<compile_context>
chip_gen: v7x
topology: tpu7x:2x2x1
jax: 0.10.0
libtpu: 0.0.40
codegen_flags: <defaults>
</compile_context>

<pallas_src>
import functools

import jax
import jax.numpy as jnp
from jax.experimental import pallas as pl
from jax.experimental.pallas import tpu as pltpu

_EPS = 1e-5
_PADL = 16  # left padding of the W axis inside the bf16 conv2 scratch:
            # interior store at packed-sublane offset 16; slabs load at 15/16/17.


# -----------------------------------------------------------------------------
# Optional single-buffering of the resident weights (pl.Buffered(1)).
# Probed once at runtime (including a value check) so the script degrades
# gracefully to default double-buffering on jax versions that reject it.
# -----------------------------------------------------------------------------
_RESIDENT_KWARGS = None


def _resident_block_kwargs():
    global _RESIDENT_KWARGS
    if _RESIDENT_KWARGS is not None:
        return _RESIDENT_KWARGS
    try:
        w_spec = pl.BlockSpec((8, 128), lambda i: (0, 0),
                              pipeline_mode=pl.Buffered(1))

        def _probe(w_ref, x_ref, o_ref):
            o_ref[...] = x_ref[...] + w_ref[...]

        f = pl.pallas_call(
            _probe,
            out_shape=jax.ShapeDtypeStruct((16, 128), jnp.float32),
            grid=(2,),
            in_specs=[w_spec, pl.BlockSpec((8, 128), lambda i: (i, 0))],
            out_specs=pl.BlockSpec((8, 128), lambda i: (i, 0)),
        )
        out = f(jnp.full((8, 128), 2.0, jnp.float32),
                jnp.ones((16, 128), jnp.float32))
        jax.block_until_ready(out)
        ok = bool(jnp.all(out == 3.0))
        _RESIDENT_KWARGS = {"pipeline_mode": pl.Buffered(1)} if ok else {}
    except Exception:  # any construction/lowering failure -> default buffering
        _RESIDENT_KWARGS = {}
    return _RESIDENT_KWARGS


def _resident_spec(shape, kwargs):
    zero = (0,) * len(shape)
    return pl.BlockSpec(shape, lambda n, _z=zero: _z, **kwargs)


# -----------------------------------------------------------------------------
# Fused kernel: two bottlenecks back-to-back on a B_TILE x H x Wp x C tile.
# -----------------------------------------------------------------------------
def _bottleneck(x2d, w1_ref, b1_ref, w2_ref, b2_ref, w3_ref, b3_ref,
                pad_ref, acc_ref, *, B, H, Wp, w_valid):
    """One bottleneck on a (M, C) bf16 activation. Returns (M, C) bf16."""
    M = B * H * Wp
    width = w1_ref.shape[1]

    # ---- conv1 (1x1) + BN + ReLU : bf16 MXU, f32 accumulate ---------------
    t1 = jnp.dot(x2d, w1_ref[...], preferred_element_type=jnp.float32)
    t1 = jnp.maximum(t1 + b1_ref[...], 0.0).reshape(B, H, Wp, width)
    if w_valid < Wp:
        # W was padded up to a multiple of 8 in the wrapper: the padded
        # columns must behave as conv2 zero padding.
        col = jax.lax.broadcasted_iota(jnp.int32, (1, 1, Wp, 1), 2)
        t1 = jnp.where(col < w_valid, t1, 0.0)
    # Single bf16 cast; aligned interior store at sublane offset _PADL.
    pad_ref[:, pl.ds(1, H), pl.ds(_PADL, Wp), :] = t1.astype(jnp.bfloat16)

    # ---- conv2 (3x3, pad=1, stride=1): 3 column slabs x 3 row taps ---------
    # dx-outer: only the 3 slab extractions touch a shifted sublane offset;
    # the per-dy slices are free leading-dim selects on the slab value.
    for dx in range(3):
        slab = pad_ref[:, :, pl.ds(_PADL - 1 + dx, Wp), :]  # (B, H+2, Wp, width)
        for dy in range(3):
            tap = slab[:, dy:dy + H].reshape(M, width)       # bf16
            contrib = jnp.dot(tap, w2_ref[dy * 3 + dx],
                              preferred_element_type=jnp.float32)
            if dx == 0 and dy == 0:
                acc_ref[...] = contrib
            else:
                acc_ref[...] += contrib
    t2 = jnp.maximum(acc_ref[...] + b2_ref[...], 0.0).astype(jnp.bfloat16)

    # ---- conv3 (1x1) + BN + identity + ReLU --------------------------------
    a3 = jnp.dot(t2, w3_ref[...], preferred_element_type=jnp.float32)
    a3 = a3 + b3_ref[...] + x2d.astype(jnp.float32)
    return jnp.maximum(a3, 0.0).astype(jnp.bfloat16)


def _layer4_tail_kernel(x_ref,
                        w1a_ref, b1a_ref, w2a_ref, b2a_ref, w3a_ref, b3a_ref,
                        w1b_ref, b1b_ref, w2b_ref, b2b_ref, w3b_ref, b3b_ref,
                        o_ref, pad_ref, acc_ref, *, w_valid):
    B, H, Wp, C = x_ref.shape
    width = pad_ref.shape[-1]

    # Zero only the 1-element conv2 halo frame around the interior (the
    # interior is fully overwritten below; columns < _PADL-1 are never read).
    # Done every step so correctness is independent of megacore grid sharding.
    zrow = jnp.zeros((B, 1, Wp + 2, width), pad_ref.dtype)
    zcol = jnp.zeros((B, H + 2, 1, width), pad_ref.dtype)
    pad_ref[:, pl.ds(0, 1), pl.ds(_PADL - 1, Wp + 2), :] = zrow
    pad_ref[:, pl.ds(H + 1, 1), pl.ds(_PADL - 1, Wp + 2), :] = zrow
    pad_ref[:, :, pl.ds(_PADL - 1, 1), :] = zcol
    pad_ref[:, :, pl.ds(_PADL + Wp, 1), :] = zcol

    x2d = x_ref[...].reshape(B * H * Wp, C)                   # bf16 (M, C)
    y = _bottleneck(x2d, w1a_ref, b1a_ref, w2a_ref, b2a_ref, w3a_ref, b3a_ref,
                    pad_ref, acc_ref, B=B, H=H, Wp=Wp, w_valid=w_valid)
    y = _bottleneck(y, w1b_ref, b1b_ref, w2b_ref, b2b_ref, w3b_ref, b3b_ref,
                    pad_ref, acc_ref, B=B, H=H, Wp=Wp, w_valid=w_valid)
    o_ref[...] = y.reshape(B, H, Wp, C)


# -----------------------------------------------------------------------------
# pallas_call wrapper
# -----------------------------------------------------------------------------
def _pick_b_tile(n, rows_per_image, min_rows=128):
    """Smallest batch tile filling >=min_rows matmul rows while keeping >=2
    grid steps when N allows (so both TensorCores get work on megacore)."""
    divisors = [d for d in range(1, n + 1) if n % d == 0]
    usable = [d for d in divisors if n // d >= 2] or divisors
    for d in usable:
        if d * rows_per_image >= min_rows:
            return d
    return usable[-1]


def layer4_tail_forward(x_nhwc, p0, p1, *, w_valid=None, b_tile=None,
                        vmem_limit_bytes=48 * 1024 * 1024):
    """Both fused bottlenecks. x_nhwc: (N, H, Wp, C) bf16 with Wp % 8 == 0."""
    N, H, Wp, C = x_nhwc.shape
    width = p0["w1"].shape[1]
    if w_valid is None:
        w_valid = Wp
    if b_tile is None:
        b_tile = _pick_b_tile(N, H * Wp)
    assert N % b_tile == 0, (N, b_tile)
    M = b_tile * H * Wp

    resident = _resident_block_kwargs()

    def param_specs():
        return [
            _resident_spec((C, width), resident),            # w1 (resident)
            pl.BlockSpec((1, width), lambda n: (0, 0)),       # b1
            _resident_spec((9, width, width), resident),      # w2 (resident)
            pl.BlockSpec((1, width), lambda n: (0, 0)),       # b2
            _resident_spec((width, C), resident),              # w3 (resident)
            pl.BlockSpec((1, C), lambda n: (0, 0)),            # b3
        ]

    flops = 2 * 2 * N * H * Wp * (C * width + 9 * width * width + width * C)
    bytes_accessed = int(
        2 * x_nhwc.size * 2                                    # x in + out (bf16)
        + 2 * (p0["w1"].size + p0["w2"].size + p0["w3"].size) * 2
        + 2 * (p0["b1"].size + p0["b2"].size + p0["b3"].size) * 4)

    kernel = functools.partial(_layer4_tail_kernel, w_valid=w_valid)

    return pl.pallas_call(
        kernel,
        out_shape=jax.ShapeDtypeStruct((N, H, Wp, C), jnp.bfloat16),
        grid=(N // b_tile,),
        in_specs=([pl.BlockSpec((b_tile, H, Wp, C), lambda n: (n, 0, 0, 0))]
                  + param_specs() + param_specs()),
        out_specs=pl.BlockSpec((b_tile, H, Wp, C), lambda n: (n, 0, 0, 0)),
        scratch_shapes=[
            pltpu.VMEM((b_tile, H + 2, _PADL + Wp + 1, width), jnp.bfloat16),
            pltpu.VMEM((M, width), jnp.float32),
        ],
        input_output_aliases={0: 0},   # x is dead after the block-1 residual
        compiler_params=pltpu.CompilerParams(
            dimension_semantics=("parallel",),        # shard images over TCs
            vmem_limit_bytes=vmem_limit_bytes),       # single-buffered weights
        cost_estimate=pl.CostEstimate(
            flops=flops, transcendentals=0, bytes_accessed=bytes_accessed),
    )(x_nhwc,
      p0["w1"], p0["b1"], p0["w2"], p0["b2"], p0["w3"], p0["b3"],
      p1["w1"], p1["b1"], p1["w2"], p1["b2"], p1["w3"], p1["b3"])


# -----------------------------------------------------------------------------
# Parameter preparation: fold eval-mode BN into conv weights, cast once to bf16
# -----------------------------------------------------------------------------
def fold_bn(w, gamma, beta, mean, var):
    scale = gamma / jnp.sqrt(var + _EPS)            # (Cout,)
    return w * scale[:, None, None, None], beta - mean * scale


def prepare_block_params(raw):
    """Fold BN and convert weights to kernel layouts/dtypes (done once)."""
    w1f, b1 = fold_bn(raw["conv1_w"], *raw["bn1"])
    w2f, b2 = fold_bn(raw["conv2_w"], *raw["bn2"])
    w3f, b3 = fold_bn(raw["conv3_w"], *raw["bn3"])
    width, C = w1f.shape[0], w1f.shape[1]
    return {
        # (Cout, Cin, 1, 1) -> (Cin, Cout)
        "w1": jnp.transpose(w1f[:, :, 0, 0], (1, 0)).astype(jnp.bfloat16),
        "b1": b1.reshape(1, width).astype(jnp.float32),
        # (Cout, Cin, 3, 3) -> (ky, kx, Cin, Cout) -> (9, Cin, Cout)
        "w2": jnp.transpose(w2f, (2, 3, 1, 0)).reshape(9, width, width)
                 .astype(jnp.bfloat16),
        "b2": b2.reshape(1, width).astype(jnp.float32),
        "w3": jnp.transpose(w3f[:, :, 0, 0], (1, 0)).astype(jnp.bfloat16),
        "b3": b3.reshape(1, C).astype(jnp.float32),
    }


def resnet50_start_at_layer4_1(x_nchw, params, *, b_tile=None):
    """Forward of the chopped model: layer4 blocks [1:] (two bottlenecks)."""
    assert len(params) == 2
    N, C, H, W = x_nchw.shape
    Wp = -(-W // 8) * 8      # lane/sublane-dense W (extra columns = conv2 right
                             # padding; cropped below — handles the real 7x7)
    x = jnp.transpose(x_nchw, (0, 2, 3, 1)).astype(jnp.bfloat16)  # NCHW->NHWC
    if Wp != W:
        x = jnp.pad(x, ((0, 0), (0, 0), (0, Wp - W), (0, 0)))
    y = layer4_tail_forward(x, params[0], params[1], w_valid=W, b_tile=b_tile)
    if Wp != W:
        y = y[:, :, :W, :]
    return jnp.transpose(y, (0, 3, 1, 2)).astype(jnp.float32)     # NHWC->NCHW


# -----------------------------------------------------------------------------
# Pure-JAX reference with identical numerics (bf16 MXU inputs, f32 accumulate)
# -----------------------------------------------------------------------------
def _ref_forward(x_nchw, params):
    x = jnp.transpose(x_nchw, (0, 2, 3, 1)).astype(jnp.bfloat16)
    for p in params:
        N, H, W, C = x.shape
        width = p["w1"].shape[1]
        x2d = x.reshape(-1, C)
        t1 = jnp.maximum(
            jnp.dot(x2d, p["w1"], preferred_element_type=jnp.float32)
            + p["b1"], 0.0)
        t1p = jnp.pad(t1.reshape(N, H, W, width),
                      ((0, 0), (1, 1), (1, 1), (0, 0)))
        acc2 = jnp.zeros((N * H * W, width), jnp.float32)
        for dy in range(3):
            for dx in range(3):
                tap = t1p[:, dy:dy + H, dx:dx + W, :].reshape(-1, width)
                acc2 = acc2 + jnp.dot(tap.astype(jnp.bfloat16),
                                      p["w2"][dy * 3 + dx],
                                      preferred_element_type=jnp.float32)
        t2 = jnp.maximum(acc2 + p["b2"], 0.0).astype(jnp.bfloat16)
        a3 = (jnp.dot(t2, p["w3"], preferred_element_type=jnp.float32)
              + p["b3"] + x2d.astype(jnp.float32))
        x = jnp.maximum(a3, 0.0).astype(jnp.bfloat16).reshape(N, H, W, C)
    return jnp.transpose(x, (0, 3, 1, 2)).astype(jnp.float32)


# -----------------------------------------------------------------------------
if __name__ == "__main__":
    # Small-but-representative bottleneck shapes (expansion = 4, width = C//4).
    # C and width are multiples of 128 (lane-dense), and with B_TILE=2 each
    # grid step runs M = 128-row matmuls over a 2-step grid (both TCs busy).
    # Real layer4 is C=2048, width=512, 7x7 — same kernel; the wrapper pads
    # W 7->8 and crops afterwards.
    N, C, H, W = 4, 512, 8, 8
    WIDTH = C // 4

    root = jax.random.PRNGKey(0)
    kx, kb1, kb2 = jax.random.split(root, 3)
    x = jax.random.normal(kx, (N, C, H, W), jnp.float32)

    def make_raw(key, inplanes, width):
        ks = jax.random.split(key, 15)

        def bn(k0, k1, k2, k3, c):
            return (jax.random.uniform(k0, (c,), jnp.float32, 0.5, 1.5),
                    0.05 * jax.random.normal(k1, (c,), jnp.float32),
                    0.05 * jax.random.normal(k2, (c,), jnp.float32),
                    jax.random.uniform(k3, (c,), jnp.float32, 0.5, 1.5))

        return {
            "conv1_w": 0.05 * jax.random.normal(
                ks[0], (width, inplanes, 1, 1), jnp.float32),
            "conv2_w": 0.05 * jax.random.normal(
                ks[1], (width, width, 3, 3), jnp.float32),
            "conv3_w": 0.05 * jax.random.normal(
                ks[2], (inplanes, width, 1, 1), jnp.float32),
            "bn1": bn(ks[3], ks[4], ks[5], ks[6], width),
            "bn2": bn(ks[7], ks[8], ks[9], ks[10], width),
            "bn3": bn(ks[11], ks[12], ks[13], ks[14], inplanes),
        }

    params = [prepare_block_params(make_raw(kb1, C, WIDTH)),   # layer4.1
              prepare_block_params(make_raw(kb2, C, WIDTH))]   # layer4.2

    _resident_block_kwargs()   # probe Buffered(1) support once, outside jit

    fwd = jax.jit(functools.partial(resnet50_start_at_layer4_1, params=params))
    out = fwd(x)
    jax.block_until_ready(out)

    ref = _ref_forward(x, params)
    assert out.shape == (N, C, H, W)
    max_err = jnp.max(jnp.abs(out - ref))
    assert jnp.allclose(out, ref, atol=2e-2, rtol=2e-2), f"max err {max_err}"

    print("KERNEL_OK")
</pallas_src>

<mosaic_0001>
module attributes {stable_mosaic.version = 11 : i64} {
  func.func @_probe(%arg0: i32, %arg1: memref<8x128xf32, #tpu.memory_space<vmem>>, %arg2: memref<8x128xf32, #tpu.memory_space<vmem>>, %arg3: memref<8x128xf32, #tpu.memory_space<vmem>>) attributes {dimension_semantics = [#tpu.dimension_semantics<arbitrary>], iteration_bounds = array<i64: 2>, scalar_prefetch = 0 : i64, scratch_operands = 0 : i64, tpu.core_type = #tpu.core_type<tc>, window_params = [{pipeline_mode = #tpu.pipeline_mode<synchronous>, transform_indices = @transform_0, window_bounds = array<i64: 8, 128>}, {transform_indices = @transform_1, window_bounds = array<i64: 8, 128>}, {transform_indices = @transform_2, window_bounds = array<i64: 8, 128>}]} {
    %c0 = arith.constant 0 : index
    %c0_0 = arith.constant 0 : index
    %0 = vector.load %arg2[%c0, %c0_0] : memref<8x128xf32, #tpu.memory_space<vmem>>, vector<8x128xf32>
    %c0_1 = arith.constant 0 : index
    %c0_2 = arith.constant 0 : index
    %1 = vector.load %arg1[%c0_1, %c0_2] : memref<8x128xf32, #tpu.memory_space<vmem>>, vector<8x128xf32>
    %2 = arith.addf %0, %1 : vector<8x128xf32>
    %c0_3 = arith.constant 0 : index
    %c0_4 = arith.constant 0 : index
    %3 = vector.load %arg3[%c0_3, %c0_4] : memref<8x128xf32, #tpu.memory_space<vmem>>, vector<8x128xf32>
    tpu.vector_store %arg3[%c0_3, %c0_4], %2 {strides = array<i32>} : memref<8x128xf32, #tpu.memory_space<vmem>>, vector<8x128xf32>,
    return
  }
  func.func @transform_0(%arg0: i32) -> (i32, i32) {
    %c0_i32 = arith.constant 0 : i32
    %c0_i32_0 = arith.constant 0 : i32
    %c0_i32_1 = arith.constant 0 : i32
    return %c0_i32, %c0_i32_0 : i32, i32
  }
  func.func @transform_1(%arg0: i32) -> (i32, i32) {
    %c0_i32 = arith.constant 0 : i32
    %c0_i32_0 = arith.constant 0 : i32
    return %arg0, %c0_i32 : i32, i32
  }
  func.func @transform_2(%arg0: i32) -> (i32, i32) {
    %c0_i32 = arith.constant 0 : i32
    %c0_i32_0 = arith.constant 0 : i32
    return %arg0, %c0_i32 : i32, i32
  }
}

module attributes {stable_mosaic.version = 11 : i64} {
  func.func @_layer4_tail_kernel(%arg0: i32, %arg1: memref<2x8x8x512xbf16, #tpu.memory_space<vmem>>, %arg2: memref<512x128xbf16, #tpu.memory_space<vmem>>, %arg3: memref<1x128xf32, #tpu.memory_space<vmem>>, %arg4: memref<9x128x128xbf16, #tpu.memory_space<vmem>>, %arg5: memref<1x128xf32, #tpu.memory_space<vmem>>, %arg6: memref<128x512xbf16, #tpu.memory_space<vmem>>, %arg7: memref<1x512xf32, #tpu.memory_space<vmem>>, %arg8: memref<512x128xbf16, #tpu.memory_space<vmem>>, %arg9: memref<1x128xf32, #tpu.memory_space<vmem>>, %arg10: memref<9x128x128xbf16, #tpu.memory_space<vmem>>, %arg11: memref<1x128xf32, #tpu.memory_space<vmem>>, %arg12: memref<128x512xbf16, #tpu.memory_space<vmem>>, %arg13: memref<1x512xf32, #tpu.memory_space<vmem>>, %arg14: memref<2x8x8x512xbf16, #tpu.memory_space<vmem>>, %arg15: memref<2x10x25x128xbf16, #tpu.memory_space<vmem>>, %arg16: memref<128x128xf32, #tpu.memory_space<vmem>>) attributes {dimension_semantics = [#tpu.dimension_semantics<parallel>], iteration_bounds = array<i64: 2>, scalar_prefetch = 0 : i64, scratch_operands = 2 : i64, tpu.core_type = #tpu.core_type<tc>, window_params = [{transform_indices = @transform_0, window_bounds = array<i64: 2, 8, 8, 512>}, {pipeline_mode = #tpu.pipeline_mode<synchronous>, transform_indices = @transform_1, window_bounds = array<i64: 512, 128>}, {pipeline_mode = #tpu.pipeline_mode<synchronous>, transform_indices = @transform_2, window_bounds = array<i64: 1, 128>}, {pipeline_mode = #tpu.pipeline_mode<synchronous>, transform_indices = @transform_3, window_bounds = array<i64: 9, 128, 128>}, {pipeline_mode = #tpu.pipeline_mode<synchronous>, transform_indices = @transform_4, window_bounds = array<i64: 1, 128>}, {pipeline_mode = #tpu.pipeline_mode<synchronous>, transform_indices = @transform_5, window_bounds = array<i64: 128, 512>}, {pipeline_mode = #tpu.pipeline_mode<synchronous>, transform_indices = @transform_6, window_bounds = array<i64: 1, 512>}, {pipeline_mode = #tpu.pipeline_mode<synchronous>, transform_indices = @transform_7, window_bounds = array<i64: 512, 128>}, {pipeline_mode = #tpu.pipeline_mode<synchronous>, transform_indices = @transform_8, window_bounds = array<i64: 1, 128>}, {pipeline_mode = #tpu.pipeline_mode<synchronous>, transform_indices = @transform_9, window_bounds = array<i64: 9, 128, 128>}, {pipeline_mode = #tpu.pipeline_mode<synchronous>, transform_indices = @transform_10, window_bounds = array<i64: 1, 128>}, {pipeline_mode = #tpu.pipeline_mode<synchronous>, transform_indices = @transform_11, window_bounds = array<i64: 128, 512>}, {pipeline_mode = #tpu.pipeline_mode<synchronous>, transform_indices = @transform_12, window_bounds = array<i64: 1, 512>}, {transform_indices = @transform_13, window_bounds = array<i64: 2, 8, 8, 512>}]} {
    %cst = arith.constant 0.000000e+00 : bf16
    %0 = vector.broadcast %cst : bf16 to vector<2x1x10x128xbf16>
    %cst_0 = arith.constant 0.000000e+00 : bf16
    %1 = vector.broadcast %cst_0 : bf16 to vector<2x10x1x128xbf16>
    %c0 = arith.constant 0 : index
    %c0_1 = arith.constant 0 : index
    %c15 = arith.constant 15 : index
    %c0_2 = arith.constant 0 : index
    %2 = vector.load %arg15[%c0, %c0_1, %c15, %c0_2] : memref<2x10x25x128xbf16, #tpu.memory_space<vmem>>, vector<2x1x10x128xbf16>
    tpu.vector_store %arg15[%c0, %c0_1, %c15, %c0_2], %0 {strides = array<i32>} : memref<2x10x25x128xbf16, #tpu.memory_space<vmem>>, vector<2x1x10x128xbf16>,
    %c0_3 = arith.constant 0 : index
    %c9 = arith.constant 9 : index
    %c15_4 = arith.constant 15 : index
    %c0_5 = arith.constant 0 : index
    %3 = vector.load %arg15[%c0_3, %c9, %c15_4, %c0_5] : memref<2x10x25x128xbf16, #tpu.memory_space<vmem>>, vector<2x1x10x128xbf16>
    tpu.vector_store %arg15[%c0_3, %c9, %c15_4, %c0_5], %0 {strides = array<i32>} : memref<2x10x25x128xbf16, #tpu.memory_space<vmem>>, vector<2x1x10x128xbf16>,
    %c0_6 = arith.constant 0 : index
    %c0_7 = arith.constant 0 : index
    %c15_8 = arith.constant 15 : index
    %c0_9 = arith.constant 0 : index
    %4 = vector.load %arg15[%c0_6, %c0_7, %c15_8, %c0_9] : memref<2x10x25x128xbf16, #tpu.memory_space<vmem>>, vector<2x10x1x128xbf16>
    tpu.vector_store %arg15[%c0_6, %c0_7, %c15_8, %c0_9], %1 {strides = array<i32>} : memref<2x10x25x128xbf16, #tpu.memory_space<vmem>>, vector<2x10x1x128xbf16>,
    %c0_10 = arith.constant 0 : index
    %c0_11 = arith.constant 0 : index
    %c24 = arith.constant 24 : index
    %c0_12 = arith.constant 0 : index
    %5 = vector.load %arg15[%c0_10, %c0_11, %c24, %c0_12] : memref<2x10x25x128xbf16, #tpu.memory_space<vmem>>, vector<2x10x1x128xbf16>
    tpu.vector_store %arg15[%c0_10, %c0_11, %c24, %c0_12], %1 {strides = array<i32>} : memref<2x10x25x128xbf16, #tpu.memory_space<vmem>>, vector<2x10x1x128xbf16>,
    %c0_13 = arith.constant 0 : index
    %c0_14 = arith.constant 0 : index
    %c0_15 = arith.constant 0 : index
    %c0_16 = arith.constant 0 : index
    %6 = vector.load %arg1[%c0_13, %c0_14, %c0_15, %c0_16] : memref<2x8x8x512xbf16, #tpu.memory_space<vmem>>, vector<2x8x8x512xbf16>
    %7 = vector.shape_cast %6 : vector<2x8x8x512xbf16> to vector<128x512xbf16>
    %c0_17 = arith.constant 0 : index
    %c0_18 = arith.constant 0 : index
    %8 = vector.load %arg2[%c0_17, %c0_18] : memref<512x128xbf16, #tpu.memory_space<vmem>>, vector<512x128xbf16>
    %cst_19 = arith.constant dense<0.000000e+00> : vector<128x128xf32>
    %9 = tpu.matmul %7, %8, %cst_19 {dimension_numbers = #tpu.dot_dimension_numbers<[1], [0], [0], [1], [0, 0, 1, 1], [], []>} : vector<128x512xbf16>, vector<512x128xbf16>, vector<128x128xf32> -> vector<128x128xf32>
    %c0_20 = arith.constant 0 : index
    %c0_21 = arith.constant 0 : index
    %10 = vector.load %arg3[%c0_20, %c0_21] : memref<1x128xf32, #tpu.memory_space<vmem>>, vector<1x128xf32>
    %11 = vector.broadcast %10 : vector<1x128xf32> to vector<128x128xf32>
    %12 = arith.addf %9, %11 : vector<128x128xf32>
    %cst_22 = arith.constant 0.000000e+00 : f32
    %13 = vector.broadcast %cst_22 : f32 to vector<128x128xf32>
    %14 = arith.maximumf %12, %13 : vector<128x128xf32>
    %15 = vector.shape_cast %14 : vector<128x128xf32> to vector<2x8x8x128xf32>
    %16 = arith.truncf %15 : vector<2x8x8x128xf32> to vector<2x8x8x128xbf16>
    %c0_23 = arith.constant 0 : index
    %c1 = arith.constant 1 : index
    %c16 = arith.constant 16 : index
    %c0_24 = arith.constant 0 : index
    %17 = vector.load %arg15[%c0_23, %c1, %c16, %c0_24] : memref<2x10x25x128xbf16, #tpu.memory_space<vmem>>, vector<2x8x8x128xbf16>
    tpu.vector_store %arg15[%c0_23, %c1, %c16, %c0_24], %16 {strides = array<i32>} : memref<2x10x25x128xbf16, #tpu.memory_space<vmem>>, vector<2x8x8x128xbf16>,
    %c0_25 = arith.constant 0 : index
    %c0_26 = arith.constant 0 : index
    %c15_27 = arith.constant 15 : index
    %c0_28 = arith.constant 0 : index
    %18 = vector.load %arg15[%c0_25, %c0_26, %c15_27, %c0_28] : memref<2x10x25x128xbf16, #tpu.memory_space<vmem>>, vector<2x10x8x128xbf16>
    %19 = vector.extract_strided_slice %18 {offsets = [0, 0, 0, 0], sizes = [2, 8, 8, 128], strides = [1, 1, 1, 1]} : vector<2x10x8x128xbf16> to vector<2x8x8x128xbf16>
    %20 = vector.shape_cast %19 : vector<2x8x8x128xbf16> to vector<128x128xbf16>
    %c0_29 = arith.constant 0 : index
    %c0_30 = arith.constant 0 : index
    %c0_31 = arith.constant 0 : index
    %21 = vector.load %arg4[%c0_29, %c0_30, %c0_31] : memref<9x128x128xbf16, #tpu.memory_space<vmem>>, vector<1x128x128xbf16>
    %22 = vector.shape_cast %21 : vector<1x128x128xbf16> to vector<128x128xbf16>
    %cst_32 = arith.constant dense<0.000000e+00> : vector<128x128xf32>
    %23 = tpu.matmul %20, %22, %cst_32 {dimension_numbers = #tpu.dot_dimension_numbers<[1], [0], [0], [1], [0, 0, 1, 1], [], []>} : vector<128x128xbf16>, vector<128x128xbf16>, vector<128x128xf32> -> vector<128x128xf32>
    %c0_33 = arith.constant 0 : index
    %c0_34 = arith.constant 0 : index
    %24 = vector.load %arg16[%c0_33, %c0_34] : memref<128x128xf32, #tpu.memory_space<vmem>>, vector<128x128xf32>
    tpu.vector_store %arg16[%c0_33, %c0_34], %23 {strides = array<i32>} : memref<128x128xf32, #tpu.memory_space<vmem>>, vector<128x128xf32>,
    %25 = vector.extract_strided_slice %18 {offsets = [0, 1, 0, 0], sizes = [2, 8, 8, 128], strides = [1, 1, 1, 1]} : vector<2x10x8x128xbf16> to vector<2x8x8x128xbf16>
    %26 = vector.shape_cast %25 : vector<2x8x8x128xbf16> to vector<128x128xbf16>
    %c3 = arith.constant 3 : index
    %c0_35 = arith.constant 0 : index
    %c0_36 = arith.constant 0 : index
    %27 = vector.load %arg4[%c3, %c0_35, %c0_36] : memref<9x128x128xbf16, #tpu.memory_space<vmem>>, vector<1x128x128xbf16>
    %28 = vector.shape_cast %27 : vector<1x128x128xbf16> to vector<128x128xbf16>
    %cst_37 = arith.constant dense<0.000000e+00> : vector<128x128xf32>
    %29 = tpu.matmul %26, %28, %cst_37 {dimension_numbers = #tpu.dot_dimension_numbers<[1], [0], [0], [1], [0, 0, 1, 1], [], []>} : vector<128x128xbf16>, vector<128x128xbf16>, vector<128x128xf32> -> vector<128x128xf32>
    %c0_38 = arith.constant 0 : index
    %c0_39 = arith.constant 0 : index
    %30 = vector.load %arg16[%c0_38, %c0_39] : memref<128x128xf32, #tpu.memory_space<vmem>>, vector<128x128xf32>
    %31 = arith.addf %30, %29 : vector<128x128xf32>
    %c0_40 = arith.constant 0 : index
    %c0_41 = arith.constant 0 : index
    %32 = vector.load %arg16[%c0_40, %c0_41] : memref<128x128xf32, #tpu.memory_space<vmem>>, vector<128x128xf32>
    tpu.vector_store %arg16[%c0_40, %c0_41], %31 {strides = array<i32>} : memref<128x128xf32, #tpu.memory_space<vmem>>, vector<128x128xf32>,
    %33 = vector.extract_strided_slice %18 {offsets = [0, 2, 0, 0], sizes = [2, 8, 8, 128], strides = [1, 1, 1, 1]} : vector<2x10x8x128xbf16> to vector<2x8x8x128xbf16>
    %34 = vector.shape_cast %33 : vector<2x8x8x128xbf16> to vector<128x128xbf16>
    %c6 = arith.constant 6 : index
    %c0_42 = arith.constant 0 : index
    %c0_43 = arith.constant 0 : index
    %35 = vector.load %arg4[%c6, %c0_42, %c0_43] : memref<9x128x128xbf16, #tpu.memory_space<vmem>>, vector<1x128x128xbf16>
    %36 = vector.shape_cast %35 : vector<1x128x128xbf16> to vector<128x128xbf16>
    %cst_44 = arith.constant dense<0.000000e+00> : vector<128x128xf32>
    %37 = tpu.matmul %34, %36, %cst_44 {dimension_numbers = #tpu.dot_dimension_numbers<[1], [0], [0], [1], [0, 0, 1, 1], [], []>} : vector<128x128xbf16>, vector<128x128xbf16>, vector<128x128xf32> -> vector<128x128xf32>
    %c0_45 = arith.constant 0 : index
    %c0_46 = arith.constant 0 : index
    %38 = vector.load %arg16[%c0_45, %c0_46] : memref<128x128xf32, #tpu.memory_space<vmem>>, vector<128x128xf32>
    %39 = arith.addf %38, %37 : vector<128x128xf32>
    %c0_47 = arith.constant 0 : index
    %c0_48 = arith.constant 0 : index
    %40 = vector.load %arg16[%c0_47, %c0_48] : memref<128x128xf32, #tpu.memory_space<vmem>>, vector<128x128xf32>
    tpu.vector_store %arg16[%c0_47, %c0_48], %39 {strides = array<i32>} : memref<128x128xf32, #tpu.memory_space<vmem>>, vector<128x128xf32>,
    %c0_49 = arith.constant 0 : index
    %c0_50 = arith.constant 0 : index
    %c16_51 = arith.constant 16 : index
    %c0_52 = arith.constant 0 : index
    %41 = vector.load %arg15[%c0_49, %c0_50, %c16_51, %c0_52] : memref<2x10x25x128xbf16, #tpu.memory_space<vmem>>, vector<2x10x8x128xbf16>
    %42 = vector.extract_strided_slice %41 {offsets = [0, 0, 0, 0], sizes = [2, 8, 8, 128], strides = [1, 1, 1, 1]} : vector<2x10x8x128xbf16> to vector<2x8x8x128xbf16>
    %43 = vector.shape_cast %42 : vector<2x8x8x128xbf16> to vector<128x128xbf16>
    %c1_53 = arith.constant 1 : index
    %c0_54 = arith.constant 0 : index
    %c0_55 = arith.constant 0 : index
    %44 = vector.load %arg4[%c1_53, %c0_54, %c0_55] : memref<9x128x128xbf16, #tpu.memory_space<vmem>>, vector<1x128x128xbf16>
    %45 = vector.shape_cast %44 : vector<1x128x128xbf16> to vector<128x128xbf16>
    %cst_56 = arith.constant dense<0.000000e+00> : vector<128x128xf32>
    %46 = tpu.matmul %43, %45, %cst_56 {dimension_numbers = #tpu.dot_dimension_numbers<[1], [0], [0], [1], [0, 0, 1, 1], [], []>} : vector<128x128xbf16>, vector<128x128xbf16>, vector<128x128xf32> -> vector<128x128xf32>
    %c0_57 = arith.constant 0 : index
    %c0_58 = arith.constant 0 : index
    %47 = vector.load %arg16[%c0_57, %c0_58] : memref<128x128xf32, #tpu.memory_space<vmem>>, vector<128x128xf32>
    %48 = arith.addf %47, %46 : vector<128x128xf32>
    %c0_59 = arith.constant 0 : index
    %c0_60 = arith.constant 0 : index
    %49 = vector.load %arg16[%c0_59, %c0_60] : memref<128x128xf32, #tpu.memory_space<vmem>>, vector<128x128xf32>
    tpu.vector_store %arg16[%c0_59, %c0_60], %48 {strides = array<i32>} : memref<128x128xf32, #tpu.memory_space<vmem>>, vector<128x128xf32>,
    %50 = vector.extract_strided_slice %41 {offsets = [0, 1, 0, 0], sizes = [2, 8, 8, 128], strides = [1, 1, 1, 1]} : vector<2x10x8x128xbf16> to vector<2x8x8x128xbf16>
    %51 = vector.shape_cast %50 : vector<2x8x8x128xbf16> to vector<128x128xbf16>
    %c4 = arith.constant 4 : index
    %c0_61 = arith.constant 0 : index
    %c0_62 = arith.constant 0 : index
    %52 = vector.load %arg4[%c4, %c0_61, %c0_62] : memref<9x128x128xbf16, #tpu.memory_space<vmem>>, vector<1x128x128xbf16>
    %53 = vector.shape_cast %52 : vector<1x128x128xbf16> to vector<128x128xbf16>
    %cst_63 = arith.constant dense<0.000000e+00> : vector<128x128xf32>
    %54 = tpu.matmul %51, %53, %cst_63 {dimension_numbers = #tpu.dot_dimension_numbers<[1], [0], [0], [1], [0, 0, 1, 1], [], []>} : vector<128x128xbf16>, vector<128x128xbf16>, vector<128x128xf32> -> vector<128x128xf32>
    %c0_64 = arith.constant 0 : index
    %c0_65 = arith.constant 0 : index
    %55 = vector.load %arg16[%c0_64, %c0_65] : memref<128x128xf32, #tpu.memory_space<vmem>>, vector<128x128xf32>
    %56 = arith.addf %55, %54 : vector<128x128xf32>
    %c0_66 = arith.constant 0 : index
    %c0_67 = arith.constant 0 : index
    %57 = vector.load %arg16[%c0_66, %c0_67] : memref<128x128xf32, #tpu.memory_space<vmem>>, vector<128x128xf32>
    tpu.vector_store %arg16[%c0_66, %c0_67], %56 {strides = array<i32>} : memref<128x128xf32, #tpu.memory_space<vmem>>, vector<128x128xf32>,
    %58 = vector.extract_strided_slice %41 {offsets = [0, 2, 0, 0], sizes = [2, 8, 8, 128], strides = [1, 1, 1, 1]} : vector<2x10x8x128xbf16> to vector<2x8x8x128xbf16>
    %59 = vector.shape_cast %58 : vector<2x8x8x128xbf16> to vector<128x128xbf16>
    %c7 = arith.constant 7 : index
    %c0_68 = arith.constant 0 : index
    %c0_69 = arith.constant 0 : index
    %60 = vector.load %arg4[%c7, %c0_68, %c0_69] : memref<9x128x128xbf16, #tpu.memory_space<vmem>>, vector<1x128x128xbf16>
    %61 = vector.shape_cast %60 : vector<1x128x128xbf16> to vector<128x128xbf16>
    %cst_70 = arith.constant dense<0.000000e+00> : vector<128x128xf32>
    %62 = tpu.matmul %59, %61, %cst_70 {dimension_numbers = #tpu.dot_dimension_numbers<[1], [0], [0], [1], [0, 0, 1, 1], [], []>} : vector<128x128xbf16>, vector<128x128xbf16>, vector<128x128xf32> -> vector<128x128xf32>
    %c0_71 = arith.constant 0 : index
    %c0_72 = arith.constant 0 : index
    %63 = vector.load %arg16[%c0_71, %c0_72] : memref<128x128xf32, #tpu.memory_space<vmem>>, vector<128x128xf32>
    %64 = arith.addf %63, %62 : vector<128x128xf32>
    %c0_73 = arith.constant 0 : index
    %c0_74 = arith.constant 0 : index
    %65 = vector.load %arg16[%c0_73, %c0_74] : memref<128x128xf32, #tpu.memory_space<vmem>>, vector<128x128xf32>
    tpu.vector_store %arg16[%c0_73, %c0_74], %64 {strides = array<i32>} : memref<128x128xf32, #tpu.memory_space<vmem>>, vector<128x128xf32>,
    %c0_75 = arith.constant 0 : index
    %c0_76 = arith.constant 0 : index
    %c17 = arith.constant 17 : index
    %c0_77 = arith.constant 0 : index
    %66 = vector.load %arg15[%c0_75, %c0_76, %c17, %c0_77] : memref<2x10x25x128xbf16, #tpu.memory_space<vmem>>, vector<2x10x8x128xbf16>
    %67 = vector.extract_strided_slice %66 {offsets = [0, 0, 0, 0], sizes = [2, 8, 8, 128], strides = [1, 1, 1, 1]} : vector<2x10x8x128xbf16> to vector<2x8x8x128xbf16>
    %68 = vector.shape_cast %67 : vector<2x8x8x128xbf16> to vector<128x128xbf16>
    %c2 = arith.constant 2 : index
    %c0_78 = arith.constant 0 : index
    %c0_79 = arith.constant 0 : index
    %69 = vector.load %arg4[%c2, %c0_78, %c0_79] : memref<9x128x128xbf16, #tpu.memory_space<vmem>>, vector<1x128x128xbf16>
    %70 = vector.shape_cast %69 : vector<1x128x128xbf16> to vector<128x128xbf16>
    %cst_80 = arith.constant dense<0.000000e+00> : vector<128x128xf32>
    %71 = tpu.matmul %68, %70, %cst_80 {dimension_numbers = #tpu.dot_dimension_numbers<[1], [0], [0], [1], [0, 0, 1, 1], [], []>} : vector<128x128xbf16>, vector<128x128xbf16>, vector<128x128xf32> -> vector<128x128xf32>
    %c0_81 = arith.constant 0 : index
    %c0_82 = arith.constant 0 : index
    %72 = vector.load %arg16[%c0_81, %c0_82] : memref<128x128xf32, #tpu.memory_space<vmem>>, vector<128x128xf32>
    %73 = arith.addf %72, %71 : vector<128x128xf32>
    %c0_83 = arith.constant 0 : index
    %c0_84 = arith.constant 0 : index
    %74 = vector.load %arg16[%c0_83, %c0_84] : memref<128x128xf32, #tpu.memory_space<vmem>>, vector<128x128xf32>
    tpu.vector_store %arg16[%c0_83, %c0_84], %73 {strides = array<i32>} : memref<128x128xf32, #tpu.memory_space<vmem>>, vector<128x128xf32>,
    %75 = vector.extract_strided_slice %66 {offsets = [0, 1, 0, 0], sizes = [2, 8, 8, 128], strides = [1, 1, 1, 1]} : vector<2x10x8x128xbf16> to vector<2x8x8x128xbf16>
    %76 = vector.shape_cast %75 : vector<2x8x8x128xbf16> to vector<128x128xbf16>
    %c5 = arith.constant 5 : index
    %c0_85 = arith.constant 0 : index
    %c0_86 = arith.constant 0 : index
    %77 = vector.load %arg4[%c5, %c0_85, %c0_86] : memref<9x128x128xbf16, #tpu.memory_space<vmem>>, vector<1x128x128xbf16>
    %78 = vector.shape_cast %77 : vector<1x128x128xbf16> to vector<128x128xbf16>
    %cst_87 = arith.constant dense<0.000000e+00> : vector<128x128xf32>
    %79 = tpu.matmul %76, %78, %cst_87 {dimension_numbers = #tpu.dot_dimension_numbers<[1], [0], [0], [1], [0, 0, 1, 1], [], []>} : vector<128x128xbf16>, vector<128x128xbf16>, vector<128x128xf32> -> vector<128x128xf32>
    %c0_88 = arith.constant 0 : index
    %c0_89 = arith.constant 0 : index
    %80 = vector.load %arg16[%c0_88, %c0_89] : memref<128x128xf32, #tpu.memory_space<vmem>>, vector<128x128xf32>
    %81 = arith.addf %80, %79 : vector<128x128xf32>
    %c0_90 = arith.constant 0 : index
    %c0_91 = arith.constant 0 : index
    %82 = vector.load %arg16[%c0_90, %c0_91] : memref<128x128xf32, #tpu.memory_space<vmem>>, vector<128x128xf32>
    tpu.vector_store %arg16[%c0_90, %c0_91], %81 {strides = array<i32>} : memref<128x128xf32, #tpu.memory_space<vmem>>, vector<128x128xf32>,
    %83 = vector.extract_strided_slice %66 {offsets = [0, 2, 0, 0], sizes = [2, 8, 8, 128], strides = [1, 1, 1, 1]} : vector<2x10x8x128xbf16> to vector<2x8x8x128xbf16>
    %84 = vector.shape_cast %83 : vector<2x8x8x128xbf16> to vector<128x128xbf16>
    %c8 = arith.constant 8 : index
    %c0_92 = arith.constant 0 : index
    %c0_93 = arith.constant 0 : index
    %85 = vector.load %arg4[%c8, %c0_92, %c0_93] : memref<9x128x128xbf16, #tpu.memory_space<vmem>>, vector<1x128x128xbf16>
    %86 = vector.shape_cast %85 : vector<1x128x128xbf16> to vector<128x128xbf16>
    %cst_94 = arith.constant dense<0.000000e+00> : vector<128x128xf32>
    %87 = tpu.matmul %84, %86, %cst_94 {dimension_numbers = #tpu.dot_dimension_numbers<[1], [0], [0], [1], [0, 0, 1, 1], [], []>} : vector<128x128xbf16>, vector<128x128xbf16>, vector<128x128xf32> -> vector<128x128xf32>
    %c0_95 = arith.constant 0 : index
    %c0_96 = arith.constant 0 : index
    %88 = vector.load %arg16[%c0_95, %c0_96] : memref<128x128xf32, #tpu.memory_space<vmem>>, vector<128x128xf32>
    %89 = arith.addf %88, %87 : vector<128x128xf32>
    %c0_97 = arith.constant 0 : index
    %c0_98 = arith.constant 0 : index
    %90 = vector.load %arg16[%c0_97, %c0_98] : memref<128x128xf32, #tpu.memory_space<vmem>>, vector<128x128xf32>
    tpu.vector_store %arg16[%c0_97, %c0_98], %89 {strides = array<i32>} : memref<128x128xf32, #tpu.memory_space<vmem>>, vector<128x128xf32>,
    %c0_99 = arith.constant 0 : index
    %c0_100 = arith.constant 0 : index
    %91 = vector.load %arg16[%c0_99, %c0_100] : memref<128x128xf32, #tpu.memory_space<vmem>>, vector<128x128xf32>
    %c0_101 = arith.constant 0 : index
    %c0_102 = arith.constant 0 : index
    %92 = vector.load %arg5[%c0_101, %c0_102] : memref<1x128xf32, #tpu.memory_space<vmem>>, vector<1x128xf32>
    %93 = vector.broadcast %92 : vector<1x128xf32> to vector<128x128xf32>
    %94 = arith.addf %91, %93 : vector<128x128xf32>
    %cst_103 = arith.constant 0.000000e+00 : f32
    %95 = vector.broadcast %cst_103 : f32 to vector<128x128xf32>
    %96 = arith.maximumf %94, %95 : vector<128x128xf32>
    %97 = arith.truncf %96 : vector<128x128xf32> to vector<128x128xbf16>
    %c0_104 = arith.constant 0 : index
    %c0_105 = arith.constant 0 : index
    %98 = vector.load %arg6[%c0_104, %c0_105] : memref<128x512xbf16, #tpu.memory_space<vmem>>, vector<128x512xbf16>
    %cst_106 = arith.constant dense<0.000000e+00> : vector<128x512xf32>
    %99 = tpu.matmul %97, %98, %cst_106 {dimension_numbers = #tpu.dot_dimension_numbers<[1], [0], [0], [1], [0, 0, 1, 1], [], []>} : vector<128x128xbf16>, vector<128x512xbf16>, vector<128x512xf32> -> vector<128x512xf32>
    %c0_107 = arith.constant 0 : index
    %c0_108 = arith.constant 0 : index
    %100 = vector.load %arg7[%c0_107, %c0_108] : memref<1x512xf32, #tpu.memory_space<vmem>>, vector<1x512xf32>
    %101 = vector.broadcast %100 : vector<1x512xf32> to vector<128x512xf32>
    %102 = arith.addf %99, %101 : vector<128x512xf32>
    %103 = arith.extf %7 : vector<128x512xbf16> to vector<128x512xf32>
    %104 = arith.addf %102, %103 : vector<128x512xf32>
    %cst_109 = arith.constant 0.000000e+00 : f32
    %105 = vector.broadcast %cst_109 : f32 to vector<128x512xf32>
    %106 = arith.maximumf %104, %105 : vector<128x512xf32>
    %107 = arith.truncf %106 : vector<128x512xf32> to vector<128x512xbf16>
    %c0_110 = arith.constant 0 : index
    %c0_111 = arith.constant 0 : index
    %108 = vector.load %arg8[%c0_110, %c0_111] : memref<512x128xbf16, #tpu.memory_space<vmem>>, vector<512x128xbf16>
    %cst_112 = arith.constant dense<0.000000e+00> : vector<128x128xf32>
    %109 = tpu.matmul %107, %108, %cst_112 {dimension_numbers = #tpu.dot_dimension_numbers<[1], [0], [0], [1], [0, 0, 1, 1], [], []>} : vector<128x512xbf16>, vector<512x128xbf16>, vector<128x128xf32> -> vector<128x128xf32>
    %c0_113 = arith.constant 0 : index
    %c0_114 = arith.constant 0 : index
    %110 = vector.load %arg9[%c0_113, %c0_114] : memref<1x128xf32, #tpu.memory_space<vmem>>, vector<1x128xf32>
    %111 = vector.broadcast %110 : vector<1x128xf32> to vector<128x128xf32>
    %112 = arith.addf %109, %111 : vector<128x128xf32>
    %cst_115 = arith.constant 0.000000e+00 : f32
    %113 = vector.broadcast %cst_115 : f32 to vector<128x128xf32>
    %114 = arith.maximumf %112, %113 : vector<128x128xf32>
    %115 = vector.shape_cast %114 : vector<128x128xf32> to vector<2x8x8x128xf32>
    %116 = arith.truncf %115 : vector<2x8x8x128xf32> to vector<2x8x8x128xbf16>
    %c0_116 = arith.constant 0 : index
    %c1_117 = arith.constant 1 : index
    %c16_118 = arith.constant 16 : index
    %c0_119 = arith.constant 0 : index
    %117 = vector.load %arg15[%c0_116, %c1_117, %c16_118, %c0_119] : memref<2x10x25x128xbf16, #tpu.memory_space<vmem>>, vector<2x8x8x128xbf16>
    tpu.vector_store %arg15[%c0_116, %c1_117, %c16_118, %c0_119], %116 {strides = array<i32>} : memref<2x10x25x128xbf16, #tpu.memory_space<vmem>>, vector<2x8x8x128xbf16>,
    %c0_120 = arith.constant 0 : index
    %c0_121 = arith.constant 0 : index
    %c15_122 = arith.constant 15 : index
    %c0_123 = arith.constant 0 : index
    %118 = vector.load %arg15[%c0_120, %c0_121, %c15_122, %c0_123] : memref<2x10x25x128xbf16, #tpu.memory_space<vmem>>, vector<2x10x8x128xbf16>
    %119 = vector.extract_strided_slice %118 {offsets = [0, 0, 0, 0], sizes = [2, 8, 8, 128], strides = [1, 1, 1, 1]} : vector<2x10x8x128xbf16> to vector<2x8x8x128xbf16>
    %120 = vector.shape_cast %119 : vector<2x8x8x128xbf16> to vector<128x128xbf16>
    %c0_124 = arith.constant 0 : index
    %c0_125 = arith.constant 0 : index
    %c0_126 = arith.constant 0 : index
    %121 = vector.load %arg10[%c0_124, %c0_125, %c0_126] : memref<9x128x128xbf16, #tpu.memory_space<vmem>>, vector<1x128x128xbf16>
    %122 = vector.shape_cast %121 : vector<1x128x128xbf16> to vector<128x128xbf16>
    %cst_127 = arith.constant dense<0.000000e+00> : vector<128x128xf32>
    %123 = tpu.matmul %120, %122, %cst_127 {dimension_numbers = #tpu.dot_dimension_numbers<[1], [0], [0], [1], [0, 0, 1, 1], [], []>} : vector<128x128xbf16>, vector<128x128xbf16>, vector<128x128xf32> -> vector<128x128xf32>
    %c0_128 = arith.constant 0 : index
    %c0_129 = arith.constant 0 : index
    %124 = vector.load %arg16[%c0_128, %c0_129] : memref<128x128xf32, #tpu.memory_space<vmem>>, vector<128x128xf32>
    tpu.vector_store %arg16[%c0_128, %c0_129], %123 {strides = array<i32>} : memref<128x128xf32, #tpu.memory_space<vmem>>, vector<128x128xf32>,
    %125 = vector.extract_strided_slice %118 {offsets = [0, 1, 0, 0], sizes = [2, 8, 8, 128], strides = [1, 1, 1, 1]} : vector<2x10x8x128xbf16> to vector<2x8x8x128xbf16>
    %126 = vector.shape_cast %125 : vector<2x8x8x128xbf16> to vector<128x128xbf16>
    %c3_130 = arith.constant 3 : index
    %c0_131 = arith.constant 0 : index
    %c0_132 = arith.constant 0 : index
    %127 = vector.load %arg10[%c3_130, %c0_131, %c0_132] : memref<9x128x128xbf16, #tpu.memory_space<vmem>>, vector<1x128x128xbf16>
    %128 = vector.shape_cast %127 : vector<1x128x128xbf16> to vector<128x128xbf16>
    %cst_133 = arith.constant dense<0.000000e+00> : vector<128x128xf32>
    %129 = tpu.matmul %126, %128, %cst_133 {dimension_numbers = #tpu.dot_dimension_numbers<[1], [0], [0], [1], [0, 0, 1, 1], [], []>} : vector<128x128xbf16>, vector<128x128xbf16>, vector<128x128xf32> -> vector<128x128xf32>
    %c0_134 = arith.constant 0 : index
    %c0_135 = arith.constant 0 : index
    %130 = vector.load %arg16[%c0_134, %c0_135] : memref<128x128xf32, #tpu.memory_space<vmem>>, vector<128x128xf32>
    %131 = arith.addf %130, %129 : vector<128x128xf32>
    %c0_136 = arith.constant 0 : index
    %c0_137 = arith.constant 0 : index
    %132 = vector.load %arg16[%c0_136, %c0_137] : memref<128x128xf32, #tpu.memory_space<vmem>>, vector<128x128xf32>
    tpu.vector_store %arg16[%c0_136, %c0_137], %131 {strides = array<i32>} : memref<128x128xf32, #tpu.memory_space<vmem>>, vector<128x128xf32>,
    %133 = vector.extract_strided_slice %118 {offsets = [0, 2, 0, 0], sizes = [2, 8, 8, 128], strides = [1, 1, 1, 1]} : vector<2x10x8x128xbf16> to vector<2x8x8x128xbf16>
    %134 = vector.shape_cast %133 : vector<2x8x8x128xbf16> to vector<128x128xbf16>
    %c6_138 = arith.constant 6 : index
    %c0_139 = arith.constant 0 : index
    %c0_140 = arith.constant 0 : index
    %135 = vector.load %arg10[%c6_138, %c0_139, %c0_140] : memref<9x128x128xbf16, #tpu.memory_space<vmem>>, vector<1x128x128xbf16>
    %136 = vector.shape_cast %135 : vector<1x128x128xbf16> to vector<128x128xbf16>
    %cst_141 = arith.constant dense<0.000000e+00> : vector<128x128xf32>
    %137 = tpu.matmul %134, %136, %cst_141 {dimension_numbers = #tpu.dot_dimension_numbers<[1], [0], [0], [1], [0, 0, 1, 1], [], []>} : vector<128x128xbf16>, vector<128x128xbf16>, vector<128x128xf32> -> vector<128x128xf32>
    %c0_142 = arith.constant 0 : index
    %c0_143 = arith.constant 0 : index
    %138 = vector.load %arg16[%c0_142, %c0_143] : memref<128x128xf32, #tpu.memory_space<vmem>>, vector<128x128xf32>
    %139 = arith.addf %138, %137 : vector<128x128xf32>
    %c0_144 = arith.constant 0 : index
    %c0_145 = arith.constant 0 : index
    %140 = vector.load %arg16[%c0_144, %c0_145] : memref<128x128xf32, #tpu.memory_space<vmem>>, vector<128x128xf32>
    tpu.vector_store %arg16[%c0_144, %c0_145], %139 {strides = array<i32>} : memref<128x128xf32, #tpu.memory_space<vmem>>, vector<128x128xf32>,
    %c0_146 = arith.constant 0 : index
    %c0_147 = arith.constant 0 : index
    %c16_148 = arith.constant 16 : index
    %c0_149 = arith.constant 0 : index
    %141 = vector.load %arg15[%c0_146, %c0_147, %c16_148, %c0_149] : memref<2x10x25x128xbf16, #tpu.memory_space<vmem>>, vector<2x10x8x128xbf16>
    %142 = vector.extract_strided_slice %141 {offsets = [0, 0, 0, 0], sizes = [2, 8, 8, 128], strides = [1, 1, 1, 1]} : vector<2x10x8x128xbf16> to vector<2x8x8x128xbf16>
    %143 = vector.shape_cast %142 : vector<2x8x8x128xbf16> to vector<128x128xbf16>
    %c1_150 = arith.constant 1 : index
    %c0_151 = arith.constant 0 : index
    %c0_152 = arith.constant 0 : index
    %144 = vector.load %arg10[%c1_150, %c0_151, %c0_152] : memref<9x128x128xbf16, #tpu.memory_space<vmem>>, vector<1x128x128xbf16>
    %145 = vector.shape_cast %144 : vector<1x128x128xbf16> to vector<128x128xbf16>
    %cst_153 = arith.constant dense<0.000000e+00> : vector<128x128xf32>
    %146 = tpu.matmul %143, %145, %cst_153 {dimension_numbers = #tpu.dot_dimension_numbers<[1], [0], [0], [1], [0, 0, 1, 1], [], []>} : vector<128x128xbf16>, vector<128x128xbf16>, vector<128x128xf32> -> vector<128x128xf32>
    %c0_154 = arith.constant 0 : index
    %c0_155 = arith.constant 0 : index
    %147 = vector.load %arg16[%c0_154, %c0_155] : memref<128x128xf32, #tpu.memory_space<vmem>>, vector<128x128xf32>
    %148 = arith.addf %147, %146 : vector<128x128xf32>
    %c0_156 = arith.constant 0 : index
    %c0_157 = arith.constant 0 : index
    %149 = vector.load %arg16[%c0_156, %c0_157] : memref<128x128xf32, #tpu.memory_space<vmem>>, vector<128x128xf32>
    tpu.vector_store %arg16[%c0_156, %c0_157], %148 {strides = array<i32>} : memref<128x128xf32, #tpu.memory_space<vmem>>, vector<128x128xf32>,
    %150 = vector.extract_strided_slice %141 {offsets = [0, 1, 0, 0], sizes = [2, 8, 8, 128], strides = [1, 1, 1, 1]} : vector<2x10x8x128xbf16> to vector<2x8x8x128xbf16>
    %151 = vector.shape_cast %150 : vector<2x8x8x128xbf16> to vector<128x128xbf16>
    %c4_158 = arith.constant 4 : index
    %c0_159 = arith.constant 0 : index
    %c0_160 = arith.constant 0 : index
    %152 = vector.load %arg10[%c4_158, %c0_159, %c0_160] : memref<9x128x128xbf16, #tpu.memory_space<vmem>>, vector<1x128x128xbf16>
    %153 = vector.shape_cast %152 : vector<1x128x128xbf16> to vector<128x128xbf16>
    %cst_161 = arith.constant dense<0.000000e+00> : vector<128x128xf32>
    %154 = tpu.matmul %151, %153, %cst_161 {dimension_numbers = #tpu.dot_dimension_numbers<[1], [0], [0], [1], [0, 0, 1, 1], [], []>} : vector<128x128xbf16>, vector<128x128xbf16>, vector<128x128xf32> -> vector<128x128xf32>
    %c0_162 = arith.constant 0 : index
    %c0_163 = arith.constant 0 : index
    %155 = vector.load %arg16[%c0_162, %c0_163] : memref<128x128xf32, #tpu.memory_space<vmem>>, vector<128x128xf32>
    %156 = arith.addf %155, %154 : vector<128x128xf32>
    %c0_164 = arith.constant 0 : index
    %c0_165 = arith.constant 0 : index
    %157 = vector.load %arg16[%c0_164, %c0_165] : memref<128x128xf32, #tpu.memory_space<vmem>>, vector<128x128xf32>
    tpu.vector_store %arg16[%c0_164, %c0_165], %156 {strides = array<i32>} : memref<128x128xf32, #tpu.memory_space<vmem>>, vector<128x128xf32>,
    %158 = vector.extract_strided_slice %141 {offsets = [0, 2, 0, 0], sizes = [2, 8, 8, 128], strides = [1, 1, 1, 1]} : vector<2x10x8x128xbf16> to vector<2x8x8x128xbf16>
    %159 = vector.shape_cast %158 : vector<2x8x8x128xbf16> to vector<128x128xbf16>
    %c7_166 = arith.constant 7 : index
    %c0_167 = arith.constant 0 : index
    %c0_168 = arith.constant 0 : index
    %160 = vector.load %arg10[%c7_166, %c0_167, %c0_168] : memref<9x128x128xbf16, #tpu.memory_space<vmem>>, vector<1x128x128xbf16>
    %161 = vector.shape_cast %160 : vector<1x128x128xbf16> to vector<128x128xbf16>
    %cst_169 = arith.constant dense<0.000000e+00> : vector<128x128xf32>
    %162 = tpu.matmul %159, %161, %cst_169 {dimension_numbers = #tpu.dot_dimension_numbers<[1], [0], [0], [1], [0, 0, 1, 1], [], []>} : vector<128x128xbf16>, vector<128x128xbf16>, vector<128x128xf32> -> vector<128x128xf32>
    %c0_170 = arith.constant 0 : index
    %c0_171 = arith.constant 0 : index
    %163 = vector.load %arg16[%c0_170, %c0_171] : memref<128x128xf32, #tpu.memory_space<vmem>>, vector<128x128xf32>
    %164 = arith.addf %163, %162 : vector<128x128xf32>
    %c0_172 = arith.constant 0 : index
    %c0_173 = arith.constant 0 : index
    %165 = vector.load %arg16[%c0_172, %c0_173] : memref<128x128xf32, #tpu.memory_space<vmem>>, vector<128x128xf32>
    tpu.vector_store %arg16[%c0_172, %c0_173], %164 {strides = array<i32>} : memref<128x128xf32, #tpu.memory_space<vmem>>, vector<128x128xf32>,
    %c0_174 = arith.constant 0 : index
    %c0_175 = arith.constant 0 : index
    %c17_176 = arith.constant 17 : index
    %c0_177 = arith.constant 0 : index
    %166 = vector.load %arg15[%c0_174, %c0_175, %c17_176, %c0_177] : memref<2x10x25x128xbf16, #tpu.memory_space<vmem>>, vector<2x10x8x128xbf16>
    %167 = vector.extract_strided_slice %166 {offsets = [0, 0, 0, 0], sizes = [2, 8, 8, 128], strides = [1, 1, 1, 1]} : vector<2x10x8x128xbf16> to vector<2x8x8x128xbf16>
    %168 = vector.shape_cast %167 : vector<2x8x8x128xbf16> to vector<128x128xbf16>
    %c2_178 = arith.constant 2 : index
    %c0_179 = arith.constant 0 : index
    %c0_180 = arith.constant 0 : index
    %169 = vector.load %arg10[%c2_178, %c0_179, %c0_180] : memref<9x128x128xbf16, #tpu.memory_space<vmem>>, vector<1x128x128xbf16>
    %170 = vector.shape_cast %169 : vector<1x128x128xbf16> to vector<128x128xbf16>
    %cst_181 = arith.constant dense<0.000000e+00> : vector<128x128xf32>
    %171 = tpu.matmul %168, %170, %cst_181 {dimension_numbers = #tpu.dot_dimension_numbers<[1], [0], [0], [1], [0, 0, 1, 1], [], []>} : vector<128x128xbf16>, vector<128x128xbf16>, vector<128x128xf32> -> vector<128x128xf32>
    %c0_182 = arith.constant 0 : index
    %c0_183 = arith.constant 0 : index
    %172 = vector.load %arg16[%c0_182, %c0_183] : memref<128x128xf32, #tpu.memory_space<vmem>>, vector<128x128xf32>
    %173 = arith.addf %172, %171 : vector<128x128xf32>
    %c0_184 = arith.constant 0 : index
    %c0_185 = arith.constant 0 : index
    %174 = vector.load %arg16[%c0_184, %c0_185] : memref<128x128xf32, #tpu.memory_space<vmem>>, vector<128x128xf32>
    tpu.vector_store %arg16[%c0_184, %c0_185], %173 {strides = array<i32>} : memref<128x128xf32, #tpu.memory_space<vmem>>, vector<128x128xf32>,
    %175 = vector.extract_strided_slice %166 {offsets = [0, 1, 0, 0], sizes = [2, 8, 8, 128], strides = [1, 1, 1, 1]} : vector<2x10x8x128xbf16> to vector<2x8x8x128xbf16>
    %176 = vector.shape_cast %175 : vector<2x8x8x128xbf16> to vector<128x128xbf16>
    %c5_186 = arith.constant 5 : index
    %c0_187 = arith.constant 0 : index
    %c0_188 = arith.constant 0 : index
    %177 = vector.load %arg10[%c5_186, %c0_187, %c0_188] : memref<9x128x128xbf16, #tpu.memory_space<vmem>>, vector<1x128x128xbf16>
    %178 = vector.shape_cast %177 : vector<1x128x128xbf16> to vector<128x128xbf16>
    %cst_189 = arith.constant dense<0.000000e+00> : vector<128x128xf32>
    %179 = tpu.matmul %176, %178, %cst_189 {dimension_numbers = #tpu.dot_dimension_numbers<[1], [0], [0], [1], [0, 0, 1, 1], [], []>} : vector<128x128xbf16>, vector<128x128xbf16>, vector<128x128xf32> -> vector<128x128xf32>
    %c0_190 = arith.constant 0 : index
    %c0_191 = arith.constant 0 : index
    %180 = vector.load %arg16[%c0_190, %c0_191] : memref<128x128xf32, #tpu.memory_space<vmem>>, vector<128x128xf32>
    %181 = arith.addf %180, %179 : vector<128x128xf32>
    %c0_192 = arith.constant 0 : index
    %c0_193 = arith.constant 0 : index
    %182 = vector.load %arg16[%c0_192, %c0_193] : memref<128x128xf32, #tpu.memory_space<vmem>>, vector<128x128xf32>
    tpu.vector_store %arg16[%c0_192, %c0_193], %181 {strides = array<i32>} : memref<128x128xf32, #tpu.memory_space<vmem>>, vector<128x128xf32>,
    %183 = vector.extract_strided_slice %166 {offsets = [0, 2, 0, 0], sizes = [2, 8, 8, 128], strides = [1, 1, 1, 1]} : vector<2x10x8x128xbf16> to vector<2x8x8x128xbf16>
    %184 = vector.shape_cast %183 : vector<2x8x8x128xbf16> to vector<128x128xbf16>
    %c8_194 = arith.constant 8 : index
    %c0_195 = arith.constant 0 : index
    %c0_196 = arith.constant 0 : index
    %185 = vector.load %arg10[%c8_194, %c0_195, %c0_196] : memref<9x128x128xbf16, #tpu.memory_space<vmem>>, vector<1x128x128xbf16>
    %186 = vector.shape_cast %185 : vector<1x128x128xbf16> to vector<128x128xbf16>
    %cst_197 = arith.constant dense<0.000000e+00> : vector<128x128xf32>
    %187 = tpu.matmul %184, %186, %cst_197 {dimension_numbers = #tpu.dot_dimension_numbers<[1], [0], [0], [1], [0, 0, 1, 1], [], []>} : vector<128x128xbf16>, vector<128x128xbf16>, vector<128x128xf32> -> vector<128x128xf32>
    %c0_198 = arith.constant 0 : index
    %c0_199 = arith.constant 0 : index
    %188 = vector.load %arg16[%c0_198, %c0_199] : memref<128x128xf32, #tpu.memory_space<vmem>>, vector<128x128xf32>
    %189 = arith.addf %188, %187 : vector<128x128xf32>
    %c0_200 = arith.constant 0 : index
    %c0_201 = arith.constant 0 : index
    %190 = vector.load %arg16[%c0_200, %c0_201] : memref<128x128xf32, #tpu.memory_space<vmem>>, vector<128x128xf32>
    tpu.vector_store %arg16[%c0_200, %c0_201], %189 {strides = array<i32>} : memref<128x128xf32, #tpu.memory_space<vmem>>, vector<128x128xf32>,
    %c0_202 = arith.constant 0 : index
    %c0_203 = arith.constant 0 : index
    %191 = vector.load %arg16[%c0_202, %c0_203] : memref<128x128xf32, #tpu.memory_space<vmem>>, vector<128x128xf32>
    %c0_204 = arith.constant 0 : index
    %c0_205 = arith.constant 0 : index
    %192 = vector.load %arg11[%c0_204, %c0_205] : memref<1x128xf32, #tpu.memory_space<vmem>>, vector<1x128xf32>
    %193 = vector.broadcast %192 : vector<1x128xf32> to vector<128x128xf32>
    %194 = arith.addf %191, %193 : vector<128x128xf32>
    %cst_206 = arith.constant 0.000000e+00 : f32
    %195 = vector.broadcast %cst_206 : f32 to vector<128x128xf32>
    %196 = arith.maximumf %194, %195 : vector<128x128xf32>
    %197 = arith.truncf %196 : vector<128x128xf32> to vector<128x128xbf16>
    %c0_207 = arith.constant 0 : index
    %c0_208 = arith.constant 0 : index
    %198 = vector.load %arg12[%c0_207, %c0_208] : memref<128x512xbf16, #tpu.memory_space<vmem>>, vector<128x512xbf16>
    %cst_209 = arith.constant dense<0.000000e+00> : vector<128x512xf32>
    %199 = tpu.matmul %197, %198, %cst_209 {dimension_numbers = #tpu.dot_dimension_numbers<[1], [0], [0], [1], [0, 0, 1, 1], [], []>} : vector<128x128xbf16>, vector<128x512xbf16>, vector<128x512xf32> -> vector<128x512xf32>
    %c0_210 = arith.constant 0 : index
    %c0_211 = arith.constant 0 : index
    %200 = vector.load %arg13[%c0_210, %c0_211] : memref<1x512xf32, #tpu.memory_space<vmem>>, vector<1x512xf32>
    %201 = vector.broadcast %200 : vector<1x512xf32> to vector<128x512xf32>
    %202 = arith.addf %199, %201 : vector<128x512xf32>
    %203 = arith.extf %107 : vector<128x512xbf16> to vector<128x512xf32>
    %204 = arith.addf %202, %203 : vector<128x512xf32>
    %cst_212 = arith.constant 0.000000e+00 : f32
    %205 = vector.broadcast %cst_212 : f32 to vector<128x512xf32>
    %206 = arith.maximumf %204, %205 : vector<128x512xf32>
    %207 = arith.truncf %206 : vector<128x512xf32> to vector<128x512xbf16>
    %208 = vector.shape_cast %207 : vector<128x512xbf16> to vector<2x8x8x512xbf16>
    %c0_213 = arith.constant 0 : index
    %c0_214 = arith.constant 0 : index
    %c0_215 = arith.constant 0 : index
    %c0_216 = arith.constant 0 : index
    %209 = vector.load %arg14[%c0_213, %c0_214, %c0_215, %c0_216] : memref<2x8x8x512xbf16, #tpu.memory_space<vmem>>, vector<2x8x8x512xbf16>
    tpu.vector_store %arg14[%c0_213, %c0_214, %c0_215, %c0_216], %208 {strides = array<i32>} : memref<2x8x8x512xbf16, #tpu.memory_space<vmem>>, vector<2x8x8x512xbf16>,
    return
  }
  func.func @transform_0(%arg0: i32) -> (i32, i32, i32, i32) {
    %c0_i32 = arith.constant 0 : i32
    %c0_i32_0 = arith.constant 0 : i32
    %c0_i32_1 = arith.constant 0 : i32
    %c0_i32_2 = arith.constant 0 : i32
    return %arg0, %c0_i32, %c0_i32_0, %c0_i32_1 : i32, i32, i32, i32
  }
  func.func @transform_1(%arg0: i32) -> (i32, i32) {
    %c0_i32 = arith.constant 0 : i32
    %c0_i32_0 = arith.constant 0 : i32
    %c0_i32_1 = arith.constant 0 : i32
    return %c0_i32, %c0_i32_0 : i32, i32
  }
  func.func @transform_2(%arg0: i32) -> (i32, i32) {
    %c0_i32 = arith.constant 0 : i32
    %c0_i32_0 = arith.constant 0 : i32
    %c0_i32_1 = arith.constant 0 : i32
    return %c0_i32, %c0_i32_0 : i32, i32
  }
  func.func @transform_3(%arg0: i32) -> (i32, i32, i32) {
    %c0_i32 = arith.constant 0 : i32
    %c0_i32_0 = arith.constant 0 : i32
    %c0_i32_1 = arith.constant 0 : i32
    %c0_i32_2 = arith.constant 0 : i32
    return %c0_i32, %c0_i32_0, %c0_i32_1 : i32, i32, i32
  }
  func.func @transform_4(%arg0: i32) -> (i32, i32) {
    %c0_i32 = arith.constant 0 : i32
    %c0_i32_0 = arith.constant 0 : i32
    %c0_i32_1 = arith.constant 0 : i32
    return %c0_i32, %c0_i32_0 : i32, i32
  }
  func.func @transform_5(%arg0: i32) -> (i32, i32) {
    %c0_i32 = arith.constant 0 : i32
    %c0_i32_0 = arith.constant 0 : i32
    %c0_i32_1 = arith.constant 0 : i32
    return %c0_i32, %c0_i32_0 : i32, i32
  }
  func.func @transform_6(%arg0: i32) -> (i32, i32) {
    %c0_i32 = arith.constant 0 : i32
    %c0_i32_0 = arith.constant 0 : i32
    %c0_i32_1 = arith.constant 0 : i32
    return %c0_i32, %c0_i32_0 : i32, i32
  }
  func.func @transform_7(%arg0: i32) -> (i32, i32) {
    %c0_i32 = arith.constant 0 : i32
    %c0_i32_0 = arith.constant 0 : i32
    %c0_i32_1 = arith.constant 0 : i32
    return %c0_i32, %c0_i32_0 : i32, i32
  }
  func.func @transform_8(%arg0: i32) -> (i32, i32) {
    %c0_i32 = arith.constant 0 : i32
    %c0_i32_0 = arith.constant 0 : i32
    %c0_i32_1 = arith.constant 0 : i32
    return %c0_i32, %c0_i32_0 : i32, i32
  }
  func.func @transform_9(%arg0: i32) -> (i32, i32, i32) {
    %c0_i32 = arith.constant 0 : i32
    %c0_i32_0 = arith.constant 0 : i32
    %c0_i32_1 = arith.constant 0 : i32
    %c0_i32_2 = arith.constant 0 : i32
    return %c0_i32, %c0_i32_0, %c0_i32_1 : i32, i32, i32
  }
  func.func @transform_10(%arg0: i32) -> (i32, i32) {
    %c0_i32 = arith.constant 0 : i32
    %c0_i32_0 = arith.constant 0 : i32
    %c0_i32_1 = arith.constant 0 : i32
    return %c0_i32, %c0_i32_0 : i32, i32
  }
  func.func @transform_11(%arg0: i32) -> (i32, i32) {
    %c0_i32 = arith.constant 0 : i32
    %c0_i32_0 = arith.constant 0 : i32
    %c0_i32_1 = arith.constant 0 : i32
    return %c0_i32, %c0_i32_0 : i32, i32
  }
  func.func @transform_12(%arg0: i32) -> (i32, i32) {
    %c0_i32 = arith.constant 0 : i32
    %c0_i32_0 = arith.constant 0 : i32
    %c0_i32_1 = arith.constant 0 : i32
    return %c0_i32, %c0_i32_0 : i32, i32
  }
  func.func @transform_13(%arg0: i32) -> (i32, i32, i32, i32) {
    %c0_i32 = arith.constant 0 : i32
    %c0_i32_0 = arith.constant 0 : i32
    %c0_i32_1 = arith.constant 0 : i32
    %c0_i32_2 = arith.constant 0 : i32
    return %arg0, %c0_i32, %c0_i32_0, %c0_i32_1 : i32, i32, i32, i32
  }
}

</mosaic_0001>

<llo_original>
// kernel: tpu_custom_call.1
$region0: #{tpu_custom_call.1}
  #allocation0 [shape = 'u32[]', space=smem, size = 0x4, offset = 0x4, fixed_abs, tag = 'smem constant byte address 0x4 - core index']
  #allocation1 [shape = 'u32[144,128]{1,0:T(1,128)}', space=vmem, size = 0x12000, scoped, tag = 'internal scratch']
  %s0 = inlined_call_operand.hbm [shape: f32[8,128], index: 0, kind: input, shape index: {}]
  %s1 = inlined_call_operand.hbm [shape: f32[16,128], index: 1, kind: input, shape index: {}]
  %s2 = inlined_call_operand.hbm [shape: f32[16,128], index: 2, kind: output, shape index: {}]
  %s3 = sld [smem:[#allocation0]]
  $region49: #{tpu_custom_call.1} parent=0
    _
  %s5 = ssub.s32 1, %s3
  %s6 = scalar_select 0, %s5, %s3
  $region1: #{tpu_custom_call.1} parent=0
    #allocation2 [shape = 'u8[4096]{0}', space=vmem, size = 0x1000, scoped, tag = 'input window, operand 0, single buffered']
    #allocation3 [shape = 's32[2]{0}', space=sflag, size = 0x8, scoped, tag = 'scoped memory for tpu_custom_call.1']
    #allocation4 [shape = 's32[2]{0}', space=sflag, size = 0x8, scoped, tag = 'scoped memory for tpu_custom_call.1']
    #allocation5 [shape = 'u8[8192]{0}', space=vmem, size = 0x2000, scoped, tag = 'input window, operand 1']
    #allocation6 [shape = 's32[2]{0}', space=sflag, size = 0x8, scoped, tag = 'scoped memory for tpu_custom_call.1']
    #allocation7 [shape = 'u8[8192]{0}', space=vmem, size = 0x2000, scoped, tag = 'output window, operand 0']
    %7 = vsyncpa [#allocation3], 0
    %8 = vsyncpa [#allocation6], 0
    %s9 = scalar_lea.sflag [#allocation6], 1
    %10 = vsyncpa %s9, 0
    %11 = vsyncpa [#allocation4], 0
    %s12 = scalar_lea.sflag [#allocation4], 1
    %13 = vsyncpa %s12, 0
    loop: start=0, step=1, limit=4
    $region2: #{tpu_custom_call.1} parent=1 // loop_pre_header
      _
    $region3: #{tpu_custom_call.1} parent=1 // loop_header
      %s15 = sphi 0, %s19
      %p16 = scmp.ge.s32.totalorder %s15, 4
      %s23 = sphi 0, %s23
      %s25 = sphi 0, %s23
      %s26 = sphi 0, %s25
      %s40 = sphi 0, %s26
      %s46 = sphi 0, %s48
      %s49 = sphi 0, %s46
      %s50 = sphi 0, %s49
      %s66 = sphi 0, %s50
      %s72 = sphi 0, %s74
      %s75 = sphi 0, %s72
      %s76 = sphi 0, %s75
      %s92 = sphi 0, %s76
    $region4: #{tpu_custom_call.1} parent=1 // loop_header_branch
      %18 = sbr.rel (%p16) target = $region8
    $region5: #{tpu_custom_call.1} parent=1 // loop_body
      %s20 = ssub.s32 %s15, 1
      %s21 = ssub.s32 %s15, 2
      %s22 = sadd.s32 %s15, 1
      %s24 = sadd.s32 %s23, 1
      %p27 = scmp.eq.s32.totalorder %s15, 1
      %p28 = scmp.ne.s32.totalorder %s23, %s25
      %p29 = scmp.eq.s32.totalorder %s15, 0
      %p30 = por %p28, %p29
      %p31 = scmp.ne.s32.totalorder %s23, %s25
      %p32 = scmp.eq.s32.totalorder %s20, 1
      %p33 = por %p31, %p32
      %p34 = scmp.ne.s32.totalorder %s25, %s26
      %p35 = scmp.eq.s32.totalorder %s20, 0
      %p36 = por %p34, %p35
      %p37 = scmp.ne.s32.totalorder %s25, %s26
      %p38 = scmp.eq.s32.totalorder %s21, 1
      %p39 = por %p37, %p38
      %p41 = scmp.ne.s32.totalorder %s26, %s40
      %p42 = scmp.eq.s32.totalorder %s21, 0
      %p43 = por %p41, %p42
      %s44 = ssub.s32 %s15, %s22
      %p45 = scmp.eq.s32.totalorder %s44, 0
      %s47 = sadd.s32 %s46, 1
      %s48 = scalar_select %p45, %s46, %s47
      %p51 = pneg %p45
      %p52 = scmp.eq.s32.totalorder %s15, 1
      %p53 = por %p51, %p52
      %p54 = scmp.ne.s32.totalorder %s46, %s49
      %p55 = scmp.eq.s32.totalorder %s15, 0
      %p56 = por %p54, %p55
      %p57 = scmp.ne.s32.totalorder %s46, %s49
      %p58 = scmp.eq.s32.totalorder %s20, 1
      %p59 = por %p57, %p58
      %p60 = scmp.ne.s32.totalorder %s49, %s50
      %p61 = scmp.eq.s32.totalorder %s20, 0
      %p62 = por %p60, %p61
      %p63 = scmp.ne.s32.totalorder %s49, %s50
      %p64 = scmp.eq.s32.totalorder %s21, 1
      %p65 = por %p63, %p64
      %p67 = scmp.ne.s32.totalorder %s50, %s66
      %p68 = scmp.eq.s32.totalorder %s21, 0
      %p69 = por %p67, %p68
      %s70 = ssub.s32 %s15, %s22
      %p71 = scmp.eq.s32.totalorder %s70, 0
      %s73 = sadd.s32 %s72, 1
      %s74 = scalar_select %p71, %s72, %s73
      %p77 = pneg %p71
      %p78 = scmp.eq.s32.totalorder %s15, 1
      %p79 = por %p77, %p78
      %p80 = scmp.ne.s32.totalorder %s72, %s75
      %p81 = scmp.eq.s32.totalorder %s15, 0
      %p82 = por %p80, %p81
      %p83 = scmp.ne.s32.totalorder %s72, %s75
      %p84 = scmp.eq.s32.totalorder %s20, 1
      %p85 = por %p83, %p84
      %p86 = scmp.ne.s32.totalorder %s75, %s76
      %p87 = scmp.eq.s32.totalorder %s20, 0
      %p88 = por %p86, %p87
      %p89 = scmp.ne.s32.totalorder %s75, %s76
      %p90 = scmp.eq.s32.totalorder %s21, 1
      %p91 = por %p89, %p90
      %p93 = scmp.ne.s32.totalorder %s76, %s92
      %p94 = scmp.eq.s32.totalorder %s21, 0
      %p95 = por %p93, %p94
      %p96 = scmp.le.s32.totalorder 1, %s15
      %p97 = scmp.lt.s32.totalorder %s15, 3
      %p98 = pnand %p96, %p97
      %p99 = pneg %p98
      // Predicated region
      $region9: #{tpu_custom_call.1} parent=5 // pred_check
        _
      $region10: #{tpu_custom_call.1} parent=5 // pred_check_branch
        %101 = sbr.rel (%p98) target = $region12
      $region11: #{tpu_custom_call.1} parent=5 // pred_region
        %s102 = ssub.s32 %s15, 1
        // Predicated region
        $region13: #{tpu_custom_call.1} parent=11 // pred_check
          %p103 = pneg %p36
        $region14: #{tpu_custom_call.1} parent=11 // pred_check_branch
          %105 = sbr.rel (%p103) target = $region16
        $region15: #{tpu_custom_call.1} parent=11 // pred_region
          %s107 = ssub.s32 128, 128
          %108 = vsyncadd [#allocation3], %s107
          %s110 = sshll.u32 [#allocation2], 4
          %s111 = int_to_ptr.vmem [resolvable:$true] %s110
          %113 = dma.hbm_to_vmem [thread:$0]  %s0, 128, %s111, [#allocation3]
        $region16: #{tpu_custom_call.1} parent=11 // pred_fallthru
          _
      $region12: #{tpu_custom_call.1} parent=5 // pred_fallthru
        _
      %p114 = scmp.lt.s32.totalorder %s15, 2
      // Predicated region
      $region17: #{tpu_custom_call.1} parent=5 // pred_check
        %p115 = pneg %p114
      $region18: #{tpu_custom_call.1} parent=5 // pred_check_branch
        %117 = sbr.rel (%p115) target = $region20
      $region19: #{tpu_custom_call.1} parent=5 // pred_region
        // Predicated region
        $region21: #{tpu_custom_call.1} parent=19 // pred_check
          %p118 = pneg %p56
        $region22: #{tpu_custom_call.1} parent=19 // pred_check_branch
          %120 = sbr.rel (%p118) target = $region24
        $region23: #{tpu_custom_call.1} parent=19 // pred_region
          %s121 = sand.u32 %s46, 1
          %s122 = scalar_lea.sflag [#allocation6], %s121
          %s123 = sand.u32 %s46, 1
          %s124 = smul.addr %s123, 8
          %s125 = scalar_lea.vmem [#allocation5], %s124
          %s127 = ssub.s32 128, 128
          %128 = vsyncadd %s122, %s127
          %s129 = smul.addr %s15, 128
          %s130 = scalar_lea.hbm %s1, %s129
          %s132 = sshll.u32 %s125, 4
          %s133 = int_to_ptr.vmem [resolvable:$true] %s132
          %135 = dma.hbm_to_vmem [thread:$0]  %s130, 128, %s133, %s122
        $region24: #{tpu_custom_call.1} parent=19 // pred_fallthru
          _
      $region20: #{tpu_custom_call.1} parent=5 // pred_fallthru
        _
      %p136 = scmp.le.s32.totalorder 1, %s15
      %p137 = scmp.lt.s32.totalorder %s15, 3
      %p138 = pnand %p136, %p137
      %p139 = pneg %p138
      // Predicated region
      $region25: #{tpu_custom_call.1} parent=5 // pred_check
        _
      $region26: #{tpu_custom_call.1} parent=5 // pred_check_branch
        %141 = sbr.rel (%p138) target = $region28
      $region27: #{tpu_custom_call.1} parent=5 // pred_region
        %s142 = ssub.s32 %s15, 1
        // Predicated region
        $region29: #{tpu_custom_call.1} parent=27 // pred_check
          %p143 = pneg %p36
        $region30: #{tpu_custom_call.1} parent=27 // pred_check_branch
          %145 = sbr.rel (%p143) target = $region32
        $region31: #{tpu_custom_call.1} parent=27 // pred_region
          %146 = dma.done [#allocation3], 128
        $region32: #{tpu_custom_call.1} parent=27 // pred_fallthru
          _
        %s147 = sand.u32 %s49, 1
        %s148 = scalar_lea.sflag [#allocation6], %s147
        %s149 = sand.u32 %s49, 1
        %s150 = smul.addr %s149, 8
        %s151 = scalar_lea.vmem [#allocation5], %s150
        // Predicated region
        $region33: #{tpu_custom_call.1} parent=27 // pred_check
          %p152 = pneg %p62
        $region34: #{tpu_custom_call.1} parent=27 // pred_check_branch
          %154 = sbr.rel (%p152) target = $region36
        $region35: #{tpu_custom_call.1} parent=27 // pred_region
          %155 = dma.done %s148, 128
        $region36: #{tpu_custom_call.1} parent=27 // pred_fallthru
          _
        %p156 = pneg %p36
        %p157 = pneg %p33
        %s158 = sand.u32 %s49, 1
        %s159 = scalar_lea.sflag [#allocation6], %s158
        %s160 = sand.u32 %s49, 1
        %s161 = smul.addr %s160, 8
        %s162 = scalar_lea.vmem [#allocation5], %s161
        %p163 = pneg %p62
        %p164 = pneg %p59
        %p165 = pneg %p88
        %p166 = pneg %p85
        %s167 = sand.u32 %s75, 1
        %s168 = scalar_lea.sflag [#allocation4], %s167
        %s169 = sand.u32 %s75, 1
        %s170 = smul.addr %s169, 8
        %s171 = scalar_lea.vmem [#allocation7], %s170
        %v172 = vld [vmem:[%s151] sm:$0xff]
        %v173 = vld [vmem:[#allocation2] sm:$0xff]
        %v174 = vadd.f32 %v172, %v173
        %175 = vst [vmem:[%s171] sm:$0xff] %v174
        %s176 = sand.u32 %s75, 1
        %s177 = scalar_lea.sflag [#allocation4], %s176
        %s178 = sand.u32 %s75, 1
        %s179 = smul.addr %s178, 8
        %s180 = scalar_lea.vmem [#allocation7], %s179
        // Predicated region
        $region37: #{tpu_custom_call.1} parent=27 // pred_check
          %p181 = pneg %p85
        $region38: #{tpu_custom_call.1} parent=27 // pred_check_branch
          %183 = sbr.rel (%p181) target = $region40
        $region39: #{tpu_custom_call.1} parent=27 // pred_region
          %s185 = ssub.s32 128, 128
          %186 = vsyncadd %s177, %s185
          %s187 = smul.addr %s20, 128
          %s188 = scalar_lea.hbm %s2, %s187
          %s190 = sshll.u32 %s180, 4
          %s191 = int_to_ptr.vmem [resolvable:$true] %s190
          %193 = dma.vmem_to_hbm [thread:$0]  %s191, 128, %s188, %s177
        $region40: #{tpu_custom_call.1} parent=27 // pred_fallthru
          _
      $region28: #{tpu_custom_call.1} parent=5 // pred_fallthru
        _
      %p194 = scmp.le.s32.totalorder 2, %s15
      // Predicated region
      $region41: #{tpu_custom_call.1} parent=5 // pred_check
        %p195 = pneg %p194
      $region42: #{tpu_custom_call.1} parent=5 // pred_check_branch
        %197 = sbr.rel (%p195) target = $region44
      $region43: #{tpu_custom_call.1} parent=5 // pred_region
        %s198 = ssub.s32 %s15, 2
        // Predicated region
        $region45: #{tpu_custom_call.1} parent=43 // pred_check
          %p199 = pneg %p91
        $region46: #{tpu_custom_call.1} parent=43 // pred_check_branch
          %201 = sbr.rel (%p199) target = $region48
        $region47: #{tpu_custom_call.1} parent=43 // pred_region
          %s202 = sand.u32 %s76, 1
          %s203 = scalar_lea.sflag [#allocation4], %s202
          %s204 = sand.u32 %s76, 1
          %s205 = smul.addr %s204, 8
          %s206 = scalar_lea.vmem [#allocation7], %s205
          %207 = dma.done %s203, 128
        $region48: #{tpu_custom_call.1} parent=43 // pred_fallthru
          _
      $region44: #{tpu_custom_call.1} parent=5 // pred_fallthru
        _
    $region6: #{tpu_custom_call.1} parent=1 // loop_footer
      %s19 = sadd.s32 1, %s15
    $region7: #{tpu_custom_call.1} parent=1 // loop_footer_branch
      %14 = sbr.rel target = $region3
    $region8: #{tpu_custom_call.1} parent=1 // loop_exit
      _
    %208 = vsyncpa [#allocation3], 1
    %s209 = scalar_lea.sflag [#allocation3], 1
    %210 = vsyncpa %s209, 1
    %211 = vsyncpa [#allocation6], 1
    %s212 = scalar_lea.sflag [#allocation6], 1
    %213 = vsyncpa %s212, 1
    %214 = vsyncpa [#allocation4], 1
    %s215 = scalar_lea.sflag [#allocation4], 1
    %216 = vsyncpa %s215, 1

// kernel: resnet50_start_at_layer4_1.1
$region0: #{resnet50_start_at_layer4_1.1}
  #allocation0 [shape = 'u32[]', space=smem, size = 0x4, offset = 0x4, fixed_abs, tag = 'smem constant byte address 0x4 - core index']
  #allocation1 [shape = 'u32[144,128]{1,0:T(1,128)}', space=vmem, size = 0x12000, scoped, tag = 'internal scratch']
  #allocation2 [shape = 'bf16[2,10,25,128]{3,2,1,0:T(8,128)(2,1)}', space=vmem, size = 0x28000, scoped, tag = 'scratch operand']
  #allocation3 [shape = 'f32[128,128]{1,0:T(8,128)}', space=vmem, size = 0x10000, scoped, tag = 'scratch operand']
  %s0 = inlined_call_operand.vmem [shape: bf16[4,8,8,512], index: 0, kind: input, shape index: {}, may-alias: {0,13}]
  %s1 = inlined_call_operand.hbm [shape: bf16[512,128], index: 1, kind: input, shape index: {}]
  %s2 = inlined_call_operand.vmem [shape: f32[1,128], index: 2, kind: input, shape index: {}]
  %s3 = inlined_call_operand.vmem [shape: bf16[9,128,128], index: 3, kind: input, shape index: {}]
  %s4 = inlined_call_operand.vmem [shape: f32[1,128], index: 4, kind: input, shape index: {}]
  %s5 = inlined_call_operand.vmem [shape: bf16[128,512], index: 5, kind: input, shape index: {}]
  %s6 = inlined_call_operand.vmem [shape: f32[1,512], index: 6, kind: input, shape index: {}]
  %s7 = inlined_call_operand.vmem [shape: bf16[512,128], index: 7, kind: input, shape index: {}]
  %s8 = inlined_call_operand.vmem [shape: f32[1,128], index: 8, kind: input, shape index: {}]
  %s9 = inlined_call_operand.vmem [shape: bf16[9,128,128], index: 9, kind: input, shape index: {}]
  %s10 = inlined_call_operand.vmem [shape: f32[1,128], index: 10, kind: input, shape index: {}]
  %s11 = inlined_call_operand.vmem [shape: bf16[128,512], index: 11, kind: input, shape index: {}]
  %s12 = inlined_call_operand.vmem [shape: f32[1,512], index: 12, kind: input, shape index: {}]
  %s13 = inlined_call_operand.vmem [shape: bf16[4,8,8,512], index: 13, kind: output, shape index: {}, may-alias: {0,13}]
  %s14 = sld [smem:[#allocation0]]
  $region89: #{resnet50_start_at_layer4_1.1} parent=0
    _
  %s16 = ssub.s32 1, %s14
  %s17 = scalar_select 0, %s16, %s14
  $region1: #{resnet50_start_at_layer4_1.1} parent=0
    #allocation4 [shape = 'u8[131072]{0}', space=vmem, size = 0x20000, scoped, tag = 'input window, operand 1, single buffered']
    #allocation5 [shape = 's32[2]{0}', space=sflag, size = 0x8, scoped, tag = 'scoped memory for resnet50_start_at_layer4_1.1']
    %18 = vsyncpa [#allocation5], 0
    loop: start=0, step=1, limit=4
    $region2: #{resnet50_start_at_layer4_1.1} parent=1 // loop_pre_header
      _
    $region3: #{resnet50_start_at_layer4_1.1} parent=1 // loop_header
      %s20 = sphi 0, %s24
      %p21 = scmp.ge.s32.totalorder %s20, 4
      %s30 = sphi 0, %s32
      %s33 = sphi 0, %s30
      %s34 = sphi 0, %s33
      %s50 = sphi 0, %s34
      %s54 = sphi 0, %s54
      %s56 = sphi 0, %s54
      %s57 = sphi 0, %s56
      %s71 = sphi 0, %s57
      %s75 = sphi 0, %s75
      %s77 = sphi 0, %s75
      %s78 = sphi 0, %s77
      %s92 = sphi 0, %s78
      %s96 = sphi 0, %s96
      %s98 = sphi 0, %s96
      %s99 = sphi 0, %s98
      %s113 = sphi 0, %s99
      %s117 = sphi 0, %s117
      %s119 = sphi 0, %s117
      %s120 = sphi 0, %s119
      %s134 = sphi 0, %s120
      %s138 = sphi 0, %s138
      %s140 = sphi 0, %s138
      %s141 = sphi 0, %s140
      %s155 = sphi 0, %s141
      %s159 = sphi 0, %s159
      %s161 = sphi 0, %s159
      %s162 = sphi 0, %s161
      %s176 = sphi 0, %s162
      %s180 = sphi 0, %s180
      %s182 = sphi 0, %s180
      %s183 = sphi 0, %s182
      %s197 = sphi 0, %s183
      %s201 = sphi 0, %s201
      %s203 = sphi 0, %s201
      %s204 = sphi 0, %s203
      %s218 = sphi 0, %s204
      %s222 = sphi 0, %s222
      %s224 = sphi 0, %s222
      %s225 = sphi 0, %s224
      %s239 = sphi 0, %s225
      %s243 = sphi 0, %s243
      %s245 = sphi 0, %s243
      %s246 = sphi 0, %s245
      %s260 = sphi 0, %s246
      %s264 = sphi 0, %s264
      %s266 = sphi 0, %s264
      %s267 = sphi 0, %s266
      %s281 = sphi 0, %s267
      %s285 = sphi 0, %s285
      %s287 = sphi 0, %s285
      %s288 = sphi 0, %s287
      %s302 = sphi 0, %s288
      %s308 = sphi 0, %s310
      %s311 = sphi 0, %s308
      %s312 = sphi 0, %s311
      %s328 = sphi 0, %s312
    $region4: #{resnet50_start_at_layer4_1.1} parent=1 // loop_header_branch
      %23 = sbr.rel (%p21) target = $region8
    $region5: #{resnet50_start_at_layer4_1.1} parent=1 // loop_body
      %s25 = ssub.s32 %s20, 1
      %s26 = ssub.s32 %s20, 2
      %s27 = sadd.s32 %s20, 1
      %s28 = ssub.s32 %s20, %s27
      %p29 = scmp.eq.s32.totalorder %s28, 0
      %s31 = sadd.s32 %s30, 1
      %s32 = scalar_select %p29, %s30, %s31
      %p35 = pneg %p29
      %p36 = scmp.eq.s32.totalorder %s20, 1
      %p37 = por %p35, %p36
      %p38 = scmp.ne.s32.totalorder %s30, %s33
      %p39 = scmp.eq.s32.totalorder %s20, 0
      %p40 = por %p38, %p39
      %p41 = scmp.ne.s32.totalorder %s30, %s33
      %p42 = scmp.eq.s32.totalorder %s25, 1
      %p43 = por %p41, %p42
      %p44 = scmp.ne.s32.totalorder %s33, %s34
      %p45 = scmp.eq.s32.totalorder %s25, 0
      %p46 = por %p44, %p45
      %p47 = scmp.ne.s32.totalorder %s33, %s34
      %p48 = scmp.eq.s32.totalorder %s26, 1
      %p49 = por %p47, %p48
      %p51 = scmp.ne.s32.totalorder %s34, %s50
      %p52 = scmp.eq.s32.totalorder %s26, 0
      %p53 = por %p51, %p52
      %s55 = sadd.s32 %s54, 1
      %p58 = scmp.eq.s32.totalorder %s20, 1
      %p59 = scmp.ne.s32.totalorder %s54, %s56
      %p60 = scmp.eq.s32.totalorder %s20, 0
      %p61 = por %p59, %p60
      %p62 = scmp.ne.s32.totalorder %s54, %s56
      %p63 = scmp.eq.s32.totalorder %s25, 1
      %p64 = por %p62, %p63
      %p65 = scmp.ne.s32.totalorder %s56, %s57
      %p66 = scmp.eq.s32.totalorder %s25, 0
      %p67 = por %p65, %p66
      %p68 = scmp.ne.s32.totalorder %s56, %s57
      %p69 = scmp.eq.s32.totalorder %s26, 1
      %p70 = por %p68, %p69
      %p72 = scmp.ne.s32.totalorder %s57, %s71
      %p73 = scmp.eq.s32.totalorder %s26, 0
      %p74 = por %p72, %p73
      %s76 = sadd.s32 %s75, 1
      %p79 = scmp.eq.s32.totalorder %s20, 1
      %p80 = scmp.ne.s32.totalorder %s75, %s77
      %p81 = scmp.eq.s32.totalorder %s20, 0
      %p82 = por %p80, %p81
      %p83 = scmp.ne.s32.totalorder %s75, %s77
      %p84 = scmp.eq.s32.totalorder %s25, 1
      %p85 = por %p83, %p84
      %p86 = scmp.ne.s32.totalorder %s77, %s78
      %p87 = scmp.eq.s32.totalorder %s25, 0
      %p88 = por %p86, %p87
      %p89 = scmp.ne.s32.totalorder %s77, %s78
      %p90 = scmp.eq.s32.totalorder %s26, 1
      %p91 = por %p89, %p90
      %p93 = scmp.ne.s32.totalorder %s78, %s92
      %p94 = scmp.eq.s32.totalorder %s26, 0
      %p95 = por %p93, %p94
      %s97 = sadd.s32 %s96, 1
      %p100 = scmp.eq.s32.totalorder %s20, 1
      %p101 = scmp.ne.s32.totalorder %s96, %s98
      %p102 = scmp.eq.s32.totalorder %s20, 0
      %p103 = por %p101, %p102
      %p104 = scmp.ne.s32.totalorder %s96, %s98
      %p105 = scmp.eq.s32.totalorder %s25, 1
      %p106 = por %p104, %p105
      %p107 = scmp.ne.s32.totalorder %s98, %s99
      %p108 = scmp.eq.s32.totalorder %s25, 0
      %p109 = por %p107, %p108
      %p110 = scmp.ne.s32.totalorder %s98, %s99
      %p111 = scmp.eq.s32.totalorder %s26, 1
      %p112 = por %p110, %p111
      %p114 = scmp.ne.s32.totalorder %s99, %s113
      %p115 = scmp.eq.s32.totalorder %s26, 0
      %p116 = por %p114, %p115
      %s118 = sadd.s32 %s117, 1
      %p121 = scmp.eq.s32.totalorder %s20, 1
      %p122 = scmp.ne.s32.totalorder %s117, %s119
      %p123 = scmp.eq.s32.totalorder %s20, 0
      %p124 = por %p122, %p123
      %p125 = scmp.ne.s32.totalorder %s117, %s119
      %p126 = scmp.eq.s32.totalorder %s25, 1
      %p127 = por %p125, %p126
      %p128 = scmp.ne.s32.totalorder %s119, %s120
      %p129 = scmp.eq.s32.totalorder %s25, 0
      %p130 = por %p128, %p129
      %p131 = scmp.ne.s32.totalorder %s119, %s120
      %p132 = scmp.eq.s32.totalorder %s26, 1
      %p133 = por %p131, %p132
      %p135 = scmp.ne.s32.totalorder %s120, %s134
      %p136 = scmp.eq.s32.totalorder %s26, 0
      %p137 = por %p135, %p136
      %s139 = sadd.s32 %s138, 1
      %p142 = scmp.eq.s32.totalorder %s20, 1
      %p143 = scmp.ne.s32.totalorder %s138, %s140
      %p144 = scmp.eq.s32.totalorder %s20, 0
      %p145 = por %p143, %p144
      %p146 = scmp.ne.s32.totalorder %s138, %s140
      %p147 = scmp.eq.s32.totalorder %s25, 1
      %p148 = por %p146, %p147
      %p149 = scmp.ne.s32.totalorder %s140, %s141
      %p150 = scmp.eq.s32.totalorder %s25, 0
      %p151 = por %p149, %p150
      %p152 = scmp.ne.s32.totalorder %s140, %s141
      %p153 = scmp.eq.s32.totalorder %s26, 1
      %p154 = por %p152, %p153
      %p156 = scmp.ne.s32.totalorder %s141, %s155
      %p157 = scmp.eq.s32.totalorder %s26, 0
      %p158 = por %p156, %p157
      %s160 = sadd.s32 %s159, 1
      %p163 = scmp.eq.s32.totalorder %s20, 1
      %p164 = scmp.ne.s32.totalorder %s159, %s161
      %p165 = scmp.eq.s32.totalorder %s20, 0
      %p166 = por %p164, %p165
      %p167 = scmp.ne.s32.totalorder %s159, %s161
      %p168 = scmp.eq.s32.totalorder %s25, 1
      %p169 = por %p167, %p168
      %p170 = scmp.ne.s32.totalorder %s161, %s162
      %p171 = scmp.eq.s32.totalorder %s25, 0
      %p172 = por %p170, %p171
      %p173 = scmp.ne.s32.totalorder %s161, %s162
      %p174 = scmp.eq.s32.totalorder %s26, 1
      %p175 = por %p173, %p174
      %p177 = scmp.ne.s32.totalorder %s162, %s176
      %p178 = scmp.eq.s32.totalorder %s26, 0
      %p179 = por %p177, %p178
      %s181 = sadd.s32 %s180, 1
      %p184 = scmp.eq.s32.totalorder %s20, 1
      %p185 = scmp.ne.s32.totalorder %s180, %s182
      %p186 = scmp.eq.s32.totalorder %s20, 0
      %p187 = por %p185, %p186
      %p188 = scmp.ne.s32.totalorder %s180, %s182
      %p189 = scmp.eq.s32.totalorder %s25, 1
      %p190 = por %p188, %p189
      %p191 = scmp.ne.s32.totalorder %s182, %s183
      %p192 = scmp.eq.s32.totalorder %s25, 0
      %p193 = por %p191, %p192
      %p194 = scmp.ne.s32.totalorder %s182, %s183
      %p195 = scmp.eq.s32.totalorder %s26, 1
      %p196 = por %p194, %p195
      %p198 = scmp.ne.s32.totalorder %s183, %s197
      %p199 = scmp.eq.s32.totalorder %s26, 0
      %p200 = por %p198, %p199
      %s202 = sadd.s32 %s201, 1
      %p205 = scmp.eq.s32.totalorder %s20, 1
      %p206 = scmp.ne.s32.totalorder %s201, %s203
      %p207 = scmp.eq.s32.totalorder %s20, 0
      %p208 = por %p206, %p207
      %p209 = scmp.ne.s32.totalorder %s201, %s203
      %p210 = scmp.eq.s32.totalorder %s25, 1
      %p211 = por %p209, %p210
      %p212 = scmp.ne.s32.totalorder %s203, %s204
      %p213 = scmp.eq.s32.totalorder %s25, 0
      %p214 = por %p212, %p213
      %p215 = scmp.ne.s32.totalorder %s203, %s204
      %p216 = scmp.eq.s32.totalorder %s26, 1
      %p217 = por %p215, %p216
      %p219 = scmp.ne.s32.totalorder %s204, %s218
      %p220 = scmp.eq.s32.totalorder %s26, 0
      %p221 = por %p219, %p220
      %s223 = sadd.s32 %s222, 1
      %p226 = scmp.eq.s32.totalorder %s20, 1
      %p227 = scmp.ne.s32.totalorder %s222, %s224
      %p228 = scmp.eq.s32.totalorder %s20, 0
      %p229 = por %p227, %p228
      %p230 = scmp.ne.s32.totalorder %s222, %s224
      %p231 = scmp.eq.s32.totalorder %s25, 1
      %p232 = por %p230, %p231
      %p233 = scmp.ne.s32.totalorder %s224, %s225
      %p234 = scmp.eq.s32.totalorder %s25, 0
      %p235 = por %p233, %p234
      %p236 = scmp.ne.s32.totalorder %s224, %s225
      %p237 = scmp.eq.s32.totalorder %s26, 1
      %p238 = por %p236, %p237
      %p240 = scmp.ne.s32.totalorder %s225, %s239
      %p241 = scmp.eq.s32.totalorder %s26, 0
      %p242 = por %p240, %p241
      %s244 = sadd.s32 %s243, 1
      %p247 = scmp.eq.s32.totalorder %s20, 1
      %p248 = scmp.ne.s32.totalorder %s243, %s245
      %p249 = scmp.eq.s32.totalorder %s20, 0
      %p250 = por %p248, %p249
      %p251 = scmp.ne.s32.totalorder %s243, %s245
      %p252 = scmp.eq.s32.totalorder %s25, 1
      %p253 = por %p251, %p252
      %p254 = scmp.ne.s32.totalorder %s245, %s246
      %p255 = scmp.eq.s32.totalorder %s25, 0
      %p256 = por %p254, %p255
      %p257 = scmp.ne.s32.totalorder %s245, %s246
      %p258 = scmp.eq.s32.totalorder %s26, 1
      %p259 = por %p257, %p258
      %p261 = scmp.ne.s32.totalorder %s246, %s260
      %p262 = scmp.eq.s32.totalorder %s26, 0
      %p263 = por %p261, %p262
      %s265 = sadd.s32 %s264, 1
      %p268 = scmp.eq.s32.totalorder %s20, 1
      %p269 = scmp.ne.s32.totalorder %s264, %s266
      %p270 = scmp.eq.s32.totalorder %s20, 0
      %p271 = por %p269, %p270
      %p272 = scmp.ne.s32.totalorder %s264, %s266
      %p273 = scmp.eq.s32.totalorder %s25, 1
      %p274 = por %p272, %p273
      %p275 = scmp.ne.s32.totalorder %s266, %s267
      %p276 = scmp.eq.s32.totalorder %s25, 0
      %p277 = por %p275, %p276
      %p278 = scmp.ne.s32.totalorder %s266, %s267
      %p279 = scmp.eq.s32.totalorder %s26, 1
      %p280 = por %p278, %p279
      %p282 = scmp.ne.s32.totalorder %s267, %s281
      %p283 = scmp.eq.s32.totalorder %s26, 0
      %p284 = por %p282, %p283
      %s286 = sadd.s32 %s285, 1
      %p289 = scmp.eq.s32.totalorder %s20, 1
      %p290 = scmp.ne.s32.totalorder %s285, %s287
      %p291 = scmp.eq.s32.totalorder %s20, 0
      %p292 = por %p290, %p291
      %p293 = scmp.ne.s32.totalorder %s285, %s287
      %p294 = scmp.eq.s32.totalorder %s25, 1
      %p295 = por %p293, %p294
      %p296 = scmp.ne.s32.totalorder %s287, %s288
      %p297 = scmp.eq.s32.totalorder %s25, 0
      %p298 = por %p296, %p297
      %p299 = scmp.ne.s32.totalorder %s287, %s288
      %p300 = scmp.eq.s32.totalorder %s26, 1
      %p301 = por %p299, %p300
      %p303 = scmp.ne.s32.totalorder %s288, %s302
      %p304 = scmp.eq.s32.totalorder %s26, 0
      %p305 = por %p303, %p304
      %s306 = ssub.s32 %s20, %s27
      %p307 = scmp.eq.s32.totalorder %s306, 0
      %s309 = sadd.s32 %s308, 1
      %s310 = scalar_select %p307, %s308, %s309
      %p313 = pneg %p307
      %p314 = scmp.eq.s32.totalorder %s20, 1
      %p315 = por %p313, %p314
      %p316 = scmp.ne.s32.totalorder %s308, %s311
      %p317 = scmp.eq.s32.totalorder %s20, 0
      %p318 = por %p316, %p317
      %p319 = scmp.ne.s32.totalorder %s308, %s311
      %p320 = scmp.eq.s32.totalorder %s25, 1
      %p321 = por %p319, %p320
      %p322 = scmp.ne.s32.totalorder %s311, %s312
      %p323 = scmp.eq.s32.totalorder %s25, 0
      %p324 = por %p322, %p323
      %p325 = scmp.ne.s32.totalorder %s311, %s312
      %p326 = scmp.eq.s32.totalorder %s26, 1
      %p327 = por %p325, %p326
      %p329 = scmp.ne.s32.totalorder %s312, %s328
      %p330 = scmp.eq.s32.totalorder %s26, 0
      %p331 = por %p329, %p330
      %p332 = scmp.le.s32.totalorder 1, %s20
      %p333 = scmp.lt.s32.totalorder %s20, 3
      %p334 = pnand %p332, %p333
      %p335 = pneg %p334
      // Predicated region
      $region9: #{resnet50_start_at_layer4_1.1} parent=5 // pred_check
        _
      $region10: #{resnet50_start_at_layer4_1.1} parent=5 // pred_check_branch
        %337 = sbr.rel (%p334) target = $region12
      $region11: #{resnet50_start_at_layer4_1.1} parent=5 // pred_region
        %s338 = ssub.s32 %s20, 1
        // Predicated region
        $region13: #{resnet50_start_at_layer4_1.1} parent=11 // pred_check
          %p339 = pneg %p67
        $region14: #{resnet50_start_at_layer4_1.1} parent=11 // pred_check_branch
          %341 = sbr.rel (%p339) target = $region16
        $region15: #{resnet50_start_at_layer4_1.1} parent=11 // pred_region
          %s343 = ssub.s32 4096, 4096
          %344 = vsyncadd [#allocation5], %s343
          %s345 = sshll.u32 [#allocation4], 4
          %s346 = int_to_ptr.vmem [resolvable:$true] %s345
          %351 = dma.hbm_to_vmem [thread:$0]  %s1, 4096, %s346, [#allocation5], 64, 64, 4
        $region16: #{resnet50_start_at_layer4_1.1} parent=11 // pred_fallthru
          _
        // Predicated region
        $region17: #{resnet50_start_at_layer4_1.1} parent=11 // pred_check
          %p352 = pneg %p88
        $region18: #{resnet50_start_at_layer4_1.1} parent=11 // pred_check_branch
          %354 = sbr.rel (%p352) target = $region20
        $region19: #{resnet50_start_at_layer4_1.1} parent=11 // pred_region
          _
        $region20: #{resnet50_start_at_layer4_1.1} parent=11 // pred_fallthru
          _
        // Predicated region
        $region21: #{resnet50_start_at_layer4_1.1} parent=11 // pred_check
          %p355 = pneg %p109
        $region22: #{resnet50_start_at_layer4_1.1} parent=11 // pred_check_branch
          %357 = sbr.rel (%p355) target = $region24
        $region23: #{resnet50_start_at_layer4_1.1} parent=11 // pred_region
          _
        $region24: #{resnet50_start_at_layer4_1.1} parent=11 // pred_fallthru
          _
        // Predicated region
        $region25: #{resnet50_start_at_layer4_1.1} parent=11 // pred_check
          %p358 = pneg %p130
        $region26: #{resnet50_start_at_layer4_1.1} parent=11 // pred_check_branch
          %360 = sbr.rel (%p358) target = $region28
        $region27: #{resnet50_start_at_layer4_1.1} parent=11 // pred_region
          _
        $region28: #{resnet50_start_at_layer4_1.1} parent=11 // pred_fallthru
          _
        // Predicated region
        $region29: #{resnet50_start_at_layer4_1.1} parent=11 // pred_check
          %p361 = pneg %p151
        $region30: #{resnet50_start_at_layer4_1.1} parent=11 // pred_check_branch
          %363 = sbr.rel (%p361) target = $region32
        $region31: #{resnet50_start_at_layer4_1.1} parent=11 // pred_region
          _
        $region32: #{resnet50_start_at_layer4_1.1} parent=11 // pred_fallthru
          _
        // Predicated region
        $region33: #{resnet50_start_at_layer4_1.1} parent=11 // pred_check
          %p364 = pneg %p172
        $region34: #{resnet50_start_at_layer4_1.1} parent=11 // pred_check_branch
          %366 = sbr.rel (%p364) target = $region36
        $region35: #{resnet50_start_at_layer4_1.1} parent=11 // pred_region
          _
        $region36: #{resnet50_start_at_layer4_1.1} parent=11 // pred_fallthru
          _
        // Predicated region
        $region37: #{resnet50_start_at_layer4_1.1} parent=11 // pred_check
          %p367 = pneg %p193
        $region38: #{resnet50_start_at_layer4_1.1} parent=11 // pred_check_branch
          %369 = sbr.rel (%p367) target = $region40
        $region39: #{resnet50_start_at_layer4_1.1} parent=11 // pred_region
          _
        $region40: #{resnet50_start_at_layer4_1.1} parent=11 // pred_fallthru
          _
        // Predicated region
        $region41: #{resnet50_start_at_layer4_1.1} parent=11 // pred_check
          %p370 = pneg %p214
        $region42: #{resnet50_start_at_layer4_1.1} parent=11 // pred_check_branch
          %372 = sbr.rel (%p370) target = $region44
        $region43: #{resnet50_start_at_layer4_1.1} parent=11 // pred_region
          _
        $region44: #{resnet50_start_at_layer4_1.1} parent=11 // pred_fallthru
          _
        // Predicated region
        $region45: #{resnet50_start_at_layer4_1.1} parent=11 // pred_check
          %p373 = pneg %p235
        $region46: #{resnet50_start_at_layer4_1.1} parent=11 // pred_check_branch
          %375 = sbr.rel (%p373) target = $region48
        $region47: #{resnet50_start_at_layer4_1.1} parent=11 // pred_region
          _
        $region48: #{resnet50_start_at_layer4_1.1} parent=11 // pred_fallthru
          _
        // Predicated region
        $region49: #{resnet50_start_at_layer4_1.1} parent=11 // pred_check
          %p376 = pneg %p256
        $region50: #{resnet50_start_at_layer4_1.1} parent=11 // pred_check_branch
          %378 = sbr.rel (%p376) target = $region52
        $region51: #{resnet50_start_at_layer4_1.1} parent=11 // pred_region
          _
        $region52: #{resnet50_start_at_layer4_1.1} parent=11 // pred_fallthru
          _
        // Predicated region
        $region53: #{resnet50_start_at_layer4_1.1} parent=11 // pred_check
          %p379 = pneg %p277
        $region54: #{resnet50_start_at_layer4_1.1} parent=11 // pred_check_branch
          %381 = sbr.rel (%p379) target = $region56
        $region55: #{resnet50_start_at_layer4_1.1} parent=11 // pred_region
          _
        $region56: #{resnet50_start_at_layer4_1.1} parent=11 // pred_fallthru
          _
        // Predicated region
        $region57: #{resnet50_start_at_layer4_1.1} parent=11 // pred_check
          %p382 = pneg %p298
        $region58: #{resnet50_start_at_layer4_1.1} parent=11 // pred_check_branch
          %384 = sbr.rel (%p382) target = $region60
        $region59: #{resnet50_start_at_layer4_1.1} parent=11 // pred_region
          _
        $region60: #{resnet50_start_at_layer4_1.1} parent=11 // pred_fallthru
          _
      $region12: #{resnet50_start_at_layer4_1.1} parent=5 // pred_fallthru
        _
      %p385 = scmp.lt.s32.totalorder %s20, 2
      // Predicated region
      $region61: #{resnet50_start_at_layer4_1.1} parent=5 // pred_check
        %p386 = pneg %p385
      $region62: #{resnet50_start_at_layer4_1.1} parent=5 // pred_check_branch
        %388 = sbr.rel (%p386) target = $region64
      $region63: #{resnet50_start_at_layer4_1.1} parent=5 // pred_region
        // Predicated region
        $region65: #{resnet50_start_at_layer4_1.1} parent=63 // pred_check
          %p389 = pneg %p40
        $region66: #{resnet50_start_at_layer4_1.1} parent=63 // pred_check_branch
          %391 = sbr.rel (%p389) target = $region68
        $region67: #{resnet50_start_at_layer4_1.1} parent=63 // pred_region
          %s392 = smul.u32 2, %s20
          %p393 = scmp.lt.s32.totalorder %s392, 3
          %s394 = scalar_select %p393, %s392, 3
          %s395 = smul.addr %s394, 32
          %s396 = smul.addr %s395, 4
          %s397 = scalar_lea.vmem %s0, %s396
          %s398 = smul.u32 2, %s20
        $region68: #{resnet50_start_at_layer4_1.1} parent=63 // pred_fallthru
          _
      $region64: #{resnet50_start_at_layer4_1.1} parent=5 // pred_fallthru
        _
      %p399 = scmp.le.s32.totalorder 1, %s20
      %p400 = scmp.lt.s32.totalorder %s20, 3
      %p401 = pnand %p399, %p400
      %p402 = pneg %p401
      // Predicated region
      $region69: #{resnet50_start_at_layer4_1.1} parent=5 // pred_check
        _
      $region70: #{resnet50_start_at_layer4_1.1} parent=5 // pred_check_branch
        %404 = sbr.rel (%p401) target = $region72
      $region71: #{resnet50_start_at_layer4_1.1} parent=5 // pred_region
        %s405 = ssub.s32 %s20, 1
        // Predicated region
        $region73: #{resnet50_start_at_layer4_1.1} parent=71 // pred_check
          %p406 = pneg %p67
        $region74: #{resnet50_start_at_layer4_1.1} parent=71 // pred_check_branch
          %408 = sbr.rel (%p406) target = $region76
        $region75: #{resnet50_start_at_layer4_1.1} parent=71 // pred_region
          %409 = dma.done [#allocation5], 4096
        $region76: #{resnet50_start_at_layer4_1.1} parent=71 // pred_fallthru
          _
        %s410 = smul.u32 2, %s25
        %p411 = scmp.lt.s32.totalorder %s410, 3
        %s412 = scalar_select %p411, %s410, 3
        %s413 = smul.addr %s412, 32
        %s414 = smul.addr %s413, 4
        %s415 = scalar_lea.vmem %s0, %s414
        %p416 = pneg %p46
        %p417 = pneg %p43
        %p418 = pneg %p67
        %p419 = pneg %p64
        %p420 = pneg %p88
        %p421 = pneg %p85
        %p422 = pneg %p109
        %p423 = pneg %p106
        %p424 = pneg %p130
        %p425 = pneg %p127
        %p426 = pneg %p151
        %p427 = pneg %p148
        %p428 = pneg %p172
        %p429 = pneg %p169
        %p430 = pneg %p193
        %p431 = pneg %p190
        %p432 = pneg %p214
        %p433 = pneg %p211
        %p434 = pneg %p235
        %p435 = pneg %p232
        %p436 = pneg %p256
        %p437 = pneg %p253
        %p438 = pneg %p277
        %p439 = pneg %p274
        %p440 = pneg %p298
        %p441 = pneg %p295
        %p442 = pneg %p324
        %p443 = pneg %p321
        %s444 = smul.u32 2, %s25
        %p445 = scmp.lt.s32.totalorder %s444, 3
        %s446 = scalar_select %p445, %s444, 3
        %s447 = smul.addr %s446, 32
        %s448 = smul.addr %s447, 4
        %s449 = scalar_lea.vmem %s13, %s448
        %s450 = smul.u32 2, %s25
        %p451 = scmp.lt.s32.totalorder %s450, 3
        %s452 = scalar_select %p451, %s450, 3
        %s453 = smul.addr %s452, 32
        %s454 = smul.addr %s453, 4
        %s455 = scalar_lea.vmem %s0, %s454
        %s456 = smul.u32 2, %s25
        %s457 = smul.u32 2, %s25
        %p458 = scmp.lt.s32.totalorder %s457, 3
        %s459 = scalar_select %p458, %s457, 3
        %s460 = smul.addr %s459, 32
        %s461 = smul.addr %s460, 4
        %s462 = scalar_lea.vmem %s13, %s461
        %s463 = smul.u32 2, %s25
        %vm465 = vcmask 1043459
        %vm466 = vsmask.f32 7950
        %vm467 = vmand %vm465, %vm466
        %v468 = vld [vmem:[#allocation2 + $0x4] sm:$0x8]
        %v469 = vsel %vm467, 0, %v468
        %470 = vst [vmem:[#allocation2 + $0x4] sm:$0x8] %v469
        %471 = vst [vmem:[#allocation2 + $0x8] sm:$0xf] 0
        %vm472 = vcmask 1040384
        %vm473 = vsmask.f32 256
        %vm474 = vmand %vm472, %vm473
        %v475 = vld [vmem:[#allocation2 + $0xc] sm:$0x1]
        %v476 = vsel %vm474, 0, %v475
        %477 = vst [vmem:[#allocation2 + $0xc] sm:$0x1] %v476
        %v478 = vld [vmem:[#allocation2 + $0xa4] sm:$0x8]
        %v479 = vsel %vm467, 0, %v478
        %480 = vst [vmem:[#allocation2 + $0xa4] sm:$0x8] %v479
        %481 = vst [vmem:[#allocation2 + $0xa8] sm:$0xf] 0
        %v482 = vld [vmem:[#allocation2 + $0xac] sm:$0x1]
        %v483 = vsel %vm474, 0, %v482
        %484 = vst [vmem:[#allocation2 + $0xac] sm:$0x1] %v483
        %s485 = scalar_lea.vmem [#allocation2], 144
        %v486 = vld [vmem:[%s485 + $0x4] sm:$0x8]
        %v487 = vsel %vm467, 0, %v486
        %488 = vst [vmem:[%s485 + $0x4] sm:$0x8] %v487
        %489 = vst [vmem:[%s485 + $0x8] sm:$0xf] 0
        %v490 = vld [vmem:[%s485 + $0xc] sm:$0x1]
        %v491 = vsel %vm474, 0, %v490
        %492 = vst [vmem:[%s485 + $0xc] sm:$0x1] %v491
        %v493 = vld [vmem:[%s485 + $0xa4] sm:$0x8]
        %v494 = vsel %vm467, 0, %v493
        %495 = vst [vmem:[%s485 + $0xa4] sm:$0x8] %v494
        %496 = vst [vmem:[%s485 + $0xa8] sm:$0xf] 0
        %v497 = vld [vmem:[%s485 + $0xac] sm:$0x1]
        %v498 = vsel %vm474, 0, %v497
        %499 = vst [vmem:[%s485 + $0xac] sm:$0x1] %v498
        %v500 = vld [vmem:[#allocation2 + $0x4] sm:$0x8]
        %v501 = vsel %vm467, 0, %v500
        %502 = vst [vmem:[#allocation2 + $0x4] sm:$0x8] %v501
        %v503 = vld [vmem:[#allocation2 + $0x14] sm:$0x8]
        %v504 = vsel %vm467, 0, %v503
        %505 = vst [vmem:[#allocation2 + $0x14] sm:$0x8] %v504
        %v506 = vld [vmem:[#allocation2 + $0x24] sm:$0x8]
        %v507 = vsel %vm467, 0, %v506
        %508 = vst [vmem:[#allocation2 + $0x24] sm:$0x8] %v507
        %v509 = vld [vmem:[#allocation2 + $0x34] sm:$0x8]
        %v510 = vsel %vm467, 0, %v509
        %511 = vst [vmem:[#allocation2 + $0x34] sm:$0x8] %v510
        %v512 = vld [vmem:[#allocation2 + $0x44] sm:$0x8]
        %v513 = vsel %vm467, 0, %v512
        %514 = vst [vmem:[#allocation2 + $0x44] sm:$0x8] %v513
        %v515 = vld [vmem:[#allocation2 + $0x54] sm:$0x8]
        %v516 = vsel %vm467, 0, %v515
        %517 = vst [vmem:[#allocation2 + $0x54] sm:$0x8] %v516
        %v518 = vld [vmem:[#allocation2 + $0x64] sm:$0x8]
        %v519 = vsel %vm467, 0, %v518
        %520 = vst [vmem:[#allocation2 + $0x64] sm:$0x8] %v519
        %v521 = vld [vmem:[#allocation2 + $0x74] sm:$0x8]
        %v522 = vsel %vm467, 0, %v521
        %523 = vst [vmem:[#allocation2 + $0x74] sm:$0x8] %v522
        %v524 = vld [vmem:[#allocation2 + $0x84] sm:$0x8]
        %v525 = vsel %vm467, 0, %v524
        %526 = vst [vmem:[#allocation2 + $0x84] sm:$0x8] %v525
        %v527 = vld [vmem:[#allocation2 + $0x94] sm:$0x8]
        %v528 = vsel %vm467, 0, %v527
        %529 = vst [vmem:[#allocation2 + $0x94] sm:$0x8] %v528
        %v530 = vld [vmem:[#allocation2 + $0xa4] sm:$0x8]
        %v531 = vsel %vm467, 0, %v530
        %532 = vst [vmem:[#allocation2 + $0xa4] sm:$0x8] %v531
        %v533 = vld [vmem:[#allocation2 + $0xb4] sm:$0x8]
        %v534 = vsel %vm467, 0, %v533
        %535 = vst [vmem:[#allocation2 + $0xb4] sm:$0x8] %v534
        %v536 = vld [vmem:[#allocation2 + $0xc4] sm:$0x8]
        %v537 = vsel %vm467, 0, %v536
        %538 = vst [vmem:[#allocation2 + $0xc4] sm:$0x8] %v537
        %v539 = vld [vmem:[#allocation2 + $0xd4] sm:$0x8]
        %v540 = vsel %vm467, 0, %v539
        %541 = vst [vmem:[#allocation2 + $0xd4] sm:$0x8] %v540
        %v542 = vld [vmem:[#allocation2 + $0xe4] sm:$0x8]
        %v543 = vsel %vm467, 0, %v542
        %544 = vst [vmem:[#allocation2 + $0xe4] sm:$0x8] %v543
        %v545 = vld [vmem:[#allocation2 + $0xf4] sm:$0x8]
        %v546 = vsel %vm467, 0, %v545
        %547 = vst [vmem:[#allocation2 + $0xf4] sm:$0x8] %v546
        %v548 = vld [vmem:[#allocation2 + $0x104] sm:$0x8]
        %v549 = vsel %vm467, 0, %v548
        %550 = vst [vmem:[#allocation2 + $0x104] sm:$0x8] %v549
        %v551 = vld [vmem:[#allocation2 + $0x114] sm:$0x8]
        %v552 = vsel %vm467, 0, %v551
        %553 = vst [vmem:[#allocation2 + $0x114] sm:$0x8] %v552
        %v554 = vld [vmem:[#allocation2 + $0x124] sm:$0x8]
        %v555 = vsel %vm467, 0, %v554
        %556 = vst [vmem:[#allocation2 + $0x124] sm:$0x8] %v555
        %v557 = vld [vmem:[#allocation2 + $0x134] sm:$0x8]
        %v558 = vsel %vm467, 0, %v557
        %559 = vst [vmem:[#allocation2 + $0x134] sm:$0x8] %v558
        %v560 = vld [vmem:[#allocation2 + $0xc] sm:$0x1]
        %v561 = vsel %vm474, 0, %v560
        %562 = vst [vmem:[#allocation2 + $0xc] sm:$0x1] %v561
        %v563 = vld [vmem:[#allocation2 + $0x1c] sm:$0x1]
        %v564 = vsel %vm474, 0, %v563
        %565 = vst [vmem:[#allocation2 + $0x1c] sm:$0x1] %v564
        %v566 = vld [vmem:[#allocation2 + $0x2c] sm:$0x1]
        %v567 = vsel %vm474, 0, %v566
        %568 = vst [vmem:[#allocation2 + $0x2c] sm:$0x1] %v567
        %v569 = vld [vmem:[#allocation2 + $0x3c] sm:$0x1]
        %v570 = vsel %vm474, 0, %v569
        %571 = vst [vmem:[#allocation2 + $0x3c] sm:$0x1] %v570
        %v572 = vld [vmem:[#allocation2 + $0x4c] sm:$0x1]
        %v573 = vsel %vm474, 0, %v572
        %574 = vst [vmem:[#allocation2 + $0x4c] sm:$0x1] %v573
        %v575 = vld [vmem:[#allocation2 + $0x5c] sm:$0x1]
        %v576 = vsel %vm474, 0, %v575
        %577 = vst [vmem:[#allocation2 + $0x5c] sm:$0x1] %v576
        %v578 = vld [vmem:[#allocation2 + $0x6c] sm:$0x1]
        %v579 = vsel %vm474, 0, %v578
        %580 = vst [vmem:[#allocation2 + $0x6c] sm:$0x1] %v579
        %v581 = vld [vmem:[#allocation2 + $0x7c] sm:$0x1]
        %v582 = vsel %vm474, 0, %v581
        %583 = vst [vmem:[#allocation2 + $0x7c] sm:$0x1] %v582
        %v584 = vld [vmem:[#allocation2 + $0x8c] sm:$0x1]
        %v585 = vsel %vm474, 0, %v584
        %586 = vst [vmem:[#allocation2 + $0x8c] sm:$0x1] %v585
        %v587 = vld [vmem:[#allocation2 + $0x9c] sm:$0x1]
        %v588 = vsel %vm474, 0, %v587
        %589 = vst [vmem:[#allocation2 + $0x9c] sm:$0x1] %v588
        %v590 = vld [vmem:[#allocation2 + $0xac] sm:$0x1]
        %v591 = vsel %vm474, 0, %v590
        %592 = vst [vmem:[#allocation2 + $0xac] sm:$0x1] %v591
        %v593 = vld [vmem:[#allocation2 + $0xbc] sm:$0x1]
        %v594 = vsel %vm474, 0, %v593
        %595 = vst [vmem:[#allocation2 + $0xbc] sm:$0x1] %v594
        %v596 = vld [vmem:[#allocation2 + $0xcc] sm:$0x1]
        %v597 = vsel %vm474, 0, %v596
        %598 = vst [vmem:[#allocation2 + $0xcc] sm:$0x1] %v597
        %v599 = vld [vmem:[#allocation2 + $0xdc] sm:$0x1]
        %v600 = vsel %vm474, 0, %v599
        %601 = vst [vmem:[#allocation2 + $0xdc] sm:$0x1] %v600
        %v602 = vld [vmem:[#allocation2 + $0xec] sm:$0x1]
        %v603 = vsel %vm474, 0, %v602
        %604 = vst [vmem:[#allocation2 + $0xec] sm:$0x1] %v603
        %v605 = vld [vmem:[#allocation2 + $0xfc] sm:$0x1]
        %v606 = vsel %vm474, 0, %v605
        %607 = vst [vmem:[#allocation2 + $0xfc] sm:$0x1] %v606
        %v608 = vld [vmem:[#allocation2 + $0x10c] sm:$0x1]
        %v609 = vsel %vm474, 0, %v608
        %610 = vst [vmem:[#allocation2 + $0x10c] sm:$0x1] %v609
        %v611 = vld [vmem:[#allocation2 + $0x11c] sm:$0x1]
        %v612 = vsel %vm474, 0, %v611
        %613 = vst [vmem:[#allocation2 + $0x11c] sm:$0x1] %v612
        %v614 = vld [vmem:[#allocation2 + $0x12c] sm:$0x1]
        %v615 = vsel %vm474, 0, %v614
        %616 = vst [vmem:[#allocation2 + $0x12c] sm:$0x1] %v615
        %v617 = vld [vmem:[#allocation2 + $0x13c] sm:$0x1]
        %v618 = vsel %vm474, 0, %v617
        %619 = vst [vmem:[#allocation2 + $0x13c] sm:$0x1] %v618
        %v620 = vld [vmem:[%s455] sm:$0xff]
        %v621 = vld [vmem:[%s455 + $0x8] sm:$0xff]
        %v622 = vld [vmem:[%s455 + $0x10] sm:$0xff]
        %v623 = vld [vmem:[%s455 + $0x18] sm:$0xff]
        %v624 = vld [vmem:[%s455 + $0x20] sm:$0xff]
        %v625 = vld [vmem:[%s455 + $0x28] sm:$0xff]
        %v626 = vld [vmem:[%s455 + $0x30] sm:$0xff]
        %v627 = vld [vmem:[%s455 + $0x38] sm:$0xff]
        %v628 = vld [vmem:[%s455 + $0x40] sm:$0xff]
        %v629 = vld [vmem:[%s455 + $0x48] sm:$0xff]
        %v630 = vld [vmem:[%s455 + $0x50] sm:$0xff]
        %v631 = vld [vmem:[%s455 + $0x58] sm:$0xff]
        %v632 = vld [vmem:[%s455 + $0x60] sm:$0xff]
        %v633 = vld [vmem:[%s455 + $0x68] sm:$0xff]
        %v634 = vld [vmem:[%s455 + $0x70] sm:$0xff]
        %v635 = vld [vmem:[%s455 + $0x78] sm:$0xff]
        %v636 = vld [vmem:[%s455 + $0x80] sm:$0xff]
        %v637 = vld [vmem:[%s455 + $0x88] sm:$0xff]
        %v638 = vld [vmem:[%s455 + $0x90] sm:$0xff]
        %v639 = vld [vmem:[%s455 + $0x98] sm:$0xff]
        %v640 = vld [vmem:[%s455 + $0xa0] sm:$0xff]
        %v641 = vld [vmem:[%s455 + $0xa8] sm:$0xff]
        %v642 = vld [vmem:[%s455 + $0xb0] sm:$0xff]
        %v643 = vld [vmem:[%s455 + $0xb8] sm:$0xff]
        %v644 = vld [vmem:[%s455 + $0xc0] sm:$0xff]
        %v645 = vld [vmem:[%s455 + $0xc8] sm:$0xff]
        %v646 = vld [vmem:[%s455 + $0xd0] sm:$0xff]
        %v647 = vld [vmem:[%s455 + $0xd8] sm:$0xff]
        %v648 = vld [vmem:[%s455 + $0xe0] sm:$0xff]
        %v649 = vld [vmem:[%s455 + $0xe8] sm:$0xff]
        %v650 = vld [vmem:[%s455 + $0xf0] sm:$0xff]
        %v651 = vld [vmem:[%s455 + $0xf8] sm:$0xff]
        %v652 = vld [vmem:[#allocation4] sm:$0xf]
        %v653 = vld [vmem:[#allocation4 + $0x4] sm:$0xf]
        %v654 = vld [vmem:[#allocation4 + $0x8] sm:$0xf]
        %v655 = vld [vmem:[#allocation4 + $0xc] sm:$0xf]
        %v656 = vld [vmem:[#allocation4 + $0x10] sm:$0xf]
        %v657 = vld [vmem:[#allocation4 + $0x14] sm:$0xf]
        %v658 = vld [vmem:[#allocation4 + $0x18] sm:$0xf]
        %v659 = vld [vmem:[#allocation4 + $0x1c] sm:$0xf]
        %v660 = vld [vmem:[#allocation4 + $0x20] sm:$0xf]
        %v661 = vld [vmem:[#allocation4 + $0x24] sm:$0xf]
        %v662 = vld [vmem:[#allocation4 + $0x28] sm:$0xf]
        %v663 = vld [vmem:[#allocation4 + $0x2c] sm:$0xf]
        %v664 = vld [vmem:[#allocation4 + $0x30] sm:$0xf]
        %v665 = vld [vmem:[#allocation4 + $0x34] sm:$0xf]
        %v666 = vld [vmem:[#allocation4 + $0x38] sm:$0xf]
        %v667 = vld [vmem:[#allocation4 + $0x3c] sm:$0xf]
        %v668 = vld [vmem:[#allocation4 + $0x40] sm:$0xf]
        %v669 = vld [vmem:[#allocation4 + $0x44] sm:$0xf]
        %v670 = vld [vmem:[#allocation4 + $0x48] sm:$0xf]
        %v671 = vld [vmem:[#allocation4 + $0x4c] sm:$0xf]
        %v672 = vld [vmem:[#allocation4 + $0x50] sm:$0xf]
        %v673 = vld [vmem:[#allocation4 + $0x54] sm:$0xf]
        %v674 = vld [vmem:[#allocation4 + $0x58] sm:$0xf]
        %v675 = vld [vmem:[#allocation4 + $0x5c] sm:$0xf]
        %v676 = vld [vmem:[#allocation4 + $0x60] sm:$0xf]
        %v677 = vld [vmem:[#allocation4 + $0x64] sm:$0xf]
        %v678 = vld [vmem:[#allocation4 + $0x68] sm:$0xf]
        %v679 = vld [vmem:[#allocation4 + $0x6c] sm:$0xf]
        %v680 = vld [vmem:[#allocation4 + $0x70] sm:$0xf]
        %v681 = vld [vmem:[#allocation4 + $0x74] sm:$0xf]
        %v682 = vld [vmem:[#allocation4 + $0x78] sm:$0xf]
        %v683 = vld [vmem:[#allocation4 + $0x7c] sm:$0xf]
        %v684 = vld [vmem:[#allocation4 + $0x80] sm:$0xf]
        %v685 = vld [vmem:[#allocation4 + $0x84] sm:$0xf]
        %v686 = vld [vmem:[#allocation4 + $0x88] sm:$0xf]
        %v687 = vld [vmem:[#allocation4 + $0x8c] sm:$0xf]
        %v688 = vld [vmem:[#allocation4 + $0x90] sm:$0xf]
        %v689 = vld [vmem:[#allocation4 + $0x94] sm:$0xf]
        %v690 = vld [vmem:[#allocation4 + $0x98] sm:$0xf]
        %v691 = vld [vmem:[#allocation4 + $0x9c] sm:$0xf]
        %v692 = vld [vmem:[#allocation4 + $0xa0] sm:$0xf]
        %v693 = vld [vmem:[#allocation4 + $0xa4] sm:$0xf]
        %v694 = vld [vmem:[#allocation4 + $0xa8] sm:$0xf]
        %v695 = vld [vmem:[#allocation4 + $0xac] sm:$0xf]
        %v696 = vld [vmem:[#allocation4 + $0xb0] sm:$0xf]
        %v697 = vld [vmem:[#allocation4 + $0xb4] sm:$0xf]
        %v698 = vld [vmem:[#allocation4 + $0xb8] sm:$0xf]
        %v699 = vld [vmem:[#allocation4 + $0xbc] sm:$0xf]
        %v700 = vld [vmem:[#allocation4 + $0xc0] sm:$0xf]
        %v701 = vld [vmem:[#allocation4 + $0xc4] sm:$0xf]
        %v702 = vld [vmem:[#allocation4 + $0xc8] sm:$0xf]
        %v703 = vld [vmem:[#allocation4 + $0xcc] sm:$0xf]
        %v704 = vld [vmem:[#allocation4 + $0xd0] sm:$0xf]
        %v705 = vld [vmem:[#allocation4 + $0xd4] sm:$0xf]
        %v706 = vld [vmem:[#allocation4 + $0xd8] sm:$0xf]
        %v707 = vld [vmem:[#allocation4 + $0xdc] sm:$0xf]
        %v708 = vld [vmem:[#allocation4 + $0xe0] sm:$0xf]
        %v709 = vld [vmem:[#allocation4 + $0xe4] sm:$0xf]
        %v710 = vld [vmem:[#allocation4 + $0xe8] sm:$0xf]
        %v711 = vld [vmem:[#allocation4 + $0xec] sm:$0xf]
        %v712 = vld [vmem:[#allocation4 + $0xf0] sm:$0xf]
        %v713 = vld [vmem:[#allocation4 + $0xf4] sm:$0xf]
        %v714 = vld [vmem:[#allocation4 + $0xf8] sm:$0xf]
        %v715 = vld [vmem:[#allocation4 + $0xfc] sm:$0xf]
        %v716 = vld [vmem:[%s2] sm:$0x1]
        %v718 = vlaneseq
        %v719 = vshrl.u32 %v718, 7
        %v720 = vsub.s32 0, %v719
        %v721 = vrot.slane %v716, %v720
        %v755 = vunpack.c.l.b16 %v620
        %v756 = vunpack.c.h.b16 %v620
        %v757 = vunpack.c.l.b16 %v621
        %v758 = vunpack.c.h.b16 %v621
        %v759 = vunpack.c.l.b16 %v622
        %v760 = vunpack.c.h.b16 %v622
        %v761 = vunpack.c.l.b16 %v623
        %v762 = vunpack.c.h.b16 %v623
        %v763 = vunpack.c.l.b16 %v624
        %v764 = vunpack.c.h.b16 %v624
        %v765 = vunpack.c.l.b16 %v625
        %v766 = vunpack.c.h.b16 %v625
        %v767 = vunpack.c.l.b16 %v626
        %v768 = vunpack.c.h.b16 %v626
        %v769 = vunpack.c.l.b16 %v627
        %v770 = vunpack.c.h.b16 %v627
        %v771 = vunpack.c.l.b16 %v628
        %v772 = vunpack.c.h.b16 %v628
        %v773 = vunpack.c.l.b16 %v629
        %v774 = vunpack.c.h.b16 %v629
        %v775 = vunpack.c.l.b16 %v630
        %v776 = vunpack.c.h.b16 %v630
        %v777 = vunpack.c.l.b16 %v631
        %v778 = vunpack.c.h.b16 %v631
        %v779 = vunpack.c.l.b16 %v632
        %v780 = vunpack.c.h.b16 %v632
        %v781 = vunpack.c.l.b16 %v633
        %v782 = vunpack.c.h.b16 %v633
        %v783 = vunpack.c.l.b16 %v634
        %v784 = vunpack.c.h.b16 %v634
        %v785 = vunpack.c.l.b16 %v635
        %v786 = vunpack.c.h.b16 %v635
        %v787 = vunpack.c.l.b16 %v636
        %v788 = vunpack.c.h.b16 %v636
        %v789 = vunpack.c.l.b16 %v637
        %v790 = vunpack.c.h.b16 %v637
        %v791 = vunpack.c.l.b16 %v638
        %v792 = vunpack.c.h.b16 %v638
        %v793 = vunpack.c.l.b16 %v639
        %v794 = vunpack.c.h.b16 %v639
        %v795 = vunpack.c.l.b16 %v640
        %v796 = vunpack.c.h.b16 %v640
        %v797 = vunpack.c.l.b16 %v641
        %v798 = vunpack.c.h.b16 %v641
        %v799 = vunpack.c.l.b16 %v642
        %v800 = vunpack.c.h.b16 %v642
        %v801 = vunpack.c.l.b16 %v643
        %v802 = vunpack.c.h.b16 %v643
        %v803 = vunpack.c.l.b16 %v644
        %v804 = vunpack.c.h.b16 %v644
        %v805 = vunpack.c.l.b16 %v645
        %v806 = vunpack.c.h.b16 %v645
        %v807 = vunpack.c.l.b16 %v646
        %v808 = vunpack.c.h.b16 %v646
        %v809 = vunpack.c.l.b16 %v647
        %v810 = vunpack.c.h.b16 %v647
        %v811 = vunpack.c.l.b16 %v648
        %v812 = vunpack.c.h.b16 %v648
        %v813 = vunpack.c.l.b16 %v649
        %v814 = vunpack.c.h.b16 %v649
        %v815 = vunpack.c.l.b16 %v650
        %v816 = vunpack.c.h.b16 %v650
        %v817 = vunpack.c.l.b16 %v651
        %v818 = vunpack.c.h.b16 %v651
        %v819 = vpack.c.b16 %v759, %v755
        %v820 = vpack.c.b16 %v760, %v756
        %v821 = vpack.c.b16 %v761, %v757
        %v822 = vpack.c.b16 %v762, %v758
        %v823 = vpack.c.b16 %v767, %v763
        %v824 = vpack.c.b16 %v768, %v764
        %v825 = vpack.c.b16 %v769, %v765
        %v826 = vpack.c.b16 %v770, %v766
        %v827 = vpack.c.b16 %v775, %v771
        %v828 = vpack.c.b16 %v776, %v772
        %v829 = vpack.c.b16 %v777, %v773
        %v830 = vpack.c.b16 %v778, %v774
        %v831 = vpack.c.b16 %v783, %v779
        %v832 = vpack.c.b16 %v784, %v780
        %v833 = vpack.c.b16 %v785, %v781
        %v834 = vpack.c.b16 %v786, %v782
        %v835 = vpack.c.b16 %v791, %v787
        %v836 = vpack.c.b16 %v792, %v788
        %v837 = vpack.c.b16 %v793, %v789
        %v838 = vpack.c.b16 %v794, %v790
        %v839 = vpack.c.b16 %v799, %v795
        %v840 = vpack.c.b16 %v800, %v796
        %v841 = vpack.c.b16 %v801, %v797
        %v842 = vpack.c.b16 %v802, %v798
        %v843 = vpack.c.b16 %v807, %v803
        %v844 = vpack.c.b16 %v808, %v804
        %v845 = vpack.c.b16 %v809, %v805
        %v846 = vpack.c.b16 %v810, %v806
        %v847 = vpack.c.b16 %v815, %v811
        %v848 = vpack.c.b16 %v816, %v812
        %v849 = vpack.c.b16 %v817, %v813
        %v850 = vpack.c.b16 %v818, %v814
        %v947 = vunpack.c.l.b16 %v652
        %v948 = vunpack.c.l.b16 %v653
        %v949 = vunpack.c.l.b16 %v654
        %v950 = vunpack.c.l.b16 %v655
        %v951 = vunpack.c.l.b16 %v656
        %v952 = vunpack.c.l.b16 %v657
        %v953 = vunpack.c.l.b16 %v658
        %v954 = vunpack.c.l.b16 %v659
        %v955 = vunpack.c.l.b16 %v660
        %v956 = vunpack.c.l.b16 %v661
        %v957 = vunpack.c.l.b16 %v662
        %v958 = vunpack.c.l.b16 %v663
        %v959 = vunpack.c.l.b16 %v664
        %v960 = vunpack.c.l.b16 %v665
        %v961 = vunpack.c.l.b16 %v666
        %v962 = vunpack.c.l.b16 %v667
        %v963 = vunpack.c.l.b16 %v668
        %v964 = vunpack.c.l.b16 %v669
        %v965 = vunpack.c.l.b16 %v670
        %v966 = vunpack.c.l.b16 %v671
        %v967 = vunpack.c.l.b16 %v672
        %v968 = vunpack.c.l.b16 %v673
        %v969 = vunpack.c.l.b16 %v674
        %v970 = vunpack.c.l.b16 %v675
        %v971 = vunpack.c.l.b16 %v676
        %v972 = vunpack.c.l.b16 %v677
        %v973 = vunpack.c.l.b16 %v678
        %v974 = vunpack.c.l.b16 %v679
        %v975 = vunpack.c.l.b16 %v680
        %v976 = vunpack.c.l.b16 %v681
        %v977 = vunpack.c.l.b16 %v682
        %v978 = vunpack.c.l.b16 %v683
        %v979 = vunpack.c.l.b16 %v684
        %v980 = vunpack.c.l.b16 %v685
        %v981 = vunpack.c.l.b16 %v686
        %v982 = vunpack.c.l.b16 %v687
        %v983 = vunpack.c.l.b16 %v688
        %v984 = vunpack.c.l.b16 %v689
        %v985 = vunpack.c.l.b16 %v690
        %v986 = vunpack.c.l.b16 %v691
        %v987 = vunpack.c.l.b16 %v692
        %v988 = vunpack.c.l.b16 %v693
        %v989 = vunpack.c.l.b16 %v694
        %v990 = vunpack.c.l.b16 %v695
        %v991 = vunpack.c.l.b16 %v696
        %v992 = vunpack.c.l.b16 %v697
        %v993 = vunpack.c.l.b16 %v698
        %v994 = vunpack.c.l.b16 %v699
        %v995 = vunpack.c.l.b16 %v700
        %v996 = vunpack.c.l.b16 %v701
        %v997 = vunpack.c.l.b16 %v702
        %v998 = vunpack.c.l.b16 %v703
        %v999 = vunpack.c.l.b16 %v704
        %v1000 = vunpack.c.l.b16 %v705
        %v1001 = vunpack.c.l.b16 %v706
        %v1002 = vunpack.c.l.b16 %v707
        %v1003 = vunpack.c.l.b16 %v708
        %v1004 = vunpack.c.l.b16 %v709
        %v1005 = vunpack.c.l.b16 %v710
        %v1006 = vunpack.c.l.b16 %v711
        %v1007 = vunpack.c.l.b16 %v712
        %v1008 = vunpack.c.l.b16 %v713
        %v1009 = vunpack.c.l.b16 %v714
        %v1010 = vunpack.c.l.b16 %v715
        %v1011 = vpack.c.b16 %v948, %v947
        %v1012 = vpack.c.b16 %v950, %v949
        %v1013 = vpack.c.b16 %v952, %v951
        %v1014 = vpack.c.b16 %v954, %v953
        %v1015 = vpack.c.b16 %v956, %v955
        %v1016 = vpack.c.b16 %v958, %v957
        %v1017 = vpack.c.b16 %v960, %v959
        %v1018 = vpack.c.b16 %v962, %v961
        %v1019 = vpack.c.b16 %v964, %v963
        %v1020 = vpack.c.b16 %v966, %v965
        %v1021 = vpack.c.b16 %v968, %v967
        %v1022 = vpack.c.b16 %v970, %v969
        %v1023 = vpack.c.b16 %v972, %v971
        %v1024 = vpack.c.b16 %v974, %v973
        %v1025 = vpack.c.b16 %v976, %v975
        %v1026 = vpack.c.b16 %v978, %v977
        %v1027 = vpack.c.b16 %v980, %v979
        %v1028 = vpack.c.b16 %v982, %v981
        %v1029 = vpack.c.b16 %v984, %v983
        %v1030 = vpack.c.b16 %v986, %v985
        %v1031 = vpack.c.b16 %v988, %v987
        %v1032 = vpack.c.b16 %v990, %v989
        %v1033 = vpack.c.b16 %v992, %v991
        %v1034 = vpack.c.b16 %v994, %v993
        %v1035 = vpack.c.b16 %v996, %v995
        %v1036 = vpack.c.b16 %v998, %v997
        %v1037 = vpack.c.b16 %v1000, %v999
        %v1038 = vpack.c.b16 %v1002, %v1001
        %v1039 = vpack.c.b16 %v1004, %v1003
        %v1040 = vpack.c.b16 %v1006, %v1005
        %v1041 = vpack.c.b16 %v1008, %v1007
        %v1042 = vpack.c.b16 %v1010, %v1009
        %1075 = vmatprep.subr.bf16.mxu0 0
        %1076 = vmatpush1.bf16.msra.mxu0 %v1011
        %1077 = vmatprep.subr.bf16.mxu0 0
        %1078 = vmatpush1.bf16.msra.mxu0 %v1012
        %1079 = vmatprep.subr.bf16.mxu0 0
        %1080 = vmatpush1.bf16.msra.mxu0 %v1013
        %1081 = vmatprep.subr.bf16.mxu0 0
        %1082 = vmatpush1.bf16.msra.mxu0 %v1014
        %1083 = vmatprep.subr.bf16.mxu0 0
        %1084 = vmatpush1.bf16.msra.mxu0 %v1015
        %1085 = vmatprep.subr.bf16.mxu0 0
        %1086 = vmatpush1.bf16.msra.mxu0 %v1016
        %1087 = vmatprep.subr.bf16.mxu0 0
        %1088 = vmatpush1.bf16.msra.mxu0 %v1017
        %1089 = vmatprep.subr.bf16.mxu0 0
        %1090 = vmatpush1.bf16.msra.mxu0 %v1018
        %1091 = vmatprep.subr.bf16.mxu0 0
        %1092 = vmatpush1.bf16.msra.mxu0 %v1019
        %1093 = vmatprep.subr.bf16.mxu0 0
        %1094 = vmatpush1.bf16.msra.mxu0 %v1020
        %1095 = vmatprep.subr.bf16.mxu0 0
        %1096 = vmatpush1.bf16.msra.mxu0 %v1021
        %1097 = vmatprep.subr.bf16.mxu0 0
        %1098 = vmatpush1.bf16.msra.mxu0 %v1022
        %1099 = vmatprep.subr.bf16.mxu0 0
        %1100 = vmatpush1.bf16.msra.mxu0 %v1023
        %1101 = vmatprep.subr.bf16.mxu0 0
        %1102 = vmatpush1.bf16.msra.mxu0 %v1024
        %1103 = vmatprep.subr.bf16.mxu0 0
        %1104 = vmatpush1.bf16.msra.mxu0 %v1025
        %1105 = vmatprep.subr.bf16.mxu0 0
        %1106 = vmatpush1.bf16.msra.mxu0 %v1026
        %1107 = vmatprep.mubr.bf16.mxu0 %v820
        %1108 = vmatmul.mubr.bf16.gmra.mrb[0].mxu0 %v819
        %v1109 = vpop.f32.mrb[0].mxu0
        %v1110 = vadd.f32 %v721, %v1109
        %v1111 = vpop.f32.mrb[0].mxu0
        %v1112 = vpop.f32.mrb[0].mxu0
        %v1113 = vadd.f32 %v721, %v1112
        %v1114 = vpop.f32.mrb[0].mxu0
        %1115 = vmatprep.mubr.bf16.mxu0 %v824
        %1116 = vmatmul.mubr.bf16.gmra.mrb[0].mxu0 %v823
        %v1117 = vpop.f32.mrb[0].mxu0
        %v1118 = vadd.f32 %v721, %v1117
        %v1119 = vpop.f32.mrb[0].mxu0
        %v1120 = vpop.f32.mrb[0].mxu0
        %v1121 = vadd.f32 %v721, %v1120
        %v1122 = vpop.f32.mrb[0].mxu0
        %1123 = vmatprep.mubr.bf16.mxu0 %v828
        %1124 = vmatmul.mubr.bf16.gmra.mrb[0].mxu0 %v827
        %v1125 = vpop.f32.mrb[0].mxu0
        %v1126 = vadd.f32 %v721, %v1125
        %v1127 = vpop.f32.mrb[0].mxu0
        %v1128 = vpop.f32.mrb[0].mxu0
        %v1129 = vadd.f32 %v721, %v1128
        %v1130 = vpop.f32.mrb[0].mxu0
        %1131 = vmatprep.mubr.bf16.mxu0 %v832
        %1132 = vmatmul.mubr.bf16.gmra.mrb[0].mxu0 %v831
        %v1133 = vpop.f32.mrb[0].mxu0
        %v1134 = vadd.f32 %v721, %v1133
        %v1135 = vpop.f32.mrb[0].mxu0
        %v1136 = vpop.f32.mrb[0].mxu0
        %v1137 = vadd.f32 %v721, %v1136
        %v1138 = vpop.f32.mrb[0].mxu0
        %1139 = vmatprep.mubr.bf16.mxu0 %v836
        %1140 = vmatmul.mubr.bf16.gmra.mrb[0].mxu0 %v835
        %v1141 = vpop.f32.mrb[0].mxu0
        %v1142 = vadd.f32 %v721, %v1141
        %v1143 = vpop.f32.mrb[0].mxu0
        %v1144 = vpop.f32.mrb[0].mxu0
        %v1145 = vadd.f32 %v721, %v1144
        %v1146 = vpop.f32.mrb[0].mxu0
        %1147 = vmatprep.mubr.bf16.mxu0 %v840
        %1148 = vmatmul.mubr.bf16.gmra.mrb[0].mxu0 %v839
        %v1149 = vpop.f32.mrb[0].mxu0
        %v1150 = vadd.f32 %v721, %v1149
        %v1151 = vpop.f32.mrb[0].mxu0
        %v1152 = vpop.f32.mrb[0].mxu0
        %v1153 = vadd.f32 %v721, %v1152
        %v1154 = vpop.f32.mrb[0].mxu0
        %1155 = vmatprep.mubr.bf16.mxu0 %v844
        %1156 = vmatmul.mubr.bf16.gmra.mrb[0].mxu0 %v843
        %v1157 = vpop.f32.mrb[0].mxu0
        %v1158 = vadd.f32 %v721, %v1157
        %v1159 = vpop.f32.mrb[0].mxu0
        %v1160 = vpop.f32.mrb[0].mxu0
        %v1161 = vadd.f32 %v721, %v1160
        %v1162 = vpop.f32.mrb[0].mxu0
        %1163 = vmatprep.mubr.bf16.mxu0 %v848
        %1164 = vmatmul.mubr.bf16.gmra.mrb[0].mxu0 %v847
        %v1165 = vpop.f32.mrb[0].mxu0
        %v1166 = vadd.f32 %v721, %v1165
        %v1167 = vpop.f32.mrb[0].mxu0
        %v1168 = vpop.f32.mrb[0].mxu0
        %v1169 = vadd.f32 %v721, %v1168
        %v1170 = vpop.f32.mrb[0].mxu0
        %1171 = vdwg.mxu0
        %1172 = vmatprep.subr.bf16.mxu0 0
        %1173 = vmatpush1.bf16.msra.mxu0 %v1027
        %1174 = vmatprep.subr.bf16.mxu0 0
        %1175 = vmatpush1.bf16.msra.mxu0 %v1028
        %1176 = vmatprep.subr.bf16.mxu0 0
        %1177 = vmatpush1.bf16.msra.mxu0 %v1029
        %1178 = vmatprep.subr.bf16.mxu0 0
        %1179 = vmatpush1.bf16.msra.mxu0 %v1030
        %1180 = vmatprep.subr.bf16.mxu0 0
        %1181 = vmatpush1.bf16.msra.mxu0 %v1031
        %1182 = vmatprep.subr.bf16.mxu0 0
        %1183 = vmatpush1.bf16.msra.mxu0 %v1032
        %1184 = vmatprep.subr.bf16.mxu0 0
        %1185 = vmatpush1.bf16.msra.mxu0 %v1033
        %1186 = vmatprep.subr.bf16.mxu0 0
        %1187 = vmatpush1.bf16.msra.mxu0 %v1034
        %1188 = vmatprep.subr.bf16.mxu0 0
        %1189 = vmatpush1.bf16.msra.mxu0 %v1035
        %1190 = vmatprep.subr.bf16.mxu0 0
        %1191 = vmatpush1.bf16.msra.mxu0 %v1036
        %1192 = vmatprep.subr.bf16.mxu0 0
        %1193 = vmatpush1.bf16.msra.mxu0 %v1037
        %1194 = vmatprep.subr.bf16.mxu0 0
        %1195 = vmatpush1.bf16.msra.mxu0 %v1038
        %1196 = vmatprep.subr.bf16.mxu0 0
        %1197 = vmatpush1.bf16.msra.mxu0 %v1039
        %1198 = vmatprep.subr.bf16.mxu0 0
        %1199 = vmatpush1.bf16.msra.mxu0 %v1040
        %1200 = vmatprep.subr.bf16.mxu0 0
        %1201 = vmatpush1.bf16.msra.mxu0 %v1041
        %1202 = vmatprep.subr.bf16.mxu0 0
        %1203 = vmatpush1.bf16.msra.mxu0 %v1042
        %1204 = vmatprep.mubr.bf16.mxu0 %v822
        %1205 = vmatmul.mubr.bf16.gmra.mrb[0].mxu0 %v821
        %v1206 = vpop.f32.mrb[0].mxu0
        %v1207 = vadd.f32 %v1110, %v1206
        %v1208 = vpop.f32.mrb[0].mxu0
        %v1209 = vpop.f32.mrb[0].mxu0
        %v1210 = vadd.f32 %v1113, %v1209
        %v1211 = vpop.f32.mrb[0].mxu0
        %1212 = vmatprep.mubr.bf16.mxu0 %v826
        %1213 = vmatmul.mubr.bf16.gmra.mrb[0].mxu0 %v825
        %v1214 = vpop.f32.mrb[0].mxu0
        %v1215 = vadd.f32 %v1118, %v1214
        %v1216 = vpop.f32.mrb[0].mxu0
        %v1217 = vpop.f32.mrb[0].mxu0
        %v1218 = vadd.f32 %v1121, %v1217
        %v1219 = vpop.f32.mrb[0].mxu0
        %1220 = vmatprep.mubr.bf16.mxu0 %v830
        %1221 = vmatmul.mubr.bf16.gmra.mrb[0].mxu0 %v829
        %v1222 = vpop.f32.mrb[0].mxu0
        %v1223 = vadd.f32 %v1126, %v1222
        %v1224 = vpop.f32.mrb[0].mxu0
        %v1225 = vpop.f32.mrb[0].mxu0
        %v1226 = vadd.f32 %v1129, %v1225
        %v1227 = vpop.f32.mrb[0].mxu0
        %1228 = vmatprep.mubr.bf16.mxu0 %v834
        %1229 = vmatmul.mubr.bf16.gmra.mrb[0].mxu0 %v833
        %v1230 = vpop.f32.mrb[0].mxu0
        %v1231 = vadd.f32 %v1134, %v1230
        %v1232 = vpop.f32.mrb[0].mxu0
        %v1233 = vpop.f32.mrb[0].mxu0
        %v1234 = vadd.f32 %v1137, %v1233
        %v1235 = vpop.f32.mrb[0].mxu0
        %1236 = vmatprep.mubr.bf16.mxu0 %v838
        %1237 = vmatmul.mubr.bf16.gmra.mrb[0].mxu0 %v837
        %v1238 = vpop.f32.mrb[0].mxu0
        %v1239 = vadd.f32 %v1142, %v1238
        %v1240 = vpop.f32.mrb[0].mxu0
        %v1241 = vpop.f32.mrb[0].mxu0
        %v1242 = vadd.f32 %v1145, %v1241
        %v1243 = vpop.f32.mrb[0].mxu0
        %1244 = vmatprep.mubr.bf16.mxu0 %v842
        %1245 = vmatmul.mubr.bf16.gmra.mrb[0].mxu0 %v841
        %v1246 = vpop.f32.mrb[0].mxu0
        %v1247 = vadd.f32 %v1150, %v1246
        %v1248 = vpop.f32.mrb[0].mxu0
        %v1249 = vpop.f32.mrb[0].mxu0
        %v1250 = vadd.f32 %v1153, %v1249
        %v1251 = vpop.f32.mrb[0].mxu0
        %1252 = vmatprep.mubr.bf16.mxu0 %v846
        %1253 = vmatmul.mubr.bf16.gmra.mrb[0].mxu0 %v845
        %v1254 = vpop.f32.mrb[0].mxu0
        %v1255 = vadd.f32 %v1158, %v1254
        %v1256 = vpop.f32.mrb[0].mxu0
        %v1257 = vpop.f32.mrb[0].mxu0
        %v1258 = vadd.f32 %v1161, %v1257
        %v1259 = vpop.f32.mrb[0].mxu0
        %1260 = vmatprep.mubr.bf16.mxu0 %v850
        %1261 = vmatmul.mubr.bf16.gmra.mrb[0].mxu0 %v849
        %v1262 = vpop.f32.mrb[0].mxu0
        %v1263 = vadd.f32 %v1166, %v1262
        %v1264 = vpop.f32.mrb[0].mxu0
        %v1265 = vpop.f32.mrb[0].mxu0
        %v1266 = vadd.f32 %v1169, %v1265
        %v1267 = vpop.f32.mrb[0].mxu0
        %1268 = vdwg.mxu0
        %v1269 = vmax.f32 %v1207, 0.0
        %v1270 = vmax.f32 %v1210, 0.0
        %v1271 = vmax.f32 %v1215, 0.0
        %v1272 = vmax.f32 %v1218, 0.0
        %v1273 = vmax.f32 %v1223, 0.0
        %v1274 = vmax.f32 %v1226, 0.0
        %v1275 = vmax.f32 %v1231, 0.0
        %v1276 = vmax.f32 %v1234, 0.0
        %v1277 = vmax.f32 %v1239, 0.0
        %v1278 = vmax.f32 %v1242, 0.0
        %v1279 = vmax.f32 %v1247, 0.0
        %v1280 = vmax.f32 %v1250, 0.0
        %v1281 = vmax.f32 %v1255, 0.0
        %v1282 = vmax.f32 %v1258, 0.0
        %v1283 = vmax.f32 %v1263, 0.0
        %v1284 = vmax.f32 %v1266, 0.0
        %v1285 = vpack.c.bf16 %v1269, %v1269
        %v1286 = vpack.c.bf16 %v1270, %v1270
        %v1287 = vpack.c.bf16 %v1271, %v1271
        %v1288 = vpack.c.bf16 %v1272, %v1272
        %v1289 = vpack.c.bf16 %v1273, %v1273
        %v1290 = vpack.c.bf16 %v1274, %v1274
        %v1291 = vpack.c.bf16 %v1275, %v1275
        %v1292 = vpack.c.bf16 %v1276, %v1276
        %v1293 = vpack.c.bf16 %v1277, %v1277
        %v1294 = vpack.c.bf16 %v1278, %v1278
        %v1295 = vpack.c.bf16 %v1279, %v1279
        %v1296 = vpack.c.bf16 %v1280, %v1280
        %v1297 = vpack.c.bf16 %v1281, %v1281
        %v1298 = vpack.c.bf16 %v1282, %v1282
        %v1299 = vpack.c.bf16 %v1283, %v1283
        %v1300 = vpack.c.bf16 %v1284, %v1284
        %s1301 = scalar_lea.vmem [#allocation2], 16
        %1302 = vst [vmem:[%s1301 + $0x8] sm:$0xf] %v1285
        %1303 = vst [vmem:[%s1301 + $0x18] sm:$0xf] %v1286
        %1304 = vst [vmem:[%s1301 + $0x28] sm:$0xf] %v1287
        %1305 = vst [vmem:[%s1301 + $0x38] sm:$0xf] %v1288
        %1306 = vst [vmem:[%s1301 + $0x48] sm:$0xf] %v1289
        %1307 = vst [vmem:[%s1301 + $0x58] sm:$0xf] %v1290
        %1308 = vst [vmem:[%s1301 + $0x68] sm:$0xf] %v1291
        %1309 = vst [vmem:[%s1301 + $0x78] sm:$0xf] %v1292
        %1310 = vst [vmem:[%s1301 + $0xa8] sm:$0xf] %v1293
        %1311 = vst [vmem:[%s1301 + $0xb8] sm:$0xf] %v1294
        %1312 = vst [vmem:[%s1301 + $0xc8] sm:$0xf] %v1295
        %1313 = vst [vmem:[%s1301 + $0xd8] sm:$0xf] %v1296
        %1314 = vst [vmem:[%s1301 + $0xe8] sm:$0xf] %v1297
        %1315 = vst [vmem:[%s1301 + $0xf8] sm:$0xf] %v1298
        %1316 = vst [vmem:[%s1301 + $0x108] sm:$0xf] %v1299
        %1317 = vst [vmem:[%s1301 + $0x118] sm:$0xf] %v1300
        %v1318 = vld [vmem:[#allocation2 + $0x4] sm:$0x8]
        %v1319 = vld [vmem:[#allocation2 + $0x8] sm:$0xf]
        %v1320 = vld [vmem:[#allocation2 + $0x14] sm:$0x8]
        %v1321 = vld [vmem:[#allocation2 + $0x18] sm:$0xf]
        %v1322 = vld [vmem:[#allocation2 + $0x24] sm:$0x8]
        %v1323 = vld [vmem:[#allocation2 + $0x28] sm:$0xf]
        %v1324 = vld [vmem:[#allocation2 + $0x34] sm:$0x8]
        %v1325 = vld [vmem:[#allocation2 + $0x38] sm:$0xf]
        %v1326 = vld [vmem:[#allocation2 + $0x44] sm:$0x8]
        %v1327 = vld [vmem:[#allocation2 + $0x48] sm:$0xf]
        %v1328 = vld [vmem:[#allocation2 + $0x54] sm:$0x8]
        %v1329 = vld [vmem:[#allocation2 + $0x58] sm:$0xf]
        %v1330 = vld [vmem:[#allocation2 + $0x64] sm:$0x8]
        %v1331 = vld [vmem:[#allocation2 + $0x68] sm:$0xf]
        %v1332 = vld [vmem:[#allocation2 + $0x74] sm:$0x8]
        %v1333 = vld [vmem:[#allocation2 + $0x78] sm:$0xf]
        %v1334 = vld [vmem:[#allocation2 + $0x84] sm:$0x8]
        %v1335 = vld [vmem:[#allocation2 + $0x88] sm:$0xf]
        %v1336 = vld [vmem:[#allocation2 + $0x94] sm:$0x8]
        %v1337 = vld [vmem:[#allocation2 + $0x98] sm:$0xf]
        %v1338 = vld [vmem:[#allocation2 + $0xa4] sm:$0x8]
        %v1339 = vld [vmem:[#allocation2 + $0xa8] sm:$0xf]
        %v1340 = vld [vmem:[#allocation2 + $0xb4] sm:$0x8]
        %v1341 = vld [vmem:[#allocation2 + $0xb8] sm:$0xf]
        %v1342 = vld [vmem:[#allocation2 + $0xc4] sm:$0x8]
        %v1343 = vld [vmem:[#allocation2 + $0xc8] sm:$0xf]
        %v1344 = vld [vmem:[#allocation2 + $0xd4] sm:$0x8]
        %v1345 = vld [vmem:[#allocation2 + $0xd8] sm:$0xf]
        %v1346 = vld [vmem:[#allocation2 + $0xe4] sm:$0x8]
        %v1347 = vld [vmem:[#allocation2 + $0xe8] sm:$0xf]
        %v1348 = vld [vmem:[#allocation2 + $0xf4] sm:$0x8]
        %v1349 = vld [vmem:[#allocation2 + $0xf8] sm:$0xf]
        %v1350 = vld [vmem:[#allocation2 + $0x104] sm:$0x8]
        %v1351 = vld [vmem:[#allocation2 + $0x108] sm:$0xf]
        %v1352 = vld [vmem:[#allocation2 + $0x114] sm:$0x8]
        %v1353 = vld [vmem:[#allocation2 + $0x118] sm:$0xf]
        %v1354 = vld [vmem:[#allocation2 + $0x124] sm:$0x8]
        %v1355 = vld [vmem:[#allocation2 + $0x128] sm:$0xf]
        %v1356 = vld [vmem:[#allocation2 + $0x134] sm:$0x8]
        %v1357 = vld [vmem:[#allocation2 + $0x138] sm:$0xf]
        %vm1358 = vsmask.f32 4368
        %vm1359 = vmor %vm473, %vm1358
        %v1361 = vshrl.u32 %v1318, 16
        %v1363 = vrot.slane %v1361, 7
        %v1364 = vrot.slane %v1363, 4
        %v1366 = vshrl.u32 %v1319, 16
        %v1368 = vrot.slane %v1366, 7
        %v1369 = vshll.u32 %v1319, 16
        %v1371 = vor.u32 %v1368, %v1369
        %v1372 = vsel %vm1359, %v1364, %v1371
        %v1374 = vshrl.u32 %v1320, 16
        %v1376 = vrot.slane %v1374, 7
        %v1377 = vrot.slane %v1376, 4
        %v1379 = vshrl.u32 %v1321, 16
        %v1381 = vrot.slane %v1379, 7
        %v1382 = vshll.u32 %v1321, 16
        %v1384 = vor.u32 %v1381, %v1382
        %v1385 = vsel %vm1359, %v1377, %v1384
        %v1387 = vshrl.u32 %v1322, 16
        %v1389 = vrot.slane %v1387, 7
        %v1390 = vrot.slane %v1389, 4
        %v1392 = vshrl.u32 %v1323, 16
        %v1394 = vrot.slane %v1392, 7
        %v1395 = vshll.u32 %v1323, 16
        %v1397 = vor.u32 %v1394, %v1395
        %v1398 = vsel %vm1359, %v1390, %v1397
        %v1400 = vshrl.u32 %v1324, 16
        %v1402 = vrot.slane %v1400, 7
        %v1403 = vrot.slane %v1402, 4
        %v1405 = vshrl.u32 %v1325, 16
        %v1407 = vrot.slane %v1405, 7
        %v1408 = vshll.u32 %v1325, 16
        %v1410 = vor.u32 %v1407, %v1408
        %v1411 = vsel %vm1359, %v1403, %v1410
        %v1413 = vshrl.u32 %v1326, 16
        %v1415 = vrot.slane %v1413, 7
        %v1416 = vrot.slane %v1415, 4
        %v1418 = vshrl.u32 %v1327, 16
        %v1420 = vrot.slane %v1418, 7
        %v1421 = vshll.u32 %v1327, 16
        %v1423 = vor.u32 %v1420, %v1421
        %v1424 = vsel %vm1359, %v1416, %v1423
        %v1426 = vshrl.u32 %v1328, 16
        %v1428 = vrot.slane %v1426, 7
        %v1429 = vrot.slane %v1428, 4
        %v1431 = vshrl.u32 %v1329, 16
        %v1433 = vrot.slane %v1431, 7
        %v1434 = vshll.u32 %v1329, 16
        %v1436 = vor.u32 %v1433, %v1434
        %v1437 = vsel %vm1359, %v1429, %v1436
        %v1439 = vshrl.u32 %v1330, 16
        %v1441 = vrot.slane %v1439, 7
        %v1442 = vrot.slane %v1441, 4
        %v1444 = vshrl.u32 %v1331, 16
        %v1446 = vrot.slane %v1444, 7
        %v1447 = vshll.u32 %v1331, 16
        %v1449 = vor.u32 %v1446, %v1447
        %v1450 = vsel %vm1359, %v1442, %v1449
        %v1452 = vshrl.u32 %v1332, 16
        %v1454 = vrot.slane %v1452, 7
        %v1455 = vrot.slane %v1454, 4
        %v1457 = vshrl.u32 %v1333, 16
        %v1459 = vrot.slane %v1457, 7
        %v1460 = vshll.u32 %v1333, 16
        %v1462 = vor.u32 %v1459, %v1460
        %v1463 = vsel %vm1359, %v1455, %v1462
        %v1465 = vshrl.u32 %v1338, 16
        %v1467 = vrot.slane %v1465, 7
        %v1468 = vrot.slane %v1467, 4
        %v1470 = vshrl.u32 %v1339, 16
        %v1472 = vrot.slane %v1470, 7
        %v1473 = vshll.u32 %v1339, 16
        %v1475 = vor.u32 %v1472, %v1473
        %v1476 = vsel %vm1359, %v1468, %v1475
        %v1478 = vshrl.u32 %v1340, 16
        %v1480 = vrot.slane %v1478, 7
        %v1481 = vrot.slane %v1480, 4
        %v1483 = vshrl.u32 %v1341, 16
        %v1485 = vrot.slane %v1483, 7
        %v1486 = vshll.u32 %v1341, 16
        %v1488 = vor.u32 %v1485, %v1486
        %v1489 = vsel %vm1359, %v1481, %v1488
        %v1491 = vshrl.u32 %v1342, 16
        %v1493 = vrot.slane %v1491, 7
        %v1494 = vrot.slane %v1493, 4
        %v1496 = vshrl.u32 %v1343, 16
        %v1498 = vrot.slane %v1496, 7
        %v1499 = vshll.u32 %v1343, 16
        %v1501 = vor.u32 %v1498, %v1499
        %v1502 = vsel %vm1359, %v1494, %v1501
        %v1504 = vshrl.u32 %v1344, 16
        %v1506 = vrot.slane %v1504, 7
        %v1507 = vrot.slane %v1506, 4
        %v1509 = vshrl.u32 %v1345, 16
        %v1511 = vrot.slane %v1509, 7
        %v1512 = vshll.u32 %v1345, 16
        %v1514 = vor.u32 %v1511, %v1512
        %v1515 = vsel %vm1359, %v1507, %v1514
        %v1517 = vshrl.u32 %v1346, 16
        %v1519 = vrot.slane %v1517, 7
        %v1520 = vrot.slane %v1519, 4
        %v1522 = vshrl.u32 %v1347, 16
        %v1524 = vrot.slane %v1522, 7
        %v1525 = vshll.u32 %v1347, 16
        %v1527 = vor.u32 %v1524, %v1525
        %v1528 = vsel %vm1359, %v1520, %v1527
        %v1530 = vshrl.u32 %v1348, 16
        %v1532 = vrot.slane %v1530, 7
        %v1533 = vrot.slane %v1532, 4
        %v1535 = vshrl.u32 %v1349, 16
        %v1537 = vrot.slane %v1535, 7
        %v1538 = vshll.u32 %v1349, 16
        %v1540 = vor.u32 %v1537, %v1538
        %v1541 = vsel %vm1359, %v1533, %v1540
        %v1543 = vshrl.u32 %v1350, 16
        %v1545 = vrot.slane %v1543, 7
        %v1546 = vrot.slane %v1545, 4
        %v1548 = vshrl.u32 %v1351, 16
        %v1550 = vrot.slane %v1548, 7
        %v1551 = vshll.u32 %v1351, 16
        %v1553 = vor.u32 %v1550, %v1551
        %v1554 = vsel %vm1359, %v1546, %v1553
        %v1556 = vshrl.u32 %v1352, 16
        %v1558 = vrot.slane %v1556, 7
        %v1559 = vrot.slane %v1558, 4
        %v1561 = vshrl.u32 %v1353, 16
        %v1563 = vrot.slane %v1561, 7
        %v1564 = vshll.u32 %v1353, 16
        %v1566 = vor.u32 %v1563, %v1564
        %v1567 = vsel %vm1359, %v1559, %v1566
        %v1568 = vld [vmem:[%s3] sm:$0xf]
        %v1569 = vld [vmem:[%s3 + $0x4] sm:$0xf]
        %v1570 = vld [vmem:[%s3 + $0x8] sm:$0xf]
        %v1571 = vld [vmem:[%s3 + $0xc] sm:$0xf]
        %v1572 = vld [vmem:[%s3 + $0x10] sm:$0xf]
        %v1573 = vld [vmem:[%s3 + $0x14] sm:$0xf]
        %v1574 = vld [vmem:[%s3 + $0x18] sm:$0xf]
        %v1575 = vld [vmem:[%s3 + $0x1c] sm:$0xf]
        %v1576 = vld [vmem:[%s3 + $0x20] sm:$0xf]
        %v1577 = vld [vmem:[%s3 + $0x24] sm:$0xf]
        %v1578 = vld [vmem:[%s3 + $0x28] sm:$0xf]
        %v1579 = vld [vmem:[%s3 + $0x2c] sm:$0xf]
        %v1580 = vld [vmem:[%s3 + $0x30] sm:$0xf]
        %v1581 = vld [vmem:[%s3 + $0x34] sm:$0xf]
        %v1582 = vld [vmem:[%s3 + $0x38] sm:$0xf]
        %v1583 = vld [vmem:[%s3 + $0x3c] sm:$0xf]
        %v1584 = vunpack.c.l.b16 %v1372
        %v1585 = vunpack.c.l.b16 %v1385
        %v1586 = vunpack.c.l.b16 %v1398
        %v1587 = vunpack.c.l.b16 %v1411
        %v1588 = vunpack.c.l.b16 %v1424
        %v1589 = vunpack.c.l.b16 %v1437
        %v1590 = vunpack.c.l.b16 %v1450
        %v1591 = vunpack.c.l.b16 %v1463
        %v1592 = vunpack.c.l.b16 %v1476
        %v1593 = vunpack.c.l.b16 %v1489
        %v1594 = vunpack.c.l.b16 %v1502
        %v1595 = vunpack.c.l.b16 %v1515
        %v1596 = vunpack.c.l.b16 %v1528
        %v1597 = vunpack.c.l.b16 %v1541
        %v1598 = vunpack.c.l.b16 %v1554
        %v1599 = vunpack.c.l.b16 %v1567
        %v1600 = vpack.c.b16 %v1585, %v1584
        %v1601 = vpack.c.b16 %v1587, %v1586
        %v1602 = vpack.c.b16 %v1589, %v1588
        %v1603 = vpack.c.b16 %v1591, %v1590
        %v1604 = vpack.c.b16 %v1593, %v1592
        %v1605 = vpack.c.b16 %v1595, %v1594
        %v1606 = vpack.c.b16 %v1597, %v1596
        %v1607 = vpack.c.b16 %v1599, %v1598
        %v1632 = vunpack.c.l.b16 %v1568
        %v1633 = vunpack.c.l.b16 %v1569
        %v1634 = vunpack.c.l.b16 %v1570
        %v1635 = vunpack.c.l.b16 %v1571
        %v1636 = vunpack.c.l.b16 %v1572
        %v1637 = vunpack.c.l.b16 %v1573
        %v1638 = vunpack.c.l.b16 %v1574
        %v1639 = vunpack.c.l.b16 %v1575
        %v1640 = vunpack.c.l.b16 %v1576
        %v1641 = vunpack.c.l.b16 %v1577
        %v1642 = vunpack.c.l.b16 %v1578
        %v1643 = vunpack.c.l.b16 %v1579
        %v1644 = vunpack.c.l.b16 %v1580
        %v1645 = vunpack.c.l.b16 %v1581
        %v1646 = vunpack.c.l.b16 %v1582
        %v1647 = vunpack.c.l.b16 %v1583
        %v1648 = vpack.c.b16 %v1633, %v1632
        %v1649 = vpack.c.b16 %v1635, %v1634
        %v1650 = vpack.c.b16 %v1637, %v1636
        %v1651 = vpack.c.b16 %v1639, %v1638
        %v1652 = vpack.c.b16 %v1641, %v1640
        %v1653 = vpack.c.b16 %v1643, %v1642
        %v1654 = vpack.c.b16 %v1645, %v1644
        %v1655 = vpack.c.b16 %v1647, %v1646
        %1664 = vmatprep.subr.bf16.mxu0 0
        %1665 = vmatpush1.bf16.msra.mxu0 %v1648
        %1666 = vmatprep.subr.bf16.mxu0 0
        %1667 = vmatpush1.bf16.msra.mxu0 %v1649
        %1668 = vmatprep.subr.bf16.mxu0 0
        %1669 = vmatpush1.bf16.msra.mxu0 %v1650
        %1670 = vmatprep.subr.bf16.mxu0 0
        %1671 = vmatpush1.bf16.msra.mxu0 %v1651
        %1672 = vmatprep.subr.bf16.mxu0 0
        %1673 = vmatpush1.bf16.msra.mxu0 %v1652
        %1674 = vmatprep.subr.bf16.mxu0 0
        %1675 = vmatpush1.bf16.msra.mxu0 %v1653
        %1676 = vmatprep.subr.bf16.mxu0 0
        %1677 = vmatpush1.bf16.msra.mxu0 %v1654
        %1678 = vmatprep.subr.bf16.mxu0 0
        %1679 = vmatpush1.bf16.msra.mxu0 %v1655
        %1680 = vmatprep.subr.bf16.mxu0 0
        %1681 = vmatpush1.bf16.msra.mxu0 0
        %1682 = vmatprep.subr.bf16.mxu0 0
        %1683 = vmatpush1.bf16.msra.mxu0 0
        %1684 = vmatprep.subr.bf16.mxu0 0
        %1685 = vmatpush1.bf16.msra.mxu0 0
        %1686 = vmatprep.subr.bf16.mxu0 0
        %1687 = vmatpush1.bf16.msra.mxu0 0
        %1688 = vmatprep.subr.bf16.mxu0 0
        %1689 = vmatpush1.bf16.msra.mxu0 0
        %1690 = vmatprep.subr.bf16.mxu0 0
        %1691 = vmatpush1.bf16.msra.mxu0 0
        %1692 = vmatprep.subr.bf16.mxu0 0
        %1693 = vmatpush1.bf16.msra.mxu0 0
        %1694 = vmatprep.subr.bf16.mxu0 0
        %1695 = vmatpush1.bf16.msra.mxu0 0
        %1696 = vmatprep.mubr.bf16.mxu0 0
        %1697 = vmatmul.mubr.bf16.gmra.mrb[0].mxu0 %v1600
        %v1698 = vpop.f32.mrb[0].mxu0
        %v1699 = vadd.f32 0.0, %v1698
        %v1700 = vpop.f32.mrb[0].mxu0
        %v1701 = vpop.f32.mrb[0].mxu0
        %v1702 = vadd.f32 0.0, %v1701
        %v1703 = vpop.f32.mrb[0].mxu0
        %1704 = vmatprep.mubr.bf16.mxu0 0
        %1705 = vmatmul.mubr.bf16.gmra.mrb[0].mxu0 %v1601
        %v1706 = vpop.f32.mrb[0].mxu0
        %v1707 = vadd.f32 0.0, %v1706
        %v1708 = vpop.f32.mrb[0].mxu0
        %v1709 = vpop.f32.mrb[0].mxu0
        %v1710 = vadd.f32 0.0, %v1709
        %v1711 = vpop.f32.mrb[0].mxu0
        %1712 = vmatprep.mubr.bf16.mxu0 0
        %1713 = vmatmul.mubr.bf16.gmra.mrb[0].mxu0 %v1602
        %v1714 = vpop.f32.mrb[0].mxu0
        %v1715 = vadd.f32 0.0, %v1714
        %v1716 = vpop.f32.mrb[0].mxu0
        %v1717 = vpop.f32.mrb[0].mxu0
        %v1718 = vadd.f32 0.0, %v1717
        %v1719 = vpop.f32.mrb[0].mxu0
        %1720 = vmatprep.mubr.bf16.mxu0 0
        %1721 = vmatmul.mubr.bf16.gmra.mrb[0].mxu0 %v1603
        %v1722 = vpop.f32.mrb[0].mxu0
        %v1723 = vadd.f32 0.0, %v1722
        %v1724 = vpop.f32.mrb[0].mxu0
        %v1725 = vpop.f32.mrb[0].mxu0
        %v1726 = vadd.f32 0.0, %v1725
        %v1727 = vpop.f32.mrb[0].mxu0
        %1728 = vmatprep.mubr.bf16.mxu0 0
        %1729 = vmatmul.mubr.bf16.gmra.mrb[0].mxu0 %v1604
        %v1730 = vpop.f32.mrb[0].mxu0
        %v1731 = vadd.f32 0.0, %v1730
        %v1732 = vpop.f32.mrb[0].mxu0
        %v1733 = vpop.f32.mrb[0].mxu0
        %v1734 = vadd.f32 0.0, %v1733
        %v1735 = vpop.f32.mrb[0].mxu0
        %1736 = vmatprep.mubr.bf16.mxu0 0
        %1737 = vmatmul.mubr.bf16.gmra.mrb[0].mxu0 %v1605
        %v1738 = vpop.f32.mrb[0].mxu0
        %v1739 = vadd.f32 0.0, %v1738
        %v1740 = vpop.f32.mrb[0].mxu0
        %v1741 = vpop.f32.mrb[0].mxu0
        %v1742 = vadd.f32 0.0, %v1741
        %v1743 = vpop.f32.mrb[0].mxu0
        %1744 = vmatprep.mubr.bf16.mxu0 0
        %1745 = vmatmul.mubr.bf16.gmra.mrb[0].mxu0 %v1606
        %v1746 = vpop.f32.mrb[0].mxu0
        %v1747 = vadd.f32 0.0, %v1746
        %v1748 = vpop.f32.mrb[0].mxu0
        %v1749 = vpop.f32.mrb[0].mxu0
        %v1750 = vadd.f32 0.0, %v1749
        %v1751 = vpop.f32.mrb[0].mxu0
        %1752 = vmatprep.mubr.bf16.mxu0 0
        %1753 = vmatmul.mubr.bf16.gmra.mrb[0].mxu0 %v1607
        %v1754 = vpop.f32.mrb[0].mxu0
        %v1755 = vadd.f32 0.0, %v1754
        %v1756 = vpop.f32.mrb[0].mxu0
        %v1757 = vpop.f32.mrb[0].mxu0
        %v1758 = vadd.f32 0.0, %v1757
        %v1759 = vpop.f32.mrb[0].mxu0
        %1760 = vdwg.mxu0
        %1761 = vst [vmem:[#allocation3] sm:$0xff] %v1699
        %1762 = vst [vmem:[#allocation3 + $0x8] sm:$0xff] %v1702
        %1763 = vst [vmem:[#allocation3 + $0x10] sm:$0xff] %v1707
        %1764 = vst [vmem:[#allocation3 + $0x18] sm:$0xff] %v1710
        %1765 = vst [vmem:[#allocation3 + $0x20] sm:$0xff] %v1715
        %1766 = vst [vmem:[#allocation3 + $0x28] sm:$0xff] %v1718
        %1767 = vst [vmem:[#allocation3 + $0x30] sm:$0xff] %v1723
        %1768 = vst [vmem:[#allocation3 + $0x38] sm:$0xff] %v1726
        %1769 = vst [vmem:[#allocation3 + $0x40] sm:$0xff] %v1731
        %1770 = vst [vmem:[#allocation3 + $0x48] sm:$0xff] %v1734
        %1771 = vst [vmem:[#allocation3 + $0x50] sm:$0xff] %v1739
        %1772 = vst [vmem:[#allocation3 + $0x58] sm:$0xff] %v1742
        %1773 = vst [vmem:[#allocation3 + $0x60] sm:$0xff] %v1747
        %1774 = vst [vmem:[#allocation3 + $0x68] sm:$0xff] %v1750
        %1775 = vst [vmem:[#allocation3 + $0x70] sm:$0xff] %v1755
        %1776 = vst [vmem:[#allocation3 + $0x78] sm:$0xff] %v1758
        %v1778 = vshrl.u32 %v1334, 16
        %v1780 = vrot.slane %v1778, 7
        %v1781 = vrot.slane %v1780, 4
        %v1783 = vshrl.u32 %v1335, 16
        %v1785 = vrot.slane %v1783, 7
        %v1786 = vshll.u32 %v1335, 16
        %v1788 = vor.u32 %v1785, %v1786
        %v1789 = vsel %vm1359, %v1781, %v1788
        %v1791 = vshrl.u32 %v1354, 16
        %v1793 = vrot.slane %v1791, 7
        %v1794 = vrot.slane %v1793, 4
        %v1796 = vshrl.u32 %v1355, 16
        %v1798 = vrot.slane %v1796, 7
        %v1799 = vshll.u32 %v1355, 16
        %v1801 = vor.u32 %v1798, %v1799
        %v1802 = vsel %vm1359, %v1794, %v1801
        %s1803 = scalar_lea.vmem %s3, 192
        %v1804 = vld [vmem:[%s1803] sm:$0xf]
        %v1805 = vld [vmem:[%s1803 + $0x4] sm:$0xf]
        %v1806 = vld [vmem:[%s1803 + $0x8] sm:$0xf]
        %v1807 = vld [vmem:[%s1803 + $0xc] sm:$0xf]
        %v1808 = vld [vmem:[%s1803 + $0x10] sm:$0xf]
        %v1809 = vld [vmem:[%s1803 + $0x14] sm:$0xf]
        %v1810 = vld [vmem:[%s1803 + $0x18] sm:$0xf]
        %v1811 = vld [vmem:[%s1803 + $0x1c] sm:$0xf]
        %v1812 = vld [vmem:[%s1803 + $0x20] sm:$0xf]
        %v1813 = vld [vmem:[%s1803 + $0x24] sm:$0xf]
        %v1814 = vld [vmem:[%s1803 + $0x28] sm:$0xf]
        %v1815 = vld [vmem:[%s1803 + $0x2c] sm:$0xf]
        %v1816 = vld [vmem:[%s1803 + $0x30] sm:$0xf]
        %v1817 = vld [vmem:[%s1803 + $0x34] sm:$0xf]
        %v1818 = vld [vmem:[%s1803 + $0x38] sm:$0xf]
        %v1819 = vld [vmem:[%s1803 + $0x3c] sm:$0xf]
        %v1820 = vunpack.c.l.b16 %v1789
        %v1821 = vunpack.c.l.b16 %v1802
        %v1822 = vpack.c.b16 %v1586, %v1585
        %v1823 = vpack.c.b16 %v1588, %v1587
        %v1824 = vpack.c.b16 %v1590, %v1589
        %v1825 = vpack.c.b16 %v1820, %v1591
        %v1826 = vpack.c.b16 %v1594, %v1593
        %v1827 = vpack.c.b16 %v1596, %v1595
        %v1828 = vpack.c.b16 %v1598, %v1597
        %v1829 = vpack.c.b16 %v1821, %v1599
        %v1854 = vunpack.c.l.b16 %v1804
        %v1855 = vunpack.c.l.b16 %v1805
        %v1856 = vunpack.c.l.b16 %v1806
        %v1857 = vunpack.c.l.b16 %v1807
        %v1858 = vunpack.c.l.b16 %v1808
        %v1859 = vunpack.c.l.b16 %v1809
        %v1860 = vunpack.c.l.b16 %v1810
        %v1861 = vunpack.c.l.b16 %v1811
        %v1862 = vunpack.c.l.b16 %v1812
        %v1863 = vunpack.c.l.b16 %v1813
        %v1864 = vunpack.c.l.b16 %v1814
        %v1865 = vunpack.c.l.b16 %v1815
        %v1866 = vunpack.c.l.b16 %v1816
        %v1867 = vunpack.c.l.b16 %v1817
        %v1868 = vunpack.c.l.b16 %v1818
        %v1869 = vunpack.c.l.b16 %v1819
        %v1870 = vpack.c.b16 %v1855, %v1854
        %v1871 = vpack.c.b16 %v1857, %v1856
        %v1872 = vpack.c.b16 %v1859, %v1858
        %v1873 = vpack.c.b16 %v1861, %v1860
        %v1874 = vpack.c.b16 %v1863, %v1862
        %v1875 = vpack.c.b16 %v1865, %v1864
        %v1876 = vpack.c.b16 %v1867, %v1866
        %v1877 = vpack.c.b16 %v1869, %v1868
        %1886 = vmatprep.subr.bf16.mxu0 0
        %1887 = vmatpush1.bf16.msra.mxu0 %v1870
        %1888 = vmatprep.subr.bf16.mxu0 0
        %1889 = vmatpush1.bf16.msra.mxu0 %v1871
        %1890 = vmatprep.subr.bf16.mxu0 0
        %1891 = vmatpush1.bf16.msra.mxu0 %v1872
        %1892 = vmatprep.subr.bf16.mxu0 0
        %1893 = vmatpush1.bf16.msra.mxu0 %v1873
        %1894 = vmatprep.subr.bf16.mxu0 0
        %1895 = vmatpush1.bf16.msra.mxu0 %v1874
        %1896 = vmatprep.subr.bf16.mxu0 0
        %1897 = vmatpush1.bf16.msra.mxu0 %v1875
        %1898 = vmatprep.subr.bf16.mxu0 0
        %1899 = vmatpush1.bf16.msra.mxu0 %v1876
        %1900 = vmatprep.subr.bf16.mxu0 0
        %1901 = vmatpush1.bf16.msra.mxu0 %v1877
        %1902 = vmatprep.subr.bf16.mxu0 0
        %1903 = vmatpush1.bf16.msra.mxu0 0
        %1904 = vmatprep.subr.bf16.mxu0 0
        %1905 = vmatpush1.bf16.msra.mxu0 0
        %1906 = vmatprep.subr.bf16.mxu0 0
        %1907 = vmatpush1.bf16.msra.mxu0 0
        %1908 = vmatprep.subr.bf16.mxu0 0
        %1909 = vmatpush1.bf16.msra.mxu0 0
        %1910 = vmatprep.subr.bf16.mxu0 0
        %1911 = vmatpush1.bf16.msra.mxu0 0
        %1912 = vmatprep.subr.bf16.mxu0 0
        %1913 = vmatpush1.bf16.msra.mxu0 0
        %1914 = vmatprep.subr.bf16.mxu0 0
        %1915 = vmatpush1.bf16.msra.mxu0 0
        %1916 = vmatprep.subr.bf16.mxu0 0
        %1917 = vmatpush1.bf16.msra.mxu0 0
        %1918 = vmatprep.mubr.bf16.mxu0 0
        %1919 = vmatmul.mubr.bf16.gmra.mrb[0].mxu0 %v1822
        %v1920 = vpop.f32.mrb[0].mxu0
        %v1921 = vadd.f32 0.0, %v1920
        %v1922 = vpop.f32.mrb[0].mxu0
        %v1923 = vpop.f32.mrb[0].mxu0
        %v1924 = vadd.f32 0.0, %v1923
        %v1925 = vpop.f32.mrb[0].mxu0
        %1926 = vmatprep.mubr.bf16.mxu0 0
        %1927 = vmatmul.mubr.bf16.gmra.mrb[0].mxu0 %v1823
        %v1928 = vpop.f32.mrb[0].mxu0
        %v1929 = vadd.f32 0.0, %v1928
        %v1930 = vpop.f32.mrb[0].mxu0
        %v1931 = vpop.f32.mrb[0].mxu0
        %v1932 = vadd.f32 0.0, %v1931
        %v1933 = vpop.f32.mrb[0].mxu0
        %1934 = vmatprep.mubr.bf16.mxu0 0
        %1935 = vmatmul.mubr.bf16.gmra.mrb[0].mxu0 %v1824
        %v1936 = vpop.f32.mrb[0].mxu0
        %v1937 = vadd.f32 0.0, %v1936
        %v1938 = vpop.f32.mrb[0].mxu0
        %v1939 = vpop.f32.mrb[0].mxu0
        %v1940 = vadd.f32 0.0, %v1939
        %v1941 = vpop.f32.mrb[0].mxu0
        %1942 = vmatprep.mubr.bf16.mxu0 0
        %1943 = vmatmul.mubr.bf16.gmra.mrb[0].mxu0 %v1825
        %v1944 = vpop.f32.mrb[0].mxu0
        %v1945 = vadd.f32 0.0, %v1944
        %v1946 = vpop.f32.mrb[0].mxu0
        %v1947 = vpop.f32.mrb[0].mxu0
        %v1948 = vadd.f32 0.0, %v1947
        %v1949 = vpop.f32.mrb[0].mxu0
        %1950 = vmatprep.mubr.bf16.mxu0 0
        %1951 = vmatmul.mubr.bf16.gmra.mrb[0].mxu0 %v1826
        %v1952 = vpop.f32.mrb[0].mxu0
        %v1953 = vadd.f32 0.0, %v1952
        %v1954 = vpop.f32.mrb[0].mxu0
        %v1955 = vpop.f32.mrb[0].mxu0
        %v1956 = vadd.f32 0.0, %v1955
        %v1957 = vpop.f32.mrb[0].mxu0
        %1958 = vmatprep.mubr.bf16.mxu0 0
        %1959 = vmatmul.mubr.bf16.gmra.mrb[0].mxu0 %v1827
        %v1960 = vpop.f32.mrb[0].mxu0
        %v1961 = vadd.f32 0.0, %v1960
        %v1962 = vpop.f32.mrb[0].mxu0
        %v1963 = vpop.f32.mrb[0].mxu0
        %v1964 = vadd.f32 0.0, %v1963
        %v1965 = vpop.f32.mrb[0].mxu0
        %1966 = vmatprep.mubr.bf16.mxu0 0
        %1967 = vmatmul.mubr.bf16.gmra.mrb[0].mxu0 %v1828
        %v1968 = vpop.f32.mrb[0].mxu0
        %v1969 = vadd.f32 0.0, %v1968
        %v1970 = vpop.f32.mrb[0].mxu0
        %v1971 = vpop.f32.mrb[0].mxu0
        %v1972 = vadd.f32 0.0, %v1971
        %v1973 = vpop.f32.mrb[0].mxu0
        %1974 = vmatprep.mubr.bf16.mxu0 0
        %1975 = vmatmul.mubr.bf16.gmra.mrb[0].mxu0 %v1829
        %v1976 = vpop.f32.mrb[0].mxu0
        %v1977 = vadd.f32 0.0, %v1976
        %v1978 = vpop.f32.mrb[0].mxu0
        %v1979 = vpop.f32.mrb[0].mxu0
        %v1980 = vadd.f32 0.0, %v1979
        %v1981 = vpop.f32.mrb[0].mxu0
        %1982 = vdwg.mxu0
        %v1983 = vld [vmem:[#allocation3] sm:$0xff]
        %v1984 = vld [vmem:[#allocation3 + $0x8] sm:$0xff]
        %v1985 = vld [vmem:[#allocation3 + $0x10] sm:$0xff]
        %v1986 = vld [vmem:[#allocation3 + $0x18] sm:$0xff]
        %v1987 = vld [vmem:[#allocation3 + $0x20] sm:$0xff]
        %v1988 = vld [vmem:[#allocation3 + $0x28] sm:$0xff]
        %v1989 = vld [vmem:[#allocation3 + $0x30] sm:$0xff]
        %v1990 = vld [vmem:[#allocation3 + $0x38] sm:$0xff]
        %v1991 = vld [vmem:[#allocation3 + $0x40] sm:$0xff]
        %v1992 = vld [vmem:[#allocation3 + $0x48] sm:$0xff]
        %v1993 = vld [vmem:[#allocation3 + $0x50] sm:$0xff]
        %v1994 = vld [vmem:[#allocation3 + $0x58] sm:$0xff]
        %v1995 = vld [vmem:[#allocation3 + $0x60] sm:$0xff]
        %v1996 = vld [vmem:[#allocation3 + $0x68] sm:$0xff]
        %v1997 = vld [vmem:[#allocation3 + $0x70] sm:$0xff]
        %v1998 = vld [vmem:[#allocation3 + $0x78] sm:$0xff]
        %v1999 = vadd.f32 %v1983, %v1921
        %v2000 = vadd.f32 %v1984, %v1924
        %v2001 = vadd.f32 %v1985, %v1929
        %v2002 = vadd.f32 %v1986, %v1932
        %v2003 = vadd.f32 %v1987, %v1937
        %v2004 = vadd.f32 %v1988, %v1940
        %v2005 = vadd.f32 %v1989, %v1945
        %v2006 = vadd.f32 %v1990, %v1948
        %v2007 = vadd.f32 %v1991, %v1953
        %v2008 = vadd.f32 %v1992, %v1956
        %v2009 = vadd.f32 %v1993, %v1961
        %v2010 = vadd.f32 %v1994, %v1964
        %v2011 = vadd.f32 %v1995, %v1969
        %v2012 = vadd.f32 %v1996, %v1972
        %v2013 = vadd.f32 %v1997, %v1977
        %v2014 = vadd.f32 %v1998, %v1980
        %2015 = vst [vmem:[#allocation3] sm:$0xff] %v1999
        %2016 = vst [vmem:[#allocation3 + $0x8] sm:$0xff] %v2000
        %2017 = vst [vmem:[#allocation3 + $0x10] sm:$0xff] %v2001
        %2018 = vst [vmem:[#allocation3 + $0x18] sm:$0xff] %v2002
        %2019 = vst [vmem:[#allocation3 + $0x20] sm:$0xff] %v2003
        %2020 = vst [vmem:[#allocation3 + $0x28] sm:$0xff] %v2004
        %2021 = vst [vmem:[#allocation3 + $0x30] sm:$0xff] %v2005
        %2022 = vst [vmem:[#allocation3 + $0x38] sm:$0xff] %v2006
        %2023 = vst [vmem:[#allocation3 + $0x40] sm:$0xff] %v2007
        %2024 = vst [vmem:[#allocation3 + $0x48] sm:$0xff] %v2008
        %2025 = vst [vmem:[#allocation3 + $0x50] sm:$0xff] %v2009
        %2026 = vst [vmem:[#allocation3 + $0x58] sm:$0xff] %v2010
        %2027 = vst [vmem:[#allocation3 + $0x60] sm:$0xff] %v2011
        %2028 = vst [vmem:[#allocation3 + $0x68] sm:$0xff] %v2012
        %2029 = vst [vmem:[#allocation3 + $0x70] sm:$0xff] %v2013
        %2030 = vst [vmem:[#allocation3 + $0x78] sm:$0xff] %v2014
        %v2032 = vshrl.u32 %v1336, 16
        %v2034 = vrot.slane %v2032, 7
        %v2035 = vrot.slane %v2034, 4
        %v2037 = vshrl.u32 %v1337, 16
        %v2039 = vrot.slane %v2037, 7
        %v2040 = vshll.u32 %v1337, 16
        %v2042 = vor.u32 %v2039, %v2040
        %v2043 = vsel %vm1359, %v2035, %v2042
        %v2045 = vshrl.u32 %v1356, 16
        %v2047 = vrot.slane %v2045, 7
        %v2048 = vrot.slane %v2047, 4
        %v2050 = vshrl.u32 %v1357, 16
        %v2052 = vrot.slane %v2050, 7
        %v2053 = vshll.u32 %v1357, 16
        %v2055 = vor.u32 %v2052, %v2053
        %v2056 = vsel %vm1359, %v2048, %v2055
        %s2057 = scalar_lea.vmem %s3, 384
        %v2058 = vld [vmem:[%s2057] sm:$0xf]
        %v2059 = vld [vmem:[%s2057 + $0x4] sm:$0xf]
        %v2060 = vld [vmem:[%s2057 + $0x8] sm:$0xf]
        %v2061 = vld [vmem:[%s2057 + $0xc] sm:$0xf]
        %v2062 = vld [vmem:[%s2057 + $0x10] sm:$0xf]
        %v2063 = vld [vmem:[%s2057 + $0x14] sm:$0xf]
        %v2064 = vld [vmem:[%s2057 + $0x18] sm:$0xf]
        %v2065 = vld [vmem:[%s2057 + $0x1c] sm:$0xf]
        %v2066 = vld [vmem:[%s2057 + $0x20] sm:$0xf]
        %v2067 = vld [vmem:[%s2057 + $0x24] sm:$0xf]
        %v2068 = vld [vmem:[%s2057 + $0x28] sm:$0xf]
        %v2069 = vld [vmem:[%s2057 + $0x2c] sm:$0xf]
        %v2070 = vld [vmem:[%s2057 + $0x30] sm:$0xf]
        %v2071 = vld [vmem:[%s2057 + $0x34] sm:$0xf]
        %v2072 = vld [vmem:[%s2057 + $0x38] sm:$0xf]
        %v2073 = vld [vmem:[%s2057 + $0x3c] sm:$0xf]
        %v2074 = vunpack.c.l.b16 %v2043
        %v2075 = vunpack.c.l.b16 %v2056
        %v2076 = vpack.c.b16 %v2074, %v1820
        %v2077 = vpack.c.b16 %v2075, %v1821
        %v2096 = vunpack.c.l.b16 %v2058
        %v2097 = vunpack.c.l.b16 %v2059
        %v2098 = vunpack.c.l.b16 %v2060
        %v2099 = vunpack.c.l.b16 %v2061
        %v2100 = vunpack.c.l.b16 %v2062
        %v2101 = vunpack.c.l.b16 %v2063
        %v2102 = vunpack.c.l.b16 %v2064
        %v2103 = vunpack.c.l.b16 %v2065
        %v2104 = vunpack.c.l.b16 %v2066
        %v2105 = vunpack.c.l.b16 %v2067
        %v2106 = vunpack.c.l.b16 %v2068
        %v2107 = vunpack.c.l.b16 %v2069
        %v2108 = vunpack.c.l.b16 %v2070
        %v2109 = vunpack.c.l.b16 %v2071
        %v2110 = vunpack.c.l.b16 %v2072
        %v2111 = vunpack.c.l.b16 %v2073
        %v2112 = vpack.c.b16 %v2097, %v2096
        %v2113 = vpack.c.b16 %v2099, %v2098
        %v2114 = vpack.c.b16 %v2101, %v2100
        %v2115 = vpack.c.b16 %v2103, %v2102
        %v2116 = vpack.c.b16 %v2105, %v2104
        %v2117 = vpack.c.b16 %v2107, %v2106
        %v2118 = vpack.c.b16 %v2109, %v2108
        %v2119 = vpack.c.b16 %v2111, %v2110
        %2128 = vmatprep.subr.bf16.mxu0 0
        %2129 = vmatpush1.bf16.msra.mxu0 %v2112
        %2130 = vmatprep.subr.bf16.mxu0 0
        %2131 = vmatpush1.bf16.msra.mxu0 %v2113
        %2132 = vmatprep.subr.bf16.mxu0 0
        %2133 = vmatpush1.bf16.msra.mxu0 %v2114
        %2134 = vmatprep.subr.bf16.mxu0 0
        %2135 = vmatpush1.bf16.msra.mxu0 %v2115
        %2136 = vmatprep.subr.bf16.mxu0 0
        %2137 = vmatpush1.bf16.msra.mxu0 %v2116
        %2138 = vmatprep.subr.bf16.mxu0 0
        %2139 = vmatpush1.bf16.msra.mxu0 %v2117
        %2140 = vmatprep.subr.bf16.mxu0 0
        %2141 = vmatpush1.bf16.msra.mxu0 %v2118
        %2142 = vmatprep.subr.bf16.mxu0 0
        %2143 = vmatpush1.bf16.msra.mxu0 %v2119
        %2144 = vmatprep.subr.bf16.mxu0 0
        %2145 = vmatpush1.bf16.msra.mxu0 0
        %2146 = vmatprep.subr.bf16.mxu0 0
        %2147 = vmatpush1.bf16.msra.mxu0 0
        %2148 = vmatprep.subr.bf16.mxu0 0
        %2149 = vmatpush1.bf16.msra.mxu0 0
        %2150 = vmatprep.subr.bf16.mxu0 0
        %2151 = vmatpush1.bf16.msra.mxu0 0
        %2152 = vmatprep.subr.bf16.mxu0 0
        %2153 = vmatpush1.bf16.msra.mxu0 0
        %2154 = vmatprep.subr.bf16.mxu0 0
        %2155 = vmatpush1.bf16.msra.mxu0 0
        %2156 = vmatprep.subr.bf16.mxu0 0
        %2157 = vmatpush1.bf16.msra.mxu0 0
        %2158 = vmatprep.subr.bf16.mxu0 0
        %2159 = vmatpush1.bf16.msra.mxu0 0
        %2160 = vmatprep.mubr.bf16.mxu0 0
        %2161 = vmatmul.mubr.bf16.gmra.mrb[0].mxu0 %v1601
        %v2162 = vpop.f32.mrb[0].mxu0
        %v2163 = vadd.f32 0.0, %v2162
        %v2164 = vpop.f32.mrb[0].mxu0
        %v2165 = vpop.f32.mrb[0].mxu0
        %v2166 = vadd.f32 0.0, %v2165
        %v2167 = vpop.f32.mrb[0].mxu0
        %2168 = vmatprep.mubr.bf16.mxu0 0
        %2169 = vmatmul.mubr.bf16.gmra.mrb[0].mxu0 %v1602
        %v2170 = vpop.f32.mrb[0].mxu0
        %v2171 = vadd.f32 0.0, %v2170
        %v2172 = vpop.f32.mrb[0].mxu0
        %v2173 = vpop.f32.mrb[0].mxu0
        %v2174 = vadd.f32 0.0, %v2173
        %v2175 = vpop.f32.mrb[0].mxu0
        %2176 = vmatprep.mubr.bf16.mxu0 0
        %2177 = vmatmul.mubr.bf16.gmra.mrb[0].mxu0 %v1603
        %v2178 = vpop.f32.mrb[0].mxu0
        %v2179 = vadd.f32 0.0, %v2178
        %v2180 = vpop.f32.mrb[0].mxu0
        %v2181 = vpop.f32.mrb[0].mxu0
        %v2182 = vadd.f32 0.0, %v2181
        %v2183 = vpop.f32.mrb[0].mxu0
        %2184 = vmatprep.mubr.bf16.mxu0 0
        %2185 = vmatmul.mubr.bf16.gmra.mrb[0].mxu0 %v2076
        %v2186 = vpop.f32.mrb[0].mxu0
        %v2187 = vadd.f32 0.0, %v2186
        %v2188 = vpop.f32.mrb[0].mxu0
        %v2189 = vpop.f32.mrb[0].mxu0
        %v2190 = vadd.f32 0.0, %v2189
        %v2191 = vpop.f32.mrb[0].mxu0
        %2192 = vmatprep.mubr.bf16.mxu0 0
        %2193 = vmatmul.mubr.bf16.gmra.mrb[0].mxu0 %v1605
        %v2194 = vpop.f32.mrb[0].mxu0
        %v2195 = vadd.f32 0.0, %v2194
        %v2196 = vpop.f32.mrb[0].mxu0
        %v2197 = vpop.f32.mrb[0].mxu0
        %v2198 = vadd.f32 0.0, %v2197
        %v2199 = vpop.f32.mrb[0].mxu0
        %2200 = vmatprep.mubr.bf16.mxu0 0
        %2201 = vmatmul.mubr.bf16.gmra.mrb[0].mxu0 %v1606
        %v2202 = vpop.f32.mrb[0].mxu0
        %v2203 = vadd.f32 0.0, %v2202
        %v2204 = vpop.f32.mrb[0].mxu0
        %v2205 = vpop.f32.mrb[0].mxu0
        %v2206 = vadd.f32 0.0, %v2205
        %v2207 = vpop.f32.mrb[0].mxu0
        %2208 = vmatprep.mubr.bf16.mxu0 0
        %2209 = vmatmul.mubr.bf16.gmra.mrb[0].mxu0 %v1607
        %v2210 = vpop.f32.mrb[0].mxu0
        %v2211 = vadd.f32 0.0, %v2210
        %v2212 = vpop.f32.mrb[0].mxu0
        %v2213 = vpop.f32.mrb[0].mxu0
        %v2214 = vadd.f32 0.0, %v2213
        %v2215 = vpop.f32.mrb[0].mxu0
        %2216 = vmatprep.mubr.bf16.mxu0 0
        %2217 = vmatmul.mubr.bf16.gmra.mrb[0].mxu0 %v2077
        %v2218 = vpop.f32.mrb[0].mxu0
        %v2219 = vadd.f32 0.0, %v2218
        %v2220 = vpop.f32.mrb[0].mxu0
        %v2221 = vpop.f32.mrb[0].mxu0
        %v2222 = vadd.f32 0.0, %v2221
        %v2223 = vpop.f32.mrb[0].mxu0
        %2224 = vdwg.mxu0
        %v2225 = vld [vmem:[#allocation3] sm:$0xff]
        %v2226 = vld [vmem:[#allocation3 + $0x8] sm:$0xff]
        %v2227 = vld [vmem:[#allocation3 + $0x10] sm:$0xff]
        %v2228 = vld [vmem:[#allocation3 + $0x18] sm:$0xff]
        %v2229 = vld [vmem:[#allocation3 + $0x20] sm:$0xff]
        %v2230 = vld [vmem:[#allocation3 + $0x28] sm:$0xff]
        %v2231 = vld [vmem:[#allocation3 + $0x30] sm:$0xff]
        %v2232 = vld [vmem:[#allocation3 + $0x38] sm:$0xff]
        %v2233 = vld [vmem:[#allocation3 + $0x40] sm:$0xff]
        %v2234 = vld [vmem:[#allocation3 + $0x48] sm:$0xff]
        %v2235 = vld [vmem:[#allocation3 + $0x50] sm:$0xff]
        %v2236 = vld [vmem:[#allocation3 + $0x58] sm:$0xff]
        %v2237 = vld [vmem:[#allocation3 + $0x60] sm:$0xff]
        %v2238 = vld [vmem:[#allocation3 + $0x68] sm:$0xff]
        %v2239 = vld [vmem:[#allocation3 + $0x70] sm:$0xff]
        %v2240 = vld [vmem:[#allocation3 + $0x78] sm:$0xff]
        %v2241 = vadd.f32 %v2225, %v2163
        %v2242 = vadd.f32 %v2226, %v2166
        %v2243 = vadd.f32 %v2227, %v2171
        %v2244 = vadd.f32 %v2228, %v2174
        %v2245 = vadd.f32 %v2229, %v2179
        %v2246 = vadd.f32 %v2230, %v2182
        %v2247 = vadd.f32 %v2231, %v2187
        %v2248 = vadd.f32 %v2232, %v2190
        %v2249 = vadd.f32 %v2233, %v2195
        %v2250 = vadd.f32 %v2234, %v2198
        %v2251 = vadd.f32 %v2235, %v2203
        %v2252 = vadd.f32 %v2236, %v2206
        %v2253 = vadd.f32 %v2237, %v2211
        %v2254 = vadd.f32 %v2238, %v2214
        %v2255 = vadd.f32 %v2239, %v2219
        %v2256 = vadd.f32 %v2240, %v2222
        %2257 = vst [vmem:[#allocation3] sm:$0xff] %v2241
        %2258 = vst [vmem:[#allocation3 + $0x8] sm:$0xff] %v2242
        %2259 = vst [vmem:[#allocation3 + $0x10] sm:$0xff] %v2243
        %2260 = vst [vmem:[#allocation3 + $0x18] sm:$0xff] %v2244
        %2261 = vst [vmem:[#allocation3 + $0x20] sm:$0xff] %v2245
        %2262 = vst [vmem:[#allocation3 + $0x28] sm:$0xff] %v2246
        %2263 = vst [vmem:[#allocation3 + $0x30] sm:$0xff] %v2247
        %2264 = vst [vmem:[#allocation3 + $0x38] sm:$0xff] %v2248
        %2265 = vst [vmem:[#allocation3 + $0x40] sm:$0xff] %v2249
        %2266 = vst [vmem:[#allocation3 + $0x48] sm:$0xff] %v2250
        %2267 = vst [vmem:[#allocation3 + $0x50] sm:$0xff] %v2251
        %2268 = vst [vmem:[#allocation3 + $0x58] sm:$0xff] %v2252
        %2269 = vst [vmem:[#allocation3 + $0x60] sm:$0xff] %v2253
        %2270 = vst [vmem:[#allocation3 + $0x68] sm:$0xff] %v2254
        %2271 = vst [vmem:[#allocation3 + $0x70] sm:$0xff] %v2255
        %2272 = vst [vmem:[#allocation3 + $0x78] sm:$0xff] %v2256
        %v2273 = vld [vmem:[#allocation2 + $0x8] sm:$0xf]
        %v2274 = vld [vmem:[#allocation2 + $0x18] sm:$0xf]
        %v2275 = vld [vmem:[#allocation2 + $0x28] sm:$0xf]
        %v2276 = vld [vmem:[#allocation2 + $0x38] sm:$0xf]
        %v2277 = vld [vmem:[#allocation2 + $0x48] sm:$0xf]
        %v2278 = vld [vmem:[#allocation2 + $0x58] sm:$0xf]
        %v2279 = vld [vmem:[#allocation2 + $0x68] sm:$0xf]
        %v2280 = vld [vmem:[#allocation2 + $0x78] sm:$0xf]
        %v2281 = vld [vmem:[#allocation2 + $0x88] sm:$0xf]
        %v2282 = vld [vmem:[#allocation2 + $0x98] sm:$0xf]
        %v2283 = vld [vmem:[#allocation2 + $0xa8] sm:$0xf]
        %v2284 = vld [vmem:[#allocation2 + $0xb8] sm:$0xf]
        %v2285 = vld [vmem:[#allocation2 + $0xc8] sm:$0xf]
        %v2286 = vld [vmem:[#allocation2 + $0xd8] sm:$0xf]
        %v2287 = vld [vmem:[#allocation2 + $0xe8] sm:$0xf]
        %v2288 = vld [vmem:[#allocation2 + $0xf8] sm:$0xf]
        %v2289 = vld [vmem:[#allocation2 + $0x108] sm:$0xf]
        %v2290 = vld [vmem:[#allocation2 + $0x118] sm:$0xf]
        %v2291 = vld [vmem:[#allocation2 + $0x128] sm:$0xf]
        %v2292 = vld [vmem:[#allocation2 + $0x138] sm:$0xf]
        %s2293 = scalar_lea.vmem %s3, 64
        %v2294 = vld [vmem:[%s2293] sm:$0xf]
        %v2295 = vld [vmem:[%s2293 + $0x4] sm:$0xf]
        %v2296 = vld [vmem:[%s2293 + $0x8] sm:$0xf]
        %v2297 = vld [vmem:[%s2293 + $0xc] sm:$0xf]
        %v2298 = vld [vmem:[%s2293 + $0x10] sm:$0xf]
        %v2299 = vld [vmem:[%s2293 + $0x14] sm:$0xf]
        %v2300 = vld [vmem:[%s2293 + $0x18] sm:$0xf]
        %v2301 = vld [vmem:[%s2293 + $0x1c] sm:$0xf]
        %v2302 = vld [vmem:[%s2293 + $0x20] sm:$0xf]
        %v2303 = vld [vmem:[%s2293 + $0x24] sm:$0xf]
        %v2304 = vld [vmem:[%s2293 + $0x28] sm:$0xf]
        %v2305 = vld [vmem:[%s2293 + $0x2c] sm:$0xf]
        %v2306 = vld [vmem:[%s2293 + $0x30] sm:$0xf]
        %v2307 = vld [vmem:[%s2293 + $0x34] sm:$0xf]
        %v2308 = vld [vmem:[%s2293 + $0x38] sm:$0xf]
        %v2309 = vld [vmem:[%s2293 + $0x3c] sm:$0xf]
        %v2326 = vunpack.c.l.b16 %v2273
        %v2327 = vunpack.c.l.b16 %v2274
        %v2328 = vunpack.c.l.b16 %v2275
        %v2329 = vunpack.c.l.b16 %v2276
        %v2330 = vunpack.c.l.b16 %v2277
        %v2331 = vunpack.c.l.b16 %v2278
        %v2332 = vunpack.c.l.b16 %v2279
        %v2333 = vunpack.c.l.b16 %v2280
        %v2334 = vunpack.c.l.b16 %v2283
        %v2335 = vunpack.c.l.b16 %v2284
        %v2336 = vunpack.c.l.b16 %v2285
        %v2337 = vunpack.c.l.b16 %v2286
        %v2338 = vunpack.c.l.b16 %v2287
        %v2339 = vunpack.c.l.b16 %v2288
        %v2340 = vunpack.c.l.b16 %v2289
        %v2341 = vunpack.c.l.b16 %v2290
        %v2342 = vpack.c.b16 %v2327, %v2326
        %v2343 = vpack.c.b16 %v2329, %v2328
        %v2344 = vpack.c.b16 %v2331, %v2330
        %v2345 = vpack.c.b16 %v2333, %v2332
        %v2346 = vpack.c.b16 %v2335, %v2334
        %v2347 = vpack.c.b16 %v2337, %v2336
        %v2348 = vpack.c.b16 %v2339, %v2338
        %v2349 = vpack.c.b16 %v2341, %v2340
        %v2374 = vunpack.c.l.b16 %v2294
        %v2375 = vunpack.c.l.b16 %v2295
        %v2376 = vunpack.c.l.b16 %v2296
        %v2377 = vunpack.c.l.b16 %v2297
        %v2378 = vunpack.c.l.b16 %v2298
        %v2379 = vunpack.c.l.b16 %v2299
        %v2380 = vunpack.c.l.b16 %v2300
        %v2381 = vunpack.c.l.b16 %v2301
        %v2382 = vunpack.c.l.b16 %v2302
        %v2383 = vunpack.c.l.b16 %v2303
        %v2384 = vunpack.c.l.b16 %v2304
        %v2385 = vunpack.c.l.b16 %v2305
        %v2386 = vunpack.c.l.b16 %v2306
        %v2387 = vunpack.c.l.b16 %v2307
        %v2388 = vunpack.c.l.b16 %v2308
        %v2389 = vunpack.c.l.b16 %v2309
        %v2390 = vpack.c.b16 %v2375, %v2374
        %v2391 = vpack.c.b16 %v2377, %v2376
        %v2392 = vpack.c.b16 %v2379, %v2378
        %v2393 = vpack.c.b16 %v2381, %v2380
        %v2394 = vpack.c.b16 %v2383, %v2382
        %v2395 = vpack.c.b16 %v2385, %v2384
        %v2396 = vpack.c.b16 %v2387, %v2386
        %v2397 = vpack.c.b16 %v2389, %v2388
        %2406 = vmatprep.subr.bf16.mxu0 0
        %2407 = vmatpush1.bf16.msra.mxu0 %v2390
        %2408 = vmatprep.subr.bf16.mxu0 0
        %2409 = vmatpush1.bf16.msra.mxu0 %v2391
        %2410 = vmatprep.subr.bf16.mxu0 0
        %2411 = vmatpush1.bf16.msra.mxu0 %v2392
        %2412 = vmatprep.subr.bf16.mxu0 0
        %2413 = vmatpush1.bf16.msra.mxu0 %v2393
        %2414 = vmatprep.subr.bf16.mxu0 0
        %2415 = vmatpush1.bf16.msra.mxu0 %v2394
        %2416 = vmatprep.subr.bf16.mxu0 0
        %2417 = vmatpush1.bf16.msra.mxu0 %v2395
        %2418 = vmatprep.subr.bf16.mxu0 0
        %2419 = vmatpush1.bf16.msra.mxu0 %v2396
        %2420 = vmatprep.subr.bf16.mxu0 0
        %2421 = vmatpush1.bf16.msra.mxu0 %v2397
        %2422 = vmatprep.subr.bf16.mxu0 0
        %2423 = vmatpush1.bf16.msra.mxu0 0
        %2424 = vmatprep.subr.bf16.mxu0 0
        %2425 = vmatpush1.bf16.msra.mxu0 0
        %2426 = vmatprep.subr.bf16.mxu0 0
        %2427 = vmatpush1.bf16.msra.mxu0 0
        %2428 = vmatprep.subr.bf16.mxu0 0
        %2429 = vmatpush1.bf16.msra.mxu0 0
        %2430 = vmatprep.subr.bf16.mxu0 0
        %2431 = vmatpush1.bf16.msra.mxu0 0
        %2432 = vmatprep.subr.bf16.mxu0 0
        %2433 = vmatpush1.bf16.msra.mxu0 0
        %2434 = vmatprep.subr.bf16.mxu0 0
        %2435 = vmatpush1.bf16.msra.mxu0 0
        %2436 = vmatprep.subr.bf16.mxu0 0
        %2437 = vmatpush1.bf16.msra.mxu0 0
        %2438 = vmatprep.mubr.bf16.mxu0 0
        %2439 = vmatmul.mubr.bf16.gmra.mrb[0].mxu0 %v2342
        %v2440 = vpop.f32.mrb[0].mxu0
        %v2441 = vadd.f32 0.0, %v2440
        %v2442 = vpop.f32.mrb[0].mxu0
        %v2443 = vpop.f32.mrb[0].mxu0
        %v2444 = vadd.f32 0.0, %v2443
        %v2445 = vpop.f32.mrb[0].mxu0
        %2446 = vmatprep.mubr.bf16.mxu0 0
        %2447 = vmatmul.mubr.bf16.gmra.mrb[0].mxu0 %v2343
        %v2448 = vpop.f32.mrb[0].mxu0
        %v2449 = vadd.f32 0.0, %v2448
        %v2450 = vpop.f32.mrb[0].mxu0
        %v2451 = vpop.f32.mrb[0].mxu0
        %v2452 = vadd.f32 0.0, %v2451
        %v2453 = vpop.f32.mrb[0].mxu0
        %2454 = vmatprep.mubr.bf16.mxu0 0
        %2455 = vmatmul.mubr.bf16.gmra.mrb[0].mxu0 %v2344
        %v2456 = vpop.f32.mrb[0].mxu0
        %v2457 = vadd.f32 0.0, %v2456
        %v2458 = vpop.f32.mrb[0].mxu0
        %v2459 = vpop.f32.mrb[0].mxu0
        %v2460 = vadd.f32 0.0, %v2459
        %v2461 = vpop.f32.mrb[0].mxu0
        %2462 = vmatprep.mubr.bf16.mxu0 0
        %2463 = vmatmul.mubr.bf16.gmra.mrb[0].mxu0 %v2345
        %v2464 = vpop.f32.mrb[0].mxu0
        %v2465 = vadd.f32 0.0, %v2464
        %v2466 = vpop.f32.mrb[0].mxu0
        %v2467 = vpop.f32.mrb[0].mxu0
        %v2468 = vadd.f32 0.0, %v2467
        %v2469 = vpop.f32.mrb[0].mxu0
        %2470 = vmatprep.mubr.bf16.mxu0 0
        %2471 = vmatmul.mubr.bf16.gmra.mrb[0].mxu0 %v2346
        %v2472 = vpop.f32.mrb[0].mxu0
        %v2473 = vadd.f32 0.0, %v2472
        %v2474 = vpop.f32.mrb[0].mxu0
        %v2475 = vpop.f32.mrb[0].mxu0
        %v2476 = vadd.f32 0.0, %v2475
        %v2477 = vpop.f32.mrb[0].mxu0
        %2478 = vmatprep.mubr.bf16.mxu0 0
        %2479 = vmatmul.mubr.bf16.gmra.mrb[0].mxu0 %v2347
        %v2480 = vpop.f32.mrb[0].mxu0
        %v2481 = vadd.f32 0.0, %v2480
        %v2482 = vpop.f32.mrb[0].mxu0
        %v2483 = vpop.f32.mrb[0].mxu0
        %v2484 = vadd.f32 0.0, %v2483
        %v2485 = vpop.f32.mrb[0].mxu0
        %2486 = vmatprep.mubr.bf16.mxu0 0
        %2487 = vmatmul.mubr.bf16.gmra.mrb[0].mxu0 %v2348
        %v2488 = vpop.f32.mrb[0].mxu0
        %v2489 = vadd.f32 0.0, %v2488
        %v2490 = vpop.f32.mrb[0].mxu0
        %v2491 = vpop.f32.mrb[0].mxu0
        %v2492 = vadd.f32 0.0, %v2491
        %v2493 = vpop.f32.mrb[0].mxu0
        %2494 = vmatprep.mubr.bf16.mxu0 0
        %2495 = vmatmul.mubr.bf16.gmra.mrb[0].mxu0 %v2349
        %v2496 = vpop.f32.mrb[0].mxu0
        %v2497 = vadd.f32 0.0, %v2496
        %v2498 = vpop.f32.mrb[0].mxu0
        %v2499 = vpop.f32.mrb[0].mxu0
        %v2500 = vadd.f32 0.0, %v2499
        %v2501 = vpop.f32.mrb[0].mxu0
        %2502 = vdwg.mxu0
        %v2503 = vld [vmem:[#allocation3] sm:$0xff]
        %v2504 = vld [vmem:[#allocation3 + $0x8] sm:$0xff]
        %v2505 = vld [vmem:[#allocation3 + $0x10] sm:$0xff]
        %v2506 = vld [vmem:[#allocation3 + $0x18] sm:$0xff]
        %v2507 = vld [vmem:[#allocation3 + $0x20] sm:$0xff]
        %v2508 = vld [vmem:[#allocation3 + $0x28] sm:$0xff]
        %v2509 = vld [vmem:[#allocation3 + $0x30] sm:$0xff]
        %v2510 = vld [vmem:[#allocation3 + $0x38] sm:$0xff]
        %v2511 = vld [vmem:[#allocation3 + $0x40] sm:$0xff]
        %v2512 = vld [vmem:[#allocation3 + $0x48] sm:$0xff]
        %v2513 = vld [vmem:[#allocation3 + $0x50] sm:$0xff]
        %v2514 = vld [vmem:[#allocation3 + $0x58] sm:$0xff]
        %v2515 = vld [vmem:[#allocation3 + $0x60] sm:$0xff]
        %v2516 = vld [vmem:[#allocation3 + $0x68] sm:$0xff]
        %v2517 = vld [vmem:[#allocation3 + $0x70] sm:$0xff]
        %v2518 = vld [vmem:[#allocation3 + $0x78] sm:$0xff]
        %v2519 = vadd.f32 %v2503, %v2441
        %v2520 = vadd.f32 %v2504, %v2444
        %v2521 = vadd.f32 %v2505, %v2449
        %v2522 = vadd.f32 %v2506, %v2452
        %v2523 = vadd.f32 %v2507, %v2457
        %v2524 = vadd.f32 %v2508, %v2460
        %v2525 = vadd.f32 %v2509, %v2465
        %v2526 = vadd.f32 %v2510, %v2468
        %v2527 = vadd.f32 %v2511, %v2473
        %v2528 = vadd.f32 %v2512, %v2476
        %v2529 = vadd.f32 %v2513, %v2481
        %v2530 = vadd.f32 %v2514, %v2484
        %v2531 = vadd.f32 %v2515, %v2489
        %v2532 = vadd.f32 %v2516, %v2492
        %v2533 = vadd.f32 %v2517, %v2497
        %v2534 = vadd.f32 %v2518, %v2500
        %2535 = vst [vmem:[#allocation3] sm:$0xff] %v2519
        %2536 = vst [vmem:[#allocation3 + $0x8] sm:$0xff] %v2520
        %2537 = vst [vmem:[#allocation3 + $0x10] sm:$0xff] %v2521
        %2538 = vst [vmem:[#allocation3 + $0x18] sm:$0xff] %v2522
        %2539 = vst [vmem:[#allocation3 + $0x20] sm:$0xff] %v2523
        %2540 = vst [vmem:[#allocation3 + $0x28] sm:$0xff] %v2524
        %2541 = vst [vmem:[#allocation3 + $0x30] sm:$0xff] %v2525
        %2542 = vst [vmem:[#allocation3 + $0x38] sm:$0xff] %v2526
        %2543 = vst [vmem:[#allocation3 + $0x40] sm:$0xff] %v2527
        %2544 = vst [vmem:[#allocation3 + $0x48] sm:$0xff] %v2528
        %2545 = vst [vmem:[#allocation3 + $0x50] sm:$0xff] %v2529
        %2546 = vst [vmem:[#allocation3 + $0x58] sm:$0xff] %v2530
        %2547 = vst [vmem:[#allocation3 + $0x60] sm:$0xff] %v2531
        %2548 = vst [vmem:[#allocation3 + $0x68] sm:$0xff] %v2532
        %2549 = vst [vmem:[#allocation3 + $0x70] sm:$0xff] %v2533
        %2550 = vst [vmem:[#allocation3 + $0x78] sm:$0xff] %v2534
        %s2551 = scalar_lea.vmem %s3, 256
        %v2552 = vld [vmem:[%s2551] sm:$0xf]
        %v2553 = vld [vmem:[%s2551 + $0x4] sm:$0xf]
        %v2554 = vld [vmem:[%s2551 + $0x8] sm:$0xf]
        %v2555 = vld [vmem:[%s2551 + $0xc] sm:$0xf]
        %v2556 = vld [vmem:[%s2551 + $0x10] sm:$0xf]
        %v2557 = vld [vmem:[%s2551 + $0x14] sm:$0xf]
        %v2558 = vld [vmem:[%s2551 + $0x18] sm:$0xf]
        %v2559 = vld [vmem:[%s2551 + $0x1c] sm:$0xf]
        %v2560 = vld [vmem:[%s2551 + $0x20] sm:$0xf]
        %v2561 = vld [vmem:[%s2551 + $0x24] sm:$0xf]
        %v2562 = vld [vmem:[%s2551 + $0x28] sm:$0xf]
        %v2563 = vld [vmem:[%s2551 + $0x2c] sm:$0xf]
        %v2564 = vld [vmem:[%s2551 + $0x30] sm:$0xf]
        %v2565 = vld [vmem:[%s2551 + $0x34] sm:$0xf]
        %v2566 = vld [vmem:[%s2551 + $0x38] sm:$0xf]
        %v2567 = vld [vmem:[%s2551 + $0x3c] sm:$0xf]
        %v2570 = vunpack.c.l.b16 %v2281
        %v2571 = vunpack.c.l.b16 %v2291
        %v2572 = vpack.c.b16 %v2328, %v2327
        %v2573 = vpack.c.b16 %v2330, %v2329
        %v2574 = vpack.c.b16 %v2332, %v2331
        %v2575 = vpack.c.b16 %v2570, %v2333
        %v2576 = vpack.c.b16 %v2336, %v2335
        %v2577 = vpack.c.b16 %v2338, %v2337
        %v2578 = vpack.c.b16 %v2340, %v2339
        %v2579 = vpack.c.b16 %v2571, %v2341
        %v2604 = vunpack.c.l.b16 %v2552
        %v2605 = vunpack.c.l.b16 %v2553
        %v2606 = vunpack.c.l.b16 %v2554
        %v2607 = vunpack.c.l.b16 %v2555
        %v2608 = vunpack.c.l.b16 %v2556
        %v2609 = vunpack.c.l.b16 %v2557
        %v2610 = vunpack.c.l.b16 %v2558
        %v2611 = vunpack.c.l.b16 %v2559
        %v2612 = vunpack.c.l.b16 %v2560
        %v2613 = vunpack.c.l.b16 %v2561
        %v2614 = vunpack.c.l.b16 %v2562
        %v2615 = vunpack.c.l.b16 %v2563
        %v2616 = vunpack.c.l.b16 %v2564
        %v2617 = vunpack.c.l.b16 %v2565
        %v2618 = vunpack.c.l.b16 %v2566
        %v2619 = vunpack.c.l.b16 %v2567
        %v2620 = vpack.c.b16 %v2605, %v2604
        %v2621 = vpack.c.b16 %v2607, %v2606
        %v2622 = vpack.c.b16 %v2609, %v2608
        %v2623 = vpack.c.b16 %v2611, %v2610
        %v2624 = vpack.c.b16 %v2613, %v2612
        %v2625 = vpack.c.b16 %v2615, %v2614
        %v2626 = vpack.c.b16 %v2617, %v2616
        %v2627 = vpack.c.b16 %v2619, %v2618
        %2636 = vmatprep.subr.bf16.mxu0 0
        %2637 = vmatpush1.bf16.msra.mxu0 %v2620
        %2638 = vmatprep.subr.bf16.mxu0 0
        %2639 = vmatpush1.bf16.msra.mxu0 %v2621
        %2640 = vmatprep.subr.bf16.mxu0 0
        %2641 = vmatpush1.bf16.msra.mxu0 %v2622
        %2642 = vmatprep.subr.bf16.mxu0 0
        %2643 = vmatpush1.bf16.msra.mxu0 %v2623
        %2644 = vmatprep.subr.bf16.mxu0 0
        %2645 = vmatpush1.bf16.msra.mxu0 %v2624
        %2646 = vmatprep.subr.bf16.mxu0 0
        %2647 = vmatpush1.bf16.msra.mxu0 %v2625
        %2648 = vmatprep.subr.bf16.mxu0 0
        %2649 = vmatpush1.bf16.msra.mxu0 %v2626
        %2650 = vmatprep.subr.bf16.mxu0 0
        %2651 = vmatpush1.bf16.msra.mxu0 %v2627
        %2652 = vmatprep.subr.bf16.mxu0 0
        %2653 = vmatpush1.bf16.msra.mxu0 0
        %2654 = vmatprep.subr.bf16.mxu0 0
        %2655 = vmatpush1.bf16.msra.mxu0 0
        %2656 = vmatprep.subr.bf16.mxu0 0
        %2657 = vmatpush1.bf16.msra.mxu0 0
        %2658 = vmatprep.subr.bf16.mxu0 0
        %2659 = vmatpush1.bf16.msra.mxu0 0
        %2660 = vmatprep.subr.bf16.mxu0 0
        %2661 = vmatpush1.bf16.msra.mxu0 0
        %2662 = vmatprep.subr.bf16.mxu0 0
        %2663 = vmatpush1.bf16.msra.mxu0 0
        %2664 = vmatprep.subr.bf16.mxu0 0
        %2665 = vmatpush1.bf16.msra.mxu0 0
        %2666 = vmatprep.subr.bf16.mxu0 0
        %2667 = vmatpush1.bf16.msra.mxu0 0
        %2668 = vmatprep.mubr.bf16.mxu0 0
        %2669 = vmatmul.mubr.bf16.gmra.mrb[0].mxu0 %v2572
        %v2670 = vpop.f32.mrb[0].mxu0
        %v2671 = vadd.f32 0.0, %v2670
        %v2672 = vpop.f32.mrb[0].mxu0
        %v2673 = vpop.f32.mrb[0].mxu0
        %v2674 = vadd.f32 0.0, %v2673
        %v2675 = vpop.f32.mrb[0].mxu0
        %2676 = vmatprep.mubr.bf16.mxu0 0
        %2677 = vmatmul.mubr.bf16.gmra.mrb[0].mxu0 %v2573
        %v2678 = vpop.f32.mrb[0].mxu0
        %v2679 = vadd.f32 0.0, %v2678
        %v2680 = vpop.f32.mrb[0].mxu0
        %v2681 = vpop.f32.mrb[0].mxu0
        %v2682 = vadd.f32 0.0, %v2681
        %v2683 = vpop.f32.mrb[0].mxu0
        %2684 = vmatprep.mubr.bf16.mxu0 0
        %2685 = vmatmul.mubr.bf16.gmra.mrb[0].mxu0 %v2574
        %v2686 = vpop.f32.mrb[0].mxu0
        %v2687 = vadd.f32 0.0, %v2686
        %v2688 = vpop.f32.mrb[0].mxu0
        %v2689 = vpop.f32.mrb[0].mxu0
        %v2690 = vadd.f32 0.0, %v2689
        %v2691 = vpop.f32.mrb[0].mxu0
        %2692 = vmatprep.mubr.bf16.mxu0 0
        %2693 = vmatmul.mubr.bf16.gmra.mrb[0].mxu0 %v2575
        %v2694 = vpop.f32.mrb[0].mxu0
        %v2695 = vadd.f32 0.0, %v2694
        %v2696 = vpop.f32.mrb[0].mxu0
        %v2697 = vpop.f32.mrb[0].mxu0
        %v2698 = vadd.f32 0.0, %v2697
        %v2699 = vpop.f32.mrb[0].mxu0
        %2700 = vmatprep.mubr.bf16.mxu0 0
        %2701 = vmatmul.mubr.bf16.gmra.mrb[0].mxu0 %v2576
        %v2702 = vpop.f32.mrb[0].mxu0
        %v2703 = vadd.f32 0.0, %v2702
        %v2704 = vpop.f32.mrb[0].mxu0
        %v2705 = vpop.f32.mrb[0].mxu0
        %v2706 = vadd.f32 0.0, %v2705
        %v2707 = vpop.f32.mrb[0].mxu0
        %2708 = vmatprep.mubr.bf16.mxu0 0
        %2709 = vmatmul.mubr.bf16.gmra.mrb[0].mxu0 %v2577
        %v2710 = vpop.f32.mrb[0].mxu0
        %v2711 = vadd.f32 0.0, %v2710
        %v2712 = vpop.f32.mrb[0].mxu0
        %v2713 = vpop.f32.mrb[0].mxu0
        %v2714 = vadd.f32 0.0, %v2713
        %v2715 = vpop.f32.mrb[0].mxu0
        %2716 = vmatprep.mubr.bf16.mxu0 0
        %2717 = vmatmul.mubr.bf16.gmra.mrb[0].mxu0 %v2578
        %v2718 = vpop.f32.mrb[0].mxu0
        %v2719 = vadd.f32 0.0, %v2718
        %v2720 = vpop.f32.mrb[0].mxu0
        %v2721 = vpop.f32.mrb[0].mxu0
        %v2722 = vadd.f32 0.0, %v2721
        %v2723 = vpop.f32.mrb[0].mxu0
        %2724 = vmatprep.mubr.bf16.mxu0 0
        %2725 = vmatmul.mubr.bf16.gmra.mrb[0].mxu0 %v2579
        %v2726 = vpop.f32.mrb[0].mxu0
        %v2727 = vadd.f32 0.0, %v2726
        %v2728 = vpop.f32.mrb[0].mxu0
        %v2729 = vpop.f32.mrb[0].mxu0
        %v2730 = vadd.f32 0.0, %v2729
        %v2731 = vpop.f32.mrb[0].mxu0
        %2732 = vdwg.mxu0
        %v2733 = vld [vmem:[#allocation3] sm:$0xff]
        %v2734 = vld [vmem:[#allocation3 + $0x8] sm:$0xff]
        %v2735 = vld [vmem:[#allocation3 + $0x10] sm:$0xff]
        %v2736 = vld [vmem:[#allocation3 + $0x18] sm:$0xff]
        %v2737 = vld [vmem:[#allocation3 + $0x20] sm:$0xff]
        %v2738 = vld [vmem:[#allocation3 + $0x28] sm:$0xff]
        %v2739 = vld [vmem:[#allocation3 + $0x30] sm:$0xff]
        %v2740 = vld [vmem:[#allocation3 + $0x38] sm:$0xff]
        %v2741 = vld [vmem:[#allocation3 + $0x40] sm:$0xff]
        %v2742 = vld [vmem:[#allocation3 + $0x48] sm:$0xff]
        %v2743 = vld [vmem:[#allocation3 + $0x50] sm:$0xff]
        %v2744 = vld [vmem:[#allocation3 + $0x58] sm:$0xff]
        %v2745 = vld [vmem:[#allocation3 + $0x60] sm:$0xff]
        %v2746 = vld [vmem:[#allocation3 + $0x68] sm:$0xff]
        %v2747 = vld [vmem:[#allocation3 + $0x70] sm:$0xff]
        %v2748 = vld [vmem:[#allocation3 + $0x78] sm:$0xff]
        %v2749 = vadd.f32 %v2733, %v2671
        %v2750 = vadd.f32 %v2734, %v2674
        %v2751 = vadd.f32 %v2735, %v2679
        %v2752 = vadd.f32 %v2736, %v2682
        %v2753 = vadd.f32 %v2737, %v2687
        %v2754 = vadd.f32 %v2738, %v2690
        %v2755 = vadd.f32 %v2739, %v2695
        %v2756 = vadd.f32 %v2740, %v2698
        %v2757 = vadd.f32 %v2741, %v2703
        %v2758 = vadd.f32 %v2742, %v2706
        %v2759 = vadd.f32 %v2743, %v2711
        %v2760 = vadd.f32 %v2744, %v2714
        %v2761 = vadd.f32 %v2745, %v2719
        %v2762 = vadd.f32 %v2746, %v2722
        %v2763 = vadd.f32 %v2747, %v2727
        %v2764 = vadd.f32 %v2748, %v2730
        %2765 = vst [vmem:[#allocation3] sm:$0xff] %v2749
        %2766 = vst [vmem:[#allocation3 + $0x8] sm:$0xff] %v2750
        %2767 = vst [vmem:[#allocation3 + $0x10] sm:$0xff] %v2751
        %2768 = vst [vmem:[#allocation3 + $0x18] sm:$0xff] %v2752
        %2769 = vst [vmem:[#allocation3 + $0x20] sm:$0xff] %v2753
        %2770 = vst [vmem:[#allocation3 + $0x28] sm:$0xff] %v2754
        %2771 = vst [vmem:[#allocation3 + $0x30] sm:$0xff] %v2755
        %2772 = vst [vmem:[#allocation3 + $0x38] sm:$0xff] %v2756
        %2773 = vst [vmem:[#allocation3 + $0x40] sm:$0xff] %v2757
        %2774 = vst [vmem:[#allocation3 + $0x48] sm:$0xff] %v2758
        %2775 = vst [vmem:[#allocation3 + $0x50] sm:$0xff] %v2759
        %2776 = vst [vmem:[#allocation3 + $0x58] sm:$0xff] %v2760
        %2777 = vst [vmem:[#allocation3 + $0x60] sm:$0xff] %v2761
        %2778 = vst [vmem:[#allocation3 + $0x68] sm:$0xff] %v2762
        %2779 = vst [vmem:[#allocation3 + $0x70] sm:$0xff] %v2763
        %2780 = vst [vmem:[#allocation3 + $0x78] sm:$0xff] %v2764
        %s2781 = scalar_lea.vmem %s3, 448
        %v2782 = vld [vmem:[%s2781] sm:$0xf]
        %v2783 = vld [vmem:[%s2781 + $0x4] sm:$0xf]
        %v2784 = vld [vmem:[%s2781 + $0x8] sm:$0xf]
        %v2785 = vld [vmem:[%s2781 + $0xc] sm:$0xf]
        %v2786 = vld [vmem:[%s2781 + $0x10] sm:$0xf]
        %v2787 = vld [vmem:[%s2781 + $0x14] sm:$0xf]
        %v2788 = vld [vmem:[%s2781 + $0x18] sm:$0xf]
        %v2789 = vld [vmem:[%s2781 + $0x1c] sm:$0xf]
        %v2790 = vld [vmem:[%s2781 + $0x20] sm:$0xf]
        %v2791 = vld [vmem:[%s2781 + $0x24] sm:$0xf]
        %v2792 = vld [vmem:[%s2781 + $0x28] sm:$0xf]
        %v2793 = vld [vmem:[%s2781 + $0x2c] sm:$0xf]
        %v2794 = vld [vmem:[%s2781 + $0x30] sm:$0xf]
        %v2795 = vld [vmem:[%s2781 + $0x34] sm:$0xf]
        %v2796 = vld [vmem:[%s2781 + $0x38] sm:$0xf]
        %v2797 = vld [vmem:[%s2781 + $0x3c] sm:$0xf]
        %v2800 = vunpack.c.l.b16 %v2282
        %v2801 = vunpack.c.l.b16 %v2292
        %v2802 = vpack.c.b16 %v2800, %v2570
        %v2803 = vpack.c.b16 %v2801, %v2571
        %v2822 = vunpack.c.l.b16 %v2782
        %v2823 = vunpack.c.l.b16 %v2783
        %v2824 = vunpack.c.l.b16 %v2784
        %v2825 = vunpack.c.l.b16 %v2785
        %v2826 = vunpack.c.l.b16 %v2786
        %v2827 = vunpack.c.l.b16 %v2787
        %v2828 = vunpack.c.l.b16 %v2788
        %v2829 = vunpack.c.l.b16 %v2789
        %v2830 = vunpack.c.l.b16 %v2790
        %v2831 = vunpack.c.l.b16 %v2791
        %v2832 = vunpack.c.l.b16 %v2792
        %v2833 = vunpack.c.l.b16 %v2793
        %v2834 = vunpack.c.l.b16 %v2794
        %v2835 = vunpack.c.l.b16 %v2795
        %v2836 = vunpack.c.l.b16 %v2796
        %v2837 = vunpack.c.l.b16 %v2797
        %v2838 = vpack.c.b16 %v2823, %v2822
        %v2839 = vpack.c.b16 %v2825, %v2824
        %v2840 = vpack.c.b16 %v2827, %v2826
        %v2841 = vpack.c.b16 %v2829, %v2828
        %v2842 = vpack.c.b16 %v2831, %v2830
        %v2843 = vpack.c.b16 %v2833, %v2832
        %v2844 = vpack.c.b16 %v2835, %v2834
        %v2845 = vpack.c.b16 %v2837, %v2836
        %2854 = vmatprep.subr.bf16.mxu0 0
        %2855 = vmatpush1.bf16.msra.mxu0 %v2838
        %2856 = vmatprep.subr.bf16.mxu0 0
        %2857 = vmatpush1.bf16.msra.mxu0 %v2839
        %2858 = vmatprep.subr.bf16.mxu0 0
        %2859 = vmatpush1.bf16.msra.mxu0 %v2840
        %2860 = vmatprep.subr.bf16.mxu0 0
        %2861 = vmatpush1.bf16.msra.mxu0 %v2841
        %2862 = vmatprep.subr.bf16.mxu0 0
        %2863 = vmatpush1.bf16.msra.mxu0 %v2842
        %2864 = vmatprep.subr.bf16.mxu0 0
        %2865 = vmatpush1.bf16.msra.mxu0 %v2843
        %2866 = vmatprep.subr.bf16.mxu0 0
        %2867 = vmatpush1.bf16.msra.mxu0 %v2844
        %2868 = vmatprep.subr.bf16.mxu0 0
        %2869 = vmatpush1.bf16.msra.mxu0 %v2845
        %2870 = vmatprep.subr.bf16.mxu0 0
        %2871 = vmatpush1.bf16.msra.mxu0 0
        %2872 = vmatprep.subr.bf16.mxu0 0
        %2873 = vmatpush1.bf16.msra.mxu0 0
        %2874 = vmatprep.subr.bf16.mxu0 0
        %2875 = vmatpush1.bf16.msra.mxu0 0
        %2876 = vmatprep.subr.bf16.mxu0 0
        %2877 = vmatpush1.bf16.msra.mxu0 0
        %2878 = vmatprep.subr.bf16.mxu0 0
        %2879 = vmatpush1.bf16.msra.mxu0 0
        %2880 = vmatprep.subr.bf16.mxu0 0
        %2881 = vmatpush1.bf16.msra.mxu0 0
        %2882 = vmatprep.subr.bf16.mxu0 0
        %2883 = vmatpush1.bf16.msra.mxu0 0
        %2884 = vmatprep.subr.bf16.mxu0 0
        %2885 = vmatpush1.bf16.msra.mxu0 0
        %2886 = vmatprep.mubr.bf16.mxu0 0
        %2887 = vmatmul.mubr.bf16.gmra.mrb[0].mxu0 %v2343
        %v2888 = vpop.f32.mrb[0].mxu0
        %v2889 = vadd.f32 0.0, %v2888
        %v2890 = vpop.f32.mrb[0].mxu0
        %v2891 = vpop.f32.mrb[0].mxu0
        %v2892 = vadd.f32 0.0, %v2891
        %v2893 = vpop.f32.mrb[0].mxu0
        %2894 = vmatprep.mubr.bf16.mxu0 0
        %2895 = vmatmul.mubr.bf16.gmra.mrb[0].mxu0 %v2344
        %v2896 = vpop.f32.mrb[0].mxu0
        %v2897 = vadd.f32 0.0, %v2896
        %v2898 = vpop.f32.mrb[0].mxu0
        %v2899 = vpop.f32.mrb[0].mxu0
        %v2900 = vadd.f32 0.0, %v2899
        %v2901 = vpop.f32.mrb[0].mxu0
        %2902 = vmatprep.mubr.bf16.mxu0 0
        %2903 = vmatmul.mubr.bf16.gmra.mrb[0].mxu0 %v2345
        %v2904 = vpop.f32.mrb[0].mxu0
        %v2905 = vadd.f32 0.0, %v2904
        %v2906 = vpop.f32.mrb[0].mxu0
        %v2907 = vpop.f32.mrb[0].mxu0
        %v2908 = vadd.f32 0.0, %v2907
        %v2909 = vpop.f32.mrb[0].mxu0
        %2910 = vmatprep.mubr.bf16.mxu0 0
        %2911 = vmatmul.mubr.bf16.gmra.mrb[0].mxu0 %v2802
        %v2912 = vpop.f32.mrb[0].mxu0
        %v2913 = vadd.f32 0.0, %v2912
        %v2914 = vpop.f32.mrb[0].mxu0
        %v2915 = vpop.f32.mrb[0].mxu0
        %v2916 = vadd.f32 0.0, %v2915
        %v2917 = vpop.f32.mrb[0].mxu0
        %2918 = vmatprep.mubr.bf16.mxu0 0
        %2919 = vmatmul.mubr.bf16.gmra.mrb[0].mxu0 %v2347
        %v2920 = vpop.f32.mrb[0].mxu0
        %v2921 = vadd.f32 0.0, %v2920
        %v2922 = vpop.f32.mrb[0].mxu0
        %v2923 = vpop.f32.mrb[0].mxu0
        %v2924 = vadd.f32 0.0, %v2923
        %v2925 = vpop.f32.mrb[0].mxu0
        %2926 = vmatprep.mubr.bf16.mxu0 0
        %2927 = vmatmul.mubr.bf16.gmra.mrb[0].mxu0 %v2348
        %v2928 = vpop.f32.mrb[0].mxu0
        %v2929 = vadd.f32 0.0, %v2928
        %v2930 = vpop.f32.mrb[0].mxu0
        %v2931 = vpop.f32.mrb[0].mxu0
        %v2932 = vadd.f32 0.0, %v2931
        %v2933 = vpop.f32.mrb[0].mxu0
        %2934 = vmatprep.mubr.bf16.mxu0 0
        %2935 = vmatmul.mubr.bf16.gmra.mrb[0].mxu0 %v2349
        %v2936 = vpop.f32.mrb[0].mxu0
        %v2937 = vadd.f32 0.0, %v2936
        %v2938 = vpop.f32.mrb[0].mxu0
        %v2939 = vpop.f32.mrb[0].mxu0
        %v2940 = vadd.f32 0.0, %v2939
        %v2941 = vpop.f32.mrb[0].mxu0
        %2942 = vmatprep.mubr.bf16.mxu0 0
        %2943 = vmatmul.mubr.bf16.gmra.mrb[0].mxu0 %v2803
        %v2944 = vpop.f32.mrb[0].mxu0
        %v2945 = vadd.f32 0.0, %v2944
        %v2946 = vpop.f32.mrb[0].mxu0
        %v2947 = vpop.f32.mrb[0].mxu0
        %v2948 = vadd.f32 0.0, %v2947
        %v2949 = vpop.f32.mrb[0].mxu0
        %2950 = vdwg.mxu0
        %v2951 = vld [vmem:[#allocation3] sm:$0xff]
        %v2952 = vld [vmem:[#allocation3 + $0x8] sm:$0xff]
        %v2953 = vld [vmem:[#allocation3 + $0x10] sm:$0xff]
        %v2954 = vld [vmem:[#allocation3 + $0x18] sm:$0xff]
        %v2955 = vld [vmem:[#allocation3 + $0x20] sm:$0xff]
        %v2956 = vld [vmem:[#allocation3 + $0x28] sm:$0xff]
        %v2957 = vld [vmem:[#allocation3 + $0x30] sm:$0xff]
        %v2958 = vld [vmem:[#allocation3 + $0x38] sm:$0xff]
        %v2959 = vld [vmem:[#allocation3 + $0x40] sm:$0xff]
        %v2960 = vld [vmem:[#allocation3 + $0x48] sm:$0xff]
        %v2961 = vld [vmem:[#allocation3 + $0x50] sm:$0xff]
        %v2962 = vld [vmem:[#allocation3 + $0x58] sm:$0xff]
        %v2963 = vld [vmem:[#allocation3 + $0x60] sm:$0xff]
        %v2964 = vld [vmem:[#allocation3 + $0x68] sm:$0xff]
        %v2965 = vld [vmem:[#allocation3 + $0x70] sm:$0xff]
        %v2966 = vld [vmem:[#allocation3 + $0x78] sm:$0xff]
        %v2967 = vadd.f32 %v2951, %v2889
        %v2968 = vadd.f32 %v2952, %v2892
        %v2969 = vadd.f32 %v2953, %v2897
        %v2970 = vadd.f32 %v2954, %v2900
        %v2971 = vadd.f32 %v2955, %v2905
        %v2972 = vadd.f32 %v2956, %v2908
        %v2973 = vadd.f32 %v2957, %v2913
        %v2974 = vadd.f32 %v2958, %v2916
        %v2975 = vadd.f32 %v2959, %v2921
        %v2976 = vadd.f32 %v2960, %v2924
        %v2977 = vadd.f32 %v2961, %v2929
        %v2978 = vadd.f32 %v2962, %v2932
        %v2979 = vadd.f32 %v2963, %v2937
        %v2980 = vadd.f32 %v2964, %v2940
        %v2981 = vadd.f32 %v2965, %v2945
        %v2982 = vadd.f32 %v2966, %v2948
        %2983 = vst [vmem:[#allocation3] sm:$0xff] %v2967
        %2984 = vst [vmem:[#allocation3 + $0x8] sm:$0xff] %v2968
        %2985 = vst [vmem:[#allocation3 + $0x10] sm:$0xff] %v2969
        %2986 = vst [vmem:[#allocation3 + $0x18] sm:$0xff] %v2970
        %2987 = vst [vmem:[#allocation3 + $0x20] sm:$0xff] %v2971
        %2988 = vst [vmem:[#allocation3 + $0x28] sm:$0xff] %v2972
        %2989 = vst [vmem:[#allocation3 + $0x30] sm:$0xff] %v2973
        %2990 = vst [vmem:[#allocation3 + $0x38] sm:$0xff] %v2974
        %2991 = vst [vmem:[#allocation3 + $0x40] sm:$0xff] %v2975
        %2992 = vst [vmem:[#allocation3 + $0x48] sm:$0xff] %v2976
        %2993 = vst [vmem:[#allocation3 + $0x50] sm:$0xff] %v2977
        %2994 = vst [vmem:[#allocation3 + $0x58] sm:$0xff] %v2978
        %2995 = vst [vmem:[#allocation3 + $0x60] sm:$0xff] %v2979
        %2996 = vst [vmem:[#allocation3 + $0x68] sm:$0xff] %v2980
        %2997 = vst [vmem:[#allocation3 + $0x70] sm:$0xff] %v2981
        %2998 = vst [vmem:[#allocation3 + $0x78] sm:$0xff] %v2982
        %v2999 = vld [vmem:[#allocation2 + $0x8] sm:$0xf]
        %v3000 = vld [vmem:[#allocation2 + $0xc] sm:$0x1]
        %v3001 = vld [vmem:[#allocation2 + $0x18] sm:$0xf]
        %v3002 = vld [vmem:[#allocation2 + $0x1c] sm:$0x1]
        %v3003 = vld [vmem:[#allocation2 + $0x28] sm:$0xf]
        %v3004 = vld [vmem:[#allocation2 + $0x2c] sm:$0x1]
        %v3005 = vld [vmem:[#allocation2 + $0x38] sm:$0xf]
        %v3006 = vld [vmem:[#allocation2 + $0x3c] sm:$0x1]
        %v3007 = vld [vmem:[#allocation2 + $0x48] sm:$0xf]
        %v3008 = vld [vmem:[#allocation2 + $0x4c] sm:$0x1]
        %v3009 = vld [vmem:[#allocation2 + $0x58] sm:$0xf]
        %v3010 = vld [vmem:[#allocation2 + $0x5c] sm:$0x1]
        %v3011 = vld [vmem:[#allocation2 + $0x68] sm:$0xf]
        %v3012 = vld [vmem:[#allocation2 + $0x6c] sm:$0x1]
        %v3013 = vld [vmem:[#allocation2 + $0x78] sm:$0xf]
        %v3014 = vld [vmem:[#allocation2 + $0x7c] sm:$0x1]
        %v3015 = vld [vmem:[#allocation2 + $0x88] sm:$0xf]
        %v3016 = vld [vmem:[#allocation2 + $0x8c] sm:$0x1]
        %v3017 = vld [vmem:[#allocation2 + $0x98] sm:$0xf]
        %v3018 = vld [vmem:[#allocation2 + $0x9c] sm:$0x1]
        %v3019 = vld [vmem:[#allocation2 + $0xa8] sm:$0xf]
        %v3020 = vld [vmem:[#allocation2 + $0xac] sm:$0x1]
        %v3021 = vld [vmem:[#allocation2 + $0xb8] sm:$0xf]
        %v3022 = vld [vmem:[#allocation2 + $0xbc] sm:$0x1]
        %v3023 = vld [vmem:[#allocation2 + $0xc8] sm:$0xf]
        %v3024 = vld [vmem:[#allocation2 + $0xcc] sm:$0x1]
        %v3025 = vld [vmem:[#allocation2 + $0xd8] sm:$0xf]
        %v3026 = vld [vmem:[#allocation2 + $0xdc] sm:$0x1]
        %v3027 = vld [vmem:[#allocation2 + $0xe8] sm:$0xf]
        %v3028 = vld [vmem:[#allocation2 + $0xec] sm:$0x1]
        %v3029 = vld [vmem:[#allocation2 + $0xf8] sm:$0xf]
        %v3030 = vld [vmem:[#allocation2 + $0xfc] sm:$0x1]
        %v3031 = vld [vmem:[#allocation2 + $0x108] sm:$0xf]
        %v3032 = vld [vmem:[#allocation2 + $0x10c] sm:$0x1]
        %v3033 = vld [vmem:[#allocation2 + $0x118] sm:$0xf]
        %v3034 = vld [vmem:[#allocation2 + $0x11c] sm:$0x1]
        %v3035 = vld [vmem:[#allocation2 + $0x128] sm:$0xf]
        %v3036 = vld [vmem:[#allocation2 + $0x12c] sm:$0x1]
        %v3037 = vld [vmem:[#allocation2 + $0x138] sm:$0xf]
        %v3038 = vld [vmem:[#allocation2 + $0x13c] sm:$0x1]
        %vm3039 = vsmask.f32 3328
        %vm3040 = vsmask.f32 7440
        %vm3041 = vmor %vm3039, %vm3040
        %v3043 = vshrl.u32 %v2999, 16
        %v3045 = vrot.slane %v3043, 4
        %v3046 = vshll.u32 %v2999, 16
        %v3048 = vrot.slane %v3046, 5
        %v3049 = vor.u32 %v3045, %v3048
        %v3050 = vrot.slane %v3049, 4
        %v3052 = vshll.u32 %v3000, 16
        %v3054 = vrot.slane %v3052, 5
        %v3055 = vsel %vm3041, %v3050, %v3054
        %v3057 = vshrl.u32 %v3001, 16
        %v3059 = vrot.slane %v3057, 4
        %v3060 = vshll.u32 %v3001, 16
        %v3062 = vrot.slane %v3060, 5
        %v3063 = vor.u32 %v3059, %v3062
        %v3064 = vrot.slane %v3063, 4
        %v3066 = vshll.u32 %v3002, 16
        %v3068 = vrot.slane %v3066, 5
        %v3069 = vsel %vm3041, %v3064, %v3068
        %v3071 = vshrl.u32 %v3003, 16
        %v3073 = vrot.slane %v3071, 4
        %v3074 = vshll.u32 %v3003, 16
        %v3076 = vrot.slane %v3074, 5
        %v3077 = vor.u32 %v3073, %v3076
        %v3078 = vrot.slane %v3077, 4
        %v3080 = vshll.u32 %v3004, 16
        %v3082 = vrot.slane %v3080, 5
        %v3083 = vsel %vm3041, %v3078, %v3082
        %v3085 = vshrl.u32 %v3005, 16
        %v3087 = vrot.slane %v3085, 4
        %v3088 = vshll.u32 %v3005, 16
        %v3090 = vrot.slane %v3088, 5
        %v3091 = vor.u32 %v3087, %v3090
        %v3092 = vrot.slane %v3091, 4
        %v3094 = vshll.u32 %v3006, 16
        %v3096 = vrot.slane %v3094, 5
        %v3097 = vsel %vm3041, %v3092, %v3096
        %v3099 = vshrl.u32 %v3007, 16
        %v3101 = vrot.slane %v3099, 4
        %v3102 = vshll.u32 %v3007, 16
        %v3104 = vrot.slane %v3102, 5
        %v3105 = vor.u32 %v3101, %v3104
        %v3106 = vrot.slane %v3105, 4
        %v3108 = vshll.u32 %v3008, 16
        %v3110 = vrot.slane %v3108, 5
        %v3111 = vsel %vm3041, %v3106, %v3110
        %v3113 = vshrl.u32 %v3009, 16
        %v3115 = vrot.slane %v3113, 4
        %v3116 = vshll.u32 %v3009, 16
        %v3118 = vrot.slane %v3116, 5
        %v3119 = vor.u32 %v3115, %v3118
        %v3120 = vrot.slane %v3119, 4
        %v3122 = vshll.u32 %v3010, 16
        %v3124 = vrot.slane %v3122, 5
        %v3125 = vsel %vm3041, %v3120, %v3124
        %v3127 = vshrl.u32 %v3011, 16
        %v3129 = vrot.slane %v3127, 4
        %v3130 = vshll.u32 %v3011, 16
        %v3132 = vrot.slane %v3130, 5
        %v3133 = vor.u32 %v3129, %v3132
        %v3134 = vrot.slane %v3133, 4
        %v3136 = vshll.u32 %v3012, 16
        %v3138 = vrot.slane %v3136, 5
        %v3139 = vsel %vm3041, %v3134, %v3138
        %v3141 = vshrl.u32 %v3013, 16
        %v3143 = vrot.slane %v3141, 4
        %v3144 = vshll.u32 %v3013, 16
        %v3146 = vrot.slane %v3144, 5
        %v3147 = vor.u32 %v3143, %v3146
        %v3148 = vrot.slane %v3147, 4
        %v3150 = vshll.u32 %v3014, 16
        %v3152 = vrot.slane %v3150, 5
        %v3153 = vsel %vm3041, %v3148, %v3152
        %v3155 = vshrl.u32 %v3019, 16
        %v3157 = vrot.slane %v3155, 4
        %v3158 = vshll.u32 %v3019, 16
        %v3160 = vrot.slane %v3158, 5
        %v3161 = vor.u32 %v3157, %v3160
        %v3162 = vrot.slane %v3161, 4
        %v3164 = vshll.u32 %v3020, 16
        %v3166 = vrot.slane %v3164, 5
        %v3167 = vsel %vm3041, %v3162, %v3166
        %v3169 = vshrl.u32 %v3021, 16
        %v3171 = vrot.slane %v3169, 4
        %v3172 = vshll.u32 %v3021, 16
        %v3174 = vrot.slane %v3172, 5
        %v3175 = vor.u32 %v3171, %v3174
        %v3176 = vrot.slane %v3175, 4
        %v3178 = vshll.u32 %v3022, 16
        %v3180 = vrot.slane %v3178, 5
        %v3181 = vsel %vm3041, %v3176, %v3180
        %v3183 = vshrl.u32 %v3023, 16
        %v3185 = vrot.slane %v3183, 4
        %v3186 = vshll.u32 %v3023, 16
        %v3188 = vrot.slane %v3186, 5
        %v3189 = vor.u32 %v3185, %v3188
        %v3190 = vrot.slane %v3189, 4
        %v3192 = vshll.u32 %v3024, 16
        %v3194 = vrot.slane %v3192, 5
        %v3195 = vsel %vm3041, %v3190, %v3194
        %v3197 = vshrl.u32 %v3025, 16
        %v3199 = vrot.slane %v3197, 4
        %v3200 = vshll.u32 %v3025, 16
        %v3202 = vrot.slane %v3200, 5
        %v3203 = vor.u32 %v3199, %v3202
        %v3204 = vrot.slane %v3203, 4
        %v3206 = vshll.u32 %v3026, 16
        %v3208 = vrot.slane %v3206, 5
        %v3209 = vsel %vm3041, %v3204, %v3208
        %v3211 = vshrl.u32 %v3027, 16
        %v3213 = vrot.slane %v3211, 4
        %v3214 = vshll.u32 %v3027, 16
        %v3216 = vrot.slane %v3214, 5
        %v3217 = vor.u32 %v3213, %v3216
        %v3218 = vrot.slane %v3217, 4
        %v3220 = vshll.u32 %v3028, 16
        %v3222 = vrot.slane %v3220, 5
        %v3223 = vsel %vm3041, %v3218, %v3222
        %v3225 = vshrl.u32 %v3029, 16
        %v3227 = vrot.slane %v3225, 4
        %v3228 = vshll.u32 %v3029, 16
        %v3230 = vrot.slane %v3228, 5
        %v3231 = vor.u32 %v3227, %v3230
        %v3232 = vrot.slane %v3231, 4
        %v3234 = vshll.u32 %v3030, 16
        %v3236 = vrot.slane %v3234, 5
        %v3237 = vsel %vm3041, %v3232, %v3236
        %v3239 = vshrl.u32 %v3031, 16
        %v3241 = vrot.slane %v3239, 4
        %v3242 = vshll.u32 %v3031, 16
        %v3244 = vrot.slane %v3242, 5
        %v3245 = vor.u32 %v3241, %v3244
        %v3246 = vrot.slane %v3245, 4
        %v3248 = vshll.u32 %v3032, 16
        %v3250 = vrot.slane %v3248, 5
        %v3251 = vsel %vm3041, %v3246, %v3250
        %v3253 = vshrl.u32 %v3033, 16
        %v3255 = vrot.slane %v3253, 4
        %v3256 = vshll.u32 %v3033, 16
        %v3258 = vrot.slane %v3256, 5
        %v3259 = vor.u32 %v3255, %v3258
        %v3260 = vrot.slane %v3259, 4
        %v3262 = vshll.u32 %v3034, 16
        %v3264 = vrot.slane %v3262, 5
        %v3265 = vsel %vm3041, %v3260, %v3264
        %s3266 = scalar_lea.vmem %s3, 128
        %v3267 = vld [vmem:[%s3266] sm:$0xf]
        %v3268 = vld [vmem:[%s3266 + $0x4] sm:$0xf]
        %v3269 = vld [vmem:[%s3266 + $0x8] sm:$0xf]
        %v3270 = vld [vmem:[%s3266 + $0xc] sm:$0xf]
        %v3271 = vld [vmem:[%s3266 + $0x10] sm:$0xf]
        %v3272 = vld [vmem:[%s3266 + $0x14] sm:$0xf]
        %v3273 = vld [vmem:[%s3266 + $0x18] sm:$0xf]
        %v3274 = vld [vmem:[%s3266 + $0x1c] sm:$0xf]
        %v3275 = vld [vmem:[%s3266 + $0x20] sm:$0xf]
        %v3276 = vld [vmem:[%s3266 + $0x24] sm:$0xf]
        %v3277 = vld [vmem:[%s3266 + $0x28] sm:$0xf]
        %v3278 = vld [vmem:[%s3266 + $0x2c] sm:$0xf]
        %v3279 = vld [vmem:[%s3266 + $0x30] sm:$0xf]
        %v3280 = vld [vmem:[%s3266 + $0x34] sm:$0xf]
        %v3281 = vld [vmem:[%s3266 + $0x38] sm:$0xf]
        %v3282 = vld [vmem:[%s3266 + $0x3c] sm:$0xf]
        %v3283 = vunpack.c.l.b16 %v3055
        %v3284 = vunpack.c.l.b16 %v3069
        %v3285 = vunpack.c.l.b16 %v3083
        %v3286 = vunpack.c.l.b16 %v3097
        %v3287 = vunpack.c.l.b16 %v3111
        %v3288 = vunpack.c.l.b16 %v3125
        %v3289 = vunpack.c.l.b16 %v3139
        %v3290 = vunpack.c.l.b16 %v3153
        %v3291 = vunpack.c.l.b16 %v3167
        %v3292 = vunpack.c.l.b16 %v3181
        %v3293 = vunpack.c.l.b16 %v3195
        %v3294 = vunpack.c.l.b16 %v3209
        %v3295 = vunpack.c.l.b16 %v3223
        %v3296 = vunpack.c.l.b16 %v3237
        %v3297 = vunpack.c.l.b16 %v3251
        %v3298 = vunpack.c.l.b16 %v3265
        %v3299 = vpack.c.b16 %v3284, %v3283
        %v3300 = vpack.c.b16 %v3286, %v3285
        %v3301 = vpack.c.b16 %v3288, %v3287
        %v3302 = vpack.c.b16 %v3290, %v3289
        %v3303 = vpack.c.b16 %v3292, %v3291
        %v3304 = vpack.c.b16 %v3294, %v3293
        %v3305 = vpack.c.b16 %v3296, %v3295
        %v3306 = vpack.c.b16 %v3298, %v3297
        %v3331 = vunpack.c.l.b16 %v3267
        %v3332 = vunpack.c.l.b16 %v3268
        %v3333 = vunpack.c.l.b16 %v3269
        %v3334 = vunpack.c.l.b16 %v3270
        %v3335 = vunpack.c.l.b16 %v3271
        %v3336 = vunpack.c.l.b16 %v3272
        %v3337 = vunpack.c.l.b16 %v3273
        %v3338 = vunpack.c.l.b16 %v3274
        %v3339 = vunpack.c.l.b16 %v3275
        %v3340 = vunpack.c.l.b16 %v3276
        %v3341 = vunpack.c.l.b16 %v3277
        %v3342 = vunpack.c.l.b16 %v3278
        %v3343 = vunpack.c.l.b16 %v3279
        %v3344 = vunpack.c.l.b16 %v3280
        %v3345 = vunpack.c.l.b16 %v3281
        %v3346 = vunpack.c.l.b16 %v3282
        %v3347 = vpack.c.b16 %v3332, %v3331
        %v3348 = vpack.c.b16 %v3334, %v3333
        %v3349 = vpack.c.b16 %v3336, %v3335
        %v3350 = vpack.c.b16 %v3338, %v3337
        %v3351 = vpack.c.b16 %v3340, %v3339
        %v3352 = vpack.c.b16 %v3342, %v3341
        %v3353 = vpack.c.b16 %v3344, %v3343
        %v3354 = vpack.c.b16 %v3346, %v3345
        %3363 = vmatprep.subr.bf16.mxu0 0
        %3364 = vmatpush1.bf16.msra.mxu0 %v3347
        %3365 = vmatprep.subr.bf16.mxu0 0
        %3366 = vmatpush1.bf16.msra.mxu0 %v3348
        %3367 = vmatprep.subr.bf16.mxu0 0
        %3368 = vmatpush1.bf16.msra.mxu0 %v3349
        %3369 = vmatprep.subr.bf16.mxu0 0
        %3370 = vmatpush1.bf16.msra.mxu0 %v3350
        %3371 = vmatprep.subr.bf16.mxu0 0
        %3372 = vmatpush1.bf16.msra.mxu0 %v3351
        %3373 = vmatprep.subr.bf16.mxu0 0
        %3374 = vmatpush1.bf16.msra.mxu0 %v3352
        %3375 = vmatprep.subr.bf16.mxu0 0
        %3376 = vmatpush1.bf16.msra.mxu0 %v3353
        %3377 = vmatprep.subr.bf16.mxu0 0
        %3378 = vmatpush1.bf16.msra.mxu0 %v3354
        %3379 = vmatprep.subr.bf16.mxu0 0
        %3380 = vmatpush1.bf16.msra.mxu0 0
        %3381 = vmatprep.subr.bf16.mxu0 0
        %3382 = vmatpush1.bf16.msra.mxu0 0
        %3383 = vmatprep.subr.bf16.mxu0 0
        %3384 = vmatpush1.bf16.msra.mxu0 0
        %3385 = vmatprep.subr.bf16.mxu0 0
        %3386 = vmatpush1.bf16.msra.mxu0 0
        %3387 = vmatprep.subr.bf16.mxu0 0
        %3388 = vmatpush1.bf16.msra.mxu0 0
        %3389 = vmatprep.subr.bf16.mxu0 0
        %3390 = vmatpush1.bf16.msra.mxu0 0
        %3391 = vmatprep.subr.bf16.mxu0 0
        %3392 = vmatpush1.bf16.msra.mxu0 0
        %3393 = vmatprep.subr.bf16.mxu0 0
        %3394 = vmatpush1.bf16.msra.mxu0 0
        %3395 = vmatprep.mubr.bf16.mxu0 0
        %3396 = vmatmul.mubr.bf16.gmra.mrb[0].mxu0 %v3299
        %v3397 = vpop.f32.mrb[0].mxu0
        %v3398 = vadd.f32 0.0, %v3397
        %v3399 = vpop.f32.mrb[0].mxu0
        %v3400 = vpop.f32.mrb[0].mxu0
        %v3401 = vadd.f32 0.0, %v3400
        %v3402 = vpop.f32.mrb[0].mxu0
        %3403 = vmatprep.mubr.bf16.mxu0 0
        %3404 = vmatmul.mubr.bf16.gmra.mrb[0].mxu0 %v3300
        %v3405 = vpop.f32.mrb[0].mxu0
        %v3406 = vadd.f32 0.0, %v3405
        %v3407 = vpop.f32.mrb[0].mxu0
        %v3408 = vpop.f32.mrb[0].mxu0
        %v3409 = vadd.f32 0.0, %v3408
        %v3410 = vpop.f32.mrb[0].mxu0
        %3411 = vmatprep.mubr.bf16.mxu0 0
        %3412 = vmatmul.mubr.bf16.gmra.mrb[0].mxu0 %v3301
        %v3413 = vpop.f32.mrb[0].mxu0
        %v3414 = vadd.f32 0.0, %v3413
        %v3415 = vpop.f32.mrb[0].mxu0
        %v3416 = vpop.f32.mrb[0].mxu0
        %v3417 = vadd.f32 0.0, %v3416
        %v3418 = vpop.f32.mrb[0].mxu0
        %3419 = vmatprep.mubr.bf16.mxu0 0
        %3420 = vmatmul.mubr.bf16.gmra.mrb[0].mxu0 %v3302
        %v3421 = vpop.f32.mrb[0].mxu0
        %v3422 = vadd.f32 0.0, %v3421
        %v3423 = vpop.f32.mrb[0].mxu0
        %v3424 = vpop.f32.mrb[0].mxu0
        %v3425 = vadd.f32 0.0, %v3424
        %v3426 = vpop.f32.mrb[0].mxu0
        %3427 = vmatprep.mubr.bf16.mxu0 0
        %3428 = vmatmul.mubr.bf16.gmra.mrb[0].mxu0 %v3303
        %v3429 = vpop.f32.mrb[0].mxu0
        %v3430 = vadd.f32 0.0, %v3429
        %v3431 = vpop.f32.mrb[0].mxu0
        %v3432 = vpop.f32.mrb[0].mxu0
        %v3433 = vadd.f32 0.0, %v3432
        %v3434 = vpop.f32.mrb[0].mxu0
        %3435 = vmatprep.mubr.bf16.mxu0 0
        %3436 = vmatmul.mubr.bf16.gmra.mrb[0].mxu0 %v3304
        %v3437 = vpop.f32.mrb[0].mxu0
        %v3438 = vadd.f32 0.0, %v3437
        %v3439 = vpop.f32.mrb[0].mxu0
        %v3440 = vpop.f32.mrb[0].mxu0
        %v3441 = vadd.f32 0.0, %v3440
        %v3442 = vpop.f32.mrb[0].mxu0
        %3443 = vmatprep.mubr.bf16.mxu0 0
        %3444 = vmatmul.mubr.bf16.gmra.mrb[0].mxu0 %v3305
        %v3445 = vpop.f32.mrb[0].mxu0
        %v3446 = vadd.f32 0.0, %v3445
        %v3447 = vpop.f32.mrb[0].mxu0
        %v3448 = vpop.f32.mrb[0].mxu0
        %v3449 = vadd.f32 0.0, %v3448
        %v3450 = vpop.f32.mrb[0].mxu0
        %3451 = vmatprep.mubr.bf16.mxu0 0
        %3452 = vmatmul.mubr.bf16.gmra.mrb[0].mxu0 %v3306
        %v3453 = vpop.f32.mrb[0].mxu0
        %v3454 = vadd.f32 0.0, %v3453
        %v3455 = vpop.f32.mrb[0].mxu0
        %v3456 = vpop.f32.mrb[0].mxu0
        %v3457 = vadd.f32 0.0, %v3456
        %v3458 = vpop.f32.mrb[0].mxu0
        %3459 = vdwg.mxu0
        %v3460 = vld [vmem:[#allocation3] sm:$0xff]
        %v3461 = vld [vmem:[#allocation3 + $0x8] sm:$0xff]
        %v3462 = vld [vmem:[#allocation3 + $0x10] sm:$0xff]
        %v3463 = vld [vmem:[#allocation3 + $0x18] sm:$0xff]
        %v3464 = vld [vmem:[#allocation3 + $0x20] sm:$0xff]
        %v3465 = vld [vmem:[#allocation3 + $0x28] sm:$0xff]
        %v3466 = vld [vmem:[#allocation3 + $0x30] sm:$0xff]
        %v3467 = vld [vmem:[#allocation3 + $0x38] sm:$0xff]
        %v3468 = vld [vmem:[#allocation3 + $0x40] sm:$0xff]
        %v3469 = vld [vmem:[#allocation3 + $0x48] sm:$0xff]
        %v3470 = vld [vmem:[#allocation3 + $0x50] sm:$0xff]
        %v3471 = vld [vmem:[#allocation3 + $0x58] sm:$0xff]
        %v3472 = vld [vmem:[#allocation3 + $0x60] sm:$0xff]
        %v3473 = vld [vmem:[#allocation3 + $0x68] sm:$0xff]
        %v3474 = vld [vmem:[#allocation3 + $0x70] sm:$0xff]
        %v3475 = vld [vmem:[#allocation3 + $0x78] sm:$0xff]
        %v3476 = vadd.f32 %v3460, %v3398
        %v3477 = vadd.f32 %v3461, %v3401
        %v3478 = vadd.f32 %v3462, %v3406
        %v3479 = vadd.f32 %v3463, %v3409
        %v3480 = vadd.f32 %v3464, %v3414
        %v3481 = vadd.f32 %v3465, %v3417
        %v3482 = vadd.f32 %v3466, %v3422
        %v3483 = vadd.f32 %v3467, %v3425
        %v3484 = vadd.f32 %v3468, %v3430
        %v3485 = vadd.f32 %v3469, %v3433
        %v3486 = vadd.f32 %v3470, %v3438
        %v3487 = vadd.f32 %v3471, %v3441
        %v3488 = vadd.f32 %v3472, %v3446
        %v3489 = vadd.f32 %v3473, %v3449
        %v3490 = vadd.f32 %v3474, %v3454
        %v3491 = vadd.f32 %v3475, %v3457
        %3492 = vst [vmem:[#allocation3] sm:$0xff] %v3476
        %3493 = vst [vmem:[#allocation3 + $0x8] sm:$0xff] %v3477
        %3494 = vst [vmem:[#allocation3 + $0x10] sm:$0xff] %v3478
        %3495 = vst [vmem:[#allocation3 + $0x18] sm:$0xff] %v3479
        %3496 = vst [vmem:[#allocation3 + $0x20] sm:$0xff] %v3480
        %3497 = vst [vmem:[#allocation3 + $0x28] sm:$0xff] %v3481
        %3498 = vst [vmem:[#allocation3 + $0x30] sm:$0xff] %v3482
        %3499 = vst [vmem:[#allocation3 + $0x38] sm:$0xff] %v3483
        %3500 = vst [vmem:[#allocation3 + $0x40] sm:$0xff] %v3484
        %3501 = vst [vmem:[#allocation3 + $0x48] sm:$0xff] %v3485
        %3502 = vst [vmem:[#allocation3 + $0x50] sm:$0xff] %v3486
        %3503 = vst [vmem:[#allocation3 + $0x58] sm:$0xff] %v3487
        %3504 = vst [vmem:[#allocation3 + $0x60] sm:$0xff] %v3488
        %3505 = vst [vmem:[#allocation3 + $0x68] sm:$0xff] %v3489
        %3506 = vst [vmem:[#allocation3 + $0x70] sm:$0xff] %v3490
        %3507 = vst [vmem:[#allocation3 + $0x78] sm:$0xff] %v3491
        %v3509 = vshrl.u32 %v3015, 16
        %v3511 = vrot.slane %v3509, 4
        %v3512 = vshll.u32 %v3015, 16
        %v3514 = vrot.slane %v3512, 5
        %v3515 = vor.u32 %v3511, %v3514
        %v3516 = vrot.slane %v3515, 4
        %v3518 = vshll.u32 %v3016, 16
        %v3520 = vrot.slane %v3518, 5
        %v3521 = vsel %vm3041, %v3516, %v3520
        %v3523 = vshrl.u32 %v3035, 16
        %v3525 = vrot.slane %v3523, 4
        %v3526 = vshll.u32 %v3035, 16
        %v3528 = vrot.slane %v3526, 5
        %v3529 = vor.u32 %v3525, %v3528
        %v3530 = vrot.slane %v3529, 4
        %v3532 = vshll.u32 %v3036, 16
        %v3534 = vrot.slane %v3532, 5
        %v3535 = vsel %vm3041, %v3530, %v3534
        %s3536 = scalar_lea.vmem %s3, 320
        %v3537 = vld [vmem:[%s3536] sm:$0xf]
        %v3538 = vld [vmem:[%s3536 + $0x4] sm:$0xf]
        %v3539 = vld [vmem:[%s3536 + $0x8] sm:$0xf]
        %v3540 = vld [vmem:[%s3536 + $0xc] sm:$0xf]
        %v3541 = vld [vmem:[%s3536 + $0x10] sm:$0xf]
        %v3542 = vld [vmem:[%s3536 + $0x14] sm:$0xf]
        %v3543 = vld [vmem:[%s3536 + $0x18] sm:$0xf]
        %v3544 = vld [vmem:[%s3536 + $0x1c] sm:$0xf]
        %v3545 = vld [vmem:[%s3536 + $0x20] sm:$0xf]
        %v3546 = vld [vmem:[%s3536 + $0x24] sm:$0xf]
        %v3547 = vld [vmem:[%s3536 + $0x28] sm:$0xf]
        %v3548 = vld [vmem:[%s3536 + $0x2c] sm:$0xf]
        %v3549 = vld [vmem:[%s3536 + $0x30] sm:$0xf]
        %v3550 = vld [vmem:[%s3536 + $0x34] sm:$0xf]
        %v3551 = vld [vmem:[%s3536 + $0x38] sm:$0xf]
        %v3552 = vld [vmem:[%s3536 + $0x3c] sm:$0xf]
        %v3553 = vunpack.c.l.b16 %v3521
        %v3554 = vunpack.c.l.b16 %v3535
        %v3555 = vpack.c.b16 %v3285, %v3284
        %v3556 = vpack.c.b16 %v3287, %v3286
        %v3557 = vpack.c.b16 %v3289, %v3288
        %v3558 = vpack.c.b16 %v3553, %v3290
        %v3559 = vpack.c.b16 %v3293, %v3292
        %v3560 = vpack.c.b16 %v3295, %v3294
        %v3561 = vpack.c.b16 %v3297, %v3296
        %v3562 = vpack.c.b16 %v3554, %v3298
        %v3587 = vunpack.c.l.b16 %v3537
        %v3588 = vunpack.c.l.b16 %v3538
        %v3589 = vunpack.c.l.b16 %v3539
        %v3590 = vunpack.c.l.b16 %v3540
        %v3591 = vunpack.c.l.b16 %v3541
        %v3592 = vunpack.c.l.b16 %v3542
        %v3593 = vunpack.c.l.b16 %v3543
        %v3594 = vunpack.c.l.b16 %v3544
        %v3595 = vunpack.c.l.b16 %v3545
        %v3596 = vunpack.c.l.b16 %v3546
        %v3597 = vunpack.c.l.b16 %v3547
        %v3598 = vunpack.c.l.b16 %v3548
        %v3599 = vunpack.c.l.b16 %v3549
        %v3600 = vunpack.c.l.b16 %v3550
        %v3601 = vunpack.c.l.b16 %v3551
        %v3602 = vunpack.c.l.b16 %v3552
        %v3603 = vpack.c.b16 %v3588, %v3587
        %v3604 = vpack.c.b16 %v3590, %v3589
        %v3605 = vpack.c.b16 %v3592, %v3591
        %v3606 = vpack.c.b16 %v3594, %v3593
        %v3607 = vpack.c.b16 %v3596, %v3595
        %v3608 = vpack.c.b16 %v3598, %v3597
        %v3609 = vpack.c.b16 %v3600, %v3599
        %v3610 = vpack.c.b16 %v3602, %v3601
        %3619 = vmatprep.subr.bf16.mxu0 0
        %3620 = vmatpush1.bf16.msra.mxu0 %v3603
        %3621 = vmatprep.subr.bf16.mxu0 0
        %3622 = vmatpush1.bf16.msra.mxu0 %v3604
        %3623 = vmatprep.subr.bf16.mxu0 0
        %3624 = vmatpush1.bf16.msra.mxu0 %v3605
        %3625 = vmatprep.subr.bf16.mxu0 0
        %3626 = vmatpush1.bf16.msra.mxu0 %v3606
        %3627 = vmatprep.subr.bf16.mxu0 0
        %3628 = vmatpush1.bf16.msra.mxu0 %v3607
        %3629 = vmatprep.subr.bf16.mxu0 0
        %3630 = vmatpush1.bf16.msra.mxu0 %v3608
        %3631 = vmatprep.subr.bf16.mxu0 0
        %3632 = vmatpush1.bf16.msra.mxu0 %v3609
        %3633 = vmatprep.subr.bf16.mxu0 0
        %3634 = vmatpush1.bf16.msra.mxu0 %v3610
        %3635 = vmatprep.subr.bf16.mxu0 0
        %3636 = vmatpush1.bf16.msra.mxu0 0
        %3637 = vmatprep.subr.bf16.mxu0 0
        %3638 = vmatpush1.bf16.msra.mxu0 0
        %3639 = vmatprep.subr.bf16.mxu0 0
        %3640 = vmatpush1.bf16.msra.mxu0 0
        %3641 = vmatprep.subr.bf16.mxu0 0
        %3642 = vmatpush1.bf16.msra.mxu0 0
        %3643 = vmatprep.subr.bf16.mxu0 0
        %3644 = vmatpush1.bf16.msra.mxu0 0
        %3645 = vmatprep.subr.bf16.mxu0 0
        %3646 = vmatpush1.bf16.msra.mxu0 0
        %3647 = vmatprep.subr.bf16.mxu0 0
        %3648 = vmatpush1.bf16.msra.mxu0 0
        %3649 = vmatprep.subr.bf16.mxu0 0
        %3650 = vmatpush1.bf16.msra.mxu0 0
        %3651 = vmatprep.mubr.bf16.mxu0 0
        %3652 = vmatmul.mubr.bf16.gmra.mrb[0].mxu0 %v3555
        %v3653 = vpop.f32.mrb[0].mxu0
        %v3654 = vadd.f32 0.0, %v3653
        %v3655 = vpop.f32.mrb[0].mxu0
        %v3656 = vpop.f32.mrb[0].mxu0
        %v3657 = vadd.f32 0.0, %v3656
        %v3658 = vpop.f32.mrb[0].mxu0
        %3659 = vmatprep.mubr.bf16.mxu0 0
        %3660 = vmatmul.mubr.bf16.gmra.mrb[0].mxu0 %v3556
        %v3661 = vpop.f32.mrb[0].mxu0
        %v3662 = vadd.f32 0.0, %v3661
        %v3663 = vpop.f32.mrb[0].mxu0
        %v3664 = vpop.f32.mrb[0].mxu0
        %v3665 = vadd.f32 0.0, %v3664
        %v3666 = vpop.f32.mrb[0].mxu0
        %3667 = vmatprep.mubr.bf16.mxu0 0
        %3668 = vmatmul.mubr.bf16.gmra.mrb[0].mxu0 %v3557
        %v3669 = vpop.f32.mrb[0].mxu0
        %v3670 = vadd.f32 0.0, %v3669
        %v3671 = vpop.f32.mrb[0].mxu0
        %v3672 = vpop.f32.mrb[0].mxu0
        %v3673 = vadd.f32 0.0, %v3672
        %v3674 = vpop.f32.mrb[0].mxu0
        %3675 = vmatprep.mubr.bf16.mxu0 0
        %3676 = vmatmul.mubr.bf16.gmra.mrb[0].mxu0 %v3558
        %v3677 = vpop.f32.mrb[0].mxu0
        %v3678 = vadd.f32 0.0, %v3677
        %v3679 = vpop.f32.mrb[0].mxu0
        %v3680 = vpop.f32.mrb[0].mxu0
        %v3681 = vadd.f32 0.0, %v3680
        %v3682 = vpop.f32.mrb[0].mxu0
        %3683 = vmatprep.mubr.bf16.mxu0 0
        %3684 = vmatmul.mubr.bf16.gmra.mrb[0].mxu0 %v3559
        %v3685 = vpop.f32.mrb[0].mxu0
        %v3686 = vadd.f32 0.0, %v3685
        %v3687 = vpop.f32.mrb[0].mxu0
        %v3688 = vpop.f32.mrb[0].mxu0
        %v3689 = vadd.f32 0.0, %v3688
        %v3690 = vpop.f32.mrb[0].mxu0
        %3691 = vmatprep.mubr.bf16.mxu0 0
        %3692 = vmatmul.mubr.bf16.gmra.mrb[0].mxu0 %v3560
        %v3693 = vpop.f32.mrb[0].mxu0
        %v3694 = vadd.f32 0.0, %v3693
        %v3695 = vpop.f32.mrb[0].mxu0
        %v3696 = vpop.f32.mrb[0].mxu0
        %v3697 = vadd.f32 0.0, %v3696
        %v3698 = vpop.f32.mrb[0].mxu0
        %3699 = vmatprep.mubr.bf16.mxu0 0
        %3700 = vmatmul.mubr.bf16.gmra.mrb[0].mxu0 %v3561
        %v3701 = vpop.f32.mrb[0].mxu0
        %v3702 = vadd.f32 0.0, %v3701
        %v3703 = vpop.f32.mrb[0].mxu0
        %v3704 = vpop.f32.mrb[0].mxu0
        %v3705 = vadd.f32 0.0, %v3704
        %v3706 = vpop.f32.mrb[0].mxu0
        %3707 = vmatprep.mubr.bf16.mxu0 0
        %3708 = vmatmul.mubr.bf16.gmra.mrb[0].mxu0 %v3562
        %v3709 = vpop.f32.mrb[0].mxu0
        %v3710 = vadd.f32 0.0, %v3709
        %v3711 = vpop.f32.mrb[0].mxu0
        %v3712 = vpop.f32.mrb[0].mxu0
        %v3713 = vadd.f32 0.0, %v3712
        %v3714 = vpop.f32.mrb[0].mxu0
        %3715 = vdwg.mxu0
        %v3716 = vld [vmem:[#allocation3] sm:$0xff]
        %v3717 = vld [vmem:[#allocation3 + $0x8] sm:$0xff]
        %v3718 = vld [vmem:[#allocation3 + $0x10] sm:$0xff]
        %v3719 = vld [vmem:[#allocation3 + $0x18] sm:$0xff]
        %v3720 = vld [vmem:[#allocation3 + $0x20] sm:$0xff]
        %v3721 = vld [vmem:[#allocation3 + $0x28] sm:$0xff]
        %v3722 = vld [vmem:[#allocation3 + $0x30] sm:$0xff]
        %v3723 = vld [vmem:[#allocation3 + $0x38] sm:$0xff]
        %v3724 = vld [vmem:[#allocation3 + $0x40] sm:$0xff]
        %v3725 = vld [vmem:[#allocation3 + $0x48] sm:$0xff]
        %v3726 = vld [vmem:[#allocation3 + $0x50] sm:$0xff]
        %v3727 = vld [vmem:[#allocation3 + $0x58] sm:$0xff]
        %v3728 = vld [vmem:[#allocation3 + $0x60] sm:$0xff]
        %v3729 = vld [vmem:[#allocation3 + $0x68] sm:$0xff]
        %v3730 = vld [vmem:[#allocation3 + $0x70] sm:$0xff]
        %v3731 = vld [vmem:[#allocation3 + $0x78] sm:$0xff]
        %v3732 = vadd.f32 %v3716, %v3654
        %v3733 = vadd.f32 %v3717, %v3657
        %v3734 = vadd.f32 %v3718, %v3662
        %v3735 = vadd.f32 %v3719, %v3665
        %v3736 = vadd.f32 %v3720, %v3670
        %v3737 = vadd.f32 %v3721, %v3673
        %v3738 = vadd.f32 %v3722, %v3678
        %v3739 = vadd.f32 %v3723, %v3681
        %v3740 = vadd.f32 %v3724, %v3686
        %v3741 = vadd.f32 %v3725, %v3689
        %v3742 = vadd.f32 %v3726, %v3694
        %v3743 = vadd.f32 %v3727, %v3697
        %v3744 = vadd.f32 %v3728, %v3702
        %v3745 = vadd.f32 %v3729, %v3705
        %v3746 = vadd.f32 %v3730, %v3710
        %v3747 = vadd.f32 %v3731, %v3713
        %3748 = vst [vmem:[#allocation3] sm:$0xff] %v3732
        %3749 = vst [vmem:[#allocation3 + $0x8] sm:$0xff] %v3733
        %3750 = vst [vmem:[#allocation3 + $0x10] sm:$0xff] %v3734
        %3751 = vst [vmem:[#allocation3 + $0x18] sm:$0xff] %v3735
        %3752 = vst [vmem:[#allocation3 + $0x20] sm:$0xff] %v3736
        %3753 = vst [vmem:[#allocation3 + $0x28] sm:$0xff] %v3737
        %3754 = vst [vmem:[#allocation3 + $0x30] sm:$0xff] %v3738
        %3755 = vst [vmem:[#allocation3 + $0x38] sm:$0xff] %v3739
        %3756 = vst [vmem:[#allocation3 + $0x40] sm:$0xff] %v3740
        %3757 = vst [vmem:[#allocation3 + $0x48] sm:$0xff] %v3741
        %3758 = vst [vmem:[#allocation3 + $0x50] sm:$0xff] %v3742
        %3759 = vst [vmem:[#allocation3 + $0x58] sm:$0xff] %v3743
        %3760 = vst [vmem:[#allocation3 + $0x60] sm:$0xff] %v3744
        %3761 = vst [vmem:[#allocation3 + $0x68] sm:$0xff] %v3745
        %3762 = vst [vmem:[#allocation3 + $0x70] sm:$0xff] %v3746
        %3763 = vst [vmem:[#allocation3 + $0x78] sm:$0xff] %v3747
        %v3765 = vshrl.u32 %v3017, 16
        %v3767 = vrot.slane %v3765, 4
        %v3768 = vshll.u32 %v3017, 16
        %v3770 = vrot.slane %v3768, 5
        %v3771 = vor.u32 %v3767, %v3770
        %v3772 = vrot.slane %v3771, 4
        %v3774 = vshll.u32 %v3018, 16
        %v3776 = vrot.slane %v3774, 5
        %v3777 = vsel %vm3041, %v3772, %v3776
        %v3779 = vshrl.u32 %v3037, 16
        %v3781 = vrot.slane %v3779, 4
        %v3782 = vshll.u32 %v3037, 16
        %v3784 = vrot.slane %v3782, 5
        %v3785 = vor.u32 %v3781, %v3784
        %v3786 = vrot.slane %v3785, 4
        %v3788 = vshll.u32 %v3038, 16
        %v3790 = vrot.slane %v3788, 5
        %v3791 = vsel %vm3041, %v3786, %v3790
        %s3792 = scalar_lea.vmem %s3, 512
        %v3793 = vld [vmem:[%s3792] sm:$0xf]
        %v3794 = vld [vmem:[%s3792 + $0x4] sm:$0xf]
        %v3795 = vld [vmem:[%s3792 + $0x8] sm:$0xf]
        %v3796 = vld [vmem:[%s3792 + $0xc] sm:$0xf]
        %v3797 = vld [vmem:[%s3792 + $0x10] sm:$0xf]
        %v3798 = vld [vmem:[%s3792 + $0x14] sm:$0xf]
        %v3799 = vld [vmem:[%s3792 + $0x18] sm:$0xf]
        %v3800 = vld [vmem:[%s3792 + $0x1c] sm:$0xf]
        %v3801 = vld [vmem:[%s3792 + $0x20] sm:$0xf]
        %v3802 = vld [vmem:[%s3792 + $0x24] sm:$0xf]
        %v3803 = vld [vmem:[%s3792 + $0x28] sm:$0xf]
        %v3804 = vld [vmem:[%s3792 + $0x2c] sm:$0xf]
        %v3805 = vld [vmem:[%s3792 + $0x30] sm:$0xf]
        %v3806 = vld [vmem:[%s3792 + $0x34] sm:$0xf]
        %v3807 = vld [vmem:[%s3792 + $0x38] sm:$0xf]
        %v3808 = vld [vmem:[%s3792 + $0x3c] sm:$0xf]
        %v3809 = vunpack.c.l.b16 %v3777
        %v3810 = vunpack.c.l.b16 %v3791
        %v3811 = vpack.c.b16 %v3809, %v3553
        %v3812 = vpack.c.b16 %v3810, %v3554
        %v3831 = vunpack.c.l.b16 %v3793
        %v3832 = vunpack.c.l.b16 %v3794
        %v3833 = vunpack.c.l.b16 %v3795
        %v3834 = vunpack.c.l.b16 %v3796
        %v3835 = vunpack.c.l.b16 %v3797
        %v3836 = vunpack.c.l.b16 %v3798
        %v3837 = vunpack.c.l.b16 %v3799
        %v3838 = vunpack.c.l.b16 %v3800
        %v3839 = vunpack.c.l.b16 %v3801
        %v3840 = vunpack.c.l.b16 %v3802
        %v3841 = vunpack.c.l.b16 %v3803
        %v3842 = vunpack.c.l.b16 %v3804
        %v3843 = vunpack.c.l.b16 %v3805
        %v3844 = vunpack.c.l.b16 %v3806
        %v3845 = vunpack.c.l.b16 %v3807
        %v3846 = vunpack.c.l.b16 %v3808
        %v3847 = vpack.c.b16 %v3832, %v3831
        %v3848 = vpack.c.b16 %v3834, %v3833
        %v3849 = vpack.c.b16 %v3836, %v3835
        %v3850 = vpack.c.b16 %v3838, %v3837
        %v3851 = vpack.c.b16 %v3840, %v3839
        %v3852 = vpack.c.b16 %v3842, %v3841
        %v3853 = vpack.c.b16 %v3844, %v3843
        %v3854 = vpack.c.b16 %v3846, %v3845
        %3863 = vmatprep.subr.bf16.mxu0 0
        %3864 = vmatpush1.bf16.msra.mxu0 %v3847
        %3865 = vmatprep.subr.bf16.mxu0 0
        %3866 = vmatpush1.bf16.msra.mxu0 %v3848
        %3867 = vmatprep.subr.bf16.mxu0 0
        %3868 = vmatpush1.bf16.msra.mxu0 %v3849
        %3869 = vmatprep.subr.bf16.mxu0 0
        %3870 = vmatpush1.bf16.msra.mxu0 %v3850
        %3871 = vmatprep.subr.bf16.mxu0 0
        %3872 = vmatpush1.bf16.msra.mxu0 %v3851
        %3873 = vmatprep.subr.bf16.mxu0 0
        %3874 = vmatpush1.bf16.msra.mxu0 %v3852
        %3875 = vmatprep.subr.bf16.mxu0 0
        %3876 = vmatpush1.bf16.msra.mxu0 %v3853
        %3877 = vmatprep.subr.bf16.mxu0 0
        %3878 = vmatpush1.bf16.msra.mxu0 %v3854
        %3879 = vmatprep.subr.bf16.mxu0 0
        %3880 = vmatpush1.bf16.msra.mxu0 0
        %3881 = vmatprep.subr.bf16.mxu0 0
        %3882 = vmatpush1.bf16.msra.mxu0 0
        %3883 = vmatprep.subr.bf16.mxu0 0
        %3884 = vmatpush1.bf16.msra.mxu0 0
        %3885 = vmatprep.subr.bf16.mxu0 0
        %3886 = vmatpush1.bf16.msra.mxu0 0
        %3887 = vmatprep.subr.bf16.mxu0 0
        %3888 = vmatpush1.bf16.msra.mxu0 0
        %3889 = vmatprep.subr.bf16.mxu0 0
        %3890 = vmatpush1.bf16.msra.mxu0 0
        %3891 = vmatprep.subr.bf16.mxu0 0
        %3892 = vmatpush1.bf16.msra.mxu0 0
        %3893 = vmatprep.subr.bf16.mxu0 0
        %3894 = vmatpush1.bf16.msra.mxu0 0
        %3895 = vmatprep.mubr.bf16.mxu0 0
        %3896 = vmatmul.mubr.bf16.gmra.mrb[0].mxu0 %v3300
        %v3897 = vpop.f32.mrb[0].mxu0
        %v3898 = vadd.f32 0.0, %v3897
        %v3899 = vpop.f32.mrb[0].mxu0
        %v3900 = vpop.f32.mrb[0].mxu0
        %v3901 = vadd.f32 0.0, %v3900
        %v3902 = vpop.f32.mrb[0].mxu0
        %3903 = vmatprep.mubr.bf16.mxu0 0
        %3904 = vmatmul.mubr.bf16.gmra.mrb[0].mxu0 %v3301
        %v3905 = vpop.f32.mrb[0].mxu0
        %v3906 = vadd.f32 0.0, %v3905
        %v3907 = vpop.f32.mrb[0].mxu0
        %v3908 = vpop.f32.mrb[0].mxu0
        %v3909 = vadd.f32 0.0, %v3908
        %v3910 = vpop.f32.mrb[0].mxu0
        %3911 = vmatprep.mubr.bf16.mxu0 0
        %3912 = vmatmul.mubr.bf16.gmra.mrb[0].mxu0 %v3302
        %v3913 = vpop.f32.mrb[0].mxu0
        %v3914 = vadd.f32 0.0, %v3913
        %v3915 = vpop.f32.mrb[0].mxu0
        %v3916 = vpop.f32.mrb[0].mxu0
        %v3917 = vadd.f32 0.0, %v3916
        %v3918 = vpop.f32.mrb[0].mxu0
        %3919 = vmatprep.mubr.bf16.mxu0 0
        %3920 = vmatmul.mubr.bf16.gmra.mrb[0].mxu0 %v3811
        %v3921 = vpop.f32.mrb[0].mxu0
        %v3922 = vadd.f32 0.0, %v3921
        %v3923 = vpop.f32.mrb[0].mxu0
        %v3924 = vpop.f32.mrb[0].mxu0
        %v3925 = vadd.f32 0.0, %v3924
        %v3926 = vpop.f32.mrb[0].mxu0
        %3927 = vmatprep.mubr.bf16.mxu0 0
        %3928 = vmatmul.mubr.bf16.gmra.mrb[0].mxu0 %v3304
        %v3929 = vpop.f32.mrb[0].mxu0
        %v3930 = vadd.f32 0.0, %v3929
        %v3931 = vpop.f32.mrb[0].mxu0
        %v3932 = vpop.f32.mrb[0].mxu0
        %v3933 = vadd.f32 0.0, %v3932
        %v3934 = vpop.f32.mrb[0].mxu0
        %3935 = vmatprep.mubr.bf16.mxu0 0
        %3936 = vmatmul.mubr.bf16.gmra.mrb[0].mxu0 %v3305
        %v3937 = vpop.f32.mrb[0].mxu0
        %v3938 = vadd.f32 0.0, %v3937
        %v3939 = vpop.f32.mrb[0].mxu0
        %v3940 = vpop.f32.mrb[0].mxu0
        %v3941 = vadd.f32 0.0, %v3940
        %v3942 = vpop.f32.mrb[0].mxu0
        %3943 = vmatprep.mubr.bf16.mxu0 0
        %3944 = vmatmul.mubr.bf16.gmra.mrb[0].mxu0 %v3306
        %v3945 = vpop.f32.mrb[0].mxu0
        %v3946 = vadd.f32 0.0, %v3945
        %v3947 = vpop.f32.mrb[0].mxu0
        %v3948 = vpop.f32.mrb[0].mxu0
        %v3949 = vadd.f32 0.0, %v3948
        %v3950 = vpop.f32.mrb[0].mxu0
        %3951 = vmatprep.mubr.bf16.mxu0 0
        %3952 = vmatmul.mubr.bf16.gmra.mrb[0].mxu0 %v3812
        %v3953 = vpop.f32.mrb[0].mxu0
        %v3954 = vadd.f32 0.0, %v3953
        %v3955 = vpop.f32.mrb[0].mxu0
        %v3956 = vpop.f32.mrb[0].mxu0
        %v3957 = vadd.f32 0.0, %v3956
        %v3958 = vpop.f32.mrb[0].mxu0
        %3959 = vdwg.mxu0
        %v3960 = vld [vmem:[#allocation3] sm:$0xff]
        %v3961 = vld [vmem:[#allocation3 + $0x8] sm:$0xff]
        %v3962 = vld [vmem:[#allocation3 + $0x10] sm:$0xff]
        %v3963 = vld [vmem:[#allocation3 + $0x18] sm:$0xff]
        %v3964 = vld [vmem:[#allocation3 + $0x20] sm:$0xff]
        %v3965 = vld [vmem:[#allocation3 + $0x28] sm:$0xff]
        %v3966 = vld [vmem:[#allocation3 + $0x30] sm:$0xff]
        %v3967 = vld [vmem:[#allocation3 + $0x38] sm:$0xff]
        %v3968 = vld [vmem:[#allocation3 + $0x40] sm:$0xff]
        %v3969 = vld [vmem:[#allocation3 + $0x48] sm:$0xff]
        %v3970 = vld [vmem:[#allocation3 + $0x50] sm:$0xff]
        %v3971 = vld [vmem:[#allocation3 + $0x58] sm:$0xff]
        %v3972 = vld [vmem:[#allocation3 + $0x60] sm:$0xff]
        %v3973 = vld [vmem:[#allocation3 + $0x68] sm:$0xff]
        %v3974 = vld [vmem:[#allocation3 + $0x70] sm:$0xff]
        %v3975 = vld [vmem:[#allocation3 + $0x78] sm:$0xff]
        %v3976 = vadd.f32 %v3960, %v3898
        %v3977 = vadd.f32 %v3961, %v3901
        %v3978 = vadd.f32 %v3962, %v3906
        %v3979 = vadd.f32 %v3963, %v3909
        %v3980 = vadd.f32 %v3964, %v3914
        %v3981 = vadd.f32 %v3965, %v3917
        %v3982 = vadd.f32 %v3966, %v3922
        %v3983 = vadd.f32 %v3967, %v3925
        %v3984 = vadd.f32 %v3968, %v3930
        %v3985 = vadd.f32 %v3969, %v3933
        %v3986 = vadd.f32 %v3970, %v3938
        %v3987 = vadd.f32 %v3971, %v3941
        %v3988 = vadd.f32 %v3972, %v3946
        %v3989 = vadd.f32 %v3973, %v3949
        %v3990 = vadd.f32 %v3974, %v3954
        %v3991 = vadd.f32 %v3975, %v3957
        %3992 = vst [vmem:[#allocation3] sm:$0xff] %v3976
        %3993 = vst [vmem:[#allocation3 + $0x8] sm:$0xff] %v3977
        %3994 = vst [vmem:[#allocation3 + $0x10] sm:$0xff] %v3978
        %3995 = vst [vmem:[#allocation3 + $0x18] sm:$0xff] %v3979
        %3996 = vst [vmem:[#allocation3 + $0x20] sm:$0xff] %v3980
        %3997 = vst [vmem:[#allocation3 + $0x28] sm:$0xff] %v3981
        %3998 = vst [vmem:[#allocation3 + $0x30] sm:$0xff] %v3982
        %3999 = vst [vmem:[#allocation3 + $0x38] sm:$0xff] %v3983
        %4000 = vst [vmem:[#allocation3 + $0x40] sm:$0xff] %v3984
        %4001 = vst [vmem:[#allocation3 + $0x48] sm:$0xff] %v3985
        %4002 = vst [vmem:[#allocation3 + $0x50] sm:$0xff] %v3986
        %4003 = vst [vmem:[#allocation3 + $0x58] sm:$0xff] %v3987
        %4004 = vst [vmem:[#allocation3 + $0x60] sm:$0xff] %v3988
        %4005 = vst [vmem:[#allocation3 + $0x68] sm:$0xff] %v3989
        %4006 = vst [vmem:[#allocation3 + $0x70] sm:$0xff] %v3990
        %4007 = vst [vmem:[#allocation3 + $0x78] sm:$0xff] %v3991
        %v4008 = vld [vmem:[#allocation3] sm:$0xff]
        %v4009 = vld [vmem:[#allocation3 + $0x8] sm:$0xff]
        %v4010 = vld [vmem:[#allocation3 + $0x10] sm:$0xff]
        %v4011 = vld [vmem:[#allocation3 + $0x18] sm:$0xff]
        %v4012 = vld [vmem:[#allocation3 + $0x20] sm:$0xff]
        %v4013 = vld [vmem:[#allocation3 + $0x28] sm:$0xff]
        %v4014 = vld [vmem:[#allocation3 + $0x30] sm:$0xff]
        %v4015 = vld [vmem:[#allocation3 + $0x38] sm:$0xff]
        %v4016 = vld [vmem:[#allocation3 + $0x40] sm:$0xff]
        %v4017 = vld [vmem:[#allocation3 + $0x48] sm:$0xff]
        %v4018 = vld [vmem:[#allocation3 + $0x50] sm:$0xff]
        %v4019 = vld [vmem:[#allocation3 + $0x58] sm:$0xff]
        %v4020 = vld [vmem:[#allocation3 + $0x60] sm:$0xff]
        %v4021 = vld [vmem:[#allocation3 + $0x68] sm:$0xff]
        %v4022 = vld [vmem:[#allocation3 + $0x70] sm:$0xff]
        %v4023 = vld [vmem:[#allocation3 + $0x78] sm:$0xff]
        %v4024 = vld [vmem:[%s4] sm:$0x1]
        %v4026 = vlaneseq
        %v4027 = vshrl.u32 %v4026, 7
        %v4028 = vsub.s32 0, %v4027
        %v4029 = vrot.slane %v4024, %v4028
        %v4031 = vadd.f32 %v4008, %v4029
        %v4032 = vadd.f32 %v4009, %v4029
        %v4033 = vadd.f32 %v4010, %v4029
        %v4034 = vadd.f32 %v4011, %v4029
        %v4035 = vadd.f32 %v4012, %v4029
        %v4036 = vadd.f32 %v4013, %v4029
        %v4037 = vadd.f32 %v4014, %v4029
        %v4038 = vadd.f32 %v4015, %v4029
        %v4039 = vadd.f32 %v4016, %v4029
        %v4040 = vadd.f32 %v4017, %v4029
        %v4041 = vadd.f32 %v4018, %v4029
        %v4042 = vadd.f32 %v4019, %v4029
        %v4043 = vadd.f32 %v4020, %v4029
        %v4044 = vadd.f32 %v4021, %v4029
        %v4045 = vadd.f32 %v4022, %v4029
        %v4046 = vadd.f32 %v4023, %v4029
        %v4047 = vmax.f32 %v4031, 0.0
        %v4048 = vmax.f32 %v4032, 0.0
        %v4049 = vmax.f32 %v4033, 0.0
        %v4050 = vmax.f32 %v4034, 0.0
        %v4051 = vmax.f32 %v4035, 0.0
        %v4052 = vmax.f32 %v4036, 0.0
        %v4053 = vmax.f32 %v4037, 0.0
        %v4054 = vmax.f32 %v4038, 0.0
        %v4055 = vmax.f32 %v4039, 0.0
        %v4056 = vmax.f32 %v4040, 0.0
        %v4057 = vmax.f32 %v4041, 0.0
        %v4058 = vmax.f32 %v4042, 0.0
        %v4059 = vmax.f32 %v4043, 0.0
        %v4060 = vmax.f32 %v4044, 0.0
        %v4061 = vmax.f32 %v4045, 0.0
        %v4062 = vmax.f32 %v4046, 0.0
        %v4063 = vpack.c.bf16 %v4048, %v4047
        %v4064 = vpack.c.bf16 %v4050, %v4049
        %v4065 = vpack.c.bf16 %v4052, %v4051
        %v4066 = vpack.c.bf16 %v4054, %v4053
        %v4067 = vpack.c.bf16 %v4056, %v4055
        %v4068 = vpack.c.bf16 %v4058, %v4057
        %v4069 = vpack.c.bf16 %v4060, %v4059
        %v4070 = vpack.c.bf16 %v4062, %v4061
        %v4071 = vld [vmem:[%s5] sm:$0xff]
        %v4072 = vld [vmem:[%s5 + $0x8] sm:$0xff]
        %v4073 = vld [vmem:[%s5 + $0x10] sm:$0xff]
        %v4074 = vld [vmem:[%s5 + $0x18] sm:$0xff]
        %v4075 = vld [vmem:[%s5 + $0x20] sm:$0xff]
        %v4076 = vld [vmem:[%s5 + $0x28] sm:$0xff]
        %v4077 = vld [vmem:[%s5 + $0x30] sm:$0xff]
        %v4078 = vld [vmem:[%s5 + $0x38] sm:$0xff]
        %v4079 = vld [vmem:[%s5 + $0x40] sm:$0xff]
        %v4080 = vld [vmem:[%s5 + $0x48] sm:$0xff]
        %v4081 = vld [vmem:[%s5 + $0x50] sm:$0xff]
        %v4082 = vld [vmem:[%s5 + $0x58] sm:$0xff]
        %v4083 = vld [vmem:[%s5 + $0x60] sm:$0xff]
        %v4084 = vld [vmem:[%s5 + $0x68] sm:$0xff]
        %v4085 = vld [vmem:[%s5 + $0x70] sm:$0xff]
        %v4086 = vld [vmem:[%s5 + $0x78] sm:$0xff]
        %v4087 = vld [vmem:[%s5 + $0x80] sm:$0xff]
        %v4088 = vld [vmem:[%s5 + $0x88] sm:$0xff]
        %v4089 = vld [vmem:[%s5 + $0x90] sm:$0xff]
        %v4090 = vld [vmem:[%s5 + $0x98] sm:$0xff]
        %v4091 = vld [vmem:[%s5 + $0xa0] sm:$0xff]
        %v4092 = vld [vmem:[%s5 + $0xa8] sm:$0xff]
        %v4093 = vld [vmem:[%s5 + $0xb0] sm:$0xff]
        %v4094 = vld [vmem:[%s5 + $0xb8] sm:$0xff]
        %v4095 = vld [vmem:[%s5 + $0xc0] sm:$0xff]
        %v4096 = vld [vmem:[%s5 + $0xc8] sm:$0xff]
        %v4097 = vld [vmem:[%s5 + $0xd0] sm:$0xff]
        %v4098 = vld [vmem:[%s5 + $0xd8] sm:$0xff]
        %v4099 = vld [vmem:[%s5 + $0xe0] sm:$0xff]
        %v4100 = vld [vmem:[%s5 + $0xe8] sm:$0xff]
        %v4101 = vld [vmem:[%s5 + $0xf0] sm:$0xff]
        %v4102 = vld [vmem:[%s5 + $0xf8] sm:$0xff]
        %v4103 = vld [vmem:[%s6] sm:$0xf]
        %v4105 = vlaneseq
        %v4106 = vshrl.u32 %v4105, 7
        %v4107 = vsub.s32 0, %v4106
        %v4108 = vrot.slane %v4103, %v4107
        %v4109 = vlaneseq
        %v4110 = vshrl.u32 %v4109, 7
        %v4111 = vsub.s32 1, %v4110
        %v4112 = vrot.slane %v4103, %v4111
        %v4113 = vlaneseq
        %v4114 = vshrl.u32 %v4113, 7
        %v4115 = vsub.s32 2, %v4114
        %v4116 = vrot.slane %v4103, %v4115
        %v4117 = vlaneseq
        %v4118 = vshrl.u32 %v4117, 7
        %v4119 = vsub.s32 3, %v4118
        %v4120 = vrot.slane %v4103, %v4119
        %v4157 = vunpack.c.l.b16 %v4071
        %v4158 = vunpack.c.h.b16 %v4071
        %v4159 = vunpack.c.l.b16 %v4072
        %v4160 = vunpack.c.h.b16 %v4072
        %v4161 = vunpack.c.l.b16 %v4073
        %v4162 = vunpack.c.h.b16 %v4073
        %v4163 = vunpack.c.l.b16 %v4074
        %v4164 = vunpack.c.h.b16 %v4074
        %v4165 = vunpack.c.l.b16 %v4075
        %v4166 = vunpack.c.h.b16 %v4075
        %v4167 = vunpack.c.l.b16 %v4076
        %v4168 = vunpack.c.h.b16 %v4076
        %v4169 = vunpack.c.l.b16 %v4077
        %v4170 = vunpack.c.h.b16 %v4077
        %v4171 = vunpack.c.l.b16 %v4078
        %v4172 = vunpack.c.h.b16 %v4078
        %v4173 = vunpack.c.l.b16 %v4079
        %v4174 = vunpack.c.h.b16 %v4079
        %v4175 = vunpack.c.l.b16 %v4080
        %v4176 = vunpack.c.h.b16 %v4080
        %v4177 = vunpack.c.l.b16 %v4081
        %v4178 = vunpack.c.h.b16 %v4081
        %v4179 = vunpack.c.l.b16 %v4082
        %v4180 = vunpack.c.h.b16 %v4082
        %v4181 = vunpack.c.l.b16 %v4083
        %v4182 = vunpack.c.h.b16 %v4083
        %v4183 = vunpack.c.l.b16 %v4084
        %v4184 = vunpack.c.h.b16 %v4084
        %v4185 = vunpack.c.l.b16 %v4085
        %v4186 = vunpack.c.h.b16 %v4085
        %v4187 = vunpack.c.l.b16 %v4086
        %v4188 = vunpack.c.h.b16 %v4086
        %v4189 = vunpack.c.l.b16 %v4087
        %v4190 = vunpack.c.h.b16 %v4087
        %v4191 = vunpack.c.l.b16 %v4088
        %v4192 = vunpack.c.h.b16 %v4088
        %v4193 = vunpack.c.l.b16 %v4089
        %v4194 = vunpack.c.h.b16 %v4089
        %v4195 = vunpack.c.l.b16 %v4090
        %v4196 = vunpack.c.h.b16 %v4090
        %v4197 = vunpack.c.l.b16 %v4091
        %v4198 = vunpack.c.h.b16 %v4091
        %v4199 = vunpack.c.l.b16 %v4092
        %v4200 = vunpack.c.h.b16 %v4092
        %v4201 = vunpack.c.l.b16 %v4093
        %v4202 = vunpack.c.h.b16 %v4093
        %v4203 = vunpack.c.l.b16 %v4094
        %v4204 = vunpack.c.h.b16 %v4094
        %v4205 = vunpack.c.l.b16 %v4095
        %v4206 = vunpack.c.h.b16 %v4095
        %v4207 = vunpack.c.l.b16 %v4096
        %v4208 = vunpack.c.h.b16 %v4096
        %v4209 = vunpack.c.l.b16 %v4097
        %v4210 = vunpack.c.h.b16 %v4097
        %v4211 = vunpack.c.l.b16 %v4098
        %v4212 = vunpack.c.h.b16 %v4098
        %v4213 = vunpack.c.l.b16 %v4099
        %v4214 = vunpack.c.h.b16 %v4099
        %v4215 = vunpack.c.l.b16 %v4100
        %v4216 = vunpack.c.h.b16 %v4100
        %v4217 = vunpack.c.l.b16 %v4101
        %v4218 = vunpack.c.h.b16 %v4101
        %v4219 = vunpack.c.l.b16 %v4102
        %v4220 = vunpack.c.h.b16 %v4102
        %v4221 = vpack.c.b16 %v4161, %v4157
        %v4222 = vpack.c.b16 %v4162, %v4158
        %v4223 = vpack.c.b16 %v4163, %v4159
        %v4224 = vpack.c.b16 %v4164, %v4160
        %v4225 = vpack.c.b16 %v4169, %v4165
        %v4226 = vpack.c.b16 %v4170, %v4166
        %v4227 = vpack.c.b16 %v4171, %v4167
        %v4228 = vpack.c.b16 %v4172, %v4168
        %v4229 = vpack.c.b16 %v4177, %v4173
        %v4230 = vpack.c.b16 %v4178, %v4174
        %v4231 = vpack.c.b16 %v4179, %v4175
        %v4232 = vpack.c.b16 %v4180, %v4176
        %v4233 = vpack.c.b16 %v4185, %v4181
        %v4234 = vpack.c.b16 %v4186, %v4182
        %v4235 = vpack.c.b16 %v4187, %v4183
        %v4236 = vpack.c.b16 %v4188, %v4184
        %v4237 = vpack.c.b16 %v4193, %v4189
        %v4238 = vpack.c.b16 %v4194, %v4190
        %v4239 = vpack.c.b16 %v4195, %v4191
        %v4240 = vpack.c.b16 %v4196, %v4192
        %v4241 = vpack.c.b16 %v4201, %v4197
        %v4242 = vpack.c.b16 %v4202, %v4198
        %v4243 = vpack.c.b16 %v4203, %v4199
        %v4244 = vpack.c.b16 %v4204, %v4200
        %v4245 = vpack.c.b16 %v4209, %v4205
        %v4246 = vpack.c.b16 %v4210, %v4206
        %v4247 = vpack.c.b16 %v4211, %v4207
        %v4248 = vpack.c.b16 %v4212, %v4208
        %v4249 = vpack.c.b16 %v4217, %v4213
        %v4250 = vpack.c.b16 %v4218, %v4214
        %v4251 = vpack.c.b16 %v4219, %v4215
        %v4252 = vpack.c.b16 %v4220, %v4216
        %4285 = vmatprep.subr.bf16.mxu0 %v4222
        %4286 = vmatpush1.bf16.msra.mxu0 %v4221
        %4287 = vmatprep.subr.bf16.mxu0 %v4226
        %4288 = vmatpush1.bf16.msra.mxu0 %v4225
        %4289 = vmatprep.subr.bf16.mxu0 %v4230
        %4290 = vmatpush1.bf16.msra.mxu0 %v4229
        %4291 = vmatprep.subr.bf16.mxu0 %v4234
        %4292 = vmatpush1.bf16.msra.mxu0 %v4233
        %4293 = vmatprep.subr.bf16.mxu0 %v4238
        %4294 = vmatpush1.bf16.msra.mxu0 %v4237
        %4295 = vmatprep.subr.bf16.mxu0 %v4242
        %4296 = vmatpush1.bf16.msra.mxu0 %v4241
        %4297 = vmatprep.subr.bf16.mxu0 %v4246
        %4298 = vmatpush1.bf16.msra.mxu0 %v4245
        %4299 = vmatprep.subr.bf16.mxu0 %v4250
        %4300 = vmatpush1.bf16.msra.mxu0 %v4249
        %4301 = vmatprep.subr.bf16.mxu0 0
        %4302 = vmatpush1.bf16.msra.mxu0 0
        %4303 = vmatprep.subr.bf16.mxu0 0
        %4304 = vmatpush1.bf16.msra.mxu0 0
        %4305 = vmatprep.subr.bf16.mxu0 0
        %4306 = vmatpush1.bf16.msra.mxu0 0
        %4307 = vmatprep.subr.bf16.mxu0 0
        %4308 = vmatpush1.bf16.msra.mxu0 0
        %4309 = vmatprep.subr.bf16.mxu0 0
        %4310 = vmatpush1.bf16.msra.mxu0 0
        %4311 = vmatprep.subr.bf16.mxu0 0
        %4312 = vmatpush1.bf16.msra.mxu0 0
        %4313 = vmatprep.subr.bf16.mxu0 0
        %4314 = vmatpush1.bf16.msra.mxu0 0
        %4315 = vmatprep.subr.bf16.mxu0 0
        %4316 = vmatpush1.bf16.msra.mxu0 0
        %4317 = vmatprep.mubr.bf16.mxu0 0
        %4318 = vmatmul.mubr.bf16.gmra.mrb[0].mxu0 %v4063
        %v4319 = vpop.f32.mrb[0].mxu0
        %v4320 = vadd.f32 %v4108, %v4319
        %v4321 = vpop.f32.mrb[0].mxu0
        %v4322 = vadd.f32 %v4112, %v4321
        %v4323 = vpop.f32.mrb[0].mxu0
        %v4324 = vadd.f32 %v4108, %v4323
        %v4325 = vpop.f32.mrb[0].mxu0
        %v4326 = vadd.f32 %v4112, %v4325
        %4327 = vmatprep.mubr.bf16.mxu0 0
        %4328 = vmatmul.mubr.bf16.gmra.mrb[0].mxu0 %v4064
        %v4329 = vpop.f32.mrb[0].mxu0
        %v4330 = vadd.f32 %v4108, %v4329
        %v4331 = vpop.f32.mrb[0].mxu0
        %v4332 = vadd.f32 %v4112, %v4331
        %v4333 = vpop.f32.mrb[0].mxu0
        %v4334 = vadd.f32 %v4108, %v4333
        %v4335 = vpop.f32.mrb[0].mxu0
        %v4336 = vadd.f32 %v4112, %v4335
        %4337 = vmatprep.mubr.bf16.mxu0 0
        %4338 = vmatmul.mubr.bf16.gmra.mrb[0].mxu0 %v4065
        %v4339 = vpop.f32.mrb[0].mxu0
        %v4340 = vadd.f32 %v4108, %v4339
        %v4341 = vpop.f32.mrb[0].mxu0
        %v4342 = vadd.f32 %v4112, %v4341
        %v4343 = vpop.f32.mrb[0].mxu0
        %v4344 = vadd.f32 %v4108, %v4343
        %v4345 = vpop.f32.mrb[0].mxu0
        %v4346 = vadd.f32 %v4112, %v4345
        %4347 = vmatprep.mubr.bf16.mxu0 0
        %4348 = vmatmul.mubr.bf16.gmra.mrb[0].mxu0 %v4066
        %v4349 = vpop.f32.mrb[0].mxu0
        %v4350 = vadd.f32 %v4108, %v4349
        %v4351 = vpop.f32.mrb[0].mxu0
        %v4352 = vadd.f32 %v4112, %v4351
        %v4353 = vpop.f32.mrb[0].mxu0
        %v4354 = vadd.f32 %v4108, %v4353
        %v4355 = vpop.f32.mrb[0].mxu0
        %v4356 = vadd.f32 %v4112, %v4355
        %4357 = vmatprep.mubr.bf16.mxu0 0
        %4358 = vmatmul.mubr.bf16.gmra.mrb[0].mxu0 %v4067
        %v4359 = vpop.f32.mrb[0].mxu0
        %v4360 = vadd.f32 %v4108, %v4359
        %v4361 = vpop.f32.mrb[0].mxu0
        %v4362 = vadd.f32 %v4112, %v4361
        %v4363 = vpop.f32.mrb[0].mxu0
        %v4364 = vadd.f32 %v4108, %v4363
        %v4365 = vpop.f32.mrb[0].mxu0
        %v4366 = vadd.f32 %v4112, %v4365
        %4367 = vmatprep.mubr.bf16.mxu0 0
        %4368 = vmatmul.mubr.bf16.gmra.mrb[0].mxu0 %v4068
        %v4369 = vpop.f32.mrb[0].mxu0
        %v4370 = vadd.f32 %v4108, %v4369
        %v4371 = vpop.f32.mrb[0].mxu0
        %v4372 = vadd.f32 %v4112, %v4371
        %v4373 = vpop.f32.mrb[0].mxu0
        %v4374 = vadd.f32 %v4108, %v4373
        %v4375 = vpop.f32.mrb[0].mxu0
        %v4376 = vadd.f32 %v4112, %v4375
        %4377 = vmatprep.mubr.bf16.mxu0 0
        %4378 = vmatmul.mubr.bf16.gmra.mrb[0].mxu0 %v4069
        %v4379 = vpop.f32.mrb[0].mxu0
        %v4380 = vadd.f32 %v4108, %v4379
        %v4381 = vpop.f32.mrb[0].mxu0
        %v4382 = vadd.f32 %v4112, %v4381
        %v4383 = vpop.f32.mrb[0].mxu0
        %v4384 = vadd.f32 %v4108, %v4383
        %v4385 = vpop.f32.mrb[0].mxu0
        %v4386 = vadd.f32 %v4112, %v4385
        %4387 = vmatprep.mubr.bf16.mxu0 0
        %4388 = vmatmul.mubr.bf16.gmra.mrb[0].mxu0 %v4070
        %v4389 = vpop.f32.mrb[0].mxu0
        %v4390 = vadd.f32 %v4108, %v4389
        %v4391 = vpop.f32.mrb[0].mxu0
        %v4392 = vadd.f32 %v4112, %v4391
        %v4393 = vpop.f32.mrb[0].mxu0
        %v4394 = vadd.f32 %v4108, %v4393
        %v4395 = vpop.f32.mrb[0].mxu0
        %v4396 = vadd.f32 %v4112, %v4395
        %4397 = vdwg.mxu0
        %4398 = vmatprep.subr.bf16.mxu0 %v4224
        %4399 = vmatpush1.bf16.msra.mxu0 %v4223
        %4400 = vmatprep.subr.bf16.mxu0 %v4228
        %4401 = vmatpush1.bf16.msra.mxu0 %v4227
        %4402 = vmatprep.subr.bf16.mxu0 %v4232
        %4403 = vmatpush1.bf16.msra.mxu0 %v4231
        %4404 = vmatprep.subr.bf16.mxu0 %v4236
        %4405 = vmatpush1.bf16.msra.mxu0 %v4235
        %4406 = vmatprep.subr.bf16.mxu0 %v4240
        %4407 = vmatpush1.bf16.msra.mxu0 %v4239
        %4408 = vmatprep.subr.bf16.mxu0 %v4244
        %4409 = vmatpush1.bf16.msra.mxu0 %v4243
        %4410 = vmatprep.subr.bf16.mxu0 %v4248
        %4411 = vmatpush1.bf16.msra.mxu0 %v4247
        %4412 = vmatprep.subr.bf16.mxu0 %v4252
        %4413 = vmatpush1.bf16.msra.mxu0 %v4251
        %4414 = vmatprep.subr.bf16.mxu0 0
        %4415 = vmatpush1.bf16.msra.mxu0 0
        %4416 = vmatprep.subr.bf16.mxu0 0
        %4417 = vmatpush1.bf16.msra.mxu0 0
        %4418 = vmatprep.subr.bf16.mxu0 0
        %4419 = vmatpush1.bf16.msra.mxu0 0
        %4420 = vmatprep.subr.bf16.mxu0 0
        %4421 = vmatpush1.bf16.msra.mxu0 0
        %4422 = vmatprep.subr.bf16.mxu0 0
        %4423 = vmatpush1.bf16.msra.mxu0 0
        %4424 = vmatprep.subr.bf16.mxu0 0
        %4425 = vmatpush1.bf16.msra.mxu0 0
        %4426 = vmatprep.subr.bf16.mxu0 0
        %4427 = vmatpush1.bf16.msra.mxu0 0
        %4428 = vmatprep.subr.bf16.mxu0 0
        %4429 = vmatpush1.bf16.msra.mxu0 0
        %4430 = vmatprep.mubr.bf16.mxu0 0
        %4431 = vmatmul.mubr.bf16.gmra.mrb[0].mxu0 %v4063
        %v4432 = vpop.f32.mrb[0].mxu0
        %v4433 = vadd.f32 %v4116, %v4432
        %v4434 = vpop.f32.mrb[0].mxu0
        %v4435 = vadd.f32 %v4120, %v4434
        %v4436 = vpop.f32.mrb[0].mxu0
        %v4437 = vadd.f32 %v4116, %v4436
        %v4438 = vpop.f32.mrb[0].mxu0
        %v4439 = vadd.f32 %v4120, %v4438
        %4440 = vmatprep.mubr.bf16.mxu0 0
        %4441 = vmatmul.mubr.bf16.gmra.mrb[0].mxu0 %v4064
        %v4442 = vpop.f32.mrb[0].mxu0
        %v4443 = vadd.f32 %v4116, %v4442
        %v4444 = vpop.f32.mrb[0].mxu0
        %v4445 = vadd.f32 %v4120, %v4444
        %v4446 = vpop.f32.mrb[0].mxu0
        %v4447 = vadd.f32 %v4116, %v4446
        %v4448 = vpop.f32.mrb[0].mxu0
        %v4449 = vadd.f32 %v4120, %v4448
        %4450 = vmatprep.mubr.bf16.mxu0 0
        %4451 = vmatmul.mubr.bf16.gmra.mrb[0].mxu0 %v4065
        %v4452 = vpop.f32.mrb[0].mxu0
        %v4453 = vadd.f32 %v4116, %v4452
        %v4454 = vpop.f32.mrb[0].mxu0
        %v4455 = vadd.f32 %v4120, %v4454
        %v4456 = vpop.f32.mrb[0].mxu0
        %v4457 = vadd.f32 %v4116, %v4456
        %v4458 = vpop.f32.mrb[0].mxu0
        %v4459 = vadd.f32 %v4120, %v4458
        %4460 = vmatprep.mubr.bf16.mxu0 0
        %4461 = vmatmul.mubr.bf16.gmra.mrb[0].mxu0 %v4066
        %v4462 = vpop.f32.mrb[0].mxu0
        %v4463 = vadd.f32 %v4116, %v4462
        %v4464 = vpop.f32.mrb[0].mxu0
        %v4465 = vadd.f32 %v4120, %v4464
        %v4466 = vpop.f32.mrb[0].mxu0
        %v4467 = vadd.f32 %v4116, %v4466
        %v4468 = vpop.f32.mrb[0].mxu0
        %v4469 = vadd.f32 %v4120, %v4468
        %4470 = vmatprep.mubr.bf16.mxu0 0
        %4471 = vmatmul.mubr.bf16.gmra.mrb[0].mxu0 %v4067
        %v4472 = vpop.f32.mrb[0].mxu0
        %v4473 = vadd.f32 %v4116, %v4472
        %v4474 = vpop.f32.mrb[0].mxu0
        %v4475 = vadd.f32 %v4120, %v4474
        %v4476 = vpop.f32.mrb[0].mxu0
        %v4477 = vadd.f32 %v4116, %v4476
        %v4478 = vpop.f32.mrb[0].mxu0
        %v4479 = vadd.f32 %v4120, %v4478
        %4480 = vmatprep.mubr.bf16.mxu0 0
        %4481 = vmatmul.mubr.bf16.gmra.mrb[0].mxu0 %v4068
        %v4482 = vpop.f32.mrb[0].mxu0
        %v4483 = vadd.f32 %v4116, %v4482
        %v4484 = vpop.f32.mrb[0].mxu0
        %v4485 = vadd.f32 %v4120, %v4484
        %v4486 = vpop.f32.mrb[0].mxu0
        %v4487 = vadd.f32 %v4116, %v4486
        %v4488 = vpop.f32.mrb[0].mxu0
        %v4489 = vadd.f32 %v4120, %v4488
        %4490 = vmatprep.mubr.bf16.mxu0 0
        %4491 = vmatmul.mubr.bf16.gmra.mrb[0].mxu0 %v4069
        %v4492 = vpop.f32.mrb[0].mxu0
        %v4493 = vadd.f32 %v4116, %v4492
        %v4494 = vpop.f32.mrb[0].mxu0
        %v4495 = vadd.f32 %v4120, %v4494
        %v4496 = vpop.f32.mrb[0].mxu0
        %v4497 = vadd.f32 %v4116, %v4496
        %v4498 = vpop.f32.mrb[0].mxu0
        %v4499 = vadd.f32 %v4120, %v4498
        %4500 = vmatprep.mubr.bf16.mxu0 0
        %4501 = vmatmul.mubr.bf16.gmra.mrb[0].mxu0 %v4070
        %v4502 = vpop.f32.mrb[0].mxu0
        %v4503 = vadd.f32 %v4116, %v4502
        %v4504 = vpop.f32.mrb[0].mxu0
        %v4505 = vadd.f32 %v4120, %v4504
        %v4506 = vpop.f32.mrb[0].mxu0
        %v4507 = vadd.f32 %v4116, %v4506
        %v4508 = vpop.f32.mrb[0].mxu0
        %v4509 = vadd.f32 %v4120, %v4508
        %4510 = vdwg.mxu0
        %v4511 = vunpack.c.l.bf16 %v620
        %v4512 = vunpack.c.h.bf16 %v620
        %v4513 = vunpack.c.l.bf16 %v621
        %v4514 = vunpack.c.h.bf16 %v621
        %v4515 = vunpack.c.l.bf16 %v622
        %v4516 = vunpack.c.h.bf16 %v622
        %v4517 = vunpack.c.l.bf16 %v623
        %v4518 = vunpack.c.h.bf16 %v623
        %v4519 = vunpack.c.l.bf16 %v624
        %v4520 = vunpack.c.h.bf16 %v624
        %v4521 = vunpack.c.l.bf16 %v625
        %v4522 = vunpack.c.h.bf16 %v625
        %v4523 = vunpack.c.l.bf16 %v626
        %v4524 = vunpack.c.h.bf16 %v626
        %v4525 = vunpack.c.l.bf16 %v627
        %v4526 = vunpack.c.h.bf16 %v627
        %v4527 = vunpack.c.l.bf16 %v628
        %v4528 = vunpack.c.h.bf16 %v628
        %v4529 = vunpack.c.l.bf16 %v629
        %v4530 = vunpack.c.h.bf16 %v629
        %v4531 = vunpack.c.l.bf16 %v630
        %v4532 = vunpack.c.h.bf16 %v630
        %v4533 = vunpack.c.l.bf16 %v631
        %v4534 = vunpack.c.h.bf16 %v631
        %v4535 = vunpack.c.l.bf16 %v632
        %v4536 = vunpack.c.h.bf16 %v632
        %v4537 = vunpack.c.l.bf16 %v633
        %v4538 = vunpack.c.h.bf16 %v633
        %v4539 = vunpack.c.l.bf16 %v634
        %v4540 = vunpack.c.h.bf16 %v634
        %v4541 = vunpack.c.l.bf16 %v635
        %v4542 = vunpack.c.h.bf16 %v635
        %v4543 = vunpack.c.l.bf16 %v636
        %v4544 = vunpack.c.h.bf16 %v636
        %v4545 = vunpack.c.l.bf16 %v637
        %v4546 = vunpack.c.h.bf16 %v637
        %v4547 = vunpack.c.l.bf16 %v638
        %v4548 = vunpack.c.h.bf16 %v638
        %v4549 = vunpack.c.l.bf16 %v639
        %v4550 = vunpack.c.h.bf16 %v639
        %v4551 = vunpack.c.l.bf16 %v640
        %v4552 = vunpack.c.h.bf16 %v640
        %v4553 = vunpack.c.l.bf16 %v641
        %v4554 = vunpack.c.h.bf16 %v641
        %v4555 = vunpack.c.l.bf16 %v642
        %v4556 = vunpack.c.h.bf16 %v642
        %v4557 = vunpack.c.l.bf16 %v643
        %v4558 = vunpack.c.h.bf16 %v643
        %v4559 = vunpack.c.l.bf16 %v644
        %v4560 = vunpack.c.h.bf16 %v644
        %v4561 = vunpack.c.l.bf16 %v645
        %v4562 = vunpack.c.h.bf16 %v645
        %v4563 = vunpack.c.l.bf16 %v646
        %v4564 = vunpack.c.h.bf16 %v646
        %v4565 = vunpack.c.l.bf16 %v647
        %v4566 = vunpack.c.h.bf16 %v647
        %v4567 = vunpack.c.l.bf16 %v648
        %v4568 = vunpack.c.h.bf16 %v648
        %v4569 = vunpack.c.l.bf16 %v649
        %v4570 = vunpack.c.h.bf16 %v649
        %v4571 = vunpack.c.l.bf16 %v650
        %v4572 = vunpack.c.h.bf16 %v650
        %v4573 = vunpack.c.l.bf16 %v651
        %v4574 = vunpack.c.h.bf16 %v651
        %v4575 = vadd.f32 %v4320, %v4511
        %v4576 = vadd.f32 %v4322, %v4512
        %v4577 = vadd.f32 %v4433, %v4513
        %v4578 = vadd.f32 %v4435, %v4514
        %v4579 = vadd.f32 %v4324, %v4515
        %v4580 = vadd.f32 %v4326, %v4516
        %v4581 = vadd.f32 %v4437, %v4517
        %v4582 = vadd.f32 %v4439, %v4518
        %v4583 = vadd.f32 %v4330, %v4519
        %v4584 = vadd.f32 %v4332, %v4520
        %v4585 = vadd.f32 %v4443, %v4521
        %v4586 = vadd.f32 %v4445, %v4522
        %v4587 = vadd.f32 %v4334, %v4523
        %v4588 = vadd.f32 %v4336, %v4524
        %v4589 = vadd.f32 %v4447, %v4525
        %v4590 = vadd.f32 %v4449, %v4526
        %v4591 = vadd.f32 %v4340, %v4527
        %v4592 = vadd.f32 %v4342, %v4528
        %v4593 = vadd.f32 %v4453, %v4529
        %v4594 = vadd.f32 %v4455, %v4530
        %v4595 = vadd.f32 %v4344, %v4531
        %v4596 = vadd.f32 %v4346, %v4532
        %v4597 = vadd.f32 %v4457, %v4533
        %v4598 = vadd.f32 %v4459, %v4534
        %v4599 = vadd.f32 %v4350, %v4535
        %v4600 = vadd.f32 %v4352, %v4536
        %v4601 = vadd.f32 %v4463, %v4537
        %v4602 = vadd.f32 %v4465, %v4538
        %v4603 = vadd.f32 %v4354, %v4539
        %v4604 = vadd.f32 %v4356, %v4540
        %v4605 = vadd.f32 %v4467, %v4541
        %v4606 = vadd.f32 %v4469, %v4542
        %v4607 = vadd.f32 %v4360, %v4543
        %v4608 = vadd.f32 %v4362, %v4544
        %v4609 = vadd.f32 %v4473, %v4545
        %v4610 = vadd.f32 %v4475, %v4546
        %v4611 = vadd.f32 %v4364, %v4547
        %v4612 = vadd.f32 %v4366, %v4548
        %v4613 = vadd.f32 %v4477, %v4549
        %v4614 = vadd.f32 %v4479, %v4550
        %v4615 = vadd.f32 %v4370, %v4551
        %v4616 = vadd.f32 %v4372, %v4552
        %v4617 = vadd.f32 %v4483, %v4553
        %v4618 = vadd.f32 %v4485, %v4554
        %v4619 = vadd.f32 %v4374, %v4555
        %v4620 = vadd.f32 %v4376, %v4556
        %v4621 = vadd.f32 %v4487, %v4557
        %v4622 = vadd.f32 %v4489, %v4558
        %v4623 = vadd.f32 %v4380, %v4559
        %v4624 = vadd.f32 %v4382, %v4560
        %v4625 = vadd.f32 %v4493, %v4561
        %v4626 = vadd.f32 %v4495, %v4562
        %v4627 = vadd.f32 %v4384, %v4563
        %v4628 = vadd.f32 %v4386, %v4564
        %v4629 = vadd.f32 %v4497, %v4565
        %v4630 = vadd.f32 %v4499, %v4566
        %v4631 = vadd.f32 %v4390, %v4567
        %v4632 = vadd.f32 %v4392, %v4568
        %v4633 = vadd.f32 %v4503, %v4569
        %v4634 = vadd.f32 %v4505, %v4570
        %v4635 = vadd.f32 %v4394, %v4571
        %v4636 = vadd.f32 %v4396, %v4572
        %v4637 = vadd.f32 %v4507, %v4573
        %v4638 = vadd.f32 %v4509, %v4574
        %v4639 = vmax.f32 %v4575, 0.0
        %v4640 = vmax.f32 %v4576, 0.0
        %v4641 = vmax.f32 %v4577, 0.0
        %v4642 = vmax.f32 %v4578, 0.0
        %v4643 = vmax.f32 %v4579, 0.0
        %v4644 = vmax.f32 %v4580, 0.0
        %v4645 = vmax.f32 %v4581, 0.0
        %v4646 = vmax.f32 %v4582, 0.0
        %v4647 = vmax.f32 %v4583, 0.0
        %v4648 = vmax.f32 %v4584, 0.0
        %v4649 = vmax.f32 %v4585, 0.0
        %v4650 = vmax.f32 %v4586, 0.0
        %v4651 = vmax.f32 %v4587, 0.0
        %v4652 = vmax.f32 %v4588, 0.0
        %v4653 = vmax.f32 %v4589, 0.0
        %v4654 = vmax.f32 %v4590, 0.0
        %v4655 = vmax.f32 %v4591, 0.0
        %v4656 = vmax.f32 %v4592, 0.0
        %v4657 = vmax.f32 %v4593, 0.0
        %v4658 = vmax.f32 %v4594, 0.0
        %v4659 = vmax.f32 %v4595, 0.0
        %v4660 = vmax.f32 %v4596, 0.0
        %v4661 = vmax.f32 %v4597, 0.0
        %v4662 = vmax.f32 %v4598, 0.0
        %v4663 = vmax.f32 %v4599, 0.0
        %v4664 = vmax.f32 %v4600, 0.0
        %v4665 = vmax.f32 %v4601, 0.0
        %v4666 = vmax.f32 %v4602, 0.0
        %v4667 = vmax.f32 %v4603, 0.0
        %v4668 = vmax.f32 %v4604, 0.0
        %v4669 = vmax.f32 %v4605, 0.0
        %v4670 = vmax.f32 %v4606, 0.0
        %v4671 = vmax.f32 %v4607, 0.0
        %v4672 = vmax.f32 %v4608, 0.0
        %v4673 = vmax.f32 %v4609, 0.0
        %v4674 = vmax.f32 %v4610, 0.0
        %v4675 = vmax.f32 %v4611, 0.0
        %v4676 = vmax.f32 %v4612, 0.0
        %v4677 = vmax.f32 %v4613, 0.0
        %v4678 = vmax.f32 %v4614, 0.0
        %v4679 = vmax.f32 %v4615, 0.0
        %v4680 = vmax.f32 %v4616, 0.0
        %v4681 = vmax.f32 %v4617, 0.0
        %v4682 = vmax.f32 %v4618, 0.0
        %v4683 = vmax.f32 %v4619, 0.0
        %v4684 = vmax.f32 %v4620, 0.0
        %v4685 = vmax.f32 %v4621, 0.0
        %v4686 = vmax.f32 %v4622, 0.0
        %v4687 = vmax.f32 %v4623, 0.0
        %v4688 = vmax.f32 %v4624, 0.0
        %v4689 = vmax.f32 %v4625, 0.0
        %v4690 = vmax.f32 %v4626, 0.0
        %v4691 = vmax.f32 %v4627, 0.0
        %v4692 = vmax.f32 %v4628, 0.0
        %v4693 = vmax.f32 %v4629, 0.0
        %v4694 = vmax.f32 %v4630, 0.0
        %v4695 = vmax.f32 %v4631, 0.0
        %v4696 = vmax.f32 %v4632, 0.0
        %v4697 = vmax.f32 %v4633, 0.0
        %v4698 = vmax.f32 %v4634, 0.0
        %v4699 = vmax.f32 %v4635, 0.0
        %v4700 = vmax.f32 %v4636, 0.0
        %v4701 = vmax.f32 %v4637, 0.0
        %v4702 = vmax.f32 %v4638, 0.0
        %v4703 = vpack.c.bf16 %v4643, %v4639
        %v4704 = vpack.c.bf16 %v4644, %v4640
        %v4705 = vpack.c.bf16 %v4645, %v4641
        %v4706 = vpack.c.bf16 %v4646, %v4642
        %v4707 = vpack.c.bf16 %v4651, %v4647
        %v4708 = vpack.c.bf16 %v4652, %v4648
        %v4709 = vpack.c.bf16 %v4653, %v4649
        %v4710 = vpack.c.bf16 %v4654, %v4650
        %v4711 = vpack.c.bf16 %v4659, %v4655
        %v4712 = vpack.c.bf16 %v4660, %v4656
        %v4713 = vpack.c.bf16 %v4661, %v4657
        %v4714 = vpack.c.bf16 %v4662, %v4658
        %v4715 = vpack.c.bf16 %v4667, %v4663
        %v4716 = vpack.c.bf16 %v4668, %v4664
        %v4717 = vpack.c.bf16 %v4669, %v4665
        %v4718 = vpack.c.bf16 %v4670, %v4666
        %v4719 = vpack.c.bf16 %v4675, %v4671
        %v4720 = vpack.c.bf16 %v4676, %v4672
        %v4721 = vpack.c.bf16 %v4677, %v4673
        %v4722 = vpack.c.bf16 %v4678, %v4674
        %v4723 = vpack.c.bf16 %v4683, %v4679
        %v4724 = vpack.c.bf16 %v4684, %v4680
        %v4725 = vpack.c.bf16 %v4685, %v4681
        %v4726 = vpack.c.bf16 %v4686, %v4682
        %v4727 = vpack.c.bf16 %v4691, %v4687
        %v4728 = vpack.c.bf16 %v4692, %v4688
        %v4729 = vpack.c.bf16 %v4693, %v4689
        %v4730 = vpack.c.bf16 %v4694, %v4690
        %v4731 = vpack.c.bf16 %v4699, %v4695
        %v4732 = vpack.c.bf16 %v4700, %v4696
        %v4733 = vpack.c.bf16 %v4701, %v4697
        %v4734 = vpack.c.bf16 %v4702, %v4698
        %v4735 = vld [vmem:[%s7] sm:$0xf]
        %v4736 = vld [vmem:[%s7 + $0x4] sm:$0xf]
        %v4737 = vld [vmem:[%s7 + $0x8] sm:$0xf]
        %v4738 = vld [vmem:[%s7 + $0xc] sm:$0xf]
        %v4739 = vld [vmem:[%s7 + $0x10] sm:$0xf]
        %v4740 = vld [vmem:[%s7 + $0x14] sm:$0xf]
        %v4741 = vld [vmem:[%s7 + $0x18] sm:$0xf]
        %v4742 = vld [vmem:[%s7 + $0x1c] sm:$0xf]
        %v4743 = vld [vmem:[%s7 + $0x20] sm:$0xf]
        %v4744 = vld [vmem:[%s7 + $0x24] sm:$0xf]
        %v4745 = vld [vmem:[%s7 + $0x28] sm:$0xf]
        %v4746 = vld [vmem:[%s7 + $0x2c] sm:$0xf]
        %v4747 = vld [vmem:[%s7 + $0x30] sm:$0xf]
        %v4748 = vld [vmem:[%s7 + $0x34] sm:$0xf]
        %v4749 = vld [vmem:[%s7 + $0x38] sm:$0xf]
        %v4750 = vld [vmem:[%s7 + $0x3c] sm:$0xf]
        %v4751 = vld [vmem:[%s7 + $0x40] sm:$0xf]
        %v4752 = vld [vmem:[%s7 + $0x44] sm:$0xf]
        %v4753 = vld [vmem:[%s7 + $0x48] sm:$0xf]
        %v4754 = vld [vmem:[%s7 + $0x4c] sm:$0xf]
        %v4755 = vld [vmem:[%s7 + $0x50] sm:$0xf]
        %v4756 = vld [vmem:[%s7 + $0x54] sm:$0xf]
        %v4757 = vld [vmem:[%s7 + $0x58] sm:$0xf]
        %v4758 = vld [vmem:[%s7 + $0x5c] sm:$0xf]
        %v4759 = vld [vmem:[%s7 + $0x60] sm:$0xf]
        %v4760 = vld [vmem:[%s7 + $0x64] sm:$0xf]
        %v4761 = vld [vmem:[%s7 + $0x68] sm:$0xf]
        %v4762 = vld [vmem:[%s7 + $0x6c] sm:$0xf]
        %v4763 = vld [vmem:[%s7 + $0x70] sm:$0xf]
        %v4764 = vld [vmem:[%s7 + $0x74] sm:$0xf]
        %v4765 = vld [vmem:[%s7 + $0x78] sm:$0xf]
        %v4766 = vld [vmem:[%s7 + $0x7c] sm:$0xf]
        %v4767 = vld [vmem:[%s7 + $0x80] sm:$0xf]
        %v4768 = vld [vmem:[%s7 + $0x84] sm:$0xf]
        %v4769 = vld [vmem:[%s7 + $0x88] sm:$0xf]
        %v4770 = vld [vmem:[%s7 + $0x8c] sm:$0xf]
        %v4771 = vld [vmem:[%s7 + $0x90] sm:$0xf]
        %v4772 = vld [vmem:[%s7 + $0x94] sm:$0xf]
        %v4773 = vld [vmem:[%s7 + $0x98] sm:$0xf]
        %v4774 = vld [vmem:[%s7 + $0x9c] sm:$0xf]
        %v4775 = vld [vmem:[%s7 + $0xa0] sm:$0xf]
        %v4776 = vld [vmem:[%s7 + $0xa4] sm:$0xf]
        %v4777 = vld [vmem:[%s7 + $0xa8] sm:$0xf]
        %v4778 = vld [vmem:[%s7 + $0xac] sm:$0xf]
        %v4779 = vld [vmem:[%s7 + $0xb0] sm:$0xf]
        %v4780 = vld [vmem:[%s7 + $0xb4] sm:$0xf]
        %v4781 = vld [vmem:[%s7 + $0xb8] sm:$0xf]
        %v4782 = vld [vmem:[%s7 + $0xbc] sm:$0xf]
        %v4783 = vld [vmem:[%s7 + $0xc0] sm:$0xf]
        %v4784 = vld [vmem:[%s7 + $0xc4] sm:$0xf]
        %v4785 = vld [vmem:[%s7 + $0xc8] sm:$0xf]
        %v4786 = vld [vmem:[%s7 + $0xcc] sm:$0xf]
        %v4787 = vld [vmem:[%s7 + $0xd0] sm:$0xf]
        %v4788 = vld [vmem:[%s7 + $0xd4] sm:$0xf]
        %v4789 = vld [vmem:[%s7 + $0xd8] sm:$0xf]
        %v4790 = vld [vmem:[%s7 + $0xdc] sm:$0xf]
        %v4791 = vld [vmem:[%s7 + $0xe0] sm:$0xf]
        %v4792 = vld [vmem:[%s7 + $0xe4] sm:$0xf]
        %v4793 = vld [vmem:[%s7 + $0xe8] sm:$0xf]
        %v4794 = vld [vmem:[%s7 + $0xec] sm:$0xf]
        %v4795 = vld [vmem:[%s7 + $0xf0] sm:$0xf]
        %v4796 = vld [vmem:[%s7 + $0xf4] sm:$0xf]
        %v4797 = vld [vmem:[%s7 + $0xf8] sm:$0xf]
        %v4798 = vld [vmem:[%s7 + $0xfc] sm:$0xf]
        %v4799 = vld [vmem:[%s8] sm:$0x1]
        %v4801 = vlaneseq
        %v4802 = vshrl.u32 %v4801, 7
        %v4803 = vsub.s32 0, %v4802
        %v4804 = vrot.slane %v4799, %v4803
        %v4870 = vunpack.c.l.b16 %v4735
        %v4871 = vunpack.c.l.b16 %v4736
        %v4872 = vunpack.c.l.b16 %v4737
        %v4873 = vunpack.c.l.b16 %v4738
        %v4874 = vunpack.c.l.b16 %v4739
        %v4875 = vunpack.c.l.b16 %v4740
        %v4876 = vunpack.c.l.b16 %v4741
        %v4877 = vunpack.c.l.b16 %v4742
        %v4878 = vunpack.c.l.b16 %v4743
        %v4879 = vunpack.c.l.b16 %v4744
        %v4880 = vunpack.c.l.b16 %v4745
        %v4881 = vunpack.c.l.b16 %v4746
        %v4882 = vunpack.c.l.b16 %v4747
        %v4883 = vunpack.c.l.b16 %v4748
        %v4884 = vunpack.c.l.b16 %v4749
        %v4885 = vunpack.c.l.b16 %v4750
        %v4886 = vunpack.c.l.b16 %v4751
        %v4887 = vunpack.c.l.b16 %v4752
        %v4888 = vunpack.c.l.b16 %v4753
        %v4889 = vunpack.c.l.b16 %v4754
        %v4890 = vunpack.c.l.b16 %v4755
        %v4891 = vunpack.c.l.b16 %v4756
        %v4892 = vunpack.c.l.b16 %v4757
        %v4893 = vunpack.c.l.b16 %v4758
        %v4894 = vunpack.c.l.b16 %v4759
        %v4895 = vunpack.c.l.b16 %v4760
        %v4896 = vunpack.c.l.b16 %v4761
        %v4897 = vunpack.c.l.b16 %v4762
        %v4898 = vunpack.c.l.b16 %v4763
        %v4899 = vunpack.c.l.b16 %v4764
        %v4900 = vunpack.c.l.b16 %v4765
        %v4901 = vunpack.c.l.b16 %v4766
        %v4902 = vunpack.c.l.b16 %v4767
        %v4903 = vunpack.c.l.b16 %v4768
        %v4904 = vunpack.c.l.b16 %v4769
        %v4905 = vunpack.c.l.b16 %v4770
        %v4906 = vunpack.c.l.b16 %v4771
        %v4907 = vunpack.c.l.b16 %v4772
        %v4908 = vunpack.c.l.b16 %v4773
        %v4909 = vunpack.c.l.b16 %v4774
        %v4910 = vunpack.c.l.b16 %v4775
        %v4911 = vunpack.c.l.b16 %v4776
        %v4912 = vunpack.c.l.b16 %v4777
        %v4913 = vunpack.c.l.b16 %v4778
        %v4914 = vunpack.c.l.b16 %v4779
        %v4915 = vunpack.c.l.b16 %v4780
        %v4916 = vunpack.c.l.b16 %v4781
        %v4917 = vunpack.c.l.b16 %v4782
        %v4918 = vunpack.c.l.b16 %v4783
        %v4919 = vunpack.c.l.b16 %v4784
        %v4920 = vunpack.c.l.b16 %v4785
        %v4921 = vunpack.c.l.b16 %v4786
        %v4922 = vunpack.c.l.b16 %v4787
        %v4923 = vunpack.c.l.b16 %v4788
        %v4924 = vunpack.c.l.b16 %v4789
        %v4925 = vunpack.c.l.b16 %v4790
        %v4926 = vunpack.c.l.b16 %v4791
        %v4927 = vunpack.c.l.b16 %v4792
        %v4928 = vunpack.c.l.b16 %v4793
        %v4929 = vunpack.c.l.b16 %v4794
        %v4930 = vunpack.c.l.b16 %v4795
        %v4931 = vunpack.c.l.b16 %v4796
        %v4932 = vunpack.c.l.b16 %v4797
        %v4933 = vunpack.c.l.b16 %v4798
        %v4934 = vpack.c.b16 %v4871, %v4870
        %v4935 = vpack.c.b16 %v4873, %v4872
        %v4936 = vpack.c.b16 %v4875, %v4874
        %v4937 = vpack.c.b16 %v4877, %v4876
        %v4938 = vpack.c.b16 %v4879, %v4878
        %v4939 = vpack.c.b16 %v4881, %v4880
        %v4940 = vpack.c.b16 %v4883, %v4882
        %v4941 = vpack.c.b16 %v4885, %v4884
        %v4942 = vpack.c.b16 %v4887, %v4886
        %v4943 = vpack.c.b16 %v4889, %v4888
        %v4944 = vpack.c.b16 %v4891, %v4890
        %v4945 = vpack.c.b16 %v4893, %v4892
        %v4946 = vpack.c.b16 %v4895, %v4894
        %v4947 = vpack.c.b16 %v4897, %v4896
        %v4948 = vpack.c.b16 %v4899, %v4898
        %v4949 = vpack.c.b16 %v4901, %v4900
        %v4950 = vpack.c.b16 %v4903, %v4902
        %v4951 = vpack.c.b16 %v4905, %v4904
        %v4952 = vpack.c.b16 %v4907, %v4906
        %v4953 = vpack.c.b16 %v4909, %v4908
        %v4954 = vpack.c.b16 %v4911, %v4910
        %v4955 = vpack.c.b16 %v4913, %v4912
        %v4956 = vpack.c.b16 %v4915, %v4914
        %v4957 = vpack.c.b16 %v4917, %v4916
        %v4958 = vpack.c.b16 %v4919, %v4918
        %v4959 = vpack.c.b16 %v4921, %v4920
        %v4960 = vpack.c.b16 %v4923, %v4922
        %v4961 = vpack.c.b16 %v4925, %v4924
        %v4962 = vpack.c.b16 %v4927, %v4926
        %v4963 = vpack.c.b16 %v4929, %v4928
        %v4964 = vpack.c.b16 %v4931, %v4930
        %v4965 = vpack.c.b16 %v4933, %v4932
        %4998 = vmatprep.subr.bf16.mxu0 0
        %4999 = vmatpush1.bf16.msra.mxu0 %v4934
        %5000 = vmatprep.subr.bf16.mxu0 0
        %5001 = vmatpush1.bf16.msra.mxu0 %v4935
        %5002 = vmatprep.subr.bf16.mxu0 0
        %5003 = vmatpush1.bf16.msra.mxu0 %v4936
        %5004 = vmatprep.subr.bf16.mxu0 0
        %5005 = vmatpush1.bf16.msra.mxu0 %v4937
        %5006 = vmatprep.subr.bf16.mxu0 0
        %5007 = vmatpush1.bf16.msra.mxu0 %v4938
        %5008 = vmatprep.subr.bf16.mxu0 0
        %5009 = vmatpush1.bf16.msra.mxu0 %v4939
        %5010 = vmatprep.subr.bf16.mxu0 0
        %5011 = vmatpush1.bf16.msra.mxu0 %v4940
        %5012 = vmatprep.subr.bf16.mxu0 0
        %5013 = vmatpush1.bf16.msra.mxu0 %v4941
        %5014 = vmatprep.subr.bf16.mxu0 0
        %5015 = vmatpush1.bf16.msra.mxu0 %v4942
        %5016 = vmatprep.subr.bf16.mxu0 0
        %5017 = vmatpush1.bf16.msra.mxu0 %v4943
        %5018 = vmatprep.subr.bf16.mxu0 0
        %5019 = vmatpush1.bf16.msra.mxu0 %v4944
        %5020 = vmatprep.subr.bf16.mxu0 0
        %5021 = vmatpush1.bf16.msra.mxu0 %v4945
        %5022 = vmatprep.subr.bf16.mxu0 0
        %5023 = vmatpush1.bf16.msra.mxu0 %v4946
        %5024 = vmatprep.subr.bf16.mxu0 0
        %5025 = vmatpush1.bf16.msra.mxu0 %v4947
        %5026 = vmatprep.subr.bf16.mxu0 0
        %5027 = vmatpush1.bf16.msra.mxu0 %v4948
        %5028 = vmatprep.subr.bf16.mxu0 0
        %5029 = vmatpush1.bf16.msra.mxu0 %v4949
        %5030 = vmatprep.mubr.bf16.mxu0 %v4704
        %5031 = vmatmul.mubr.bf16.gmra.mrb[0].mxu0 %v4703
        %v5032 = vpop.f32.mrb[0].mxu0
        %v5033 = vadd.f32 %v4804, %v5032
        %v5034 = vpop.f32.mrb[0].mxu0
        %v5035 = vpop.f32.mrb[0].mxu0
        %v5036 = vadd.f32 %v4804, %v5035
        %v5037 = vpop.f32.mrb[0].mxu0
        %5038 = vmatprep.mubr.bf16.mxu0 %v4708
        %5039 = vmatmul.mubr.bf16.gmra.mrb[0].mxu0 %v4707
        %v5040 = vpop.f32.mrb[0].mxu0
        %v5041 = vadd.f32 %v4804, %v5040
        %v5042 = vpop.f32.mrb[0].mxu0
        %v5043 = vpop.f32.mrb[0].mxu0
        %v5044 = vadd.f32 %v4804, %v5043
        %v5045 = vpop.f32.mrb[0].mxu0
        %5046 = vmatprep.mubr.bf16.mxu0 %v4712
        %5047 = vmatmul.mubr.bf16.gmra.mrb[0].mxu0 %v4711
        %v5048 = vpop.f32.mrb[0].mxu0
        %v5049 = vadd.f32 %v4804, %v5048
        %v5050 = vpop.f32.mrb[0].mxu0
        %v5051 = vpop.f32.mrb[0].mxu0
        %v5052 = vadd.f32 %v4804, %v5051
        %v5053 = vpop.f32.mrb[0].mxu0
        %5054 = vmatprep.mubr.bf16.mxu0 %v4716
        %5055 = vmatmul.mubr.bf16.gmra.mrb[0].mxu0 %v4715
        %v5056 = vpop.f32.mrb[0].mxu0
        %v5057 = vadd.f32 %v4804, %v5056
        %v5058 = vpop.f32.mrb[0].mxu0
        %v5059 = vpop.f32.mrb[0].mxu0
        %v5060 = vadd.f32 %v4804, %v5059
        %v5061 = vpop.f32.mrb[0].mxu0
        %5062 = vmatprep.mubr.bf16.mxu0 %v4720
        %5063 = vmatmul.mubr.bf16.gmra.mrb[0].mxu0 %v4719
        %v5064 = vpop.f32.mrb[0].mxu0
        %v5065 = vadd.f32 %v4804, %v5064
        %v5066 = vpop.f32.mrb[0].mxu0
        %v5067 = vpop.f32.mrb[0].mxu0
        %v5068 = vadd.f32 %v4804, %v5067
        %v5069 = vpop.f32.mrb[0].mxu0
        %5070 = vmatprep.mubr.bf16.mxu0 %v4724
        %5071 = vmatmul.mubr.bf16.gmra.mrb[0].mxu0 %v4723
        %v5072 = vpop.f32.mrb[0].mxu0
        %v5073 = vadd.f32 %v4804, %v5072
        %v5074 = vpop.f32.mrb[0].mxu0
        %v5075 = vpop.f32.mrb[0].mxu0
        %v5076 = vadd.f32 %v4804, %v5075
        %v5077 = vpop.f32.mrb[0].mxu0
        %5078 = vmatprep.mubr.bf16.mxu0 %v4728
        %5079 = vmatmul.mubr.bf16.gmra.mrb[0].mxu0 %v4727
        %v5080 = vpop.f32.mrb[0].mxu0
        %v5081 = vadd.f32 %v4804, %v5080
        %v5082 = vpop.f32.mrb[0].mxu0
        %v5083 = vpop.f32.mrb[0].mxu0
        %v5084 = vadd.f32 %v4804, %v5083
        %v5085 = vpop.f32.mrb[0].mxu0
        %5086 = vmatprep.mubr.bf16.mxu0 %v4732
        %5087 = vmatmul.mubr.bf16.gmra.mrb[0].mxu0 %v4731
        %v5088 = vpop.f32.mrb[0].mxu0
        %v5089 = vadd.f32 %v4804, %v5088
        %v5090 = vpop.f32.mrb[0].mxu0
        %v5091 = vpop.f32.mrb[0].mxu0
        %v5092 = vadd.f32 %v4804, %v5091
        %v5093 = vpop.f32.mrb[0].mxu0
        %5094 = vdwg.mxu0
        %5095 = vmatprep.subr.bf16.mxu0 0
        %5096 = vmatpush1.bf16.msra.mxu0 %v4950
        %5097 = vmatprep.subr.bf16.mxu0 0
        %5098 = vmatpush1.bf16.msra.mxu0 %v4951
        %5099 = vmatprep.subr.bf16.mxu0 0
        %5100 = vmatpush1.bf16.msra.mxu0 %v4952
        %5101 = vmatprep.subr.bf16.mxu0 0
        %5102 = vmatpush1.bf16.msra.mxu0 %v4953
        %5103 = vmatprep.subr.bf16.mxu0 0
        %5104 = vmatpush1.bf16.msra.mxu0 %v4954
        %5105 = vmatprep.subr.bf16.mxu0 0
        %5106 = vmatpush1.bf16.msra.mxu0 %v4955
        %5107 = vmatprep.subr.bf16.mxu0 0
        %5108 = vmatpush1.bf16.msra.mxu0 %v4956
        %5109 = vmatprep.subr.bf16.mxu0 0
        %5110 = vmatpush1.bf16.msra.mxu0 %v4957
        %5111 = vmatprep.subr.bf16.mxu0 0
        %5112 = vmatpush1.bf16.msra.mxu0 %v4958
        %5113 = vmatprep.subr.bf16.mxu0 0
        %5114 = vmatpush1.bf16.msra.mxu0 %v4959
        %5115 = vmatprep.subr.bf16.mxu0 0
        %5116 = vmatpush1.bf16.msra.mxu0 %v4960
        %5117 = vmatprep.subr.bf16.mxu0 0
        %5118 = vmatpush1.bf16.msra.mxu0 %v4961
        %5119 = vmatprep.subr.bf16.mxu0 0
        %5120 = vmatpush1.bf16.msra.mxu0 %v4962
        %5121 = vmatprep.subr.bf16.mxu0 0
        %5122 = vmatpush1.bf16.msra.mxu0 %v4963
        %5123 = vmatprep.subr.bf16.mxu0 0
        %5124 = vmatpush1.bf16.msra.mxu0 %v4964
        %5125 = vmatprep.subr.bf16.mxu0 0
        %5126 = vmatpush1.bf16.msra.mxu0 %v4965
        %5127 = vmatprep.mubr.bf16.mxu0 %v4706
        %5128 = vmatmul.mubr.bf16.gmra.mrb[0].mxu0 %v4705
        %v5129 = vpop.f32.mrb[0].mxu0
        %v5130 = vadd.f32 %v5033, %v5129
        %v5131 = vpop.f32.mrb[0].mxu0
        %v5132 = vpop.f32.mrb[0].mxu0
        %v5133 = vadd.f32 %v5036, %v5132
        %v5134 = vpop.f32.mrb[0].mxu0
        %5135 = vmatprep.mubr.bf16.mxu0 %v4710
        %5136 = vmatmul.mubr.bf16.gmra.mrb[0].mxu0 %v4709
        %v5137 = vpop.f32.mrb[0].mxu0
        %v5138 = vadd.f32 %v5041, %v5137
        %v5139 = vpop.f32.mrb[0].mxu0
        %v5140 = vpop.f32.mrb[0].mxu0
        %v5141 = vadd.f32 %v5044, %v5140
        %v5142 = vpop.f32.mrb[0].mxu0
        %5143 = vmatprep.mubr.bf16.mxu0 %v4714
        %5144 = vmatmul.mubr.bf16.gmra.mrb[0].mxu0 %v4713
        %v5145 = vpop.f32.mrb[0].mxu0
        %v5146 = vadd.f32 %v5049, %v5145
        %v5147 = vpop.f32.mrb[0].mxu0
        %v5148 = vpop.f32.mrb[0].mxu0
        %v5149 = vadd.f32 %v5052, %v5148
        %v5150 = vpop.f32.mrb[0].mxu0
        %5151 = vmatprep.mubr.bf16.mxu0 %v4718
        %5152 = vmatmul.mubr.bf16.gmra.mrb[0].mxu0 %v4717
        %v5153 = vpop.f32.mrb[0].mxu0
        %v5154 = vadd.f32 %v5057, %v5153
        %v5155 = vpop.f32.mrb[0].mxu0
        %v5156 = vpop.f32.mrb[0].mxu0
        %v5157 = vadd.f32 %v5060, %v5156
        %v5158 = vpop.f32.mrb[0].mxu0
        %5159 = vmatprep.mubr.bf16.mxu0 %v4722
        %5160 = vmatmul.mubr.bf16.gmra.mrb[0].mxu0 %v4721
        %v5161 = vpop.f32.mrb[0].mxu0
        %v5162 = vadd.f32 %v5065, %v5161
        %v5163 = vpop.f32.mrb[0].mxu0
        %v5164 = vpop.f32.mrb[0].mxu0
        %v5165 = vadd.f32 %v5068, %v5164
        %v5166 = vpop.f32.mrb[0].mxu0
        %5167 = vmatprep.mubr.bf16.mxu0 %v4726
        %5168 = vmatmul.mubr.bf16.gmra.mrb[0].mxu0 %v4725
        %v5169 = vpop.f32.mrb[0].mxu0
        %v5170 = vadd.f32 %v5073, %v5169
        %v5171 = vpop.f32.mrb[0].mxu0
        %v5172 = vpop.f32.mrb[0].mxu0
        %v5173 = vadd.f32 %v5076, %v5172
        %v5174 = vpop.f32.mrb[0].mxu0
        %5175 = vmatprep.mubr.bf16.mxu0 %v4730
        %5176 = vmatmul.mubr.bf16.gmra.mrb[0].mxu0 %v4729
        %v5177 = vpop.f32.mrb[0].mxu0
        %v5178 = vadd.f32 %v5081, %v5177
        %v5179 = vpop.f32.mrb[0].mxu0
        %v5180 = vpop.f32.mrb[0].mxu0
        %v5181 = vadd.f32 %v5084, %v5180
        %v5182 = vpop.f32.mrb[0].mxu0
        %5183 = vmatprep.mubr.bf16.mxu0 %v4734
        %5184 = vmatmul.mubr.bf16.gmra.mrb[0].mxu0 %v4733
        %v5185 = vpop.f32.mrb[0].mxu0
        %v5186 = vadd.f32 %v5089, %v5185
        %v5187 = vpop.f32.mrb[0].mxu0
        %v5188 = vpop.f32.mrb[0].mxu0
        %v5189 = vadd.f32 %v5092, %v5188
        %v5190 = vpop.f32.mrb[0].mxu0
        %5191 = vdwg.mxu0
        %v5192 = vmax.f32 %v5130, 0.0
        %v5193 = vmax.f32 %v5133, 0.0
        %v5194 = vmax.f32 %v5138, 0.0
        %v5195 = vmax.f32 %v5141, 0.0
        %v5196 = vmax.f32 %v5146, 0.0
        %v5197 = vmax.f32 %v5149, 0.0
        %v5198 = vmax.f32 %v5154, 0.0
        %v5199 = vmax.f32 %v5157, 0.0
        %v5200 = vmax.f32 %v5162, 0.0
        %v5201 = vmax.f32 %v5165, 0.0
        %v5202 = vmax.f32 %v5170, 0.0
        %v5203 = vmax.f32 %v5173, 0.0
        %v5204 = vmax.f32 %v5178, 0.0
        %v5205 = vmax.f32 %v5181, 0.0
        %v5206 = vmax.f32 %v5186, 0.0
        %v5207 = vmax.f32 %v5189, 0.0
        %v5208 = vpack.c.bf16 %v5192, %v5192
        %v5209 = vpack.c.bf16 %v5193, %v5193
        %v5210 = vpack.c.bf16 %v5194, %v5194
        %v5211 = vpack.c.bf16 %v5195, %v5195
        %v5212 = vpack.c.bf16 %v5196, %v5196
        %v5213 = vpack.c.bf16 %v5197, %v5197
        %v5214 = vpack.c.bf16 %v5198, %v5198
        %v5215 = vpack.c.bf16 %v5199, %v5199
        %v5216 = vpack.c.bf16 %v5200, %v5200
        %v5217 = vpack.c.bf16 %v5201, %v5201
        %v5218 = vpack.c.bf16 %v5202, %v5202
        %v5219 = vpack.c.bf16 %v5203, %v5203
        %v5220 = vpack.c.bf16 %v5204, %v5204
        %v5221 = vpack.c.bf16 %v5205, %v5205
        %v5222 = vpack.c.bf16 %v5206, %v5206
        %v5223 = vpack.c.bf16 %v5207, %v5207
        %5224 = vst [vmem:[%s1301 + $0x8] sm:$0xf] %v5208
        %5225 = vst [vmem:[%s1301 + $0x18] sm:$0xf] %v5209
        %5226 = vst [vmem:[%s1301 + $0x28] sm:$0xf] %v5210
        %5227 = vst [vmem:[%s1301 + $0x38] sm:$0xf] %v5211
        %5228 = vst [vmem:[%s1301 + $0x48] sm:$0xf] %v5212
        %5229 = vst [vmem:[%s1301 + $0x58] sm:$0xf] %v5213
        %5230 = vst [vmem:[%s1301 + $0x68] sm:$0xf] %v5214
        %5231 = vst [vmem:[%s1301 + $0x78] sm:$0xf] %v5215
        %5232 = vst [vmem:[%s1301 + $0xa8] sm:$0xf] %v5216
        %5233 = vst [vmem:[%s1301 + $0xb8] sm:$0xf] %v5217
        %5234 = vst [vmem:[%s1301 + $0xc8] sm:$0xf] %v5218
        %5235 = vst [vmem:[%s1301 + $0xd8] sm:$0xf] %v5219
        %5236 = vst [vmem:[%s1301 + $0xe8] sm:$0xf] %v5220
        %5237 = vst [vmem:[%s1301 + $0xf8] sm:$0xf] %v5221
        %5238 = vst [vmem:[%s1301 + $0x108] sm:$0xf] %v5222
        %5239 = vst [vmem:[%s1301 + $0x118] sm:$0xf] %v5223
        %v5240 = vld [vmem:[#allocation2 + $0x4] sm:$0x8]
        %v5241 = vld [vmem:[#allocation2 + $0x8] sm:$0xf]
        %v5242 = vld [vmem:[#allocation2 + $0x14] sm:$0x8]
        %v5243 = vld [vmem:[#allocation2 + $0x18] sm:$0xf]
        %v5244 = vld [vmem:[#allocation2 + $0x24] sm:$0x8]
        %v5245 = vld [vmem:[#allocation2 + $0x28] sm:$0xf]
        %v5246 = vld [vmem:[#allocation2 + $0x34] sm:$0x8]
        %v5247 = vld [vmem:[#allocation2 + $0x38] sm:$0xf]
        %v5248 = vld [vmem:[#allocation2 + $0x44] sm:$0x8]
        %v5249 = vld [vmem:[#allocation2 + $0x48] sm:$0xf]
        %v5250 = vld [vmem:[#allocation2 + $0x54] sm:$0x8]
        %v5251 = vld [vmem:[#allocation2 + $0x58] sm:$0xf]
        %v5252 = vld [vmem:[#allocation2 + $0x64] sm:$0x8]
        %v5253 = vld [vmem:[#allocation2 + $0x68] sm:$0xf]
        %v5254 = vld [vmem:[#allocation2 + $0x74] sm:$0x8]
        %v5255 = vld [vmem:[#allocation2 + $0x78] sm:$0xf]
        %v5256 = vld [vmem:[#allocation2 + $0x84] sm:$0x8]
        %v5257 = vld [vmem:[#allocation2 + $0x88] sm:$0xf]
        %v5258 = vld [vmem:[#allocation2 + $0x94] sm:$0x8]
        %v5259 = vld [vmem:[#allocation2 + $0x98] sm:$0xf]
        %v5260 = vld [vmem:[#allocation2 + $0xa4] sm:$0x8]
        %v5261 = vld [vmem:[#allocation2 + $0xa8] sm:$0xf]
        %v5262 = vld [vmem:[#allocation2 + $0xb4] sm:$0x8]
        %v5263 = vld [vmem:[#allocation2 + $0xb8] sm:$0xf]
        %v5264 = vld [vmem:[#allocation2 + $0xc4] sm:$0x8]
        %v5265 = vld [vmem:[#allocation2 + $0xc8] sm:$0xf]
        %v5266 = vld [vmem:[#allocation2 + $0xd4] sm:$0x8]
        %v5267 = vld [vmem:[#allocation2 + $0xd8] sm:$0xf]
        %v5268 = vld [vmem:[#allocation2 + $0xe4] sm:$0x8]
        %v5269 = vld [vmem:[#allocation2 + $0xe8] sm:$0xf]
        %v5270 = vld [vmem:[#allocation2 + $0xf4] sm:$0x8]
        %v5271 = vld [vmem:[#allocation2 + $0xf8] sm:$0xf]
        %v5272 = vld [vmem:[#allocation2 + $0x104] sm:$0x8]
        %v5273 = vld [vmem:[#allocation2 + $0x108] sm:$0xf]
        %v5274 = vld [vmem:[#allocation2 + $0x114] sm:$0x8]
        %v5275 = vld [vmem:[#allocation2 + $0x118] sm:$0xf]
        %v5276 = vld [vmem:[#allocation2 + $0x124] sm:$0x8]
        %v5277 = vld [vmem:[#allocation2 + $0x128] sm:$0xf]
        %v5278 = vld [vmem:[#allocation2 + $0x134] sm:$0x8]
        %v5279 = vld [vmem:[#allocation2 + $0x138] sm:$0xf]
        %v5281 = vshrl.u32 %v5240, 16
        %v5283 = vrot.slane %v5281, 7
        %v5284 = vrot.slane %v5283, 4
        %v5286 = vshrl.u32 %v5241, 16
        %v5288 = vrot.slane %v5286, 7
        %v5289 = vshll.u32 %v5241, 16
        %v5291 = vor.u32 %v5288, %v5289
        %v5292 = vsel %vm1359, %v5284, %v5291
        %v5294 = vshrl.u32 %v5242, 16
        %v5296 = vrot.slane %v5294, 7
        %v5297 = vrot.slane %v5296, 4
        %v5299 = vshrl.u32 %v5243, 16
        %v5301 = vrot.slane %v5299, 7
        %v5302 = vshll.u32 %v5243, 16
        %v5304 = vor.u32 %v5301, %v5302
        %v5305 = vsel %vm1359, %v5297, %v5304
        %v5307 = vshrl.u32 %v5244, 16
        %v5309 = vrot.slane %v5307, 7
        %v5310 = vrot.slane %v5309, 4
        %v5312 = vshrl.u32 %v5245, 16
        %v5314 = vrot.slane %v5312, 7
        %v5315 = vshll.u32 %v5245, 16
        %v5317 = vor.u32 %v5314, %v5315
        %v5318 = vsel %vm1359, %v5310, %v5317
        %v5320 = vshrl.u32 %v5246, 16
        %v5322 = vrot.slane %v5320, 7
        %v5323 = vrot.slane %v5322, 4
        %v5325 = vshrl.u32 %v5247, 16
        %v5327 = vrot.slane %v5325, 7
        %v5328 = vshll.u32 %v5247, 16
        %v5330 = vor.u32 %v5327, %v5328
        %v5331 = vsel %vm1359, %v5323, %v5330
        %v5333 = vshrl.u32 %v5248, 16
        %v5335 = vrot.slane %v5333, 7
        %v5336 = vrot.slane %v5335, 4
        %v5338 = vshrl.u32 %v5249, 16
        %v5340 = vrot.slane %v5338, 7
        %v5341 = vshll.u32 %v5249, 16
        %v5343 = vor.u32 %v5340, %v5341
        %v5344 = vsel %vm1359, %v5336, %v5343
        %v5346 = vshrl.u32 %v5250, 16
        %v5348 = vrot.slane %v5346, 7
        %v5349 = vrot.slane %v5348, 4
        %v5351 = vshrl.u32 %v5251, 16
        %v5353 = vrot.slane %v5351, 7
        %v5354 = vshll.u32 %v5251, 16
        %v5356 = vor.u32 %v5353, %v5354
        %v5357 = vsel %vm1359, %v5349, %v5356
        %v5359 = vshrl.u32 %v5252, 16
        %v5361 = vrot.slane %v5359, 7
        %v5362 = vrot.slane %v5361, 4
        %v5364 = vshrl.u32 %v5253, 16
        %v5366 = vrot.slane %v5364, 7
        %v5367 = vshll.u32 %v5253, 16
        %v5369 = vor.u32 %v5366, %v5367
        %v5370 = vsel %vm1359, %v5362, %v5369
        %v5372 = vshrl.u32 %v5254, 16
        %v5374 = vrot.slane %v5372, 7
        %v5375 = vrot.slane %v5374, 4
        %v5377 = vshrl.u32 %v5255, 16
        %v5379 = vrot.slane %v5377, 7
        %v5380 = vshll.u32 %v5255, 16
        %v5382 = vor.u32 %v5379, %v5380
        %v5383 = vsel %vm1359, %v5375, %v5382
        %v5385 = vshrl.u32 %v5260, 16
        %v5387 = vrot.slane %v5385, 7
        %v5388 = vrot.slane %v5387, 4
        %v5390 = vshrl.u32 %v5261, 16
        %v5392 = vrot.slane %v5390, 7
        %v5393 = vshll.u32 %v5261, 16
        %v5395 = vor.u32 %v5392, %v5393
        %v5396 = vsel %vm1359, %v5388, %v5395
        %v5398 = vshrl.u32 %v5262, 16
        %v5400 = vrot.slane %v5398, 7
        %v5401 = vrot.slane %v5400, 4
        %v5403 = vshrl.u32 %v5263, 16
        %v5405 = vrot.slane %v5403, 7
        %v5406 = vshll.u32 %v5263, 16
        %v5408 = vor.u32 %v5405, %v5406
        %v5409 = vsel %vm1359, %v5401, %v5408
        %v5411 = vshrl.u32 %v5264, 16
        %v5413 = vrot.slane %v5411, 7
        %v5414 = vrot.slane %v5413, 4
        %v5416 = vshrl.u32 %v5265, 16
        %v5418 = vrot.slane %v5416, 7
        %v5419 = vshll.u32 %v5265, 16
        %v5421 = vor.u32 %v5418, %v5419
        %v5422 = vsel %vm1359, %v5414, %v5421
        %v5424 = vshrl.u32 %v5266, 16
        %v5426 = vrot.slane %v5424, 7
        %v5427 = vrot.slane %v5426, 4
        %v5429 = vshrl.u32 %v5267, 16
        %v5431 = vrot.slane %v5429, 7
        %v5432 = vshll.u32 %v5267, 16
        %v5434 = vor.u32 %v5431, %v5432
        %v5435 = vsel %vm1359, %v5427, %v5434
        %v5437 = vshrl.u32 %v5268, 16
        %v5439 = vrot.slane %v5437, 7
        %v5440 = vrot.slane %v5439, 4
        %v5442 = vshrl.u32 %v5269, 16
        %v5444 = vrot.slane %v5442, 7
        %v5445 = vshll.u32 %v5269, 16
        %v5447 = vor.u32 %v5444, %v5445
        %v5448 = vsel %vm1359, %v5440, %v5447
        %v5450 = vshrl.u32 %v5270, 16
        %v5452 = vrot.slane %v5450, 7
        %v5453 = vrot.slane %v5452, 4
        %v5455 = vshrl.u32 %v5271, 16
        %v5457 = vrot.slane %v5455, 7
        %v5458 = vshll.u32 %v5271, 16
        %v5460 = vor.u32 %v5457, %v5458
        %v5461 = vsel %vm1359, %v5453, %v5460
        %v5463 = vshrl.u32 %v5272, 16
        %v5465 = vrot.slane %v5463, 7
        %v5466 = vrot.slane %v5465, 4
        %v5468 = vshrl.u32 %v5273, 16
        %v5470 = vrot.slane %v5468, 7
        %v5471 = vshll.u32 %v5273, 16
        %v5473 = vor.u32 %v5470, %v5471
        %v5474 = vsel %vm1359, %v5466, %v5473
        %v5476 = vshrl.u32 %v5274, 16
        %v5478 = vrot.slane %v5476, 7
        %v5479 = vrot.slane %v5478, 4
        %v5481 = vshrl.u32 %v5275, 16
        %v5483 = vrot.slane %v5481, 7
        %v5484 = vshll.u32 %v5275, 16
        %v5486 = vor.u32 %v5483, %v5484
        %v5487 = vsel %vm1359, %v5479, %v5486
        %v5488 = vld [vmem:[%s9] sm:$0xf]
        %v5489 = vld [vmem:[%s9 + $0x4] sm:$0xf]
        %v5490 = vld [vmem:[%s9 + $0x8] sm:$0xf]
        %v5491 = vld [vmem:[%s9 + $0xc] sm:$0xf]
        %v5492 = vld [vmem:[%s9 + $0x10] sm:$0xf]
        %v5493 = vld [vmem:[%s9 + $0x14] sm:$0xf]
        %v5494 = vld [vmem:[%s9 + $0x18] sm:$0xf]
        %v5495 = vld [vmem:[%s9 + $0x1c] sm:$0xf]
        %v5496 = vld [vmem:[%s9 + $0x20] sm:$0xf]
        %v5497 = vld [vmem:[%s9 + $0x24] sm:$0xf]
        %v5498 = vld [vmem:[%s9 + $0x28] sm:$0xf]
        %v5499 = vld [vmem:[%s9 + $0x2c] sm:$0xf]
        %v5500 = vld [vmem:[%s9 + $0x30] sm:$0xf]
        %v5501 = vld [vmem:[%s9 + $0x34] sm:$0xf]
        %v5502 = vld [vmem:[%s9 + $0x38] sm:$0xf]
        %v5503 = vld [vmem:[%s9 + $0x3c] sm:$0xf]
        %v5504 = vunpack.c.l.b16 %v5292
        %v5505 = vunpack.c.l.b16 %v5305
        %v5506 = vunpack.c.l.b16 %v5318
        %v5507 = vunpack.c.l.b16 %v5331
        %v5508 = vunpack.c.l.b16 %v5344
        %v5509 = vunpack.c.l.b16 %v5357
        %v5510 = vunpack.c.l.b16 %v5370
        %v5511 = vunpack.c.l.b16 %v5383
        %v5512 = vunpack.c.l.b16 %v5396
        %v5513 = vunpack.c.l.b16 %v5409
        %v5514 = vunpack.c.l.b16 %v5422
        %v5515 = vunpack.c.l.b16 %v5435
        %v5516 = vunpack.c.l.b16 %v5448
        %v5517 = vunpack.c.l.b16 %v5461
        %v5518 = vunpack.c.l.b16 %v5474
        %v5519 = vunpack.c.l.b16 %v5487
        %v5520 = vpack.c.b16 %v5505, %v5504
        %v5521 = vpack.c.b16 %v5507, %v5506
        %v5522 = vpack.c.b16 %v5509, %v5508
        %v5523 = vpack.c.b16 %v5511, %v5510
        %v5524 = vpack.c.b16 %v5513, %v5512
        %v5525 = vpack.c.b16 %v5515, %v5514
        %v5526 = vpack.c.b16 %v5517, %v5516
        %v5527 = vpack.c.b16 %v5519, %v5518
        %v5552 = vunpack.c.l.b16 %v5488
        %v5553 = vunpack.c.l.b16 %v5489
        %v5554 = vunpack.c.l.b16 %v5490
        %v5555 = vunpack.c.l.b16 %v5491
        %v5556 = vunpack.c.l.b16 %v5492
        %v5557 = vunpack.c.l.b16 %v5493
        %v5558 = vunpack.c.l.b16 %v5494
        %v5559 = vunpack.c.l.b16 %v5495
        %v5560 = vunpack.c.l.b16 %v5496
        %v5561 = vunpack.c.l.b16 %v5497
        %v5562 = vunpack.c.l.b16 %v5498
        %v5563 = vunpack.c.l.b16 %v5499
        %v5564 = vunpack.c.l.b16 %v5500
        %v5565 = vunpack.c.l.b16 %v5501
        %v5566 = vunpack.c.l.b16 %v5502
        %v5567 = vunpack.c.l.b16 %v5503
        %v5568 = vpack.c.b16 %v5553, %v5552
        %v5569 = vpack.c.b16 %v5555, %v5554
        %v5570 = vpack.c.b16 %v5557, %v5556
        %v5571 = vpack.c.b16 %v5559, %v5558
        %v5572 = vpack.c.b16 %v5561, %v5560
        %v5573 = vpack.c.b16 %v5563, %v5562
        %v5574 = vpack.c.b16 %v5565, %v5564
        %v5575 = vpack.c.b16 %v5567, %v5566
        %5584 = vmatprep.subr.bf16.mxu0 0
        %5585 = vmatpush1.bf16.msra.mxu0 %v5568
        %5586 = vmatprep.subr.bf16.mxu0 0
        %5587 = vmatpush1.bf16.msra.mxu0 %v5569
        %5588 = vmatprep.subr.bf16.mxu0 0
        %5589 = vmatpush1.bf16.msra.mxu0 %v5570
        %5590 = vmatprep.subr.bf16.mxu0 0
        %5591 = vmatpush1.bf16.msra.mxu0 %v5571
        %5592 = vmatprep.subr.bf16.mxu0 0
        %5593 = vmatpush1.bf16.msra.mxu0 %v5572
        %5594 = vmatprep.subr.bf16.mxu0 0
        %5595 = vmatpush1.bf16.msra.mxu0 %v5573
        %5596 = vmatprep.subr.bf16.mxu0 0
        %5597 = vmatpush1.bf16.msra.mxu0 %v5574
        %5598 = vmatprep.subr.bf16.mxu0 0
        %5599 = vmatpush1.bf16.msra.mxu0 %v5575
        %5600 = vmatprep.subr.bf16.mxu0 0
        %5601 = vmatpush1.bf16.msra.mxu0 0
        %5602 = vmatprep.subr.bf16.mxu0 0
        %5603 = vmatpush1.bf16.msra.mxu0 0
        %5604 = vmatprep.subr.bf16.mxu0 0
        %5605 = vmatpush1.bf16.msra.mxu0 0
        %5606 = vmatprep.subr.bf16.mxu0 0
        %5607 = vmatpush1.bf16.msra.mxu0 0
        %5608 = vmatprep.subr.bf16.mxu0 0
        %5609 = vmatpush1.bf16.msra.mxu0 0
        %5610 = vmatprep.subr.bf16.mxu0 0
        %5611 = vmatpush1.bf16.msra.mxu0 0
        %5612 = vmatprep.subr.bf16.mxu0 0
        %5613 = vmatpush1.bf16.msra.mxu0 0
        %5614 = vmatprep.subr.bf16.mxu0 0
        %5615 = vmatpush1.bf16.msra.mxu0 0
        %5616 = vmatprep.mubr.bf16.mxu0 0
        %5617 = vmatmul.mubr.bf16.gmra.mrb[0].mxu0 %v5520
        %v5618 = vpop.f32.mrb[0].mxu0
        %v5619 = vadd.f32 0.0, %v5618
        %v5620 = vpop.f32.mrb[0].mxu0
        %v5621 = vpop.f32.mrb[0].mxu0
        %v5622 = vadd.f32 0.0, %v5621
        %v5623 = vpop.f32.mrb[0].mxu0
        %5624 = vmatprep.mubr.bf16.mxu0 0
        %5625 = vmatmul.mubr.bf16.gmra.mrb[0].mxu0 %v5521
        %v5626 = vpop.f32.mrb[0].mxu0
        %v5627 = vadd.f32 0.0, %v5626
        %v5628 = vpop.f32.mrb[0].mxu0
        %v5629 = vpop.f32.mrb[0].mxu0
        %v5630 = vadd.f32 0.0, %v5629
        %v5631 = vpop.f32.mrb[0].mxu0
        %5632 = vmatprep.mubr.bf16.mxu0 0
        %5633 = vmatmul.mubr.bf16.gmra.mrb[0].mxu0 %v5522
        %v5634 = vpop.f32.mrb[0].mxu0
        %v5635 = vadd.f32 0.0, %v5634
        %v5636 = vpop.f32.mrb[0].mxu0
        %v5637 = vpop.f32.mrb[0].mxu0
        %v5638 = vadd.f32 0.0, %v5637
        %v5639 = vpop.f32.mrb[0].mxu0
        %5640 = vmatprep.mubr.bf16.mxu0 0
        %5641 = vmatmul.mubr.bf16.gmra.mrb[0].mxu0 %v5523
        %v5642 = vpop.f32.mrb[0].mxu0
        %v5643 = vadd.f32 0.0, %v5642
        %v5644 = vpop.f32.mrb[0].mxu0
        %v5645 = vpop.f32.mrb[0].mxu0
        %v5646 = vadd.f32 0.0, %v5645
        %v5647 = vpop.f32.mrb[0].mxu0
        %5648 = vmatprep.mubr.bf16.mxu0 0
        %5649 = vmatmul.mubr.bf16.gmra.mrb[0].mxu0 %v5524
        %v5650 = vpop.f32.mrb[0].mxu0
        %v5651 = vadd.f32 0.0, %v5650
        %v5652 = vpop.f32.mrb[0].mxu0
        %v5653 = vpop.f32.mrb[0].mxu0
        %v5654 = vadd.f32 0.0, %v5653
        %v5655 = vpop.f32.mrb[0].mxu0
        %5656 = vmatprep.mubr.bf16.mxu0 0
        %5657 = vmatmul.mubr.bf16.gmra.mrb[0].mxu0 %v5525
        %v5658 = vpop.f32.mrb[0].mxu0
        %v5659 = vadd.f32 0.0, %v5658
        %v5660 = vpop.f32.mrb[0].mxu0
        %v5661 = vpop.f32.mrb[0].mxu0
        %v5662 = vadd.f32 0.0, %v5661
        %v5663 = vpop.f32.mrb[0].mxu0
        %5664 = vmatprep.mubr.bf16.mxu0 0
        %5665 = vmatmul.mubr.bf16.gmra.mrb[0].mxu0 %v5526
        %v5666 = vpop.f32.mrb[0].mxu0
        %v5667 = vadd.f32 0.0, %v5666
        %v5668 = vpop.f32.mrb[0].mxu0
        %v5669 = vpop.f32.mrb[0].mxu0
        %v5670 = vadd.f32 0.0, %v5669
        %v5671 = vpop.f32.mrb[0].mxu0
        %5672 = vmatprep.mubr.bf16.mxu0 0
        %5673 = vmatmul.mubr.bf16.gmra.mrb[0].mxu0 %v5527
        %v5674 = vpop.f32.mrb[0].mxu0
        %v5675 = vadd.f32 0.0, %v5674
        %v5676 = vpop.f32.mrb[0].mxu0
        %v5677 = vpop.f32.mrb[0].mxu0
        %v5678 = vadd.f32 0.0, %v5677
        %v5679 = vpop.f32.mrb[0].mxu0
        %5680 = vdwg.mxu0
        %5681 = vst [vmem:[#allocation3] sm:$0xff] %v5619
        %5682 = vst [vmem:[#allocation3 + $0x8] sm:$0xff] %v5622
        %5683 = vst [vmem:[#allocation3 + $0x10] sm:$0xff] %v5627
        %5684 = vst [vmem:[#allocation3 + $0x18] sm:$0xff] %v5630
        %5685 = vst [vmem:[#allocation3 + $0x20] sm:$0xff] %v5635
        %5686 = vst [vmem:[#allocation3 + $0x28] sm:$0xff] %v5638
        %5687 = vst [vmem:[#allocation3 + $0x30] sm:$0xff] %v5643
        %5688 = vst [vmem:[#allocation3 + $0x38] sm:$0xff] %v5646
        %5689 = vst [vmem:[#allocation3 + $0x40] sm:$0xff] %v5651
        %5690 = vst [vmem:[#allocation3 + $0x48] sm:$0xff] %v5654
        %5691 = vst [vmem:[#allocation3 + $0x50] sm:$0xff] %v5659
        %5692 = vst [vmem:[#allocation3 + $0x58] sm:$0xff] %v5662
        %5693 = vst [vmem:[#allocation3 + $0x60] sm:$0xff] %v5667
        %5694 = vst [vmem:[#allocation3 + $0x68] sm:$0xff] %v5670
        %5695 = vst [vmem:[#allocation3 + $0x70] sm:$0xff] %v5675
        %5696 = vst [vmem:[#allocation3 + $0x78] sm:$0xff] %v5678
        %v5698 = vshrl.u32 %v5256, 16
        %v5700 = vrot.slane %v5698, 7
        %v5701 = vrot.slane %v5700, 4
        %v5703 = vshrl.u32 %v5257, 16
        %v5705 = vrot.slane %v5703, 7
        %v5706 = vshll.u32 %v5257, 16
        %v5708 = vor.u32 %v5705, %v5706
        %v5709 = vsel %vm1359, %v5701, %v5708
        %v5711 = vshrl.u32 %v5276, 16
        %v5713 = vrot.slane %v5711, 7
        %v5714 = vrot.slane %v5713, 4
        %v5716 = vshrl.u32 %v5277, 16
        %v5718 = vrot.slane %v5716, 7
        %v5719 = vshll.u32 %v5277, 16
        %v5721 = vor.u32 %v5718, %v5719
        %v5722 = vsel %vm1359, %v5714, %v5721
        %s5723 = scalar_lea.vmem %s9, 192
        %v5724 = vld [vmem:[%s5723] sm:$0xf]
        %v5725 = vld [vmem:[%s5723 + $0x4] sm:$0xf]
        %v5726 = vld [vmem:[%s5723 + $0x8] sm:$0xf]
        %v5727 = vld [vmem:[%s5723 + $0xc] sm:$0xf]
        %v5728 = vld [vmem:[%s5723 + $0x10] sm:$0xf]
        %v5729 = vld [vmem:[%s5723 + $0x14] sm:$0xf]
        %v5730 = vld [vmem:[%s5723 + $0x18] sm:$0xf]
        %v5731 = vld [vmem:[%s5723 + $0x1c] sm:$0xf]
        %v5732 = vld [vmem:[%s5723 + $0x20] sm:$0xf]
        %v5733 = vld [vmem:[%s5723 + $0x24] sm:$0xf]
        %v5734 = vld [vmem:[%s5723 + $0x28] sm:$0xf]
        %v5735 = vld [vmem:[%s5723 + $0x2c] sm:$0xf]
        %v5736 = vld [vmem:[%s5723 + $0x30] sm:$0xf]
        %v5737 = vld [vmem:[%s5723 + $0x34] sm:$0xf]
        %v5738 = vld [vmem:[%s5723 + $0x38] sm:$0xf]
        %v5739 = vld [vmem:[%s5723 + $0x3c] sm:$0xf]
        %v5740 = vunpack.c.l.b16 %v5709
        %v5741 = vunpack.c.l.b16 %v5722
        %v5742 = vpack.c.b16 %v5506, %v5505
        %v5743 = vpack.c.b16 %v5508, %v5507
        %v5744 = vpack.c.b16 %v5510, %v5509
        %v5745 = vpack.c.b16 %v5740, %v5511
        %v5746 = vpack.c.b16 %v5514, %v5513
        %v5747 = vpack.c.b16 %v5516, %v5515
        %v5748 = vpack.c.b16 %v5518, %v5517
        %v5749 = vpack.c.b16 %v5741, %v5519
        %v5774 = vunpack.c.l.b16 %v5724
        %v5775 = vunpack.c.l.b16 %v5725
        %v5776 = vunpack.c.l.b16 %v5726
        %v5777 = vunpack.c.l.b16 %v5727
        %v5778 = vunpack.c.l.b16 %v5728
        %v5779 = vunpack.c.l.b16 %v5729
        %v5780 = vunpack.c.l.b16 %v5730
        %v5781 = vunpack.c.l.b16 %v5731
        %v5782 = vunpack.c.l.b16 %v5732
        %v5783 = vunpack.c.l.b16 %v5733
        %v5784 = vunpack.c.l.b16 %v5734
        %v5785 = vunpack.c.l.b16 %v5735
        %v5786 = vunpack.c.l.b16 %v5736
        %v5787 = vunpack.c.l.b16 %v5737
        %v5788 = vunpack.c.l.b16 %v5738
        %v5789 = vunpack.c.l.b16 %v5739
        %v5790 = vpack.c.b16 %v5775, %v5774
        %v5791 = vpack.c.b16 %v5777, %v5776
        %v5792 = vpack.c.b16 %v5779, %v5778
        %v5793 = vpack.c.b16 %v5781, %v5780
        %v5794 = vpack.c.b16 %v5783, %v5782
        %v5795 = vpack.c.b16 %v5785, %v5784
        %v5796 = vpack.c.b16 %v5787, %v5786
        %v5797 = vpack.c.b16 %v5789, %v5788
        %5806 = vmatprep.subr.bf16.mxu0 0
        %5807 = vmatpush1.bf16.msra.mxu0 %v5790
        %5808 = vmatprep.subr.bf16.mxu0 0
        %5809 = vmatpush1.bf16.msra.mxu0 %v5791
        %5810 = vmatprep.subr.bf16.mxu0 0
        %5811 = vmatpush1.bf16.msra.mxu0 %v5792
        %5812 = vmatprep.subr.bf16.mxu0 0
        %5813 = vmatpush1.bf16.msra.mxu0 %v5793
        %5814 = vmatprep.subr.bf16.mxu0 0
        %5815 = vmatpush1.bf16.msra.mxu0 %v5794
        %5816 = vmatprep.subr.bf16.mxu0 0
        %5817 = vmatpush1.bf16.msra.mxu0 %v5795
        %5818 = vmatprep.subr.bf16.mxu0 0
        %5819 = vmatpush1.bf16.msra.mxu0 %v5796
        %5820 = vmatprep.subr.bf16.mxu0 0
        %5821 = vmatpush1.bf16.msra.mxu0 %v5797
        %5822 = vmatprep.subr.bf16.mxu0 0
        %5823 = vmatpush1.bf16.msra.mxu0 0
        %5824 = vmatprep.subr.bf16.mxu0 0
        %5825 = vmatpush1.bf16.msra.mxu0 0
        %5826 = vmatprep.subr.bf16.mxu0 0
        %5827 = vmatpush1.bf16.msra.mxu0 0
        %5828 = vmatprep.subr.bf16.mxu0 0
        %5829 = vmatpush1.bf16.msra.mxu0 0
        %5830 = vmatprep.subr.bf16.mxu0 0
        %5831 = vmatpush1.bf16.msra.mxu0 0
        %5832 = vmatprep.subr.bf16.mxu0 0
        %5833 = vmatpush1.bf16.msra.mxu0 0
        %5834 = vmatprep.subr.bf16.mxu0 0
        %5835 = vmatpush1.bf16.msra.mxu0 0
        %5836 = vmatprep.subr.bf16.mxu0 0
        %5837 = vmatpush1.bf16.msra.mxu0 0
        %5838 = vmatprep.mubr.bf16.mxu0 0
        %5839 = vmatmul.mubr.bf16.gmra.mrb[0].mxu0 %v5742
        %v5840 = vpop.f32.mrb[0].mxu0
        %v5841 = vadd.f32 0.0, %v5840
        %v5842 = vpop.f32.mrb[0].mxu0
        %v5843 = vpop.f32.mrb[0].mxu0
        %v5844 = vadd.f32 0.0, %v5843
        %v5845 = vpop.f32.mrb[0].mxu0
        %5846 = vmatprep.mubr.bf16.mxu0 0
        %5847 = vmatmul.mubr.bf16.gmra.mrb[0].mxu0 %v5743
        %v5848 = vpop.f32.mrb[0].mxu0
        %v5849 = vadd.f32 0.0, %v5848
        %v5850 = vpop.f32.mrb[0].mxu0
        %v5851 = vpop.f32.mrb[0].mxu0
        %v5852 = vadd.f32 0.0, %v5851
        %v5853 = vpop.f32.mrb[0].mxu0
        %5854 = vmatprep.mubr.bf16.mxu0 0
        %5855 = vmatmul.mubr.bf16.gmra.mrb[0].mxu0 %v5744
        %v5856 = vpop.f32.mrb[0].mxu0
        %v5857 = vadd.f32 0.0, %v5856
        %v5858 = vpop.f32.mrb[0].mxu0
        %v5859 = vpop.f32.mrb[0].mxu0
        %v5860 = vadd.f32 0.0, %v5859
        %v5861 = vpop.f32.mrb[0].mxu0
        %5862 = vmatprep.mubr.bf16.mxu0 0
        %5863 = vmatmul.mubr.bf16.gmra.mrb[0].mxu0 %v5745
        %v5864 = vpop.f32.mrb[0].mxu0
        %v5865 = vadd.f32 0.0, %v5864
        %v5866 = vpop.f32.mrb[0].mxu0
        %v5867 = vpop.f32.mrb[0].mxu0
        %v5868 = vadd.f32 0.0, %v5867
        %v5869 = vpop.f32.mrb[0].mxu0
        %5870 = vmatprep.mubr.bf16.mxu0 0
        %5871 = vmatmul.mubr.bf16.gmra.mrb[0].mxu0 %v5746
        %v5872 = vpop.f32.mrb[0].mxu0
        %v5873 = vadd.f32 0.0, %v5872
        %v5874 = vpop.f32.mrb[0].mxu0
        %v5875 = vpop.f32.mrb[0].mxu0
        %v5876 = vadd.f32 0.0, %v5875
        %v5877 = vpop.f32.mrb[0].mxu0
        %5878 = vmatprep.mubr.bf16.mxu0 0
        %5879 = vmatmul.mubr.bf16.gmra.mrb[0].mxu0 %v5747
        %v5880 = vpop.f32.mrb[0].mxu0
        %v5881 = vadd.f32 0.0, %v5880
        %v5882 = vpop.f32.mrb[0].mxu0
        %v5883 = vpop.f32.mrb[0].mxu0
        %v5884 = vadd.f32 0.0, %v5883
        %v5885 = vpop.f32.mrb[0].mxu0
        %5886 = vmatprep.mubr.bf16.mxu0 0
        %5887 = vmatmul.mubr.bf16.gmra.mrb[0].mxu0 %v5748
        %v5888 = vpop.f32.mrb[0].mxu0
        %v5889 = vadd.f32 0.0, %v5888
        %v5890 = vpop.f32.mrb[0].mxu0
        %v5891 = vpop.f32.mrb[0].mxu0
        %v5892 = vadd.f32 0.0, %v5891
        %v5893 = vpop.f32.mrb[0].mxu0
        %5894 = vmatprep.mubr.bf16.mxu0 0
        %5895 = vmatmul.mubr.bf16.gmra.mrb[0].mxu0 %v5749
        %v5896 = vpop.f32.mrb[0].mxu0
        %v5897 = vadd.f32 0.0, %v5896
        %v5898 = vpop.f32.mrb[0].mxu0
        %v5899 = vpop.f32.mrb[0].mxu0
        %v5900 = vadd.f32 0.0, %v5899
        %v5901 = vpop.f32.mrb[0].mxu0
        %5902 = vdwg.mxu0
        %v5903 = vld [vmem:[#allocation3] sm:$0xff]
        %v5904 = vld [vmem:[#allocation3 + $0x8] sm:$0xff]
        %v5905 = vld [vmem:[#allocation3 + $0x10] sm:$0xff]
        %v5906 = vld [vmem:[#allocation3 + $0x18] sm:$0xff]
        %v5907 = vld [vmem:[#allocation3 + $0x20] sm:$0xff]
        %v5908 = vld [vmem:[#allocation3 + $0x28] sm:$0xff]
        %v5909 = vld [vmem:[#allocation3 + $0x30] sm:$0xff]
        %v5910 = vld [vmem:[#allocation3 + $0x38] sm:$0xff]
        %v5911 = vld [vmem:[#allocation3 + $0x40] sm:$0xff]
        %v5912 = vld [vmem:[#allocation3 + $0x48] sm:$0xff]
        %v5913 = vld [vmem:[#allocation3 + $0x50] sm:$0xff]
        %v5914 = vld [vmem:[#allocation3 + $0x58] sm:$0xff]
        %v5915 = vld [vmem:[#allocation3 + $0x60] sm:$0xff]
        %v5916 = vld [vmem:[#allocation3 + $0x68] sm:$0xff]
        %v5917 = vld [vmem:[#allocation3 + $0x70] sm:$0xff]
        %v5918 = vld [vmem:[#allocation3 + $0x78] sm:$0xff]
        %v5919 = vadd.f32 %v5903, %v5841
        %v5920 = vadd.f32 %v5904, %v5844
        %v5921 = vadd.f32 %v5905, %v5849
        %v5922 = vadd.f32 %v5906, %v5852
        %v5923 = vadd.f32 %v5907, %v5857
        %v5924 = vadd.f32 %v5908, %v5860
        %v5925 = vadd.f32 %v5909, %v5865
        %v5926 = vadd.f32 %v5910, %v5868
        %v5927 = vadd.f32 %v5911, %v5873
        %v5928 = vadd.f32 %v5912, %v5876
        %v5929 = vadd.f32 %v5913, %v5881
        %v5930 = vadd.f32 %v5914, %v5884
        %v5931 = vadd.f32 %v5915, %v5889
        %v5932 = vadd.f32 %v5916, %v5892
        %v5933 = vadd.f32 %v5917, %v5897
        %v5934 = vadd.f32 %v5918, %v5900
        %5935 = vst [vmem:[#allocation3] sm:$0xff] %v5919
        %5936 = vst [vmem:[#allocation3 + $0x8] sm:$0xff] %v5920
        %5937 = vst [vmem:[#allocation3 + $0x10] sm:$0xff] %v5921
        %5938 = vst [vmem:[#allocation3 + $0x18] sm:$0xff] %v5922
        %5939 = vst [vmem:[#allocation3 + $0x20] sm:$0xff] %v5923
        %5940 = vst [vmem:[#allocation3 + $0x28] sm:$0xff] %v5924
        %5941 = vst [vmem:[#allocation3 + $0x30] sm:$0xff] %v5925
        %5942 = vst [vmem:[#allocation3 + $0x38] sm:$0xff] %v5926
        %5943 = vst [vmem:[#allocation3 + $0x40] sm:$0xff] %v5927
        %5944 = vst [vmem:[#allocation3 + $0x48] sm:$0xff] %v5928
        %5945 = vst [vmem:[#allocation3 + $0x50] sm:$0xff] %v5929
        %5946 = vst [vmem:[#allocation3 + $0x58] sm:$0xff] %v5930
        %5947 = vst [vmem:[#allocation3 + $0x60] sm:$0xff] %v5931
        %5948 = vst [vmem:[#allocation3 + $0x68] sm:$0xff] %v5932
        %5949 = vst [vmem:[#allocation3 + $0x70] sm:$0xff] %v5933
        %5950 = vst [vmem:[#allocation3 + $0x78] sm:$0xff] %v5934
        %v5952 = vshrl.u32 %v5258, 16
        %v5954 = vrot.slane %v5952, 7
        %v5955 = vrot.slane %v5954, 4
        %v5957 = vshrl.u32 %v5259, 16
        %v5959 = vrot.slane %v5957, 7
        %v5960 = vshll.u32 %v5259, 16
        %v5962 = vor.u32 %v5959, %v5960
        %v5963 = vsel %vm1359, %v5955, %v5962
        %v5965 = vshrl.u32 %v5278, 16
        %v5967 = vrot.slane %v5965, 7
        %v5968 = vrot.slane %v5967, 4
        %v5970 = vshrl.u32 %v5279, 16
        %v5972 = vrot.slane %v5970, 7
        %v5973 = vshll.u32 %v5279, 16
        %v5975 = vor.u32 %v5972, %v5973
        %v5976 = vsel %vm1359, %v5968, %v5975
        %s5977 = scalar_lea.vmem %s9, 384
        %v5978 = vld [vmem:[%s5977] sm:$0xf]
        %v5979 = vld [vmem:[%s5977 + $0x4] sm:$0xf]
        %v5980 = vld [vmem:[%s5977 + $0x8] sm:$0xf]
        %v5981 = vld [vmem:[%s5977 + $0xc] sm:$0xf]
        %v5982 = vld [vmem:[%s5977 + $0x10] sm:$0xf]
        %v5983 = vld [vmem:[%s5977 + $0x14] sm:$0xf]
        %v5984 = vld [vmem:[%s5977 + $0x18] sm:$0xf]
        %v5985 = vld [vmem:[%s5977 + $0x1c] sm:$0xf]
        %v5986 = vld [vmem:[%s5977 + $0x20] sm:$0xf]
        %v5987 = vld [vmem:[%s5977 + $0x24] sm:$0xf]
        %v5988 = vld [vmem:[%s5977 + $0x28] sm:$0xf]
        %v5989 = vld [vmem:[%s5977 + $0x2c] sm:$0xf]
        %v5990 = vld [vmem:[%s5977 + $0x30] sm:$0xf]
        %v5991 = vld [vmem:[%s5977 + $0x34] sm:$0xf]
        %v5992 = vld [vmem:[%s5977 + $0x38] sm:$0xf]
        %v5993 = vld [vmem:[%s5977 + $0x3c] sm:$0xf]
        %v5994 = vunpack.c.l.b16 %v5963
        %v5995 = vunpack.c.l.b16 %v5976
        %v5996 = vpack.c.b16 %v5994, %v5740
        %v5997 = vpack.c.b16 %v5995, %v5741
        %v6016 = vunpack.c.l.b16 %v5978
        %v6017 = vunpack.c.l.b16 %v5979
        %v6018 = vunpack.c.l.b16 %v5980
        %v6019 = vunpack.c.l.b16 %v5981
        %v6020 = vunpack.c.l.b16 %v5982
        %v6021 = vunpack.c.l.b16 %v5983
        %v6022 = vunpack.c.l.b16 %v5984
        %v6023 = vunpack.c.l.b16 %v5985
        %v6024 = vunpack.c.l.b16 %v5986
        %v6025 = vunpack.c.l.b16 %v5987
        %v6026 = vunpack.c.l.b16 %v5988
        %v6027 = vunpack.c.l.b16 %v5989
        %v6028 = vunpack.c.l.b16 %v5990
        %v6029 = vunpack.c.l.b16 %v5991
        %v6030 = vunpack.c.l.b16 %v5992
        %v6031 = vunpack.c.l.b16 %v5993
        %v6032 = vpack.c.b16 %v6017, %v6016
        %v6033 = vpack.c.b16 %v6019, %v6018
        %v6034 = vpack.c.b16 %v6021, %v6020
        %v6035 = vpack.c.b16 %v6023, %v6022
        %v6036 = vpack.c.b16 %v6025, %v6024
        %v6037 = vpack.c.b16 %v6027, %v6026
        %v6038 = vpack.c.b16 %v6029, %v6028
        %v6039 = vpack.c.b16 %v6031, %v6030
        %6048 = vmatprep.subr.bf16.mxu0 0
        %6049 = vmatpush1.bf16.msra.mxu0 %v6032
        %6050 = vmatprep.subr.bf16.mxu0 0
        %6051 = vmatpush1.bf16.msra.mxu0 %v6033
        %6052 = vmatprep.subr.bf16.mxu0 0
        %6053 = vmatpush1.bf16.msra.mxu0 %v6034
        %6054 = vmatprep.subr.bf16.mxu0 0
        %6055 = vmatpush1.bf16.msra.mxu0 %v6035
        %6056 = vmatprep.subr.bf16.mxu0 0
        %6057 = vmatpush1.bf16.msra.mxu0 %v6036
        %6058 = vmatprep.subr.bf16.mxu0 0
        %6059 = vmatpush1.bf16.msra.mxu0 %v6037
        %6060 = vmatprep.subr.bf16.mxu0 0
        %6061 = vmatpush1.bf16.msra.mxu0 %v6038
        %6062 = vmatprep.subr.bf16.mxu0 0
        %6063 = vmatpush1.bf16.msra.mxu0 %v6039
        %6064 = vmatprep.subr.bf16.mxu0 0
        %6065 = vmatpush1.bf16.msra.mxu0 0
        %6066 = vmatprep.subr.bf16.mxu0 0
        %6067 = vmatpush1.bf16.msra.mxu0 0
        %6068 = vmatprep.subr.bf16.mxu0 0
        %6069 = vmatpush1.bf16.msra.mxu0 0
        %6070 = vmatprep.subr.bf16.mxu0 0
        %6071 = vmatpush1.bf16.msra.mxu0 0
        %6072 = vmatprep.subr.bf16.mxu0 0
        %6073 = vmatpush1.bf16.msra.mxu0 0
        %6074 = vmatprep.subr.bf16.mxu0 0
        %6075 = vmatpush1.bf16.msra.mxu0 0
        %6076 = vmatprep.subr.bf16.mxu0 0
        %6077 = vmatpush1.bf16.msra.mxu0 0
        %6078 = vmatprep.subr.bf16.mxu0 0
        %6079 = vmatpush1.bf16.msra.mxu0 0
        %6080 = vmatprep.mubr.bf16.mxu0 0
        %6081 = vmatmul.mubr.bf16.gmra.mrb[0].mxu0 %v5521
        %v6082 = vpop.f32.mrb[0].mxu0
        %v6083 = vadd.f32 0.0, %v6082
        %v6084 = vpop.f32.mrb[0].mxu0
        %v6085 = vpop.f32.mrb[0].mxu0
        %v6086 = vadd.f32 0.0, %v6085
        %v6087 = vpop.f32.mrb[0].mxu0
        %6088 = vmatprep.mubr.bf16.mxu0 0
        %6089 = vmatmul.mubr.bf16.gmra.mrb[0].mxu0 %v5522
        %v6090 = vpop.f32.mrb[0].mxu0
        %v6091 = vadd.f32 0.0, %v6090
        %v6092 = vpop.f32.mrb[0].mxu0
        %v6093 = vpop.f32.mrb[0].mxu0
        %v6094 = vadd.f32 0.0, %v6093
        %v6095 = vpop.f32.mrb[0].mxu0
        %6096 = vmatprep.mubr.bf16.mxu0 0
        %6097 = vmatmul.mubr.bf16.gmra.mrb[0].mxu0 %v5523
        %v6098 = vpop.f32.mrb[0].mxu0
        %v6099 = vadd.f32 0.0, %v6098
        %v6100 = vpop.f32.mrb[0].mxu0
        %v6101 = vpop.f32.mrb[0].mxu0
        %v6102 = vadd.f32 0.0, %v6101
        %v6103 = vpop.f32.mrb[0].mxu0
        %6104 = vmatprep.mubr.bf16.mxu0 0
        %6105 = vmatmul.mubr.bf16.gmra.mrb[0].mxu0 %v5996
        %v6106 = vpop.f32.mrb[0].mxu0
        %v6107 = vadd.f32 0.0, %v6106
        %v6108 = vpop.f32.mrb[0].mxu0
        %v6109 = vpop.f32.mrb[0].mxu0
        %v6110 = vadd.f32 0.0, %v6109
        %v6111 = vpop.f32.mrb[0].mxu0
        %6112 = vmatprep.mubr.bf16.mxu0 0
        %6113 = vmatmul.mubr.bf16.gmra.mrb[0].mxu0 %v5525
        %v6114 = vpop.f32.mrb[0].mxu0
        %v6115 = vadd.f32 0.0, %v6114
        %v6116 = vpop.f32.mrb[0].mxu0
        %v6117 = vpop.f32.mrb[0].mxu0
        %v6118 = vadd.f32 0.0, %v6117
        %v6119 = vpop.f32.mrb[0].mxu0
        %6120 = vmatprep.mubr.bf16.mxu0 0
        %6121 = vmatmul.mubr.bf16.gmra.mrb[0].mxu0 %v5526
        %v6122 = vpop.f32.mrb[0].mxu0
        %v6123 = vadd.f32 0.0, %v6122
        %v6124 = vpop.f32.mrb[0].mxu0
        %v6125 = vpop.f32.mrb[0].mxu0
        %v6126 = vadd.f32 0.0, %v6125
        %v6127 = vpop.f32.mrb[0].mxu0
        %6128 = vmatprep.mubr.bf16.mxu0 0
        %6129 = vmatmul.mubr.bf16.gmra.mrb[0].mxu0 %v5527
        %v6130 = vpop.f32.mrb[0].mxu0
        %v6131 = vadd.f32 0.0, %v6130
        %v6132 = vpop.f32.mrb[0].mxu0
        %v6133 = vpop.f32.mrb[0].mxu0
        %v6134 = vadd.f32 0.0, %v6133
        %v6135 = vpop.f32.mrb[0].mxu0
        %6136 = vmatprep.mubr.bf16.mxu0 0
        %6137 = vmatmul.mubr.bf16.gmra.mrb[0].mxu0 %v5997
        %v6138 = vpop.f32.mrb[0].mxu0
        %v6139 = vadd.f32 0.0, %v6138
        %v6140 = vpop.f32.mrb[0].mxu0
        %v6141 = vpop.f32.mrb[0].mxu0
        %v6142 = vadd.f32 0.0, %v6141
        %v6143 = vpop.f32.mrb[0].mxu0
        %6144 = vdwg.mxu0
        %v6145 = vld [vmem:[#allocation3] sm:$0xff]
        %v6146 = vld [vmem:[#allocation3 + $0x8] sm:$0xff]
        %v6147 = vld [vmem:[#allocation3 + $0x10] sm:$0xff]
        %v6148 = vld [vmem:[#allocation3 + $0x18] sm:$0xff]
        %v6149 = vld [vmem:[#allocation3 + $0x20] sm:$0xff]
        %v6150 = vld [vmem:[#allocation3 + $0x28] sm:$0xff]
        %v6151 = vld [vmem:[#allocation3 + $0x30] sm:$0xff]
        %v6152 = vld [vmem:[#allocation3 + $0x38] sm:$0xff]
        %v6153 = vld [vmem:[#allocation3 + $0x40] sm:$0xff]
        %v6154 = vld [vmem:[#allocation3 + $0x48] sm:$0xff]
        %v6155 = vld [vmem:[#allocation3 + $0x50] sm:$0xff]
        %v6156 = vld [vmem:[#allocation3 + $0x58] sm:$0xff]
        %v6157 = vld [vmem:[#allocation3 + $0x60] sm:$0xff]
        %v6158 = vld [vmem:[#allocation3 + $0x68] sm:$0xff]
        %v6159 = vld [vmem:[#allocation3 + $0x70] sm:$0xff]
        %v6160 = vld [vmem:[#allocation3 + $0x78] sm:$0xff]
        %v6161 = vadd.f32 %v6145, %v6083
        %v6162 = vadd.f32 %v6146, %v6086
        %v6163 = vadd.f32 %v6147, %v6091
        %v6164 = vadd.f32 %v6148, %v6094
        %v6165 = vadd.f32 %v6149, %v6099
        %v6166 = vadd.f32 %v6150, %v6102
        %v6167 = vadd.f32 %v6151, %v6107
        %v6168 = vadd.f32 %v6152, %v6110
        %v6169 = vadd.f32 %v6153, %v6115
        %v6170 = vadd.f32 %v6154, %v6118
        %v6171 = vadd.f32 %v6155, %v6123
        %v6172 = vadd.f32 %v6156, %v6126
        %v6173 = vadd.f32 %v6157, %v6131
        %v6174 = vadd.f32 %v6158, %v6134
        %v6175 = vadd.f32 %v6159, %v6139
        %v6176 = vadd.f32 %v6160, %v6142
        %6177 = vst [vmem:[#allocation3] sm:$0xff] %v6161
        %6178 = vst [vmem:[#allocation3 + $0x8] sm:$0xff] %v6162
        %6179 = vst [vmem:[#allocation3 + $0x10] sm:$0xff] %v6163
        %6180 = vst [vmem:[#allocation3 + $0x18] sm:$0xff] %v6164
        %6181 = vst [vmem:[#allocation3 + $0x20] sm:$0xff] %v6165
        %6182 = vst [vmem:[#allocation3 + $0x28] sm:$0xff] %v6166
        %6183 = vst [vmem:[#allocation3 + $0x30] sm:$0xff] %v6167
        %6184 = vst [vmem:[#allocation3 + $0x38] sm:$0xff] %v6168
        %6185 = vst [vmem:[#allocation3 + $0x40] sm:$0xff] %v6169
        %6186 = vst [vmem:[#allocation3 + $0x48] sm:$0xff] %v6170
        %6187 = vst [vmem:[#allocation3 + $0x50] sm:$0xff] %v6171
        %6188 = vst [vmem:[#allocation3 + $0x58] sm:$0xff] %v6172
        %6189 = vst [vmem:[#allocation3 + $0x60] sm:$0xff] %v6173
        %6190 = vst [vmem:[#allocation3 + $0x68] sm:$0xff] %v6174
        %6191 = vst [vmem:[#allocation3 + $0x70] sm:$0xff] %v6175
        %6192 = vst [vmem:[#allocation3 + $0x78] sm:$0xff] %v6176
        %v6193 = vld [vmem:[#allocation2 + $0x8] sm:$0xf]
        %v6194 = vld [vmem:[#allocation2 + $0x18] sm:$0xf]
        %v6195 = vld [vmem:[#allocation2 + $0x28] sm:$0xf]
        %v6196 = vld [vmem:[#allocation2 + $0x38] sm:$0xf]
        %v6197 = vld [vmem:[#allocation2 + $0x48] sm:$0xf]
        %v6198 = vld [vmem:[#allocation2 + $0x58] sm:$0xf]
        %v6199 = vld [vmem:[#allocation2 + $0x68] sm:$0xf]
        %v6200 = vld [vmem:[#allocation2 + $0x78] sm:$0xf]
        %v6201 = vld [vmem:[#allocation2 + $0x88] sm:$0xf]
        %v6202 = vld [vmem:[#allocation2 + $0x98] sm:$0xf]
        %v6203 = vld [vmem:[#allocation2 + $0xa8] sm:$0xf]
        %v6204 = vld [vmem:[#allocation2 + $0xb8] sm:$0xf]
        %v6205 = vld [vmem:[#allocation2 + $0xc8] sm:$0xf]
        %v6206 = vld [vmem:[#allocation2 + $0xd8] sm:$0xf]
        %v6207 = vld [vmem:[#allocation2 + $0xe8] sm:$0xf]
        %v6208 = vld [vmem:[#allocation2 + $0xf8] sm:$0xf]
        %v6209 = vld [vmem:[#allocation2 + $0x108] sm:$0xf]
        %v6210 = vld [vmem:[#allocation2 + $0x118] sm:$0xf]
        %v6211 = vld [vmem:[#allocation2 + $0x128] sm:$0xf]
        %v6212 = vld [vmem:[#allocation2 + $0x138] sm:$0xf]
        %s6213 = scalar_lea.vmem %s9, 64
        %v6214 = vld [vmem:[%s6213] sm:$0xf]
        %v6215 = vld [vmem:[%s6213 + $0x4] sm:$0xf]
        %v6216 = vld [vmem:[%s6213 + $0x8] sm:$0xf]
        %v6217 = vld [vmem:[%s6213 + $0xc] sm:$0xf]
        %v6218 = vld [vmem:[%s6213 + $0x10] sm:$0xf]
        %v6219 = vld [vmem:[%s6213 + $0x14] sm:$0xf]
        %v6220 = vld [vmem:[%s6213 + $0x18] sm:$0xf]
        %v6221 = vld [vmem:[%s6213 + $0x1c] sm:$0xf]
        %v6222 = vld [vmem:[%s6213 + $0x20] sm:$0xf]
        %v6223 = vld [vmem:[%s6213 + $0x24] sm:$0xf]
        %v6224 = vld [vmem:[%s6213 + $0x28] sm:$0xf]
        %v6225 = vld [vmem:[%s6213 + $0x2c] sm:$0xf]
        %v6226 = vld [vmem:[%s6213 + $0x30] sm:$0xf]
        %v6227 = vld [vmem:[%s6213 + $0x34] sm:$0xf]
        %v6228 = vld [vmem:[%s6213 + $0x38] sm:$0xf]
        %v6229 = vld [vmem:[%s6213 + $0x3c] sm:$0xf]
        %v6246 = vunpack.c.l.b16 %v6193
        %v6247 = vunpack.c.l.b16 %v6194
        %v6248 = vunpack.c.l.b16 %v6195
        %v6249 = vunpack.c.l.b16 %v6196
        %v6250 = vunpack.c.l.b16 %v6197
        %v6251 = vunpack.c.l.b16 %v6198
        %v6252 = vunpack.c.l.b16 %v6199
        %v6253 = vunpack.c.l.b16 %v6200
        %v6254 = vunpack.c.l.b16 %v6203
        %v6255 = vunpack.c.l.b16 %v6204
        %v6256 = vunpack.c.l.b16 %v6205
        %v6257 = vunpack.c.l.b16 %v6206
        %v6258 = vunpack.c.l.b16 %v6207
        %v6259 = vunpack.c.l.b16 %v6208
        %v6260 = vunpack.c.l.b16 %v6209
        %v6261 = vunpack.c.l.b16 %v6210
        %v6262 = vpack.c.b16 %v6247, %v6246
        %v6263 = vpack.c.b16 %v6249, %v6248
        %v6264 = vpack.c.b16 %v6251, %v6250
        %v6265 = vpack.c.b16 %v6253, %v6252
        %v6266 = vpack.c.b16 %v6255, %v6254
        %v6267 = vpack.c.b16 %v6257, %v6256
        %v6268 = vpack.c.b16 %v6259, %v6258
        %v6269 = vpack.c.b16 %v6261, %v6260
        %v6294 = vunpack.c.l.b16 %v6214
        %v6295 = vunpack.c.l.b16 %v6215
        %v6296 = vunpack.c.l.b16 %v6216
        %v6297 = vunpack.c.l.b16 %v6217
        %v6298 = vunpack.c.l.b16 %v6218
        %v6299 = vunpack.c.l.b16 %v6219
        %v6300 = vunpack.c.l.b16 %v6220
        %v6301 = vunpack.c.l.b16 %v6221
        %v6302 = vunpack.c.l.b16 %v6222
        %v6303 = vunpack.c.l.b16 %v6223
        %v6304 = vunpack.c.l.b16 %v6224
        %v6305 = vunpack.c.l.b16 %v6225
        %v6306 = vunpack.c.l.b16 %v6226
        %v6307 = vunpack.c.l.b16 %v6227
        %v6308 = vunpack.c.l.b16 %v6228
        %v6309 = vunpack.c.l.b16 %v6229
        %v6310 = vpack.c.b16 %v6295, %v6294
        %v6311 = vpack.c.b16 %v6297, %v6296
        %v6312 = vpack.c.b16 %v6299, %v6298
        %v6313 = vpack.c.b16 %v6301, %v6300
        %v6314 = vpack.c.b16 %v6303, %v6302
        %v6315 = vpack.c.b16 %v6305, %v6304
        %v6316 = vpack.c.b16 %v6307, %v6306
        %v6317 = vpack.c.b16 %v6309, %v6308
        %6326 = vmatprep.subr.bf16.mxu0 0
        %6327 = vmatpush1.bf16.msra.mxu0 %v6310
        %6328 = vmatprep.subr.bf16.mxu0 0
        %6329 = vmatpush1.bf16.msra.mxu0 %v6311
        %6330 = vmatprep.subr.bf16.mxu0 0
        %6331 = vmatpush1.bf16.msra.mxu0 %v6312
        %6332 = vmatprep.subr.bf16.mxu0 0
        %6333 = vmatpush1.bf16.msra.mxu0 %v6313
        %6334 = vmatprep.subr.bf16.mxu0 0
        %6335 = vmatpush1.bf16.msra.mxu0 %v6314
        %6336 = vmatprep.subr.bf16.mxu0 0
        %6337 = vmatpush1.bf16.msra.mxu0 %v6315
        %6338 = vmatprep.subr.bf16.mxu0 0
        %6339 = vmatpush1.bf16.msra.mxu0 %v6316
        %6340 = vmatprep.subr.bf16.mxu0 0
        %6341 = vmatpush1.bf16.msra.mxu0 %v6317
        %6342 = vmatprep.subr.bf16.mxu0 0
        %6343 = vmatpush1.bf16.msra.mxu0 0
        %6344 = vmatprep.subr.bf16.mxu0 0
        %6345 = vmatpush1.bf16.msra.mxu0 0
        %6346 = vmatprep.subr.bf16.mxu0 0
        %6347 = vmatpush1.bf16.msra.mxu0 0
        %6348 = vmatprep.subr.bf16.mxu0 0
        %6349 = vmatpush1.bf16.msra.mxu0 0
        %6350 = vmatprep.subr.bf16.mxu0 0
        %6351 = vmatpush1.bf16.msra.mxu0 0
        %6352 = vmatprep.subr.bf16.mxu0 0
        %6353 = vmatpush1.bf16.msra.mxu0 0
        %6354 = vmatprep.subr.bf16.mxu0 0
        %6355 = vmatpush1.bf16.msra.mxu0 0
        %6356 = vmatprep.subr.bf16.mxu0 0
        %6357 = vmatpush1.bf16.msra.mxu0 0
        %6358 = vmatprep.mubr.bf16.mxu0 0
        %6359 = vmatmul.mubr.bf16.gmra.mrb[0].mxu0 %v6262
        %v6360 = vpop.f32.mrb[0].mxu0
        %v6361 = vadd.f32 0.0, %v6360
        %v6362 = vpop.f32.mrb[0].mxu0
        %v6363 = vpop.f32.mrb[0].mxu0
        %v6364 = vadd.f32 0.0, %v6363
        %v6365 = vpop.f32.mrb[0].mxu0
        %6366 = vmatprep.mubr.bf16.mxu0 0
        %6367 = vmatmul.mubr.bf16.gmra.mrb[0].mxu0 %v6263
        %v6368 = vpop.f32.mrb[0].mxu0
        %v6369 = vadd.f32 0.0, %v6368
        %v6370 = vpop.f32.mrb[0].mxu0
        %v6371 = vpop.f32.mrb[0].mxu0
        %v6372 = vadd.f32 0.0, %v6371
        %v6373 = vpop.f32.mrb[0].mxu0
        %6374 = vmatprep.mubr.bf16.mxu0 0
        %6375 = vmatmul.mubr.bf16.gmra.mrb[0].mxu0 %v6264
        %v6376 = vpop.f32.mrb[0].mxu0
        %v6377 = vadd.f32 0.0, %v6376
        %v6378 = vpop.f32.mrb[0].mxu0
        %v6379 = vpop.f32.mrb[0].mxu0
        %v6380 = vadd.f32 0.0, %v6379
        %v6381 = vpop.f32.mrb[0].mxu0
        %6382 = vmatprep.mubr.bf16.mxu0 0
        %6383 = vmatmul.mubr.bf16.gmra.mrb[0].mxu0 %v6265
        %v6384 = vpop.f32.mrb[0].mxu0
        %v6385 = vadd.f32 0.0, %v6384
        %v6386 = vpop.f32.mrb[0].mxu0
        %v6387 = vpop.f32.mrb[0].mxu0
        %v6388 = vadd.f32 0.0, %v6387
        %v6389 = vpop.f32.mrb[0].mxu0
        %6390 = vmatprep.mubr.bf16.mxu0 0
        %6391 = vmatmul.mubr.bf16.gmra.mrb[0].mxu0 %v6266
        %v6392 = vpop.f32.mrb[0].mxu0
        %v6393 = vadd.f32 0.0, %v6392
        %v6394 = vpop.f32.mrb[0].mxu0
        %v6395 = vpop.f32.mrb[0].mxu0
        %v6396 = vadd.f32 0.0, %v6395
        %v6397 = vpop.f32.mrb[0].mxu0
        %6398 = vmatprep.mubr.bf16.mxu0 0
        %6399 = vmatmul.mubr.bf16.gmra.mrb[0].mxu0 %v6267
        %v6400 = vpop.f32.mrb[0].mxu0
        %v6401 = vadd.f32 0.0, %v6400
        %v6402 = vpop.f32.mrb[0].mxu0
        %v6403 = vpop.f32.mrb[0].mxu0
        %v6404 = vadd.f32 0.0, %v6403
        %v6405 = vpop.f32.mrb[0].mxu0
        %6406 = vmatprep.mubr.bf16.mxu0 0
        %6407 = vmatmul.mubr.bf16.gmra.mrb[0].mxu0 %v6268
        %v6408 = vpop.f32.mrb[0].mxu0
        %v6409 = vadd.f32 0.0, %v6408
        %v6410 = vpop.f32.mrb[0].mxu0
        %v6411 = vpop.f32.mrb[0].mxu0
        %v6412 = vadd.f32 0.0, %v6411
        %v6413 = vpop.f32.mrb[0].mxu0
        %6414 = vmatprep.mubr.bf16.mxu0 0
        %6415 = vmatmul.mubr.bf16.gmra.mrb[0].mxu0 %v6269
        %v6416 = vpop.f32.mrb[0].mxu0
        %v6417 = vadd.f32 0.0, %v6416
        %v6418 = vpop.f32.mrb[0].mxu0
        %v6419 = vpop.f32.mrb[0].mxu0
        %v6420 = vadd.f32 0.0, %v6419
        %v6421 = vpop.f32.mrb[0].mxu0
        %6422 = vdwg.mxu0
        %v6423 = vld [vmem:[#allocation3] sm:$0xff]
        %v6424 = vld [vmem:[#allocation3 + $0x8] sm:$0xff]
        %v6425 = vld [vmem:[#allocation3 + $0x10] sm:$0xff]
        %v6426 = vld [vmem:[#allocation3 + $0x18] sm:$0xff]
        %v6427 = vld [vmem:[#allocation3 + $0x20] sm:$0xff]
        %v6428 = vld [vmem:[#allocation3 + $0x28] sm:$0xff]
        %v6429 = vld [vmem:[#allocation3 + $0x30] sm:$0xff]
        %v6430 = vld [vmem:[#allocation3 + $0x38] sm:$0xff]
        %v6431 = vld [vmem:[#allocation3 + $0x40] sm:$0xff]
        %v6432 = vld [vmem:[#allocation3 + $0x48] sm:$0xff]
        %v6433 = vld [vmem:[#allocation3 + $0x50] sm:$0xff]
        %v6434 = vld [vmem:[#allocation3 + $0x58] sm:$0xff]
        %v6435 = vld [vmem:[#allocation3 + $0x60] sm:$0xff]
        %v6436 = vld [vmem:[#allocation3 + $0x68] sm:$0xff]
        %v6437 = vld [vmem:[#allocation3 + $0x70] sm:$0xff]
        %v6438 = vld [vmem:[#allocation3 + $0x78] sm:$0xff]
        %v6439 = vadd.f32 %v6423, %v6361
        %v6440 = vadd.f32 %v6424, %v6364
        %v6441 = vadd.f32 %v6425, %v6369
        %v6442 = vadd.f32 %v6426, %v6372
        %v6443 = vadd.f32 %v6427, %v6377
        %v6444 = vadd.f32 %v6428, %v6380
        %v6445 = vadd.f32 %v6429, %v6385
        %v6446 = vadd.f32 %v6430, %v6388
        %v6447 = vadd.f32 %v6431, %v6393
        %v6448 = vadd.f32 %v6432, %v6396
        %v6449 = vadd.f32 %v6433, %v6401
        %v6450 = vadd.f32 %v6434, %v6404
        %v6451 = vadd.f32 %v6435, %v6409
        %v6452 = vadd.f32 %v6436, %v6412
        %v6453 = vadd.f32 %v6437, %v6417
        %v6454 = vadd.f32 %v6438, %v6420
        %6455 = vst [vmem:[#allocation3] sm:$0xff] %v6439
        %6456 = vst [vmem:[#allocation3 + $0x8] sm:$0xff] %v6440
        %6457 = vst [vmem:[#allocation3 + $0x10] sm:$0xff] %v6441
        %6458 = vst [vmem:[#allocation3 + $0x18] sm:$0xff] %v6442
        %6459 = vst [vmem:[#allocation3 + $0x20] sm:$0xff] %v6443
        %6460 = vst [vmem:[#allocation3 + $0x28] sm:$0xff] %v6444
        %6461 = vst [vmem:[#allocation3 + $0x30] sm:$0xff] %v6445
        %6462 = vst [vmem:[#allocation3 + $0x38] sm:$0xff] %v6446
        %6463 = vst [vmem:[#allocation3 + $0x40] sm:$0xff] %v6447
        %6464 = vst [vmem:[#allocation3 + $0x48] sm:$0xff] %v6448
        %6465 = vst [vmem:[#allocation3 + $0x50] sm:$0xff] %v6449
        %6466 = vst [vmem:[#allocation3 + $0x58] sm:$0xff] %v6450
        %6467 = vst [vmem:[#allocation3 + $0x60] sm:$0xff] %v6451
        %6468 = vst [vmem:[#allocation3 + $0x68] sm:$0xff] %v6452
        %6469 = vst [vmem:[#allocation3 + $0x70] sm:$0xff] %v6453
        %6470 = vst [vmem:[#allocation3 + $0x78] sm:$0xff] %v6454
        %s6471 = scalar_lea.vmem %s9, 256
        %v6472 = vld [vmem:[%s6471] sm:$0xf]
        %v6473 = vld [vmem:[%s6471 + $0x4] sm:$0xf]
        %v6474 = vld [vmem:[%s6471 + $0x8] sm:$0xf]
        %v6475 = vld [vmem:[%s6471 + $0xc] sm:$0xf]
        %v6476 = vld [vmem:[%s6471 + $0x10] sm:$0xf]
        %v6477 = vld [vmem:[%s6471 + $0x14] sm:$0xf]
        %v6478 = vld [vmem:[%s6471 + $0x18] sm:$0xf]
        %v6479 = vld [vmem:[%s6471 + $0x1c] sm:$0xf]
        %v6480 = vld [vmem:[%s6471 + $0x20] sm:$0xf]
        %v6481 = vld [vmem:[%s6471 + $0x24] sm:$0xf]
        %v6482 = vld [vmem:[%s6471 + $0x28] sm:$0xf]
        %v6483 = vld [vmem:[%s6471 + $0x2c] sm:$0xf]
        %v6484 = vld [vmem:[%s6471 + $0x30] sm:$0xf]
        %v6485 = vld [vmem:[%s6471 + $0x34] sm:$0xf]
        %v6486 = vld [vmem:[%s6471 + $0x38] sm:$0xf]
        %v6487 = vld [vmem:[%s6471 + $0x3c] sm:$0xf]
        %v6490 = vunpack.c.l.b16 %v6201
        %v6491 = vunpack.c.l.b16 %v6211
        %v6492 = vpack.c.b16 %v6248, %v6247
        %v6493 = vpack.c.b16 %v6250, %v6249
        %v6494 = vpack.c.b16 %v6252, %v6251
        %v6495 = vpack.c.b16 %v6490, %v6253
        %v6496 = vpack.c.b16 %v6256, %v6255
        %v6497 = vpack.c.b16 %v6258, %v6257
        %v6498 = vpack.c.b16 %v6260, %v6259
        %v6499 = vpack.c.b16 %v6491, %v6261
        %v6524 = vunpack.c.l.b16 %v6472
        %v6525 = vunpack.c.l.b16 %v6473
        %v6526 = vunpack.c.l.b16 %v6474
        %v6527 = vunpack.c.l.b16 %v6475
        %v6528 = vunpack.c.l.b16 %v6476
        %v6529 = vunpack.c.l.b16 %v6477
        %v6530 = vunpack.c.l.b16 %v6478
        %v6531 = vunpack.c.l.b16 %v6479
        %v6532 = vunpack.c.l.b16 %v6480
        %v6533 = vunpack.c.l.b16 %v6481
        %v6534 = vunpack.c.l.b16 %v6482
        %v6535 = vunpack.c.l.b16 %v6483
        %v6536 = vunpack.c.l.b16 %v6484
        %v6537 = vunpack.c.l.b16 %v6485
        %v6538 = vunpack.c.l.b16 %v6486
        %v6539 = vunpack.c.l.b16 %v6487
        %v6540 = vpack.c.b16 %v6525, %v6524
        %v6541 = vpack.c.b16 %v6527, %v6526
        %v6542 = vpack.c.b16 %v6529, %v6528
        %v6543 = vpack.c.b16 %v6531, %v6530
        %v6544 = vpack.c.b16 %v6533, %v6532
        %v6545 = vpack.c.b16 %v6535, %v6534
        %v6546 = vpack.c.b16 %v6537, %v6536
        %v6547 = vpack.c.b16 %v6539, %v6538
        %6556 = vmatprep.subr.bf16.mxu0 0
        %6557 = vmatpush1.bf16.msra.mxu0 %v6540
        %6558 = vmatprep.subr.bf16.mxu0 0
        %6559 = vmatpush1.bf16.msra.mxu0 %v6541
        %6560 = vmatprep.subr.bf16.mxu0 0
        %6561 = vmatpush1.bf16.msra.mxu0 %v6542
        %6562 = vmatprep.subr.bf16.mxu0 0
        %6563 = vmatpush1.bf16.msra.mxu0 %v6543
        %6564 = vmatprep.subr.bf16.mxu0 0
        %6565 = vmatpush1.bf16.msra.mxu0 %v6544
        %6566 = vmatprep.subr.bf16.mxu0 0
        %6567 = vmatpush1.bf16.msra.mxu0 %v6545
        %6568 = vmatprep.subr.bf16.mxu0 0
        %6569 = vmatpush1.bf16.msra.mxu0 %v6546
        %6570 = vmatprep.subr.bf16.mxu0 0
        %6571 = vmatpush1.bf16.msra.mxu0 %v6547
        %6572 = vmatprep.subr.bf16.mxu0 0
        %6573 = vmatpush1.bf16.msra.mxu0 0
        %6574 = vmatprep.subr.bf16.mxu0 0
        %6575 = vmatpush1.bf16.msra.mxu0 0
        %6576 = vmatprep.subr.bf16.mxu0 0
        %6577 = vmatpush1.bf16.msra.mxu0 0
        %6578 = vmatprep.subr.bf16.mxu0 0
        %6579 = vmatpush1.bf16.msra.mxu0 0
        %6580 = vmatprep.subr.bf16.mxu0 0
        %6581 = vmatpush1.bf16.msra.mxu0 0
        %6582 = vmatprep.subr.bf16.mxu0 0
        %6583 = vmatpush1.bf16.msra.mxu0 0
        %6584 = vmatprep.subr.bf16.mxu0 0
        %6585 = vmatpush1.bf16.msra.mxu0 0
        %6586 = vmatprep.subr.bf16.mxu0 0
        %6587 = vmatpush1.bf16.msra.mxu0 0
        %6588 = vmatprep.mubr.bf16.mxu0 0
        %6589 = vmatmul.mubr.bf16.gmra.mrb[0].mxu0 %v6492
        %v6590 = vpop.f32.mrb[0].mxu0
        %v6591 = vadd.f32 0.0, %v6590
        %v6592 = vpop.f32.mrb[0].mxu0
        %v6593 = vpop.f32.mrb[0].mxu0
        %v6594 = vadd.f32 0.0, %v6593
        %v6595 = vpop.f32.mrb[0].mxu0
        %6596 = vmatprep.mubr.bf16.mxu0 0
        %6597 = vmatmul.mubr.bf16.gmra.mrb[0].mxu0 %v6493
        %v6598 = vpop.f32.mrb[0].mxu0
        %v6599 = vadd.f32 0.0, %v6598
        %v6600 = vpop.f32.mrb[0].mxu0
        %v6601 = vpop.f32.mrb[0].mxu0
        %v6602 = vadd.f32 0.0, %v6601
        %v6603 = vpop.f32.mrb[0].mxu0
        %6604 = vmatprep.mubr.bf16.mxu0 0
        %6605 = vmatmul.mubr.bf16.gmra.mrb[0].mxu0 %v6494
        %v6606 = vpop.f32.mrb[0].mxu0
        %v6607 = vadd.f32 0.0, %v6606
        %v6608 = vpop.f32.mrb[0].mxu0
        %v6609 = vpop.f32.mrb[0].mxu0
        %v6610 = vadd.f32 0.0, %v6609
        %v6611 = vpop.f32.mrb[0].mxu0
        %6612 = vmatprep.mubr.bf16.mxu0 0
        %6613 = vmatmul.mubr.bf16.gmra.mrb[0].mxu0 %v6495
        %v6614 = vpop.f32.mrb[0].mxu0
        %v6615 = vadd.f32 0.0, %v6614
        %v6616 = vpop.f32.mrb[0].mxu0
        %v6617 = vpop.f32.mrb[0].mxu0
        %v6618 = vadd.f32 0.0, %v6617
        %v6619 = vpop.f32.mrb[0].mxu0
        %6620 = vmatprep.mubr.bf16.mxu0 0
        %6621 = vmatmul.mubr.bf16.gmra.mrb[0].mxu0 %v6496
        %v6622 = vpop.f32.mrb[0].mxu0
        %v6623 = vadd.f32 0.0, %v6622
        %v6624 = vpop.f32.mrb[0].mxu0
        %v6625 = vpop.f32.mrb[0].mxu0
        %v6626 = vadd.f32 0.0, %v6625
        %v6627 = vpop.f32.mrb[0].mxu0
        %6628 = vmatprep.mubr.bf16.mxu0 0
        %6629 = vmatmul.mubr.bf16.gmra.mrb[0].mxu0 %v6497
        %v6630 = vpop.f32.mrb[0].mxu0
        %v6631 = vadd.f32 0.0, %v6630
        %v6632 = vpop.f32.mrb[0].mxu0
        %v6633 = vpop.f32.mrb[0].mxu0
        %v6634 = vadd.f32 0.0, %v6633
        %v6635 = vpop.f32.mrb[0].mxu0
        %6636 = vmatprep.mubr.bf16.mxu0 0
        %6637 = vmatmul.mubr.bf16.gmra.mrb[0].mxu0 %v6498
        %v6638 = vpop.f32.mrb[0].mxu0
        %v6639 = vadd.f32 0.0, %v6638
        %v6640 = vpop.f32.mrb[0].mxu0
        %v6641 = vpop.f32.mrb[0].mxu0
        %v6642 = vadd.f32 0.0, %v6641
        %v6643 = vpop.f32.mrb[0].mxu0
        %6644 = vmatprep.mubr.bf16.mxu0 0
        %6645 = vmatmul.mubr.bf16.gmra.mrb[0].mxu0 %v6499
        %v6646 = vpop.f32.mrb[0].mxu0
        %v6647 = vadd.f32 0.0, %v6646
        %v6648 = vpop.f32.mrb[0].mxu0
        %v6649 = vpop.f32.mrb[0].mxu0
        %v6650 = vadd.f32 0.0, %v6649
        %v6651 = vpop.f32.mrb[0].mxu0
        %6652 = vdwg.mxu0
        %v6653 = vld [vmem:[#allocation3] sm:$0xff]
        %v6654 = vld [vmem:[#allocation3 + $0x8] sm:$0xff]
        %v6655 = vld [vmem:[#allocation3 + $0x10] sm:$0xff]
        %v6656 = vld [vmem:[#allocation3 + $0x18] sm:$0xff]
        %v6657 = vld [vmem:[#allocation3 + $0x20] sm:$0xff]
        %v6658 = vld [vmem:[#allocation3 + $0x28] sm:$0xff]
        %v6659 = vld [vmem:[#allocation3 + $0x30] sm:$0xff]
        %v6660 = vld [vmem:[#allocation3 + $0x38] sm:$0xff]
        %v6661 = vld [vmem:[#allocation3 + $0x40] sm:$0xff]
        %v6662 = vld [vmem:[#allocation3 + $0x48] sm:$0xff]
        %v6663 = vld [vmem:[#allocation3 + $0x50] sm:$0xff]
        %v6664 = vld [vmem:[#allocation3 + $0x58] sm:$0xff]
        %v6665 = vld [vmem:[#allocation3 + $0x60] sm:$0xff]
        %v6666 = vld [vmem:[#allocation3 + $0x68] sm:$0xff]
        %v6667 = vld [vmem:[#allocation3 + $0x70] sm:$0xff]
        %v6668 = vld [vmem:[#allocation3 + $0x78] sm:$0xff]
        %v6669 = vadd.f32 %v6653, %v6591
        %v6670 = vadd.f32 %v6654, %v6594
        %v6671 = vadd.f32 %v6655, %v6599
        %v6672 = vadd.f32 %v6656, %v6602
        %v6673 = vadd.f32 %v6657, %v6607
        %v6674 = vadd.f32 %v6658, %v6610
        %v6675 = vadd.f32 %v6659, %v6615
        %v6676 = vadd.f32 %v6660, %v6618
        %v6677 = vadd.f32 %v6661, %v6623
        %v6678 = vadd.f32 %v6662, %v6626
        %v6679 = vadd.f32 %v6663, %v6631
        %v6680 = vadd.f32 %v6664, %v6634
        %v6681 = vadd.f32 %v6665, %v6639
        %v6682 = vadd.f32 %v6666, %v6642
        %v6683 = vadd.f32 %v6667, %v6647
        %v6684 = vadd.f32 %v6668, %v6650
        %6685 = vst [vmem:[#allocation3] sm:$0xff] %v6669
        %6686 = vst [vmem:[#allocation3 + $0x8] sm:$0xff] %v6670
        %6687 = vst [vmem:[#allocation3 + $0x10] sm:$0xff] %v6671
        %6688 = vst [vmem:[#allocation3 + $0x18] sm:$0xff] %v6672
        %6689 = vst [vmem:[#allocation3 + $0x20] sm:$0xff] %v6673
        %6690 = vst [vmem:[#allocation3 + $0x28] sm:$0xff] %v6674
        %6691 = vst [vmem:[#allocation3 + $0x30] sm:$0xff] %v6675
        %6692 = vst [vmem:[#allocation3 + $0x38] sm:$0xff] %v6676
        %6693 = vst [vmem:[#allocation3 + $0x40] sm:$0xff] %v6677
        %6694 = vst [vmem:[#allocation3 + $0x48] sm:$0xff] %v6678
        %6695 = vst [vmem:[#allocation3 + $0x50] sm:$0xff] %v6679
        %6696 = vst [vmem:[#allocation3 + $0x58] sm:$0xff] %v6680
        %6697 = vst [vmem:[#allocation3 + $0x60] sm:$0xff] %v6681
        %6698 = vst [vmem:[#allocation3 + $0x68] sm:$0xff] %v6682
        %6699 = vst [vmem:[#allocation3 + $0x70] sm:$0xff] %v6683
        %6700 = vst [vmem:[#allocation3 + $0x78] sm:$0xff] %v6684
        %s6701 = scalar_lea.vmem %s9, 448
        %v6702 = vld [vmem:[%s6701] sm:$0xf]
        %v6703 = vld [vmem:[%s6701 + $0x4] sm:$0xf]
        %v6704 = vld [vmem:[%s6701 + $0x8] sm:$0xf]
        %v6705 = vld [vmem:[%s6701 + $0xc] sm:$0xf]
        %v6706 = vld [vmem:[%s6701 + $0x10] sm:$0xf]
        %v6707 = vld [vmem:[%s6701 + $0x14] sm:$0xf]
        %v6708 = vld [vmem:[%s6701 + $0x18] sm:$0xf]
        %v6709 = vld [vmem:[%s6701 + $0x1c] sm:$0xf]
        %v6710 = vld [vmem:[%s6701 + $0x20] sm:$0xf]
        %v6711 = vld [vmem:[%s6701 + $0x24] sm:$0xf]
        %v6712 = vld [vmem:[%s6701 + $0x28] sm:$0xf]
        %v6713 = vld [vmem:[%s6701 + $0x2c] sm:$0xf]
        %v6714 = vld [vmem:[%s6701 + $0x30] sm:$0xf]
        %v6715 = vld [vmem:[%s6701 + $0x34] sm:$0xf]
        %v6716 = vld [vmem:[%s6701 + $0x38] sm:$0xf]
        %v6717 = vld [vmem:[%s6701 + $0x3c] sm:$0xf]
        %v6720 = vunpack.c.l.b16 %v6202
        %v6721 = vunpack.c.l.b16 %v6212
        %v6722 = vpack.c.b16 %v6720, %v6490
        %v6723 = vpack.c.b16 %v6721, %v6491
        %v6742 = vunpack.c.l.b16 %v6702
        %v6743 = vunpack.c.l.b16 %v6703
        %v6744 = vunpack.c.l.b16 %v6704
        %v6745 = vunpack.c.l.b16 %v6705
        %v6746 = vunpack.c.l.b16 %v6706
        %v6747 = vunpack.c.l.b16 %v6707
        %v6748 = vunpack.c.l.b16 %v6708
        %v6749 = vunpack.c.l.b16 %v6709
        %v6750 = vunpack.c.l.b16 %v6710
        %v6751 = vunpack.c.l.b16 %v6711
        %v6752 = vunpack.c.l.b16 %v6712
        %v6753 = vunpack.c.l.b16 %v6713
        %v6754 = vunpack.c.l.b16 %v6714
        %v6755 = vunpack.c.l.b16 %v6715
        %v6756 = vunpack.c.l.b16 %v6716
        %v6757 = vunpack.c.l.b16 %v6717
        %v6758 = vpack.c.b16 %v6743, %v6742
        %v6759 = vpack.c.b16 %v6745, %v6744
        %v6760 = vpack.c.b16 %v6747, %v6746
        %v6761 = vpack.c.b16 %v6749, %v6748
        %v6762 = vpack.c.b16 %v6751, %v6750
        %v6763 = vpack.c.b16 %v6753, %v6752
        %v6764 = vpack.c.b16 %v6755, %v6754
        %v6765 = vpack.c.b16 %v6757, %v6756
        %6774 = vmatprep.subr.bf16.mxu0 0
        %6775 = vmatpush1.bf16.msra.mxu0 %v6758
        %6776 = vmatprep.subr.bf16.mxu0 0
        %6777 = vmatpush1.bf16.msra.mxu0 %v6759
        %6778 = vmatprep.subr.bf16.mxu0 0
        %6779 = vmatpush1.bf16.msra.mxu0 %v6760
        %6780 = vmatprep.subr.bf16.mxu0 0
        %6781 = vmatpush1.bf16.msra.mxu0 %v6761
        %6782 = vmatprep.subr.bf16.mxu0 0
        %6783 = vmatpush1.bf16.msra.mxu0 %v6762
        %6784 = vmatprep.subr.bf16.mxu0 0
        %6785 = vmatpush1.bf16.msra.mxu0 %v6763
        %6786 = vmatprep.subr.bf16.mxu0 0
        %6787 = vmatpush1.bf16.msra.mxu0 %v6764
        %6788 = vmatprep.subr.bf16.mxu0 0
        %6789 = vmatpush1.bf16.msra.mxu0 %v6765
        %6790 = vmatprep.subr.bf16.mxu0 0
        %6791 = vmatpush1.bf16.msra.mxu0 0
        %6792 = vmatprep.subr.bf16.mxu0 0
        %6793 = vmatpush1.bf16.msra.mxu0 0
        %6794 = vmatprep.subr.bf16.mxu0 0
        %6795 = vmatpush1.bf16.msra.mxu0 0
        %6796 = vmatprep.subr.bf16.mxu0 0
        %6797 = vmatpush1.bf16.msra.mxu0 0
        %6798 = vmatprep.subr.bf16.mxu0 0
        %6799 = vmatpush1.bf16.msra.mxu0 0
        %6800 = vmatprep.subr.bf16.mxu0 0
        %6801 = vmatpush1.bf16.msra.mxu0 0
        %6802 = vmatprep.subr.bf16.mxu0 0
        %6803 = vmatpush1.bf16.msra.mxu0 0
        %6804 = vmatprep.subr.bf16.mxu0 0
        %6805 = vmatpush1.bf16.msra.mxu0 0
        %6806 = vmatprep.mubr.bf16.mxu0 0
        %6807 = vmatmul.mubr.bf16.gmra.mrb[0].mxu0 %v6263
        %v6808 = vpop.f32.mrb[0].mxu0
        %v6809 = vadd.f32 0.0, %v6808
        %v6810 = vpop.f32.mrb[0].mxu0
        %v6811 = vpop.f32.mrb[0].mxu0
        %v6812 = vadd.f32 0.0, %v6811
        %v6813 = vpop.f32.mrb[0].mxu0
        %6814 = vmatprep.mubr.bf16.mxu0 0
        %6815 = vmatmul.mubr.bf16.gmra.mrb[0].mxu0 %v6264
        %v6816 = vpop.f32.mrb[0].mxu0
        %v6817 = vadd.f32 0.0, %v6816
        %v6818 = vpop.f32.mrb[0].mxu0
        %v6819 = vpop.f32.mrb[0].mxu0
        %v6820 = vadd.f32 0.0, %v6819
        %v6821 = vpop.f32.mrb[0].mxu0
        %6822 = vmatprep.mubr.bf16.mxu0 0
        %6823 = vmatmul.mubr.bf16.gmra.mrb[0].mxu0 %v6265
        %v6824 = vpop.f32.mrb[0].mxu0
        %v6825 = vadd.f32 0.0, %v6824
        %v6826 = vpop.f32.mrb[0].mxu0
        %v6827 = vpop.f32.mrb[0].mxu0
        %v6828 = vadd.f32 0.0, %v6827
        %v6829 = vpop.f32.mrb[0].mxu0
        %6830 = vmatprep.mubr.bf16.mxu0 0
        %6831 = vmatmul.mubr.bf16.gmra.mrb[0].mxu0 %v6722
        %v6832 = vpop.f32.mrb[0].mxu0
        %v6833 = vadd.f32 0.0, %v6832
        %v6834 = vpop.f32.mrb[0].mxu0
        %v6835 = vpop.f32.mrb[0].mxu0
        %v6836 = vadd.f32 0.0, %v6835
        %v6837 = vpop.f32.mrb[0].mxu0
        %6838 = vmatprep.mubr.bf16.mxu0 0
        %6839 = vmatmul.mubr.bf16.gmra.mrb[0].mxu0 %v6267
        %v6840 = vpop.f32.mrb[0].mxu0
        %v6841 = vadd.f32 0.0, %v6840
        %v6842 = vpop.f32.mrb[0].mxu0
        %v6843 = vpop.f32.mrb[0].mxu0
        %v6844 = vadd.f32 0.0, %v6843
        %v6845 = vpop.f32.mrb[0].mxu0
        %6846 = vmatprep.mubr.bf16.mxu0 0
        %6847 = vmatmul.mubr.bf16.gmra.mrb[0].mxu0 %v6268
        %v6848 = vpop.f32.mrb[0].mxu0
        %v6849 = vadd.f32 0.0, %v6848
        %v6850 = vpop.f32.mrb[0].mxu0
        %v6851 = vpop.f32.mrb[0].mxu0
        %v6852 = vadd.f32 0.0, %v6851
        %v6853 = vpop.f32.mrb[0].mxu0
        %6854 = vmatprep.mubr.bf16.mxu0 0
        %6855 = vmatmul.mubr.bf16.gmra.mrb[0].mxu0 %v6269
        %v6856 = vpop.f32.mrb[0].mxu0
        %v6857 = vadd.f32 0.0, %v6856
        %v6858 = vpop.f32.mrb[0].mxu0
        %v6859 = vpop.f32.mrb[0].mxu0
        %v6860 = vadd.f32 0.0, %v6859
        %v6861 = vpop.f32.mrb[0].mxu0
        %6862 = vmatprep.mubr.bf16.mxu0 0
        %6863 = vmatmul.mubr.bf16.gmra.mrb[0].mxu0 %v6723
        %v6864 = vpop.f32.mrb[0].mxu0
        %v6865 = vadd.f32 0.0, %v6864
        %v6866 = vpop.f32.mrb[0].mxu0
        %v6867 = vpop.f32.mrb[0].mxu0
        %v6868 = vadd.f32 0.0, %v6867
        %v6869 = vpop.f32.mrb[0].mxu0
        %6870 = vdwg.mxu0
        %v6871 = vld [vmem:[#allocation3] sm:$0xff]
        %v6872 = vld [vmem:[#allocation3 + $0x8] sm:$0xff]
        %v6873 = vld [vmem:[#allocation3 + $0x10] sm:$0xff]
        %v6874 = vld [vmem:[#allocation3 + $0x18] sm:$0xff]
        %v6875 = vld [vmem:[#allocation3 + $0x20] sm:$0xff]
        %v6876 = vld [vmem:[#allocation3 + $0x28] sm:$0xff]
        %v6877 = vld [vmem:[#allocation3 + $0x30] sm:$0xff]
        %v6878 = vld [vmem:[#allocation3 + $0x38] sm:$0xff]
        %v6879 = vld [vmem:[#allocation3 + $0x40] sm:$0xff]
        %v6880 = vld [vmem:[#allocation3 + $0x48] sm:$0xff]
        %v6881 = vld [vmem:[#allocation3 + $0x50] sm:$0xff]
        %v6882 = vld [vmem:[#allocation3 + $0x58] sm:$0xff]
        %v6883 = vld [vmem:[#allocation3 + $0x60] sm:$0xff]
        %v6884 = vld [vmem:[#allocation3 + $0x68] sm:$0xff]
        %v6885 = vld [vmem:[#allocation3 + $0x70] sm:$0xff]
        %v6886 = vld [vmem:[#allocation3 + $0x78] sm:$0xff]
        %v6887 = vadd.f32 %v6871, %v6809
        %v6888 = vadd.f32 %v6872, %v6812
        %v6889 = vadd.f32 %v6873, %v6817
        %v6890 = vadd.f32 %v6874, %v6820
        %v6891 = vadd.f32 %v6875, %v6825
        %v6892 = vadd.f32 %v6876, %v6828
        %v6893 = vadd.f32 %v6877, %v6833
        %v6894 = vadd.f32 %v6878, %v6836
        %v6895 = vadd.f32 %v6879, %v6841
        %v6896 = vadd.f32 %v6880, %v6844
        %v6897 = vadd.f32 %v6881, %v6849
        %v6898 = vadd.f32 %v6882, %v6852
        %v6899 = vadd.f32 %v6883, %v6857
        %v6900 = vadd.f32 %v6884, %v6860
        %v6901 = vadd.f32 %v6885, %v6865
        %v6902 = vadd.f32 %v6886, %v6868
        %6903 = vst [vmem:[#allocation3] sm:$0xff] %v6887
        %6904 = vst [vmem:[#allocation3 + $0x8] sm:$0xff] %v6888
        %6905 = vst [vmem:[#allocation3 + $0x10] sm:$0xff] %v6889
        %6906 = vst [vmem:[#allocation3 + $0x18] sm:$0xff] %v6890
        %6907 = vst [vmem:[#allocation3 + $0x20] sm:$0xff] %v6891
        %6908 = vst [vmem:[#allocation3 + $0x28] sm:$0xff] %v6892
        %6909 = vst [vmem:[#allocation3 + $0x30] sm:$0xff] %v6893
        %6910 = vst [vmem:[#allocation3 + $0x38] sm:$0xff] %v6894
        %6911 = vst [vmem:[#allocation3 + $0x40] sm:$0xff] %v6895
        %6912 = vst [vmem:[#allocation3 + $0x48] sm:$0xff] %v6896
        %6913 = vst [vmem:[#allocation3 + $0x50] sm:$0xff] %v6897
        %6914 = vst [vmem:[#allocation3 + $0x58] sm:$0xff] %v6898
        %6915 = vst [vmem:[#allocation3 + $0x60] sm:$0xff] %v6899
        %6916 = vst [vmem:[#allocation3 + $0x68] sm:$0xff] %v6900
        %6917 = vst [vmem:[#allocation3 + $0x70] sm:$0xff] %v6901
        %6918 = vst [vmem:[#allocation3 + $0x78] sm:$0xff] %v6902
        %v6919 = vld [vmem:[#allocation2 + $0x8] sm:$0xf]
        %v6920 = vld [vmem:[#allocation2 + $0xc] sm:$0x1]
        %v6921 = vld [vmem:[#allocation2 + $0x18] sm:$0xf]
        %v6922 = vld [vmem:[#allocation2 + $0x1c] sm:$0x1]
        %v6923 = vld [vmem:[#allocation2 + $0x28] sm:$0xf]
        %v6924 = vld [vmem:[#allocation2 + $0x2c] sm:$0x1]
        %v6925 = vld [vmem:[#allocation2 + $0x38] sm:$0xf]
        %v6926 = vld [vmem:[#allocation2 + $0x3c] sm:$0x1]
        %v6927 = vld [vmem:[#allocation2 + $0x48] sm:$0xf]
        %v6928 = vld [vmem:[#allocation2 + $0x4c] sm:$0x1]
        %v6929 = vld [vmem:[#allocation2 + $0x58] sm:$0xf]
        %v6930 = vld [vmem:[#allocation2 + $0x5c] sm:$0x1]
        %v6931 = vld [vmem:[#allocation2 + $0x68] sm:$0xf]
        %v6932 = vld [vmem:[#allocation2 + $0x6c] sm:$0x1]
        %v6933 = vld [vmem:[#allocation2 + $0x78] sm:$0xf]
        %v6934 = vld [vmem:[#allocation2 + $0x7c] sm:$0x1]
        %v6935 = vld [vmem:[#allocation2 + $0x88] sm:$0xf]
        %v6936 = vld [vmem:[#allocation2 + $0x8c] sm:$0x1]
        %v6937 = vld [vmem:[#allocation2 + $0x98] sm:$0xf]
        %v6938 = vld [vmem:[#allocation2 + $0x9c] sm:$0x1]
        %v6939 = vld [vmem:[#allocation2 + $0xa8] sm:$0xf]
        %v6940 = vld [vmem:[#allocation2 + $0xac] sm:$0x1]
        %v6941 = vld [vmem:[#allocation2 + $0xb8] sm:$0xf]
        %v6942 = vld [vmem:[#allocation2 + $0xbc] sm:$0x1]
        %v6943 = vld [vmem:[#allocation2 + $0xc8] sm:$0xf]
        %v6944 = vld [vmem:[#allocation2 + $0xcc] sm:$0x1]
        %v6945 = vld [vmem:[#allocation2 + $0xd8] sm:$0xf]
        %v6946 = vld [vmem:[#allocation2 + $0xdc] sm:$0x1]
        %v6947 = vld [vmem:[#allocation2 + $0xe8] sm:$0xf]
        %v6948 = vld [vmem:[#allocation2 + $0xec] sm:$0x1]
        %v6949 = vld [vmem:[#allocation2 + $0xf8] sm:$0xf]
        %v6950 = vld [vmem:[#allocation2 + $0xfc] sm:$0x1]
        %v6951 = vld [vmem:[#allocation2 + $0x108] sm:$0xf]
        %v6952 = vld [vmem:[#allocation2 + $0x10c] sm:$0x1]
        %v6953 = vld [vmem:[#allocation2 + $0x118] sm:$0xf]
        %v6954 = vld [vmem:[#allocation2 + $0x11c] sm:$0x1]
        %v6955 = vld [vmem:[#allocation2 + $0x128] sm:$0xf]
        %v6956 = vld [vmem:[#allocation2 + $0x12c] sm:$0x1]
        %v6957 = vld [vmem:[#allocation2 + $0x138] sm:$0xf]
        %v6958 = vld [vmem:[#allocation2 + $0x13c] sm:$0x1]
        %v6960 = vshrl.u32 %v6919, 16
        %v6962 = vrot.slane %v6960, 4
        %v6963 = vshll.u32 %v6919, 16
        %v6965 = vrot.slane %v6963, 5
        %v6966 = vor.u32 %v6962, %v6965
        %v6967 = vrot.slane %v6966, 4
        %v6969 = vshll.u32 %v6920, 16
        %v6971 = vrot.slane %v6969, 5
        %v6972 = vsel %vm3041, %v6967, %v6971
        %v6974 = vshrl.u32 %v6921, 16
        %v6976 = vrot.slane %v6974, 4
        %v6977 = vshll.u32 %v6921, 16
        %v6979 = vrot.slane %v6977, 5
        %v6980 = vor.u32 %v6976, %v6979
        %v6981 = vrot.slane %v6980, 4
        %v6983 = vshll.u32 %v6922, 16
        %v6985 = vrot.slane %v6983, 5
        %v6986 = vsel %vm3041, %v6981, %v6985
        %v6988 = vshrl.u32 %v6923, 16
        %v6990 = vrot.slane %v6988, 4
        %v6991 = vshll.u32 %v6923, 16
        %v6993 = vrot.slane %v6991, 5
        %v6994 = vor.u32 %v6990, %v6993
        %v6995 = vrot.slane %v6994, 4
        %v6997 = vshll.u32 %v6924, 16
        %v6999 = vrot.slane %v6997, 5
        %v7000 = vsel %vm3041, %v6995, %v6999
        %v7002 = vshrl.u32 %v6925, 16
        %v7004 = vrot.slane %v7002, 4
        %v7005 = vshll.u32 %v6925, 16
        %v7007 = vrot.slane %v7005, 5
        %v7008 = vor.u32 %v7004, %v7007
        %v7009 = vrot.slane %v7008, 4
        %v7011 = vshll.u32 %v6926, 16
        %v7013 = vrot.slane %v7011, 5
        %v7014 = vsel %vm3041, %v7009, %v7013
        %v7016 = vshrl.u32 %v6927, 16
        %v7018 = vrot.slane %v7016, 4
        %v7019 = vshll.u32 %v6927, 16
        %v7021 = vrot.slane %v7019, 5
        %v7022 = vor.u32 %v7018, %v7021
        %v7023 = vrot.slane %v7022, 4
        %v7025 = vshll.u32 %v6928, 16
        %v7027 = vrot.slane %v7025, 5
        %v7028 = vsel %vm3041, %v7023, %v7027
        %v7030 = vshrl.u32 %v6929, 16
        %v7032 = vrot.slane %v7030, 4
        %v7033 = vshll.u32 %v6929, 16
        %v7035 = vrot.slane %v7033, 5
        %v7036 = vor.u32 %v7032, %v7035
        %v7037 = vrot.slane %v7036, 4
        %v7039 = vshll.u32 %v6930, 16
        %v7041 = vrot.slane %v7039, 5
        %v7042 = vsel %vm3041, %v7037, %v7041
        %v7044 = vshrl.u32 %v6931, 16
        %v7046 = vrot.slane %v7044, 4
        %v7047 = vshll.u32 %v6931, 16
        %v7049 = vrot.slane %v7047, 5
        %v7050 = vor.u32 %v7046, %v7049
        %v7051 = vrot.slane %v7050, 4
        %v7053 = vshll.u32 %v6932, 16
        %v7055 = vrot.slane %v7053, 5
        %v7056 = vsel %vm3041, %v7051, %v7055
        %v7058 = vshrl.u32 %v6933, 16
        %v7060 = vrot.slane %v7058, 4
        %v7061 = vshll.u32 %v6933, 16
        %v7063 = vrot.slane %v7061, 5
        %v7064 = vor.u32 %v7060, %v7063
        %v7065 = vrot.slane %v7064, 4
        %v7067 = vshll.u32 %v6934, 16
        %v7069 = vrot.slane %v7067, 5
        %v7070 = vsel %vm3041, %v7065, %v7069
        %v7072 = vshrl.u32 %v6939, 16
        %v7074 = vrot.slane %v7072, 4
        %v7075 = vshll.u32 %v6939, 16
        %v7077 = vrot.slane %v7075, 5
        %v7078 = vor.u32 %v7074, %v7077
        %v7079 = vrot.slane %v7078, 4
        %v7081 = vshll.u32 %v6940, 16
        %v7083 = vrot.slane %v7081, 5
        %v7084 = vsel %vm3041, %v7079, %v7083
        %v7086 = vshrl.u32 %v6941, 16
        %v7088 = vrot.slane %v7086, 4
        %v7089 = vshll.u32 %v6941, 16
        %v7091 = vrot.slane %v7089, 5
        %v7092 = vor.u32 %v7088, %v7091
        %v7093 = vrot.slane %v7092, 4
        %v7095 = vshll.u32 %v6942, 16
        %v7097 = vrot.slane %v7095, 5
        %v7098 = vsel %vm3041, %v7093, %v7097
        %v7100 = vshrl.u32 %v6943, 16
        %v7102 = vrot.slane %v7100, 4
        %v7103 = vshll.u32 %v6943, 16
        %v7105 = vrot.slane %v7103, 5
        %v7106 = vor.u32 %v7102, %v7105
        %v7107 = vrot.slane %v7106, 4
        %v7109 = vshll.u32 %v6944, 16
        %v7111 = vrot.slane %v7109, 5
        %v7112 = vsel %vm3041, %v7107, %v7111
        %v7114 = vshrl.u32 %v6945, 16
        %v7116 = vrot.slane %v7114, 4
        %v7117 = vshll.u32 %v6945, 16
        %v7119 = vrot.slane %v7117, 5
        %v7120 = vor.u32 %v7116, %v7119
        %v7121 = vrot.slane %v7120, 4
        %v7123 = vshll.u32 %v6946, 16
        %v7125 = vrot.slane %v7123, 5
        %v7126 = vsel %vm3041, %v7121, %v7125
        %v7128 = vshrl.u32 %v6947, 16
        %v7130 = vrot.slane %v7128, 4
        %v7131 = vshll.u32 %v6947, 16
        %v7133 = vrot.slane %v7131, 5
        %v7134 = vor.u32 %v7130, %v7133
        %v7135 = vrot.slane %v7134, 4
        %v7137 = vshll.u32 %v6948, 16
        %v7139 = vrot.slane %v7137, 5
        %v7140 = vsel %vm3041, %v7135, %v7139
        %v7142 = vshrl.u32 %v6949, 16
        %v7144 = vrot.slane %v7142, 4
        %v7145 = vshll.u32 %v6949, 16
        %v7147 = vrot.slane %v7145, 5
        %v7148 = vor.u32 %v7144, %v7147
        %v7149 = vrot.slane %v7148, 4
        %v7151 = vshll.u32 %v6950, 16
        %v7153 = vrot.slane %v7151, 5
        %v7154 = vsel %vm3041, %v7149, %v7153
        %v7156 = vshrl.u32 %v6951, 16
        %v7158 = vrot.slane %v7156, 4
        %v7159 = vshll.u32 %v6951, 16
        %v7161 = vrot.slane %v7159, 5
        %v7162 = vor.u32 %v7158, %v7161
        %v7163 = vrot.slane %v7162, 4
        %v7165 = vshll.u32 %v6952, 16
        %v7167 = vrot.slane %v7165, 5
        %v7168 = vsel %vm3041, %v7163, %v7167
        %v7170 = vshrl.u32 %v6953, 16
        %v7172 = vrot.slane %v7170, 4
        %v7173 = vshll.u32 %v6953, 16
        %v7175 = vrot.slane %v7173, 5
        %v7176 = vor.u32 %v7172, %v7175
        %v7177 = vrot.slane %v7176, 4
        %v7179 = vshll.u32 %v6954, 16
        %v7181 = vrot.slane %v7179, 5
        %v7182 = vsel %vm3041, %v7177, %v7181
        %s7183 = scalar_lea.vmem %s9, 128
        %v7184 = vld [vmem:[%s7183] sm:$0xf]
        %v7185 = vld [vmem:[%s7183 + $0x4] sm:$0xf]
        %v7186 = vld [vmem:[%s7183 + $0x8] sm:$0xf]
        %v7187 = vld [vmem:[%s7183 + $0xc] sm:$0xf]
        %v7188 = vld [vmem:[%s7183 + $0x10] sm:$0xf]
        %v7189 = vld [vmem:[%s7183 + $0x14] sm:$0xf]
        %v7190 = vld [vmem:[%s7183 + $0x18] sm:$0xf]
        %v7191 = vld [vmem:[%s7183 + $0x1c] sm:$0xf]
        %v7192 = vld [vmem:[%s7183 + $0x20] sm:$0xf]
        %v7193 = vld [vmem:[%s7183 + $0x24] sm:$0xf]
        %v7194 = vld [vmem:[%s7183 + $0x28] sm:$0xf]
        %v7195 = vld [vmem:[%s7183 + $0x2c] sm:$0xf]
        %v7196 = vld [vmem:[%s7183 + $0x30] sm:$0xf]
        %v7197 = vld [vmem:[%s7183 + $0x34] sm:$0xf]
        %v7198 = vld [vmem:[%s7183 + $0x38] sm:$0xf]
        %v7199 = vld [vmem:[%s7183 + $0x3c] sm:$0xf]
        %v7200 = vunpack.c.l.b16 %v6972
        %v7201 = vunpack.c.l.b16 %v6986
        %v7202 = vunpack.c.l.b16 %v7000
        %v7203 = vunpack.c.l.b16 %v7014
        %v7204 = vunpack.c.l.b16 %v7028
        %v7205 = vunpack.c.l.b16 %v7042
        %v7206 = vunpack.c.l.b16 %v7056
        %v7207 = vunpack.c.l.b16 %v7070
        %v7208 = vunpack.c.l.b16 %v7084
        %v7209 = vunpack.c.l.b16 %v7098
        %v7210 = vunpack.c.l.b16 %v7112
        %v7211 = vunpack.c.l.b16 %v7126
        %v7212 = vunpack.c.l.b16 %v7140
        %v7213 = vunpack.c.l.b16 %v7154
        %v7214 = vunpack.c.l.b16 %v7168
        %v7215 = vunpack.c.l.b16 %v7182
        %v7216 = vpack.c.b16 %v7201, %v7200
        %v7217 = vpack.c.b16 %v7203, %v7202
        %v7218 = vpack.c.b16 %v7205, %v7204
        %v7219 = vpack.c.b16 %v7207, %v7206
        %v7220 = vpack.c.b16 %v7209, %v7208
        %v7221 = vpack.c.b16 %v7211, %v7210
        %v7222 = vpack.c.b16 %v7213, %v7212
        %v7223 = vpack.c.b16 %v7215, %v7214
        %v7248 = vunpack.c.l.b16 %v7184
        %v7249 = vunpack.c.l.b16 %v7185
        %v7250 = vunpack.c.l.b16 %v7186
        %v7251 = vunpack.c.l.b16 %v7187
        %v7252 = vunpack.c.l.b16 %v7188
        %v7253 = vunpack.c.l.b16 %v7189
        %v7254 = vunpack.c.l.b16 %v7190
        %v7255 = vunpack.c.l.b16 %v7191
        %v7256 = vunpack.c.l.b16 %v7192
        %v7257 = vunpack.c.l.b16 %v7193
        %v7258 = vunpack.c.l.b16 %v7194
        %v7259 = vunpack.c.l.b16 %v7195
        %v7260 = vunpack.c.l.b16 %v7196
        %v7261 = vunpack.c.l.b16 %v7197
        %v7262 = vunpack.c.l.b16 %v7198
        %v7263 = vunpack.c.l.b16 %v7199
        %v7264 = vpack.c.b16 %v7249, %v7248
        %v7265 = vpack.c.b16 %v7251, %v7250
        %v7266 = vpack.c.b16 %v7253, %v7252
        %v7267 = vpack.c.b16 %v7255, %v7254
        %v7268 = vpack.c.b16 %v7257, %v7256
        %v7269 = vpack.c.b16 %v7259, %v7258
        %v7270 = vpack.c.b16 %v7261, %v7260
        %v7271 = vpack.c.b16 %v7263, %v7262
        %7280 = vmatprep.subr.bf16.mxu0 0
        %7281 = vmatpush1.bf16.msra.mxu0 %v7264
        %7282 = vmatprep.subr.bf16.mxu0 0
        %7283 = vmatpush1.bf16.msra.mxu0 %v7265
        %7284 = vmatprep.subr.bf16.mxu0 0
        %7285 = vmatpush1.bf16.msra.mxu0 %v7266
        %7286 = vmatprep.subr.bf16.mxu0 0
        %7287 = vmatpush1.bf16.msra.mxu0 %v7267
        %7288 = vmatprep.subr.bf16.mxu0 0
        %7289 = vmatpush1.bf16.msra.mxu0 %v7268
        %7290 = vmatprep.subr.bf16.mxu0 0
        %7291 = vmatpush1.bf16.msra.mxu0 %v7269
        %7292 = vmatprep.subr.bf16.mxu0 0
        %7293 = vmatpush1.bf16.msra.mxu0 %v7270
        %7294 = vmatprep.subr.bf16.mxu0 0
        %7295 = vmatpush1.bf16.msra.mxu0 %v7271
        %7296 = vmatprep.subr.bf16.mxu0 0
        %7297 = vmatpush1.bf16.msra.mxu0 0
        %7298 = vmatprep.subr.bf16.mxu0 0
        %7299 = vmatpush1.bf16.msra.mxu0 0
        %7300 = vmatprep.subr.bf16.mxu0 0
        %7301 = vmatpush1.bf16.msra.mxu0 0
        %7302 = vmatprep.subr.bf16.mxu0 0
        %7303 = vmatpush1.bf16.msra.mxu0 0
        %7304 = vmatprep.subr.bf16.mxu0 0
        %7305 = vmatpush1.bf16.msra.mxu0 0
        %7306 = vmatprep.subr.bf16.mxu0 0
        %7307 = vmatpush1.bf16.msra.mxu0 0
        %7308 = vmatprep.subr.bf16.mxu0 0
        %7309 = vmatpush1.bf16.msra.mxu0 0
        %7310 = vmatprep.subr.bf16.mxu0 0
        %7311 = vmatpush1.bf16.msra.mxu0 0
        %7312 = vmatprep.mubr.bf16.mxu0 0
        %7313 = vmatmul.mubr.bf16.gmra.mrb[0].mxu0 %v7216
        %v7314 = vpop.f32.mrb[0].mxu0
        %v7315 = vadd.f32 0.0, %v7314
        %v7316 = vpop.f32.mrb[0].mxu0
        %v7317 = vpop.f32.mrb[0].mxu0
        %v7318 = vadd.f32 0.0, %v7317
        %v7319 = vpop.f32.mrb[0].mxu0
        %7320 = vmatprep.mubr.bf16.mxu0 0
        %7321 = vmatmul.mubr.bf16.gmra.mrb[0].mxu0 %v7217
        %v7322 = vpop.f32.mrb[0].mxu0
        %v7323 = vadd.f32 0.0, %v7322
        %v7324 = vpop.f32.mrb[0].mxu0
        %v7325 = vpop.f32.mrb[0].mxu0
        %v7326 = vadd.f32 0.0, %v7325
        %v7327 = vpop.f32.mrb[0].mxu0
        %7328 = vmatprep.mubr.bf16.mxu0 0
        %7329 = vmatmul.mubr.bf16.gmra.mrb[0].mxu0 %v7218
        %v7330 = vpop.f32.mrb[0].mxu0
        %v7331 = vadd.f32 0.0, %v7330
        %v7332 = vpop.f32.mrb[0].mxu0
        %v7333 = vpop.f32.mrb[0].mxu0
        %v7334 = vadd.f32 0.0, %v7333
        %v7335 = vpop.f32.mrb[0].mxu0
        %7336 = vmatprep.mubr.bf16.mxu0 0
        %7337 = vmatmul.mubr.bf16.gmra.mrb[0].mxu0 %v7219
        %v7338 = vpop.f32.mrb[0].mxu0
        %v7339 = vadd.f32 0.0, %v7338
        %v7340 = vpop.f32.mrb[0].mxu0
        %v7341 = vpop.f32.mrb[0].mxu0
        %v7342 = vadd.f32 0.0, %v7341
        %v7343 = vpop.f32.mrb[0].mxu0
        %7344 = vmatprep.mubr.bf16.mxu0 0
        %7345 = vmatmul.mubr.bf16.gmra.mrb[0].mxu0 %v7220
        %v7346 = vpop.f32.mrb[0].mxu0
        %v7347 = vadd.f32 0.0, %v7346
        %v7348 = vpop.f32.mrb[0].mxu0
        %v7349 = vpop.f32.mrb[0].mxu0
        %v7350 = vadd.f32 0.0, %v7349
        %v7351 = vpop.f32.mrb[0].mxu0
        %7352 = vmatprep.mubr.bf16.mxu0 0
        %7353 = vmatmul.mubr.bf16.gmra.mrb[0].mxu0 %v7221
        %v7354 = vpop.f32.mrb[0].mxu0
        %v7355 = vadd.f32 0.0, %v7354
        %v7356 = vpop.f32.mrb[0].mxu0
        %v7357 = vpop.f32.mrb[0].mxu0
        %v7358 = vadd.f32 0.0, %v7357
        %v7359 = vpop.f32.mrb[0].mxu0
        %7360 = vmatprep.mubr.bf16.mxu0 0
        %7361 = vmatmul.mubr.bf16.gmra.mrb[0].mxu0 %v7222
        %v7362 = vpop.f32.mrb[0].mxu0
        %v7363 = vadd.f32 0.0, %v7362
        %v7364 = vpop.f32.mrb[0].mxu0
        %v7365 = vpop.f32.mrb[0].mxu0
        %v7366 = vadd.f32 0.0, %v7365
        %v7367 = vpop.f32.mrb[0].mxu0
        %7368 = vmatprep.mubr.bf16.mxu0 0
        %7369 = vmatmul.mubr.bf16.gmra.mrb[0].mxu0 %v7223
        %v7370 = vpop.f32.mrb[0].mxu0
        %v7371 = vadd.f32 0.0, %v7370
        %v7372 = vpop.f32.mrb[0].mxu0
        %v7373 = vpop.f32.mrb[0].mxu0
        %v7374 = vadd.f32 0.0, %v7373
        %v7375 = vpop.f32.mrb[0].mxu0
        %7376 = vdwg.mxu0
        %v7377 = vld [vmem:[#allocation3] sm:$0xff]
        %v7378 = vld [vmem:[#allocation3 + $0x8] sm:$0xff]
        %v7379 = vld [vmem:[#allocation3 + $0x10] sm:$0xff]
        %v7380 = vld [vmem:[#allocation3 + $0x18] sm:$0xff]
        %v7381 = vld [vmem:[#allocation3 + $0x20] sm:$0xff]
        %v7382 = vld [vmem:[#allocation3 + $0x28] sm:$0xff]
        %v7383 = vld [vmem:[#allocation3 + $0x30] sm:$0xff]
        %v7384 = vld [vmem:[#allocation3 + $0x38] sm:$0xff]
        %v7385 = vld [vmem:[#allocation3 + $0x40] sm:$0xff]
        %v7386 = vld [vmem:[#allocation3 + $0x48] sm:$0xff]
        %v7387 = vld [vmem:[#allocation3 + $0x50] sm:$0xff]
        %v7388 = vld [vmem:[#allocation3 + $0x58] sm:$0xff]
        %v7389 = vld [vmem:[#allocation3 + $0x60] sm:$0xff]
        %v7390 = vld [vmem:[#allocation3 + $0x68] sm:$0xff]
        %v7391 = vld [vmem:[#allocation3 + $0x70] sm:$0xff]
        %v7392 = vld [vmem:[#allocation3 + $0x78] sm:$0xff]
        %v7393 = vadd.f32 %v7377, %v7315
        %v7394 = vadd.f32 %v7378, %v7318
        %v7395 = vadd.f32 %v7379, %v7323
        %v7396 = vadd.f32 %v7380, %v7326
        %v7397 = vadd.f32 %v7381, %v7331
        %v7398 = vadd.f32 %v7382, %v7334
        %v7399 = vadd.f32 %v7383, %v7339
        %v7400 = vadd.f32 %v7384, %v7342
        %v7401 = vadd.f32 %v7385, %v7347
        %v7402 = vadd.f32 %v7386, %v7350
        %v7403 = vadd.f32 %v7387, %v7355
        %v7404 = vadd.f32 %v7388, %v7358
        %v7405 = vadd.f32 %v7389, %v7363
        %v7406 = vadd.f32 %v7390, %v7366
        %v7407 = vadd.f32 %v7391, %v7371
        %v7408 = vadd.f32 %v7392, %v7374
        %7409 = vst [vmem:[#allocation3] sm:$0xff] %v7393
        %7410 = vst [vmem:[#allocation3 + $0x8] sm:$0xff] %v7394
        %7411 = vst [vmem:[#allocation3 + $0x10] sm:$0xff] %v7395
        %7412 = vst [vmem:[#allocation3 + $0x18] sm:$0xff] %v7396
        %7413 = vst [vmem:[#allocation3 + $0x20] sm:$0xff] %v7397
        %7414 = vst [vmem:[#allocation3 + $0x28] sm:$0xff] %v7398
        %7415 = vst [vmem:[#allocation3 + $0x30] sm:$0xff] %v7399
        %7416 = vst [vmem:[#allocation3 + $0x38] sm:$0xff] %v7400
        %7417 = vst [vmem:[#allocation3 + $0x40] sm:$0xff] %v7401
        %7418 = vst [vmem:[#allocation3 + $0x48] sm:$0xff] %v7402
        %7419 = vst [vmem:[#allocation3 + $0x50] sm:$0xff] %v7403
        %7420 = vst [vmem:[#allocation3 + $0x58] sm:$0xff] %v7404
        %7421 = vst [vmem:[#allocation3 + $0x60] sm:$0xff] %v7405
        %7422 = vst [vmem:[#allocation3 + $0x68] sm:$0xff] %v7406
        %7423 = vst [vmem:[#allocation3 + $0x70] sm:$0xff] %v7407
        %7424 = vst [vmem:[#allocation3 + $0x78] sm:$0xff] %v7408
        %v7426 = vshrl.u32 %v6935, 16
        %v7428 = vrot.slane %v7426, 4
        %v7429 = vshll.u32 %v6935, 16
        %v7431 = vrot.slane %v7429, 5
        %v7432 = vor.u32 %v7428, %v7431
        %v7433 = vrot.slane %v7432, 4
        %v7435 = vshll.u32 %v6936, 16
        %v7437 = vrot.slane %v7435, 5
        %v7438 = vsel %vm3041, %v7433, %v7437
        %v7440 = vshrl.u32 %v6955, 16
        %v7442 = vrot.slane %v7440, 4
        %v7443 = vshll.u32 %v6955, 16
        %v7445 = vrot.slane %v7443, 5
        %v7446 = vor.u32 %v7442, %v7445
        %v7447 = vrot.slane %v7446, 4
        %v7449 = vshll.u32 %v6956, 16
        %v7451 = vrot.slane %v7449, 5
        %v7452 = vsel %vm3041, %v7447, %v7451
        %s7453 = scalar_lea.vmem %s9, 320
        %v7454 = vld [vmem:[%s7453] sm:$0xf]
        %v7455 = vld [vmem:[%s7453 + $0x4] sm:$0xf]
        %v7456 = vld [vmem:[%s7453 + $0x8] sm:$0xf]
        %v7457 = vld [vmem:[%s7453 + $0xc] sm:$0xf]
        %v7458 = vld [vmem:[%s7453 + $0x10] sm:$0xf]
        %v7459 = vld [vmem:[%s7453 + $0x14] sm:$0xf]
        %v7460 = vld [vmem:[%s7453 + $0x18] sm:$0xf]
        %v7461 = vld [vmem:[%s7453 + $0x1c] sm:$0xf]
        %v7462 = vld [vmem:[%s7453 + $0x20] sm:$0xf]
        %v7463 = vld [vmem:[%s7453 + $0x24] sm:$0xf]
        %v7464 = vld [vmem:[%s7453 + $0x28] sm:$0xf]
        %v7465 = vld [vmem:[%s7453 + $0x2c] sm:$0xf]
        %v7466 = vld [vmem:[%s7453 + $0x30] sm:$0xf]
        %v7467 = vld [vmem:[%s7453 + $0x34] sm:$0xf]
        %v7468 = vld [vmem:[%s7453 + $0x38] sm:$0xf]
        %v7469 = vld [vmem:[%s7453 + $0x3c] sm:$0xf]
        %v7470 = vunpack.c.l.b16 %v7438
        %v7471 = vunpack.c.l.b16 %v7452
        %v7472 = vpack.c.b16 %v7202, %v7201
        %v7473 = vpack.c.b16 %v7204, %v7203
        %v7474 = vpack.c.b16 %v7206, %v7205
        %v7475 = vpack.c.b16 %v7470, %v7207
        %v7476 = vpack.c.b16 %v7210, %v7209
        %v7477 = vpack.c.b16 %v7212, %v7211
        %v7478 = vpack.c.b16 %v7214, %v7213
        %v7479 = vpack.c.b16 %v7471, %v7215
        %v7504 = vunpack.c.l.b16 %v7454
        %v7505 = vunpack.c.l.b16 %v7455
        %v7506 = vunpack.c.l.b16 %v7456
        %v7507 = vunpack.c.l.b16 %v7457
        %v7508 = vunpack.c.l.b16 %v7458
        %v7509 = vunpack.c.l.b16 %v7459
        %v7510 = vunpack.c.l.b16 %v7460
        %v7511 = vunpack.c.l.b16 %v7461
        %v7512 = vunpack.c.l.b16 %v7462
        %v7513 = vunpack.c.l.b16 %v7463
        %v7514 = vunpack.c.l.b16 %v7464
        %v7515 = vunpack.c.l.b16 %v7465
        %v7516 = vunpack.c.l.b16 %v7466
        %v7517 = vunpack.c.l.b16 %v7467
        %v7518 = vunpack.c.l.b16 %v7468
        %v7519 = vunpack.c.l.b16 %v7469
        %v7520 = vpack.c.b16 %v7505, %v7504
        %v7521 = vpack.c.b16 %v7507, %v7506
        %v7522 = vpack.c.b16 %v7509, %v7508
        %v7523 = vpack.c.b16 %v7511, %v7510
        %v7524 = vpack.c.b16 %v7513, %v7512
        %v7525 = vpack.c.b16 %v7515, %v7514
        %v7526 = vpack.c.b16 %v7517, %v7516
        %v7527 = vpack.c.b16 %v7519, %v7518
        %7536 = vmatprep.subr.bf16.mxu0 0
        %7537 = vmatpush1.bf16.msra.mxu0 %v7520
        %7538 = vmatprep.subr.bf16.mxu0 0
        %7539 = vmatpush1.bf16.msra.mxu0 %v7521
        %7540 = vmatprep.subr.bf16.mxu0 0
        %7541 = vmatpush1.bf16.msra.mxu0 %v7522
        %7542 = vmatprep.subr.bf16.mxu0 0
        %7543 = vmatpush1.bf16.msra.mxu0 %v7523
        %7544 = vmatprep.subr.bf16.mxu0 0
        %7545 = vmatpush1.bf16.msra.mxu0 %v7524
        %7546 = vmatprep.subr.bf16.mxu0 0
        %7547 = vmatpush1.bf16.msra.mxu0 %v7525
        %7548 = vmatprep.subr.bf16.mxu0 0
        %7549 = vmatpush1.bf16.msra.mxu0 %v7526
        %7550 = vmatprep.subr.bf16.mxu0 0
        %7551 = vmatpush1.bf16.msra.mxu0 %v7527
        %7552 = vmatprep.subr.bf16.mxu0 0
        %7553 = vmatpush1.bf16.msra.mxu0 0
        %7554 = vmatprep.subr.bf16.mxu0 0
        %7555 = vmatpush1.bf16.msra.mxu0 0
        %7556 = vmatprep.subr.bf16.mxu0 0
        %7557 = vmatpush1.bf16.msra.mxu0 0
        %7558 = vmatprep.subr.bf16.mxu0 0
        %7559 = vmatpush1.bf16.msra.mxu0 0
        %7560 = vmatprep.subr.bf16.mxu0 0
        %7561 = vmatpush1.bf16.msra.mxu0 0
        %7562 = vmatprep.subr.bf16.mxu0 0
        %7563 = vmatpush1.bf16.msra.mxu0 0
        %7564 = vmatprep.subr.bf16.mxu0 0
        %7565 = vmatpush1.bf16.msra.mxu0 0
        %7566 = vmatprep.subr.bf16.mxu0 0
        %7567 = vmatpush1.bf16.msra.mxu0 0
        %7568 = vmatprep.mubr.bf16.mxu0 0
        %7569 = vmatmul.mubr.bf16.gmra.mrb[0].mxu0 %v7472
        %v7570 = vpop.f32.mrb[0].mxu0
        %v7571 = vadd.f32 0.0, %v7570
        %v7572 = vpop.f32.mrb[0].mxu0
        %v7573 = vpop.f32.mrb[0].mxu0
        %v7574 = vadd.f32 0.0, %v7573
        %v7575 = vpop.f32.mrb[0].mxu0
        %7576 = vmatprep.mubr.bf16.mxu0 0
        %7577 = vmatmul.mubr.bf16.gmra.mrb[0].mxu0 %v7473
        %v7578 = vpop.f32.mrb[0].mxu0
        %v7579 = vadd.f32 0.0, %v7578
        %v7580 = vpop.f32.mrb[0].mxu0
        %v7581 = vpop.f32.mrb[0].mxu0
        %v7582 = vadd.f32 0.0, %v7581
        %v7583 = vpop.f32.mrb[0].mxu0
        %7584 = vmatprep.mubr.bf16.mxu0 0
        %7585 = vmatmul.mubr.bf16.gmra.mrb[0].mxu0 %v7474
        %v7586 = vpop.f32.mrb[0].mxu0
        %v7587 = vadd.f32 0.0, %v7586
        %v7588 = vpop.f32.mrb[0].mxu0
        %v7589 = vpop.f32.mrb[0].mxu0
        %v7590 = vadd.f32 0.0, %v7589
        %v7591 = vpop.f32.mrb[0].mxu0
        %7592 = vmatprep.mubr.bf16.mxu0 0
        %7593 = vmatmul.mubr.bf16.gmra.mrb[0].mxu0 %v7475
        %v7594 = vpop.f32.mrb[0].mxu0
        %v7595 = vadd.f32 0.0, %v7594
        %v7596 = vpop.f32.mrb[0].mxu0
        %v7597 = vpop.f32.mrb[0].mxu0
        %v7598 = vadd.f32 0.0, %v7597
        %v7599 = vpop.f32.mrb[0].mxu0
        %7600 = vmatprep.mubr.bf16.mxu0 0
        %7601 = vmatmul.mubr.bf16.gmra.mrb[0].mxu0 %v7476
        %v7602 = vpop.f32.mrb[0].mxu0
        %v7603 = vadd.f32 0.0, %v7602
        %v7604 = vpop.f32.mrb[0].mxu0
        %v7605 = vpop.f32.mrb[0].mxu0
        %v7606 = vadd.f32 0.0, %v7605
        %v7607 = vpop.f32.mrb[0].mxu0
        %7608 = vmatprep.mubr.bf16.mxu0 0
        %7609 = vmatmul.mubr.bf16.gmra.mrb[0].mxu0 %v7477
        %v7610 = vpop.f32.mrb[0].mxu0
        %v7611 = vadd.f32 0.0, %v7610
        %v7612 = vpop.f32.mrb[0].mxu0
        %v7613 = vpop.f32.mrb[0].mxu0
        %v7614 = vadd.f32 0.0, %v7613
        %v7615 = vpop.f32.mrb[0].mxu0
        %7616 = vmatprep.mubr.bf16.mxu0 0
        %7617 = vmatmul.mubr.bf16.gmra.mrb[0].mxu0 %v7478
        %v7618 = vpop.f32.mrb[0].mxu0
        %v7619 = vadd.f32 0.0, %v7618
        %v7620 = vpop.f32.mrb[0].mxu0
        %v7621 = vpop.f32.mrb[0].mxu0
        %v7622 = vadd.f32 0.0, %v7621
        %v7623 = vpop.f32.mrb[0].mxu0
        %7624 = vmatprep.mubr.bf16.mxu0 0
        %7625 = vmatmul.mubr.bf16.gmra.mrb[0].mxu0 %v7479
        %v7626 = vpop.f32.mrb[0].mxu0
        %v7627 = vadd.f32 0.0, %v7626
        %v7628 = vpop.f32.mrb[0].mxu0
        %v7629 = vpop.f32.mrb[0].mxu0
        %v7630 = vadd.f32 0.0, %v7629
        %v7631 = vpop.f32.mrb[0].mxu0
        %7632 = vdwg.mxu0
        %v7633 = vld [vmem:[#allocation3] sm:$0xff]
        %v7634 = vld [vmem:[#allocation3 + $0x8] sm:$0xff]
        %v7635 = vld [vmem:[#allocation3 + $0x10] sm:$0xff]
        %v7636 = vld [vmem:[#allocation3 + $0x18] sm:$0xff]
        %v7637 = vld [vmem:[#allocation3 + $0x20] sm:$0xff]
        %v7638 = vld [vmem:[#allocation3 + $0x28] sm:$0xff]
        %v7639 = vld [vmem:[#allocation3 + $0x30] sm:$0xff]
        %v7640 = vld [vmem:[#allocation3 + $0x38] sm:$0xff]
        %v7641 = vld [vmem:[#allocation3 + $0x40] sm:$0xff]
        %v7642 = vld [vmem:[#allocation3 + $0x48] sm:$0xff]
        %v7643 = vld [vmem:[#allocation3 + $0x50] sm:$0xff]
        %v7644 = vld [vmem:[#allocation3 + $0x58] sm:$0xff]
        %v7645 = vld [vmem:[#allocation3 + $0x60] sm:$0xff]
        %v7646 = vld [vmem:[#allocation3 + $0x68] sm:$0xff]
        %v7647 = vld [vmem:[#allocation3 + $0x70] sm:$0xff]
        %v7648 = vld [vmem:[#allocation3 + $0x78] sm:$0xff]
        %v7649 = vadd.f32 %v7633, %v7571
        %v7650 = vadd.f32 %v7634, %v7574
        %v7651 = vadd.f32 %v7635, %v7579
        %v7652 = vadd.f32 %v7636, %v7582
        %v7653 = vadd.f32 %v7637, %v7587
        %v7654 = vadd.f32 %v7638, %v7590
        %v7655 = vadd.f32 %v7639, %v7595
        %v7656 = vadd.f32 %v7640, %v7598
        %v7657 = vadd.f32 %v7641, %v7603
        %v7658 = vadd.f32 %v7642, %v7606
        %v7659 = vadd.f32 %v7643, %v7611
        %v7660 = vadd.f32 %v7644, %v7614
        %v7661 = vadd.f32 %v7645, %v7619
        %v7662 = vadd.f32 %v7646, %v7622
        %v7663 = vadd.f32 %v7647, %v7627
        %v7664 = vadd.f32 %v7648, %v7630
        %7665 = vst [vmem:[#allocation3] sm:$0xff] %v7649
        %7666 = vst [vmem:[#allocation3 + $0x8] sm:$0xff] %v7650
        %7667 = vst [vmem:[#allocation3 + $0x10] sm:$0xff] %v7651
        %7668 = vst [vmem:[#allocation3 + $0x18] sm:$0xff] %v7652
        %7669 = vst [vmem:[#allocation3 + $0x20] sm:$0xff] %v7653
        %7670 = vst [vmem:[#allocation3 + $0x28] sm:$0xff] %v7654
        %7671 = vst [vmem:[#allocation3 + $0x30] sm:$0xff] %v7655
        %7672 = vst [vmem:[#allocation3 + $0x38] sm:$0xff] %v7656
        %7673 = vst [vmem:[#allocation3 + $0x40] sm:$0xff] %v7657
        %7674 = vst [vmem:[#allocation3 + $0x48] sm:$0xff] %v7658
        %7675 = vst [vmem:[#allocation3 + $0x50] sm:$0xff] %v7659
        %7676 = vst [vmem:[#allocation3 + $0x58] sm:$0xff] %v7660
        %7677 = vst [vmem:[#allocation3 + $0x60] sm:$0xff] %v7661
        %7678 = vst [vmem:[#allocation3 + $0x68] sm:$0xff] %v7662
        %7679 = vst [vmem:[#allocation3 + $0x70] sm:$0xff] %v7663
        %7680 = vst [vmem:[#allocation3 + $0x78] sm:$0xff] %v7664
        %v7682 = vshrl.u32 %v6937, 16
        %v7684 = vrot.slane %v7682, 4
        %v7685 = vshll.u32 %v6937, 16
        %v7687 = vrot.slane %v7685, 5
        %v7688 = vor.u32 %v7684, %v7687
        %v7689 = vrot.slane %v7688, 4
        %v7691 = vshll.u32 %v6938, 16
        %v7693 = vrot.slane %v7691, 5
        %v7694 = vsel %vm3041, %v7689, %v7693
        %v7696 = vshrl.u32 %v6957, 16
        %v7698 = vrot.slane %v7696, 4
        %v7699 = vshll.u32 %v6957, 16
        %v7701 = vrot.slane %v7699, 5
        %v7702 = vor.u32 %v7698, %v7701
        %v7703 = vrot.slane %v7702, 4
        %v7705 = vshll.u32 %v6958, 16
        %v7707 = vrot.slane %v7705, 5
        %v7708 = vsel %vm3041, %v7703, %v7707
        %s7709 = scalar_lea.vmem %s9, 512
        %v7710 = vld [vmem:[%s7709] sm:$0xf]
        %v7711 = vld [vmem:[%s7709 + $0x4] sm:$0xf]
        %v7712 = vld [vmem:[%s7709 + $0x8] sm:$0xf]
        %v7713 = vld [vmem:[%s7709 + $0xc] sm:$0xf]
        %v7714 = vld [vmem:[%s7709 + $0x10] sm:$0xf]
        %v7715 = vld [vmem:[%s7709 + $0x14] sm:$0xf]
        %v7716 = vld [vmem:[%s7709 + $0x18] sm:$0xf]
        %v7717 = vld [vmem:[%s7709 + $0x1c] sm:$0xf]
        %v7718 = vld [vmem:[%s7709 + $0x20] sm:$0xf]
        %v7719 = vld [vmem:[%s7709 + $0x24] sm:$0xf]
        %v7720 = vld [vmem:[%s7709 + $0x28] sm:$0xf]
        %v7721 = vld [vmem:[%s7709 + $0x2c] sm:$0xf]
        %v7722 = vld [vmem:[%s7709 + $0x30] sm:$0xf]
        %v7723 = vld [vmem:[%s7709 + $0x34] sm:$0xf]
        %v7724 = vld [vmem:[%s7709 + $0x38] sm:$0xf]
        %v7725 = vld [vmem:[%s7709 + $0x3c] sm:$0xf]
        %v7726 = vunpack.c.l.b16 %v7694
        %v7727 = vunpack.c.l.b16 %v7708
        %v7728 = vpack.c.b16 %v7726, %v7470
        %v7729 = vpack.c.b16 %v7727, %v7471
        %v7748 = vunpack.c.l.b16 %v7710
        %v7749 = vunpack.c.l.b16 %v7711
        %v7750 = vunpack.c.l.b16 %v7712
        %v7751 = vunpack.c.l.b16 %v7713
        %v7752 = vunpack.c.l.b16 %v7714
        %v7753 = vunpack.c.l.b16 %v7715
        %v7754 = vunpack.c.l.b16 %v7716
        %v7755 = vunpack.c.l.b16 %v7717
        %v7756 = vunpack.c.l.b16 %v7718
        %v7757 = vunpack.c.l.b16 %v7719
        %v7758 = vunpack.c.l.b16 %v7720
        %v7759 = vunpack.c.l.b16 %v7721
        %v7760 = vunpack.c.l.b16 %v7722
        %v7761 = vunpack.c.l.b16 %v7723
        %v7762 = vunpack.c.l.b16 %v7724
        %v7763 = vunpack.c.l.b16 %v7725
        %v7764 = vpack.c.b16 %v7749, %v7748
        %v7765 = vpack.c.b16 %v7751, %v7750
        %v7766 = vpack.c.b16 %v7753, %v7752
        %v7767 = vpack.c.b16 %v7755, %v7754
        %v7768 = vpack.c.b16 %v7757, %v7756
        %v7769 = vpack.c.b16 %v7759, %v7758
        %v7770 = vpack.c.b16 %v7761, %v7760
        %v7771 = vpack.c.b16 %v7763, %v7762
        %7780 = vmatprep.subr.bf16.mxu0 0
        %7781 = vmatpush1.bf16.msra.mxu0 %v7764
        %7782 = vmatprep.subr.bf16.mxu0 0
        %7783 = vmatpush1.bf16.msra.mxu0 %v7765
        %7784 = vmatprep.subr.bf16.mxu0 0
        %7785 = vmatpush1.bf16.msra.mxu0 %v7766
        %7786 = vmatprep.subr.bf16.mxu0 0
        %7787 = vmatpush1.bf16.msra.mxu0 %v7767
        %7788 = vmatprep.subr.bf16.mxu0 0
        %7789 = vmatpush1.bf16.msra.mxu0 %v7768
        %7790 = vmatprep.subr.bf16.mxu0 0
        %7791 = vmatpush1.bf16.msra.mxu0 %v7769
        %7792 = vmatprep.subr.bf16.mxu0 0
        %7793 = vmatpush1.bf16.msra.mxu0 %v7770
        %7794 = vmatprep.subr.bf16.mxu0 0
        %7795 = vmatpush1.bf16.msra.mxu0 %v7771
        %7796 = vmatprep.subr.bf16.mxu0 0
        %7797 = vmatpush1.bf16.msra.mxu0 0
        %7798 = vmatprep.subr.bf16.mxu0 0
        %7799 = vmatpush1.bf16.msra.mxu0 0
        %7800 = vmatprep.subr.bf16.mxu0 0
        %7801 = vmatpush1.bf16.msra.mxu0 0
        %7802 = vmatprep.subr.bf16.mxu0 0
        %7803 = vmatpush1.bf16.msra.mxu0 0
        %7804 = vmatprep.subr.bf16.mxu0 0
        %7805 = vmatpush1.bf16.msra.mxu0 0
        %7806 = vmatprep.subr.bf16.mxu0 0
        %7807 = vmatpush1.bf16.msra.mxu0 0
        %7808 = vmatprep.subr.bf16.mxu0 0
        %7809 = vmatpush1.bf16.msra.mxu0 0
        %7810 = vmatprep.subr.bf16.mxu0 0
        %7811 = vmatpush1.bf16.msra.mxu0 0
        %7812 = vmatprep.mubr.bf16.mxu0 0
        %7813 = vmatmul.mubr.bf16.gmra.mrb[0].mxu0 %v7217
        %v7814 = vpop.f32.mrb[0].mxu0
        %v7815 = vadd.f32 0.0, %v7814
        %v7816 = vpop.f32.mrb[0].mxu0
        %v7817 = vpop.f32.mrb[0].mxu0
        %v7818 = vadd.f32 0.0, %v7817
        %v7819 = vpop.f32.mrb[0].mxu0
        %7820 = vmatprep.mubr.bf16.mxu0 0
        %7821 = vmatmul.mubr.bf16.gmra.mrb[0].mxu0 %v7218
        %v7822 = vpop.f32.mrb[0].mxu0
        %v7823 = vadd.f32 0.0, %v7822
        %v7824 = vpop.f32.mrb[0].mxu0
        %v7825 = vpop.f32.mrb[0].mxu0
        %v7826 = vadd.f32 0.0, %v7825
        %v7827 = vpop.f32.mrb[0].mxu0
        %7828 = vmatprep.mubr.bf16.mxu0 0
        %7829 = vmatmul.mubr.bf16.gmra.mrb[0].mxu0 %v7219
        %v7830 = vpop.f32.mrb[0].mxu0
        %v7831 = vadd.f32 0.0, %v7830
        %v7832 = vpop.f32.mrb[0].mxu0
        %v7833 = vpop.f32.mrb[0].mxu0
        %v7834 = vadd.f32 0.0, %v7833
        %v7835 = vpop.f32.mrb[0].mxu0
        %7836 = vmatprep.mubr.bf16.mxu0 0
        %7837 = vmatmul.mubr.bf16.gmra.mrb[0].mxu0 %v7728
        %v7838 = vpop.f32.mrb[0].mxu0
        %v7839 = vadd.f32 0.0, %v7838
        %v7840 = vpop.f32.mrb[0].mxu0
        %v7841 = vpop.f32.mrb[0].mxu0
        %v7842 = vadd.f32 0.0, %v7841
        %v7843 = vpop.f32.mrb[0].mxu0
        %7844 = vmatprep.mubr.bf16.mxu0 0
        %7845 = vmatmul.mubr.bf16.gmra.mrb[0].mxu0 %v7221
        %v7846 = vpop.f32.mrb[0].mxu0
        %v7847 = vadd.f32 0.0, %v7846
        %v7848 = vpop.f32.mrb[0].mxu0
        %v7849 = vpop.f32.mrb[0].mxu0
        %v7850 = vadd.f32 0.0, %v7849
        %v7851 = vpop.f32.mrb[0].mxu0
        %7852 = vmatprep.mubr.bf16.mxu0 0
        %7853 = vmatmul.mubr.bf16.gmra.mrb[0].mxu0 %v7222
        %v7854 = vpop.f32.mrb[0].mxu0
        %v7855 = vadd.f32 0.0, %v7854
        %v7856 = vpop.f32.mrb[0].mxu0
        %v7857 = vpop.f32.mrb[0].mxu0
        %v7858 = vadd.f32 0.0, %v7857
        %v7859 = vpop.f32.mrb[0].mxu0
        %7860 = vmatprep.mubr.bf16.mxu0 0
        %7861 = vmatmul.mubr.bf16.gmra.mrb[0].mxu0 %v7223
        %v7862 = vpop.f32.mrb[0].mxu0
        %v7863 = vadd.f32 0.0, %v7862
        %v7864 = vpop.f32.mrb[0].mxu0
        %v7865 = vpop.f32.mrb[0].mxu0
        %v7866 = vadd.f32 0.0, %v7865
        %v7867 = vpop.f32.mrb[0].mxu0
        %7868 = vmatprep.mubr.bf16.mxu0 0
        %7869 = vmatmul.mubr.bf16.gmra.mrb[0].mxu0 %v7729
        %v7870 = vpop.f32.mrb[0].mxu0
        %v7871 = vadd.f32 0.0, %v7870
        %v7872 = vpop.f32.mrb[0].mxu0
        %v7873 = vpop.f32.mrb[0].mxu0
        %v7874 = vadd.f32 0.0, %v7873
        %v7875 = vpop.f32.mrb[0].mxu0
        %7876 = vdwg.mxu0
        %v7877 = vld [vmem:[#allocation3] sm:$0xff]
        %v7878 = vld [vmem:[#allocation3 + $0x8] sm:$0xff]
        %v7879 = vld [vmem:[#allocation3 + $0x10] sm:$0xff]
        %v7880 = vld [vmem:[#allocation3 + $0x18] sm:$0xff]
        %v7881 = vld [vmem:[#allocation3 + $0x20] sm:$0xff]
        %v7882 = vld [vmem:[#allocation3 + $0x28] sm:$0xff]
        %v7883 = vld [vmem:[#allocation3 + $0x30] sm:$0xff]
        %v7884 = vld [vmem:[#allocation3 + $0x38] sm:$0xff]
        %v7885 = vld [vmem:[#allocation3 + $0x40] sm:$0xff]
        %v7886 = vld [vmem:[#allocation3 + $0x48] sm:$0xff]
        %v7887 = vld [vmem:[#allocation3 + $0x50] sm:$0xff]
        %v7888 = vld [vmem:[#allocation3 + $0x58] sm:$0xff]
        %v7889 = vld [vmem:[#allocation3 + $0x60] sm:$0xff]
        %v7890 = vld [vmem:[#allocation3 + $0x68] sm:$0xff]
        %v7891 = vld [vmem:[#allocation3 + $0x70] sm:$0xff]
        %v7892 = vld [vmem:[#allocation3 + $0x78] sm:$0xff]
        %v7893 = vadd.f32 %v7877, %v7815
        %v7894 = vadd.f32 %v7878, %v7818
        %v7895 = vadd.f32 %v7879, %v7823
        %v7896 = vadd.f32 %v7880, %v7826
        %v7897 = vadd.f32 %v7881, %v7831
        %v7898 = vadd.f32 %v7882, %v7834
        %v7899 = vadd.f32 %v7883, %v7839
        %v7900 = vadd.f32 %v7884, %v7842
        %v7901 = vadd.f32 %v7885, %v7847
        %v7902 = vadd.f32 %v7886, %v7850
        %v7903 = vadd.f32 %v7887, %v7855
        %v7904 = vadd.f32 %v7888, %v7858
        %v7905 = vadd.f32 %v7889, %v7863
        %v7906 = vadd.f32 %v7890, %v7866
        %v7907 = vadd.f32 %v7891, %v7871
        %v7908 = vadd.f32 %v7892, %v7874
        %7909 = vst [vmem:[#allocation3] sm:$0xff] %v7893
        %7910 = vst [vmem:[#allocation3 + $0x8] sm:$0xff] %v7894
        %7911 = vst [vmem:[#allocation3 + $0x10] sm:$0xff] %v7895
        %7912 = vst [vmem:[#allocation3 + $0x18] sm:$0xff] %v7896
        %7913 = vst [vmem:[#allocation3 + $0x20] sm:$0xff] %v7897
        %7914 = vst [vmem:[#allocation3 + $0x28] sm:$0xff] %v7898
        %7915 = vst [vmem:[#allocation3 + $0x30] sm:$0xff] %v7899
        %7916 = vst [vmem:[#allocation3 + $0x38] sm:$0xff] %v7900
        %7917 = vst [vmem:[#allocation3 + $0x40] sm:$0xff] %v7901
        %7918 = vst [vmem:[#allocation3 + $0x48] sm:$0xff] %v7902
        %7919 = vst [vmem:[#allocation3 + $0x50] sm:$0xff] %v7903
        %7920 = vst [vmem:[#allocation3 + $0x58] sm:$0xff] %v7904
        %7921 = vst [vmem:[#allocation3 + $0x60] sm:$0xff] %v7905
        %7922 = vst [vmem:[#allocation3 + $0x68] sm:$0xff] %v7906
        %7923 = vst [vmem:[#allocation3 + $0x70] sm:$0xff] %v7907
        %7924 = vst [vmem:[#allocation3 + $0x78] sm:$0xff] %v7908
        %v7925 = vld [vmem:[#allocation3] sm:$0xff]
        %v7926 = vld [vmem:[#allocation3 + $0x8] sm:$0xff]
        %v7927 = vld [vmem:[#allocation3 + $0x10] sm:$0xff]
        %v7928 = vld [vmem:[#allocation3 + $0x18] sm:$0xff]
        %v7929 = vld [vmem:[#allocation3 + $0x20] sm:$0xff]
        %v7930 = vld [vmem:[#allocation3 + $0x28] sm:$0xff]
        %v7931 = vld [vmem:[#allocation3 + $0x30] sm:$0xff]
        %v7932 = vld [vmem:[#allocation3 + $0x38] sm:$0xff]
        %v7933 = vld [vmem:[#allocation3 + $0x40] sm:$0xff]
        %v7934 = vld [vmem:[#allocation3 + $0x48] sm:$0xff]
        %v7935 = vld [vmem:[#allocation3 + $0x50] sm:$0xff]
        %v7936 = vld [vmem:[#allocation3 + $0x58] sm:$0xff]
        %v7937 = vld [vmem:[#allocation3 + $0x60] sm:$0xff]
        %v7938 = vld [vmem:[#allocation3 + $0x68] sm:$0xff]
        %v7939 = vld [vmem:[#allocation3 + $0x70] sm:$0xff]
        %v7940 = vld [vmem:[#allocation3 + $0x78] sm:$0xff]
        %v7941 = vld [vmem:[%s10] sm:$0x1]
        %v7943 = vlaneseq
        %v7944 = vshrl.u32 %v7943, 7
        %v7945 = vsub.s32 0, %v7944
        %v7946 = vrot.slane %v7941, %v7945
        %v7948 = vadd.f32 %v7925, %v7946
        %v7949 = vadd.f32 %v7926, %v7946
        %v7950 = vadd.f32 %v7927, %v7946
        %v7951 = vadd.f32 %v7928, %v7946
        %v7952 = vadd.f32 %v7929, %v7946
        %v7953 = vadd.f32 %v7930, %v7946
        %v7954 = vadd.f32 %v7931, %v7946
        %v7955 = vadd.f32 %v7932, %v7946
        %v7956 = vadd.f32 %v7933, %v7946
        %v7957 = vadd.f32 %v7934, %v7946
        %v7958 = vadd.f32 %v7935, %v7946
        %v7959 = vadd.f32 %v7936, %v7946
        %v7960 = vadd.f32 %v7937, %v7946
        %v7961 = vadd.f32 %v7938, %v7946
        %v7962 = vadd.f32 %v7939, %v7946
        %v7963 = vadd.f32 %v7940, %v7946
        %v7964 = vmax.f32 %v7948, 0.0
        %v7965 = vmax.f32 %v7949, 0.0
        %v7966 = vmax.f32 %v7950, 0.0
        %v7967 = vmax.f32 %v7951, 0.0
        %v7968 = vmax.f32 %v7952, 0.0
        %v7969 = vmax.f32 %v7953, 0.0
        %v7970 = vmax.f32 %v7954, 0.0
        %v7971 = vmax.f32 %v7955, 0.0
        %v7972 = vmax.f32 %v7956, 0.0
        %v7973 = vmax.f32 %v7957, 0.0
        %v7974 = vmax.f32 %v7958, 0.0
        %v7975 = vmax.f32 %v7959, 0.0
        %v7976 = vmax.f32 %v7960, 0.0
        %v7977 = vmax.f32 %v7961, 0.0
        %v7978 = vmax.f32 %v7962, 0.0
        %v7979 = vmax.f32 %v7963, 0.0
        %v7980 = vpack.c.bf16 %v7965, %v7964
        %v7981 = vpack.c.bf16 %v7967, %v7966
        %v7982 = vpack.c.bf16 %v7969, %v7968
        %v7983 = vpack.c.bf16 %v7971, %v7970
        %v7984 = vpack.c.bf16 %v7973, %v7972
        %v7985 = vpack.c.bf16 %v7975, %v7974
        %v7986 = vpack.c.bf16 %v7977, %v7976
        %v7987 = vpack.c.bf16 %v7979, %v7978
        %v7988 = vld [vmem:[%s11] sm:$0xff]
        %v7989 = vld [vmem:[%s11 + $0x8] sm:$0xff]
        %v7990 = vld [vmem:[%s11 + $0x10] sm:$0xff]
        %v7991 = vld [vmem:[%s11 + $0x18] sm:$0xff]
        %v7992 = vld [vmem:[%s11 + $0x20] sm:$0xff]
        %v7993 = vld [vmem:[%s11 + $0x28] sm:$0xff]
        %v7994 = vld [vmem:[%s11 + $0x30] sm:$0xff]
        %v7995 = vld [vmem:[%s11 + $0x38] sm:$0xff]
        %v7996 = vld [vmem:[%s11 + $0x40] sm:$0xff]
        %v7997 = vld [vmem:[%s11 + $0x48] sm:$0xff]
        %v7998 = vld [vmem:[%s11 + $0x50] sm:$0xff]
        %v7999 = vld [vmem:[%s11 + $0x58] sm:$0xff]
        %v8000 = vld [vmem:[%s11 + $0x60] sm:$0xff]
        %v8001 = vld [vmem:[%s11 + $0x68] sm:$0xff]
        %v8002 = vld [vmem:[%s11 + $0x70] sm:$0xff]
        %v8003 = vld [vmem:[%s11 + $0x78] sm:$0xff]
        %v8004 = vld [vmem:[%s11 + $0x80] sm:$0xff]
        %v8005 = vld [vmem:[%s11 + $0x88] sm:$0xff]
        %v8006 = vld [vmem:[%s11 + $0x90] sm:$0xff]
        %v8007 = vld [vmem:[%s11 + $0x98] sm:$0xff]
        %v8008 = vld [vmem:[%s11 + $0xa0] sm:$0xff]
        %v8009 = vld [vmem:[%s11 + $0xa8] sm:$0xff]
        %v8010 = vld [vmem:[%s11 + $0xb0] sm:$0xff]
        %v8011 = vld [vmem:[%s11 + $0xb8] sm:$0xff]
        %v8012 = vld [vmem:[%s11 + $0xc0] sm:$0xff]
        %v8013 = vld [vmem:[%s11 + $0xc8] sm:$0xff]
        %v8014 = vld [vmem:[%s11 + $0xd0] sm:$0xff]
        %v8015 = vld [vmem:[%s11 + $0xd8] sm:$0xff]
        %v8016 = vld [vmem:[%s11 + $0xe0] sm:$0xff]
        %v8017 = vld [vmem:[%s11 + $0xe8] sm:$0xff]
        %v8018 = vld [vmem:[%s11 + $0xf0] sm:$0xff]
        %v8019 = vld [vmem:[%s11 + $0xf8] sm:$0xff]
        %v8020 = vld [vmem:[%s12] sm:$0xf]
        %v8022 = vlaneseq
        %v8023 = vshrl.u32 %v8022, 7
        %v8024 = vsub.s32 0, %v8023
        %v8025 = vrot.slane %v8020, %v8024
        %v8026 = vlaneseq
        %v8027 = vshrl.u32 %v8026, 7
        %v8028 = vsub.s32 1, %v8027
        %v8029 = vrot.slane %v8020, %v8028
        %v8030 = vlaneseq
        %v8031 = vshrl.u32 %v8030, 7
        %v8032 = vsub.s32 2, %v8031
        %v8033 = vrot.slane %v8020, %v8032
        %v8034 = vlaneseq
        %v8035 = vshrl.u32 %v8034, 7
        %v8036 = vsub.s32 3, %v8035
        %v8037 = vrot.slane %v8020, %v8036
        %v8074 = vunpack.c.l.b16 %v7988
        %v8075 = vunpack.c.h.b16 %v7988
        %v8076 = vunpack.c.l.b16 %v7989
        %v8077 = vunpack.c.h.b16 %v7989
        %v8078 = vunpack.c.l.b16 %v7990
        %v8079 = vunpack.c.h.b16 %v7990
        %v8080 = vunpack.c.l.b16 %v7991
        %v8081 = vunpack.c.h.b16 %v7991
        %v8082 = vunpack.c.l.b16 %v7992
        %v8083 = vunpack.c.h.b16 %v7992
        %v8084 = vunpack.c.l.b16 %v7993
        %v8085 = vunpack.c.h.b16 %v7993
        %v8086 = vunpack.c.l.b16 %v7994
        %v8087 = vunpack.c.h.b16 %v7994
        %v8088 = vunpack.c.l.b16 %v7995
        %v8089 = vunpack.c.h.b16 %v7995
        %v8090 = vunpack.c.l.b16 %v7996
        %v8091 = vunpack.c.h.b16 %v7996
        %v8092 = vunpack.c.l.b16 %v7997
        %v8093 = vunpack.c.h.b16 %v7997
        %v8094 = vunpack.c.l.b16 %v7998
        %v8095 = vunpack.c.h.b16 %v7998
        %v8096 = vunpack.c.l.b16 %v7999
        %v8097 = vunpack.c.h.b16 %v7999
        %v8098 = vunpack.c.l.b16 %v8000
        %v8099 = vunpack.c.h.b16 %v8000
        %v8100 = vunpack.c.l.b16 %v8001
        %v8101 = vunpack.c.h.b16 %v8001
        %v8102 = vunpack.c.l.b16 %v8002
        %v8103 = vunpack.c.h.b16 %v8002
        %v8104 = vunpack.c.l.b16 %v8003
        %v8105 = vunpack.c.h.b16 %v8003
        %v8106 = vunpack.c.l.b16 %v8004
        %v8107 = vunpack.c.h.b16 %v8004
        %v8108 = vunpack.c.l.b16 %v8005
        %v8109 = vunpack.c.h.b16 %v8005
        %v8110 = vunpack.c.l.b16 %v8006
        %v8111 = vunpack.c.h.b16 %v8006
        %v8112 = vunpack.c.l.b16 %v8007
        %v8113 = vunpack.c.h.b16 %v8007
        %v8114 = vunpack.c.l.b16 %v8008
        %v8115 = vunpack.c.h.b16 %v8008
        %v8116 = vunpack.c.l.b16 %v8009
        %v8117 = vunpack.c.h.b16 %v8009
        %v8118 = vunpack.c.l.b16 %v8010
        %v8119 = vunpack.c.h.b16 %v8010
        %v8120 = vunpack.c.l.b16 %v8011
        %v8121 = vunpack.c.h.b16 %v8011
        %v8122 = vunpack.c.l.b16 %v8012
        %v8123 = vunpack.c.h.b16 %v8012
        %v8124 = vunpack.c.l.b16 %v8013
        %v8125 = vunpack.c.h.b16 %v8013
        %v8126 = vunpack.c.l.b16 %v8014
        %v8127 = vunpack.c.h.b16 %v8014
        %v8128 = vunpack.c.l.b16 %v8015
        %v8129 = vunpack.c.h.b16 %v8015
        %v8130 = vunpack.c.l.b16 %v8016
        %v8131 = vunpack.c.h.b16 %v8016
        %v8132 = vunpack.c.l.b16 %v8017
        %v8133 = vunpack.c.h.b16 %v8017
        %v8134 = vunpack.c.l.b16 %v8018
        %v8135 = vunpack.c.h.b16 %v8018
        %v8136 = vunpack.c.l.b16 %v8019
        %v8137 = vunpack.c.h.b16 %v8019
        %v8138 = vpack.c.b16 %v8078, %v8074
        %v8139 = vpack.c.b16 %v8079, %v8075
        %v8140 = vpack.c.b16 %v8080, %v8076
        %v8141 = vpack.c.b16 %v8081, %v8077
        %v8142 = vpack.c.b16 %v8086, %v8082
        %v8143 = vpack.c.b16 %v8087, %v8083
        %v8144 = vpack.c.b16 %v8088, %v8084
        %v8145 = vpack.c.b16 %v8089, %v8085
        %v8146 = vpack.c.b16 %v8094, %v8090
        %v8147 = vpack.c.b16 %v8095, %v8091
        %v8148 = vpack.c.b16 %v8096, %v8092
        %v8149 = vpack.c.b16 %v8097, %v8093
        %v8150 = vpack.c.b16 %v8102, %v8098
        %v8151 = vpack.c.b16 %v8103, %v8099
        %v8152 = vpack.c.b16 %v8104, %v8100
        %v8153 = vpack.c.b16 %v8105, %v8101
        %v8154 = vpack.c.b16 %v8110, %v8106
        %v8155 = vpack.c.b16 %v8111, %v8107
        %v8156 = vpack.c.b16 %v8112, %v8108
        %v8157 = vpack.c.b16 %v8113, %v8109
        %v8158 = vpack.c.b16 %v8118, %v8114
        %v8159 = vpack.c.b16 %v8119, %v8115
        %v8160 = vpack.c.b16 %v8120, %v8116
        %v8161 = vpack.c.b16 %v8121, %v8117
        %v8162 = vpack.c.b16 %v8126, %v8122
        %v8163 = vpack.c.b16 %v8127, %v8123
        %v8164 = vpack.c.b16 %v8128, %v8124
        %v8165 = vpack.c.b16 %v8129, %v8125
        %v8166 = vpack.c.b16 %v8134, %v8130
        %v8167 = vpack.c.b16 %v8135, %v8131
        %v8168 = vpack.c.b16 %v8136, %v8132
        %v8169 = vpack.c.b16 %v8137, %v8133
        %8202 = vmatprep.subr.bf16.mxu0 %v8139
        %8203 = vmatpush1.bf16.msra.mxu0 %v8138
        %8204 = vmatprep.subr.bf16.mxu0 %v8143
        %8205 = vmatpush1.bf16.msra.mxu0 %v8142
        %8206 = vmatprep.subr.bf16.mxu0 %v8147
        %8207 = vmatpush1.bf16.msra.mxu0 %v8146
        %8208 = vmatprep.subr.bf16.mxu0 %v8151
        %8209 = vmatpush1.bf16.msra.mxu0 %v8150
        %8210 = vmatprep.subr.bf16.mxu0 %v8155
        %8211 = vmatpush1.bf16.msra.mxu0 %v8154
        %8212 = vmatprep.subr.bf16.mxu0 %v8159
        %8213 = vmatpush1.bf16.msra.mxu0 %v8158
        %8214 = vmatprep.subr.bf16.mxu0 %v8163
        %8215 = vmatpush1.bf16.msra.mxu0 %v8162
        %8216 = vmatprep.subr.bf16.mxu0 %v8167
        %8217 = vmatpush1.bf16.msra.mxu0 %v8166
        %8218 = vmatprep.subr.bf16.mxu0 0
        %8219 = vmatpush1.bf16.msra.mxu0 0
        %8220 = vmatprep.subr.bf16.mxu0 0
        %8221 = vmatpush1.bf16.msra.mxu0 0
        %8222 = vmatprep.subr.bf16.mxu0 0
        %8223 = vmatpush1.bf16.msra.mxu0 0
        %8224 = vmatprep.subr.bf16.mxu0 0
        %8225 = vmatpush1.bf16.msra.mxu0 0
        %8226 = vmatprep.subr.bf16.mxu0 0
        %8227 = vmatpush1.bf16.msra.mxu0 0
        %8228 = vmatprep.subr.bf16.mxu0 0
        %8229 = vmatpush1.bf16.msra.mxu0 0
        %8230 = vmatprep.subr.bf16.mxu0 0
        %8231 = vmatpush1.bf16.msra.mxu0 0
        %8232 = vmatprep.subr.bf16.mxu0 0
        %8233 = vmatpush1.bf16.msra.mxu0 0
        %8234 = vmatprep.mubr.bf16.mxu0 0
        %8235 = vmatmul.mubr.bf16.gmra.mrb[0].mxu0 %v7980
        %v8236 = vpop.f32.mrb[0].mxu0
        %v8237 = vadd.f32 %v8025, %v8236
        %v8238 = vpop.f32.mrb[0].mxu0
        %v8239 = vadd.f32 %v8029, %v8238
        %v8240 = vpop.f32.mrb[0].mxu0
        %v8241 = vadd.f32 %v8025, %v8240
        %v8242 = vpop.f32.mrb[0].mxu0
        %v8243 = vadd.f32 %v8029, %v8242
        %8244 = vmatprep.mubr.bf16.mxu0 0
        %8245 = vmatmul.mubr.bf16.gmra.mrb[0].mxu0 %v7981
        %v8246 = vpop.f32.mrb[0].mxu0
        %v8247 = vadd.f32 %v8025, %v8246
        %v8248 = vpop.f32.mrb[0].mxu0
        %v8249 = vadd.f32 %v8029, %v8248
        %v8250 = vpop.f32.mrb[0].mxu0
        %v8251 = vadd.f32 %v8025, %v8250
        %v8252 = vpop.f32.mrb[0].mxu0
        %v8253 = vadd.f32 %v8029, %v8252
        %8254 = vmatprep.mubr.bf16.mxu0 0
        %8255 = vmatmul.mubr.bf16.gmra.mrb[0].mxu0 %v7982
        %v8256 = vpop.f32.mrb[0].mxu0
        %v8257 = vadd.f32 %v8025, %v8256
        %v8258 = vpop.f32.mrb[0].mxu0
        %v8259 = vadd.f32 %v8029, %v8258
        %v8260 = vpop.f32.mrb[0].mxu0
        %v8261 = vadd.f32 %v8025, %v8260
        %v8262 = vpop.f32.mrb[0].mxu0
        %v8263 = vadd.f32 %v8029, %v8262
        %8264 = vmatprep.mubr.bf16.mxu0 0
        %8265 = vmatmul.mubr.bf16.gmra.mrb[0].mxu0 %v7983
        %v8266 = vpop.f32.mrb[0].mxu0
        %v8267 = vadd.f32 %v8025, %v8266
        %v8268 = vpop.f32.mrb[0].mxu0
        %v8269 = vadd.f32 %v8029, %v8268
        %v8270 = vpop.f32.mrb[0].mxu0
        %v8271 = vadd.f32 %v8025, %v8270
        %v8272 = vpop.f32.mrb[0].mxu0
        %v8273 = vadd.f32 %v8029, %v8272
        %8274 = vmatprep.mubr.bf16.mxu0 0
        %8275 = vmatmul.mubr.bf16.gmra.mrb[0].mxu0 %v7984
        %v8276 = vpop.f32.mrb[0].mxu0
        %v8277 = vadd.f32 %v8025, %v8276
        %v8278 = vpop.f32.mrb[0].mxu0
        %v8279 = vadd.f32 %v8029, %v8278
        %v8280 = vpop.f32.mrb[0].mxu0
        %v8281 = vadd.f32 %v8025, %v8280
        %v8282 = vpop.f32.mrb[0].mxu0
        %v8283 = vadd.f32 %v8029, %v8282
        %8284 = vmatprep.mubr.bf16.mxu0 0
        %8285 = vmatmul.mubr.bf16.gmra.mrb[0].mxu0 %v7985
        %v8286 = vpop.f32.mrb[0].mxu0
        %v8287 = vadd.f32 %v8025, %v8286
        %v8288 = vpop.f32.mrb[0].mxu0
        %v8289 = vadd.f32 %v8029, %v8288
        %v8290 = vpop.f32.mrb[0].mxu0
        %v8291 = vadd.f32 %v8025, %v8290
        %v8292 = vpop.f32.mrb[0].mxu0
        %v8293 = vadd.f32 %v8029, %v8292
        %8294 = vmatprep.mubr.bf16.mxu0 0
        %8295 = vmatmul.mubr.bf16.gmra.mrb[0].mxu0 %v7986
        %v8296 = vpop.f32.mrb[0].mxu0
        %v8297 = vadd.f32 %v8025, %v8296
        %v8298 = vpop.f32.mrb[0].mxu0
        %v8299 = vadd.f32 %v8029, %v8298
        %v8300 = vpop.f32.mrb[0].mxu0
        %v8301 = vadd.f32 %v8025, %v8300
        %v8302 = vpop.f32.mrb[0].mxu0
        %v8303 = vadd.f32 %v8029, %v8302
        %8304 = vmatprep.mubr.bf16.mxu0 0
        %8305 = vmatmul.mubr.bf16.gmra.mrb[0].mxu0 %v7987
        %v8306 = vpop.f32.mrb[0].mxu0
        %v8307 = vadd.f32 %v8025, %v8306
        %v8308 = vpop.f32.mrb[0].mxu0
        %v8309 = vadd.f32 %v8029, %v8308
        %v8310 = vpop.f32.mrb[0].mxu0
        %v8311 = vadd.f32 %v8025, %v8310
        %v8312 = vpop.f32.mrb[0].mxu0
        %v8313 = vadd.f32 %v8029, %v8312
        %8314 = vdwg.mxu0
        %8315 = vmatprep.subr.bf16.mxu0 %v8141
        %8316 = vmatpush1.bf16.msra.mxu0 %v8140
        %8317 = vmatprep.subr.bf16.mxu0 %v8145
        %8318 = vmatpush1.bf16.msra.mxu0 %v8144
        %8319 = vmatprep.subr.bf16.mxu0 %v8149
        %8320 = vmatpush1.bf16.msra.mxu0 %v8148
        %8321 = vmatprep.subr.bf16.mxu0 %v8153
        %8322 = vmatpush1.bf16.msra.mxu0 %v8152
        %8323 = vmatprep.subr.bf16.mxu0 %v8157
        %8324 = vmatpush1.bf16.msra.mxu0 %v8156
        %8325 = vmatprep.subr.bf16.mxu0 %v8161
        %8326 = vmatpush1.bf16.msra.mxu0 %v8160
        %8327 = vmatprep.subr.bf16.mxu0 %v8165
        %8328 = vmatpush1.bf16.msra.mxu0 %v8164
        %8329 = vmatprep.subr.bf16.mxu0 %v8169
        %8330 = vmatpush1.bf16.msra.mxu0 %v8168
        %8331 = vmatprep.subr.bf16.mxu0 0
        %8332 = vmatpush1.bf16.msra.mxu0 0
        %8333 = vmatprep.subr.bf16.mxu0 0
        %8334 = vmatpush1.bf16.msra.mxu0 0
        %8335 = vmatprep.subr.bf16.mxu0 0
        %8336 = vmatpush1.bf16.msra.mxu0 0
        %8337 = vmatprep.subr.bf16.mxu0 0
        %8338 = vmatpush1.bf16.msra.mxu0 0
        %8339 = vmatprep.subr.bf16.mxu0 0
        %8340 = vmatpush1.bf16.msra.mxu0 0
        %8341 = vmatprep.subr.bf16.mxu0 0
        %8342 = vmatpush1.bf16.msra.mxu0 0
        %8343 = vmatprep.subr.bf16.mxu0 0
        %8344 = vmatpush1.bf16.msra.mxu0 0
        %8345 = vmatprep.subr.bf16.mxu0 0
        %8346 = vmatpush1.bf16.msra.mxu0 0
        %8347 = vmatprep.mubr.bf16.mxu0 0
        %8348 = vmatmul.mubr.bf16.gmra.mrb[0].mxu0 %v7980
        %v8349 = vpop.f32.mrb[0].mxu0
        %v8350 = vadd.f32 %v8033, %v8349
        %v8351 = vpop.f32.mrb[0].mxu0
        %v8352 = vadd.f32 %v8037, %v8351
        %v8353 = vpop.f32.mrb[0].mxu0
        %v8354 = vadd.f32 %v8033, %v8353
        %v8355 = vpop.f32.mrb[0].mxu0
        %v8356 = vadd.f32 %v8037, %v8355
        %8357 = vmatprep.mubr.bf16.mxu0 0
        %8358 = vmatmul.mubr.bf16.gmra.mrb[0].mxu0 %v7981
        %v8359 = vpop.f32.mrb[0].mxu0
        %v8360 = vadd.f32 %v8033, %v8359
        %v8361 = vpop.f32.mrb[0].mxu0
        %v8362 = vadd.f32 %v8037, %v8361
        %v8363 = vpop.f32.mrb[0].mxu0
        %v8364 = vadd.f32 %v8033, %v8363
        %v8365 = vpop.f32.mrb[0].mxu0
        %v8366 = vadd.f32 %v8037, %v8365
        %8367 = vmatprep.mubr.bf16.mxu0 0
        %8368 = vmatmul.mubr.bf16.gmra.mrb[0].mxu0 %v7982
        %v8369 = vpop.f32.mrb[0].mxu0
        %v8370 = vadd.f32 %v8033, %v8369
        %v8371 = vpop.f32.mrb[0].mxu0
        %v8372 = vadd.f32 %v8037, %v8371
        %v8373 = vpop.f32.mrb[0].mxu0
        %v8374 = vadd.f32 %v8033, %v8373
        %v8375 = vpop.f32.mrb[0].mxu0
        %v8376 = vadd.f32 %v8037, %v8375
        %8377 = vmatprep.mubr.bf16.mxu0 0
        %8378 = vmatmul.mubr.bf16.gmra.mrb[0].mxu0 %v7983
        %v8379 = vpop.f32.mrb[0].mxu0
        %v8380 = vadd.f32 %v8033, %v8379
        %v8381 = vpop.f32.mrb[0].mxu0
        %v8382 = vadd.f32 %v8037, %v8381
        %v8383 = vpop.f32.mrb[0].mxu0
        %v8384 = vadd.f32 %v8033, %v8383
        %v8385 = vpop.f32.mrb[0].mxu0
        %v8386 = vadd.f32 %v8037, %v8385
        %8387 = vmatprep.mubr.bf16.mxu0 0
        %8388 = vmatmul.mubr.bf16.gmra.mrb[0].mxu0 %v7984
        %v8389 = vpop.f32.mrb[0].mxu0
        %v8390 = vadd.f32 %v8033, %v8389
        %v8391 = vpop.f32.mrb[0].mxu0
        %v8392 = vadd.f32 %v8037, %v8391
        %v8393 = vpop.f32.mrb[0].mxu0
        %v8394 = vadd.f32 %v8033, %v8393
        %v8395 = vpop.f32.mrb[0].mxu0
        %v8396 = vadd.f32 %v8037, %v8395
        %8397 = vmatprep.mubr.bf16.mxu0 0
        %8398 = vmatmul.mubr.bf16.gmra.mrb[0].mxu0 %v7985
        %v8399 = vpop.f32.mrb[0].mxu0
        %v8400 = vadd.f32 %v8033, %v8399
        %v8401 = vpop.f32.mrb[0].mxu0
        %v8402 = vadd.f32 %v8037, %v8401
        %v8403 = vpop.f32.mrb[0].mxu0
        %v8404 = vadd.f32 %v8033, %v8403
        %v8405 = vpop.f32.mrb[0].mxu0
        %v8406 = vadd.f32 %v8037, %v8405
        %8407 = vmatprep.mubr.bf16.mxu0 0
        %8408 = vmatmul.mubr.bf16.gmra.mrb[0].mxu0 %v7986
        %v8409 = vpop.f32.mrb[0].mxu0
        %v8410 = vadd.f32 %v8033, %v8409
        %v8411 = vpop.f32.mrb[0].mxu0
        %v8412 = vadd.f32 %v8037, %v8411
        %v8413 = vpop.f32.mrb[0].mxu0
        %v8414 = vadd.f32 %v8033, %v8413
        %v8415 = vpop.f32.mrb[0].mxu0
        %v8416 = vadd.f32 %v8037, %v8415
        %8417 = vmatprep.mubr.bf16.mxu0 0
        %8418 = vmatmul.mubr.bf16.gmra.mrb[0].mxu0 %v7987
        %v8419 = vpop.f32.mrb[0].mxu0
        %v8420 = vadd.f32 %v8033, %v8419
        %v8421 = vpop.f32.mrb[0].mxu0
        %v8422 = vadd.f32 %v8037, %v8421
        %v8423 = vpop.f32.mrb[0].mxu0
        %v8424 = vadd.f32 %v8033, %v8423
        %v8425 = vpop.f32.mrb[0].mxu0
        %v8426 = vadd.f32 %v8037, %v8425
        %8427 = vdwg.mxu0
        %v8428 = vunpack.c.l.bf16 %v4703
        %v8429 = vunpack.c.l.bf16 %v4704
        %v8430 = vunpack.c.l.bf16 %v4705
        %v8431 = vunpack.c.l.bf16 %v4706
        %v8432 = vunpack.c.h.bf16 %v4703
        %v8433 = vunpack.c.h.bf16 %v4704
        %v8434 = vunpack.c.h.bf16 %v4705
        %v8435 = vunpack.c.h.bf16 %v4706
        %v8436 = vunpack.c.l.bf16 %v4707
        %v8437 = vunpack.c.l.bf16 %v4708
        %v8438 = vunpack.c.l.bf16 %v4709
        %v8439 = vunpack.c.l.bf16 %v4710
        %v8440 = vunpack.c.h.bf16 %v4707
        %v8441 = vunpack.c.h.bf16 %v4708
        %v8442 = vunpack.c.h.bf16 %v4709
        %v8443 = vunpack.c.h.bf16 %v4710
        %v8444 = vunpack.c.l.bf16 %v4711
        %v8445 = vunpack.c.l.bf16 %v4712
        %v8446 = vunpack.c.l.bf16 %v4713
        %v8447 = vunpack.c.l.bf16 %v4714
        %v8448 = vunpack.c.h.bf16 %v4711
        %v8449 = vunpack.c.h.bf16 %v4712
        %v8450 = vunpack.c.h.bf16 %v4713
        %v8451 = vunpack.c.h.bf16 %v4714
        %v8452 = vunpack.c.l.bf16 %v4715
        %v8453 = vunpack.c.l.bf16 %v4716
        %v8454 = vunpack.c.l.bf16 %v4717
        %v8455 = vunpack.c.l.bf16 %v4718
        %v8456 = vunpack.c.h.bf16 %v4715
        %v8457 = vunpack.c.h.bf16 %v4716
        %v8458 = vunpack.c.h.bf16 %v4717
        %v8459 = vunpack.c.h.bf16 %v4718
        %v8460 = vunpack.c.l.bf16 %v4719
        %v8461 = vunpack.c.l.bf16 %v4720
        %v8462 = vunpack.c.l.bf16 %v4721
        %v8463 = vunpack.c.l.bf16 %v4722
        %v8464 = vunpack.c.h.bf16 %v4719
        %v8465 = vunpack.c.h.bf16 %v4720
        %v8466 = vunpack.c.h.bf16 %v4721
        %v8467 = vunpack.c.h.bf16 %v4722
        %v8468 = vunpack.c.l.bf16 %v4723
        %v8469 = vunpack.c.l.bf16 %v4724
        %v8470 = vunpack.c.l.bf16 %v4725
        %v8471 = vunpack.c.l.bf16 %v4726
        %v8472 = vunpack.c.h.bf16 %v4723
        %v8473 = vunpack.c.h.bf16 %v4724
        %v8474 = vunpack.c.h.bf16 %v4725
        %v8475 = vunpack.c.h.bf16 %v4726
        %v8476 = vunpack.c.l.bf16 %v4727
        %v8477 = vunpack.c.l.bf16 %v4728
        %v8478 = vunpack.c.l.bf16 %v4729
        %v8479 = vunpack.c.l.bf16 %v4730
        %v8480 = vunpack.c.h.bf16 %v4727
        %v8481 = vunpack.c.h.bf16 %v4728
        %v8482 = vunpack.c.h.bf16 %v4729
        %v8483 = vunpack.c.h.bf16 %v4730
        %v8484 = vunpack.c.l.bf16 %v4731
        %v8485 = vunpack.c.l.bf16 %v4732
        %v8486 = vunpack.c.l.bf16 %v4733
        %v8487 = vunpack.c.l.bf16 %v4734
        %v8488 = vunpack.c.h.bf16 %v4731
        %v8489 = vunpack.c.h.bf16 %v4732
        %v8490 = vunpack.c.h.bf16 %v4733
        %v8491 = vunpack.c.h.bf16 %v4734
        %v8492 = vadd.f32 %v8237, %v8428
        %v8493 = vadd.f32 %v8239, %v8429
        %v8494 = vadd.f32 %v8350, %v8430
        %v8495 = vadd.f32 %v8352, %v8431
        %v8496 = vadd.f32 %v8241, %v8432
        %v8497 = vadd.f32 %v8243, %v8433
        %v8498 = vadd.f32 %v8354, %v8434
        %v8499 = vadd.f32 %v8356, %v8435
        %v8500 = vadd.f32 %v8247, %v8436
        %v8501 = vadd.f32 %v8249, %v8437
        %v8502 = vadd.f32 %v8360, %v8438
        %v8503 = vadd.f32 %v8362, %v8439
        %v8504 = vadd.f32 %v8251, %v8440
        %v8505 = vadd.f32 %v8253, %v8441
        %v8506 = vadd.f32 %v8364, %v8442
        %v8507 = vadd.f32 %v8366, %v8443
        %v8508 = vadd.f32 %v8257, %v8444
        %v8509 = vadd.f32 %v8259, %v8445
        %v8510 = vadd.f32 %v8370, %v8446
        %v8511 = vadd.f32 %v8372, %v8447
        %v8512 = vadd.f32 %v8261, %v8448
        %v8513 = vadd.f32 %v8263, %v8449
        %v8514 = vadd.f32 %v8374, %v8450
        %v8515 = vadd.f32 %v8376, %v8451
        %v8516 = vadd.f32 %v8267, %v8452
        %v8517 = vadd.f32 %v8269, %v8453
        %v8518 = vadd.f32 %v8380, %v8454
        %v8519 = vadd.f32 %v8382, %v8455
        %v8520 = vadd.f32 %v8271, %v8456
        %v8521 = vadd.f32 %v8273, %v8457
        %v8522 = vadd.f32 %v8384, %v8458
        %v8523 = vadd.f32 %v8386, %v8459
        %v8524 = vadd.f32 %v8277, %v8460
        %v8525 = vadd.f32 %v8279, %v8461
        %v8526 = vadd.f32 %v8390, %v8462
        %v8527 = vadd.f32 %v8392, %v8463
        %v8528 = vadd.f32 %v8281, %v8464
        %v8529 = vadd.f32 %v8283, %v8465
        %v8530 = vadd.f32 %v8394, %v8466
        %v8531 = vadd.f32 %v8396, %v8467
        %v8532 = vadd.f32 %v8287, %v8468
        %v8533 = vadd.f32 %v8289, %v8469
        %v8534 = vadd.f32 %v8400, %v8470
        %v8535 = vadd.f32 %v8402, %v8471
        %v8536 = vadd.f32 %v8291, %v8472
        %v8537 = vadd.f32 %v8293, %v8473
        %v8538 = vadd.f32 %v8404, %v8474
        %v8539 = vadd.f32 %v8406, %v8475
        %v8540 = vadd.f32 %v8297, %v8476
        %v8541 = vadd.f32 %v8299, %v8477
        %v8542 = vadd.f32 %v8410, %v8478
        %v8543 = vadd.f32 %v8412, %v8479
        %v8544 = vadd.f32 %v8301, %v8480
        %v8545 = vadd.f32 %v8303, %v8481
        %v8546 = vadd.f32 %v8414, %v8482
        %v8547 = vadd.f32 %v8416, %v8483
        %v8548 = vadd.f32 %v8307, %v8484
        %v8549 = vadd.f32 %v8309, %v8485
        %v8550 = vadd.f32 %v8420, %v8486
        %v8551 = vadd.f32 %v8422, %v8487
        %v8552 = vadd.f32 %v8311, %v8488
        %v8553 = vadd.f32 %v8313, %v8489
        %v8554 = vadd.f32 %v8424, %v8490
        %v8555 = vadd.f32 %v8426, %v8491
        %v8556 = vmax.f32 %v8492, 0.0
        %v8557 = vmax.f32 %v8493, 0.0
        %v8558 = vmax.f32 %v8494, 0.0
        %v8559 = vmax.f32 %v8495, 0.0
        %v8560 = vmax.f32 %v8496, 0.0
        %v8561 = vmax.f32 %v8497, 0.0
        %v8562 = vmax.f32 %v8498, 0.0
        %v8563 = vmax.f32 %v8499, 0.0
        %v8564 = vmax.f32 %v8500, 0.0
        %v8565 = vmax.f32 %v8501, 0.0
        %v8566 = vmax.f32 %v8502, 0.0
        %v8567 = vmax.f32 %v8503, 0.0
        %v8568 = vmax.f32 %v8504, 0.0
        %v8569 = vmax.f32 %v8505, 0.0
        %v8570 = vmax.f32 %v8506, 0.0
        %v8571 = vmax.f32 %v8507, 0.0
        %v8572 = vmax.f32 %v8508, 0.0
        %v8573 = vmax.f32 %v8509, 0.0
        %v8574 = vmax.f32 %v8510, 0.0
        %v8575 = vmax.f32 %v8511, 0.0
        %v8576 = vmax.f32 %v8512, 0.0
        %v8577 = vmax.f32 %v8513, 0.0
        %v8578 = vmax.f32 %v8514, 0.0
        %v8579 = vmax.f32 %v8515, 0.0
        %v8580 = vmax.f32 %v8516, 0.0
        %v8581 = vmax.f32 %v8517, 0.0
        %v8582 = vmax.f32 %v8518, 0.0
        %v8583 = vmax.f32 %v8519, 0.0
        %v8584 = vmax.f32 %v8520, 0.0
        %v8585 = vmax.f32 %v8521, 0.0
        %v8586 = vmax.f32 %v8522, 0.0
        %v8587 = vmax.f32 %v8523, 0.0
        %v8588 = vmax.f32 %v8524, 0.0
        %v8589 = vmax.f32 %v8525, 0.0
        %v8590 = vmax.f32 %v8526, 0.0
        %v8591 = vmax.f32 %v8527, 0.0
        %v8592 = vmax.f32 %v8528, 0.0
        %v8593 = vmax.f32 %v8529, 0.0
        %v8594 = vmax.f32 %v8530, 0.0
        %v8595 = vmax.f32 %v8531, 0.0
        %v8596 = vmax.f32 %v8532, 0.0
        %v8597 = vmax.f32 %v8533, 0.0
        %v8598 = vmax.f32 %v8534, 0.0
        %v8599 = vmax.f32 %v8535, 0.0
        %v8600 = vmax.f32 %v8536, 0.0
        %v8601 = vmax.f32 %v8537, 0.0
        %v8602 = vmax.f32 %v8538, 0.0
        %v8603 = vmax.f32 %v8539, 0.0
        %v8604 = vmax.f32 %v8540, 0.0
        %v8605 = vmax.f32 %v8541, 0.0
        %v8606 = vmax.f32 %v8542, 0.0
        %v8607 = vmax.f32 %v8543, 0.0
        %v8608 = vmax.f32 %v8544, 0.0
        %v8609 = vmax.f32 %v8545, 0.0
        %v8610 = vmax.f32 %v8546, 0.0
        %v8611 = vmax.f32 %v8547, 0.0
        %v8612 = vmax.f32 %v8548, 0.0
        %v8613 = vmax.f32 %v8549, 0.0
        %v8614 = vmax.f32 %v8550, 0.0
        %v8615 = vmax.f32 %v8551, 0.0
        %v8616 = vmax.f32 %v8552, 0.0
        %v8617 = vmax.f32 %v8553, 0.0
        %v8618 = vmax.f32 %v8554, 0.0
        %v8619 = vmax.f32 %v8555, 0.0
        %v8620 = vpack.c.bf16 %v8560, %v8556
        %v8621 = vpack.c.bf16 %v8561, %v8557
        %v8622 = vpack.c.bf16 %v8562, %v8558
        %v8623 = vpack.c.bf16 %v8563, %v8559
        %v8624 = vpack.c.bf16 %v8568, %v8564
        %v8625 = vpack.c.bf16 %v8569, %v8565
        %v8626 = vpack.c.bf16 %v8570, %v8566
        %v8627 = vpack.c.bf16 %v8571, %v8567
        %v8628 = vpack.c.bf16 %v8576, %v8572
        %v8629 = vpack.c.bf16 %v8577, %v8573
        %v8630 = vpack.c.bf16 %v8578, %v8574
        %v8631 = vpack.c.bf16 %v8579, %v8575
        %v8632 = vpack.c.bf16 %v8584, %v8580
        %v8633 = vpack.c.bf16 %v8585, %v8581
        %v8634 = vpack.c.bf16 %v8586, %v8582
        %v8635 = vpack.c.bf16 %v8587, %v8583
        %v8636 = vpack.c.bf16 %v8592, %v8588
        %v8637 = vpack.c.bf16 %v8593, %v8589
        %v8638 = vpack.c.bf16 %v8594, %v8590
        %v8639 = vpack.c.bf16 %v8595, %v8591
        %v8640 = vpack.c.bf16 %v8600, %v8596
        %v8641 = vpack.c.bf16 %v8601, %v8597
        %v8642 = vpack.c.bf16 %v8602, %v8598
        %v8643 = vpack.c.bf16 %v8603, %v8599
        %v8644 = vpack.c.bf16 %v8608, %v8604
        %v8645 = vpack.c.bf16 %v8609, %v8605
        %v8646 = vpack.c.bf16 %v8610, %v8606
        %v8647 = vpack.c.bf16 %v8611, %v8607
        %v8648 = vpack.c.bf16 %v8616, %v8612
        %v8649 = vpack.c.bf16 %v8617, %v8613
        %v8650 = vpack.c.bf16 %v8618, %v8614
        %v8651 = vpack.c.bf16 %v8619, %v8615
        %v8684 = vunpack.c.l.b16 %v8620
        %v8685 = vunpack.c.l.b16 %v8621
        %v8686 = vunpack.c.l.b16 %v8622
        %v8687 = vunpack.c.l.b16 %v8623
        %v8688 = vunpack.c.h.b16 %v8620
        %v8689 = vunpack.c.h.b16 %v8621
        %v8690 = vunpack.c.h.b16 %v8622
        %v8691 = vunpack.c.h.b16 %v8623
        %v8692 = vunpack.c.l.b16 %v8624
        %v8693 = vunpack.c.l.b16 %v8625
        %v8694 = vunpack.c.l.b16 %v8626
        %v8695 = vunpack.c.l.b16 %v8627
        %v8696 = vunpack.c.h.b16 %v8624
        %v8697 = vunpack.c.h.b16 %v8625
        %v8698 = vunpack.c.h.b16 %v8626
        %v8699 = vunpack.c.h.b16 %v8627
        %v8700 = vunpack.c.l.b16 %v8628
        %v8701 = vunpack.c.l.b16 %v8629
        %v8702 = vunpack.c.l.b16 %v8630
        %v8703 = vunpack.c.l.b16 %v8631
        %v8704 = vunpack.c.h.b16 %v8628
        %v8705 = vunpack.c.h.b16 %v8629
        %v8706 = vunpack.c.h.b16 %v8630
        %v8707 = vunpack.c.h.b16 %v8631
        %v8708 = vunpack.c.l.b16 %v8632
        %v8709 = vunpack.c.l.b16 %v8633
        %v8710 = vunpack.c.l.b16 %v8634
        %v8711 = vunpack.c.l.b16 %v8635
        %v8712 = vunpack.c.h.b16 %v8632
        %v8713 = vunpack.c.h.b16 %v8633
        %v8714 = vunpack.c.h.b16 %v8634
        %v8715 = vunpack.c.h.b16 %v8635
        %v8716 = vunpack.c.l.b16 %v8636
        %v8717 = vunpack.c.l.b16 %v8637
        %v8718 = vunpack.c.l.b16 %v8638
        %v8719 = vunpack.c.l.b16 %v8639
        %v8720 = vunpack.c.h.b16 %v8636
        %v8721 = vunpack.c.h.b16 %v8637
        %v8722 = vunpack.c.h.b16 %v8638
        %v8723 = vunpack.c.h.b16 %v8639
        %v8724 = vunpack.c.l.b16 %v8640
        %v8725 = vunpack.c.l.b16 %v8641
        %v8726 = vunpack.c.l.b16 %v8642
        %v8727 = vunpack.c.l.b16 %v8643
        %v8728 = vunpack.c.h.b16 %v8640
        %v8729 = vunpack.c.h.b16 %v8641
        %v8730 = vunpack.c.h.b16 %v8642
        %v8731 = vunpack.c.h.b16 %v8643
        %v8732 = vunpack.c.l.b16 %v8644
        %v8733 = vunpack.c.l.b16 %v8645
        %v8734 = vunpack.c.l.b16 %v8646
        %v8735 = vunpack.c.l.b16 %v8647
        %v8736 = vunpack.c.h.b16 %v8644
        %v8737 = vunpack.c.h.b16 %v8645
        %v8738 = vunpack.c.h.b16 %v8646
        %v8739 = vunpack.c.h.b16 %v8647
        %v8740 = vunpack.c.l.b16 %v8648
        %v8741 = vunpack.c.l.b16 %v8649
        %v8742 = vunpack.c.l.b16 %v8650
        %v8743 = vunpack.c.l.b16 %v8651
        %v8744 = vunpack.c.h.b16 %v8648
        %v8745 = vunpack.c.h.b16 %v8649
        %v8746 = vunpack.c.h.b16 %v8650
        %v8747 = vunpack.c.h.b16 %v8651
        %v8748 = vpack.c.b16 %v8685, %v8684
        %v8749 = vpack.c.b16 %v8687, %v8686
        %v8750 = vpack.c.b16 %v8689, %v8688
        %v8751 = vpack.c.b16 %v8691, %v8690
        %v8752 = vpack.c.b16 %v8693, %v8692
        %v8753 = vpack.c.b16 %v8695, %v8694
        %v8754 = vpack.c.b16 %v8697, %v8696
        %v8755 = vpack.c.b16 %v8699, %v8698
        %v8756 = vpack.c.b16 %v8701, %v8700
        %v8757 = vpack.c.b16 %v8703, %v8702
        %v8758 = vpack.c.b16 %v8705, %v8704
        %v8759 = vpack.c.b16 %v8707, %v8706
        %v8760 = vpack.c.b16 %v8709, %v8708
        %v8761 = vpack.c.b16 %v8711, %v8710
        %v8762 = vpack.c.b16 %v8713, %v8712
        %v8763 = vpack.c.b16 %v8715, %v8714
        %v8764 = vpack.c.b16 %v8717, %v8716
        %v8765 = vpack.c.b16 %v8719, %v8718
        %v8766 = vpack.c.b16 %v8721, %v8720
        %v8767 = vpack.c.b16 %v8723, %v8722
        %v8768 = vpack.c.b16 %v8725, %v8724
        %v8769 = vpack.c.b16 %v8727, %v8726
        %v8770 = vpack.c.b16 %v8729, %v8728
        %v8771 = vpack.c.b16 %v8731, %v8730
        %v8772 = vpack.c.b16 %v8733, %v8732
        %v8773 = vpack.c.b16 %v8735, %v8734
        %v8774 = vpack.c.b16 %v8737, %v8736
        %v8775 = vpack.c.b16 %v8739, %v8738
        %v8776 = vpack.c.b16 %v8741, %v8740
        %v8777 = vpack.c.b16 %v8743, %v8742
        %v8778 = vpack.c.b16 %v8745, %v8744
        %v8779 = vpack.c.b16 %v8747, %v8746
        %8812 = vst [vmem:[%s462] sm:$0xff] %v8748
        %8813 = vst [vmem:[%s462 + $0x8] sm:$0xff] %v8749
        %8814 = vst [vmem:[%s462 + $0x10] sm:$0xff] %v8750
        %8815 = vst [vmem:[%s462 + $0x18] sm:$0xff] %v8751
        %8816 = vst [vmem:[%s462 + $0x20] sm:$0xff] %v8752
        %8817 = vst [vmem:[%s462 + $0x28] sm:$0xff] %v8753
        %8818 = vst [vmem:[%s462 + $0x30] sm:$0xff] %v8754
        %8819 = vst [vmem:[%s462 + $0x38] sm:$0xff] %v8755
        %8820 = vst [vmem:[%s462 + $0x40] sm:$0xff] %v8756
        %8821 = vst [vmem:[%s462 + $0x48] sm:$0xff] %v8757
        %8822 = vst [vmem:[%s462 + $0x50] sm:$0xff] %v8758
        %8823 = vst [vmem:[%s462 + $0x58] sm:$0xff] %v8759
        %8824 = vst [vmem:[%s462 + $0x60] sm:$0xff] %v8760
        %8825 = vst [vmem:[%s462 + $0x68] sm:$0xff] %v8761
        %8826 = vst [vmem:[%s462 + $0x70] sm:$0xff] %v8762
        %8827 = vst [vmem:[%s462 + $0x78] sm:$0xff] %v8763
        %8828 = vst [vmem:[%s462 + $0x80] sm:$0xff] %v8764
        %8829 = vst [vmem:[%s462 + $0x88] sm:$0xff] %v8765
        %8830 = vst [vmem:[%s462 + $0x90] sm:$0xff] %v8766
        %8831 = vst [vmem:[%s462 + $0x98] sm:$0xff] %v8767
        %8832 = vst [vmem:[%s462 + $0xa0] sm:$0xff] %v8768
        %8833 = vst [vmem:[%s462 + $0xa8] sm:$0xff] %v8769
        %8834 = vst [vmem:[%s462 + $0xb0] sm:$0xff] %v8770
        %8835 = vst [vmem:[%s462 + $0xb8] sm:$0xff] %v8771
        %8836 = vst [vmem:[%s462 + $0xc0] sm:$0xff] %v8772
        %8837 = vst [vmem:[%s462 + $0xc8] sm:$0xff] %v8773
        %8838 = vst [vmem:[%s462 + $0xd0] sm:$0xff] %v8774
        %8839 = vst [vmem:[%s462 + $0xd8] sm:$0xff] %v8775
        %8840 = vst [vmem:[%s462 + $0xe0] sm:$0xff] %v8776
        %8841 = vst [vmem:[%s462 + $0xe8] sm:$0xff] %v8777
        %8842 = vst [vmem:[%s462 + $0xf0] sm:$0xff] %v8778
        %8843 = vst [vmem:[%s462 + $0xf8] sm:$0xff] %v8779
        %s8844 = smul.u32 2, %s25
        %p8845 = scmp.lt.s32.totalorder %s8844, 3
        %s8846 = scalar_select %p8845, %s8844, 3
        %s8847 = smul.addr %s8846, 32
        %s8848 = smul.addr %s8847, 4
        %s8849 = scalar_lea.vmem %s13, %s8848
        // Predicated region
        $region77: #{resnet50_start_at_layer4_1.1} parent=71 // pred_check
          %p8850 = pneg %p321
        $region78: #{resnet50_start_at_layer4_1.1} parent=71 // pred_check_branch
          %8852 = sbr.rel (%p8850) target = $region80
        $region79: #{resnet50_start_at_layer4_1.1} parent=71 // pred_region
          %s8853 = smul.u32 2, %s25
        $region80: #{resnet50_start_at_layer4_1.1} parent=71 // pred_fallthru
          _
      $region72: #{resnet50_start_at_layer4_1.1} parent=5 // pred_fallthru
        _
      %p8854 = scmp.le.s32.totalorder 2, %s20
      // Predicated region
      $region81: #{resnet50_start_at_layer4_1.1} parent=5 // pred_check
        %p8855 = pneg %p8854
      $region82: #{resnet50_start_at_layer4_1.1} parent=5 // pred_check_branch
        %8857 = sbr.rel (%p8855) target = $region84
      $region83: #{resnet50_start_at_layer4_1.1} parent=5 // pred_region
        %s8858 = ssub.s32 %s20, 2
        // Predicated region
        $region85: #{resnet50_start_at_layer4_1.1} parent=83 // pred_check
          %p8859 = pneg %p327
        $region86: #{resnet50_start_at_layer4_1.1} parent=83 // pred_check_branch
          %8861 = sbr.rel (%p8859) target = $region88
        $region87: #{resnet50_start_at_layer4_1.1} parent=83 // pred_region
          %s8862 = smul.u32 2, %s26
          %p8863 = scmp.lt.s32.totalorder %s8862, 3
          %s8864 = scalar_select %p8863, %s8862, 3
          %s8865 = smul.addr %s8864, 32
          %s8866 = smul.addr %s8865, 4
          %s8867 = scalar_lea.vmem %s13, %s8866
        $region88: #{resnet50_start_at_layer4_1.1} parent=83 // pred_fallthru
          _
      $region84: #{resnet50_start_at_layer4_1.1} parent=5 // pred_fallthru
        _
    $region6: #{resnet50_start_at_layer4_1.1} parent=1 // loop_footer
      %s24 = sadd.s32 1, %s20
    $region7: #{resnet50_start_at_layer4_1.1} parent=1 // loop_footer_branch
      %19 = sbr.rel target = $region3
    $region8: #{resnet50_start_at_layer4_1.1} parent=1 // loop_exit
      _
    %8868 = vsyncpa [#allocation5], 1
    %s8869 = scalar_lea.sflag [#allocation5], 1
    %8870 = vsyncpa %s8869, 1

</llo_original>
